<compile_context>
chip_gen: v7x
topology: tpu7x:2x2x1
jax: 0.10.0
libtpu: 0.0.40
codegen_flags: <defaults>
</compile_context>

<pallas_src>
import jax
import jax.numpy as jnp
from jax.experimental import pallas as pl
from jax.experimental.pallas import tpu as pltpu

W1 = 512        # hidden width, matches `w1 = 512` in the PyTorch module
W1H = W1 // 2   # 256

WEIGHT_DTYPE = jnp.bfloat16


def _round_up(x, m):
    return ((x + m - 1) // m) * m


def _ae_kernel(y_ref,
               w1_ref, b1_ref, w2_ref, b2_ref, w3_ref, b3_ref,   # encoder
               w4_ref, b4_ref, w5_ref, b5_ref, w6_ref, b6_ref,   # decoder
               w7_ref, b7_ref,
               yhat_ref, l_ref):
    def dense(x_bf16, w_ref, b_ref):
        # bf16 MXU operands, f32 accumulation; bias add stays f32.
        return jnp.dot(x_bf16, w_ref[...],
                       preferred_element_type=jnp.float32) + b_ref[...]

    def relu_bf16(a_f32):
        # ReLU in f32, then a single cast to bf16 for the next layer's MXU input.
        return jnp.maximum(a_f32, 0.0).astype(WEIGHT_DTYPE)

    # Cast the input tile to bf16 exactly once.
    x = y_ref[...].astype(WEIGHT_DTYPE)

    # ---- encoder ----
    h = relu_bf16(dense(x, w1_ref, b1_ref))        # Linear(dim, 512) + ReLU
    h = relu_bf16(dense(h, w2_ref, b2_ref))        # Linear(512, 256) + ReLU
    l_f32 = jnp.tanh(dense(h, w3_ref, b3_ref))     # Linear(256, bottle) + Tanh
    l_bf16 = l_f32.astype(WEIGHT_DTYPE)

    # ---- decoder ----
    d = relu_bf16(dense(l_bf16, w4_ref, b4_ref))   # Linear(bottle, 256) + ReLU
    d = relu_bf16(dense(d, w5_ref, b5_ref))        # Linear(256, 512) + ReLU
    d = relu_bf16(dense(d, w6_ref, b6_ref))        # Linear(512, 512) + ReLU
    y_hat = dense(d, w7_ref, b7_ref)               # Linear(512, dim), f32

    yhat_ref[...] = y_hat.astype(yhat_ref.dtype)
    l_ref[...] = l_f32.astype(l_ref.dtype)


def autoencoder_forward(y, params, *, block_b=1024):
    """y: (batch, dim) f32.  params: dict of bf16 weights / f32 biases.

    Returns (y_hat, l) with y_hat: (batch, dim), l: (batch, bottle_dim), both f32.
    """
    B, dim = y.shape
    bottle_dim = params["w3"].shape[1]

    # Batch tile selection:
    #  * tiny batches -> one tile, rounded to a multiple of 16 (clean sublane layout,
    #    unmasked stores);
    #  * otherwise a multiple-of-256 tile chosen so there are >= 2 grid steps
    #    (keeps both v7x TensorCores busy under dimension_semantics=("parallel",)).
    if B <= 256:
        tb = _round_up(B, 16)
    else:
        tb = min(_round_up(block_b, 256), _round_up(pl.cdiv(B, 2), 256))
    n_steps = pl.cdiv(B, tb)
    b_pad = n_steps * tb
    if b_pad != B:
        y = jnp.pad(y, ((0, b_pad - B), (0, 0)))

    param_order = ("w1", "b1", "w2", "b2", "w3", "b3",
                   "w4", "b4", "w5", "b5", "w6", "b6", "w7", "b7")
    param_args = tuple(params[k] for k in param_order)

    def act_spec(feat):
        return pl.BlockSpec((tb, feat), lambda i: (i, 0))

    def resident_spec(a):
        # Constant index_map -> block never changes -> fetched once, stays in VMEM.
        # Single-buffer it (no need to double-buffer an operand that never changes).
        index_map = lambda i: tuple(0 for _ in a.shape)
        try:
            return pl.BlockSpec(a.shape, index_map, pipeline_mode=pl.Buffered(1))
        except TypeError:
            return pl.BlockSpec(a.shape, index_map)

    in_specs = [act_spec(dim)] + [resident_spec(a) for a in param_args]
    out_specs = (act_spec(dim), act_spec(bottle_dim))

    flops = 2 * b_pad * (dim * W1 + W1 * W1H + W1H * bottle_dim
                         + bottle_dim * W1H + W1H * W1 + W1 * W1 + W1 * dim)
    weight_bytes = sum(a.size * a.dtype.itemsize for a in param_args)
    bytes_accessed = (y.size * y.dtype.itemsize
                      + weight_bytes
                      + b_pad * (dim + bottle_dim) * 4)
    cost = pl.CostEstimate(flops=flops,
                           transcendentals=b_pad * bottle_dim,   # tanh
                           bytes_accessed=bytes_accessed)

    # Scoped-VMEM budget: double-buffered activation tiles + weights (assume worst
    # case 2 copies) + a rough allowance for live f32 accumulators / bf16 activations.
    tile_io_bytes = 2 * tb * (2 * dim + bottle_dim) * 4
    inter_bytes = 2 * tb * W1 * (4 + 2)
    vmem_needed = tile_io_bytes + 2 * weight_bytes + inter_bytes
    vmem_limit = int(min(64 << 20, max(32 << 20, int(vmem_needed * 1.5))))

    y_hat, l = pl.pallas_call(
        _ae_kernel,
        grid=(n_steps,),
        in_specs=in_specs,
        out_specs=out_specs,
        out_shape=(jax.ShapeDtypeStruct((b_pad, dim), jnp.float32),
                   jax.ShapeDtypeStruct((b_pad, bottle_dim), jnp.float32)),
        compiler_params=pltpu.CompilerParams(
            dimension_semantics=("parallel",),
            vmem_limit_bytes=vmem_limit),
        cost_estimate=cost,
    )(y, *param_args)

    if b_pad != B:
        y_hat = y_hat[:B]
        l = l[:B]
    return y_hat, l


def init_params(key, dim, bottle_dim):
    """Deterministic init. Weights (in, out) in bf16; biases (1, out) in f32."""
    layer_dims = [(dim, W1), (W1, W1H), (W1H, bottle_dim),            # encoder
                  (bottle_dim, W1H), (W1H, W1), (W1, W1), (W1, dim)]  # decoder
    ks = jax.random.split(key, 2 * len(layer_dims))
    p = {}
    for idx, (fan_in, fan_out) in enumerate(layer_dims):
        bound = 1.0 / (float(fan_in) ** 0.5)   # mimic nn.Linear's U(-1/sqrt(fan_in), ...)
        w = jax.random.uniform(ks[2 * idx], (fan_in, fan_out), jnp.float32, -bound, bound)
        b = jax.random.uniform(ks[2 * idx + 1], (1, fan_out), jnp.float32, -bound, bound)
        p[f"w{idx + 1}"] = w.astype(WEIGHT_DTYPE)
        p[f"b{idx + 1}"] = b
    return p


def reference_forward(y, p):
    """Pure-JAX reference doing the same bf16-operand / f32-accumulate arithmetic."""
    def dense(x, w, b):
        return jnp.dot(x.astype(WEIGHT_DTYPE), w,
                       preferred_element_type=jnp.float32) + b

    h = jnp.maximum(dense(y, p["w1"], p["b1"]), 0.0)
    h = jnp.maximum(dense(h, p["w2"], p["b2"]), 0.0)
    l = jnp.tanh(dense(h, p["w3"], p["b3"]))
    d = jnp.maximum(dense(l, p["w4"], p["b4"]), 0.0)
    d = jnp.maximum(dense(d, p["w5"], p["b5"]), 0.0)
    d = jnp.maximum(dense(d, p["w6"], p["b6"]), 0.0)
    y_hat = dense(d, p["w7"], p["b7"])
    return y_hat, l


if __name__ == "__main__":
    key = jax.random.PRNGKey(0)
    k_param, k_data = jax.random.split(key)

    # Small but MXU-friendly shapes: B=512 gives 2 grid steps of 256 rows each
    # (so the v7x two-TensorCore path is exercised even at this small batch).
    batch, dim, bottle_dim = 512, 256, 128
    params = init_params(k_param, dim, bottle_dim)
    y = jax.random.normal(k_data, (batch, dim), jnp.float32)

    y_hat, l = autoencoder_forward(y, params)
    y_hat = jax.block_until_ready(y_hat)
    l = jax.block_until_ready(l)

    y_hat_ref, l_ref = reference_forward(y, params)
    assert y_hat.shape == (batch, dim) and l.shape == (batch, bottle_dim)
    assert jnp.allclose(l, l_ref, atol=1e-2, rtol=1e-2), \
        float(jnp.max(jnp.abs(l - l_ref)))
    assert jnp.allclose(y_hat, y_hat_ref, atol=1e-2, rtol=1e-2), \
        float(jnp.max(jnp.abs(y_hat - y_hat_ref)))

    print("KERNEL_OK")
</pallas_src>

<mosaic_0001>
module attributes {stable_mosaic.version = 11 : i64} {
  func.func @_ae_kernel(%arg0: i32, %arg1: memref<256x256xf32, #tpu.memory_space<vmem>>, %arg2: memref<256x512xbf16, #tpu.memory_space<vmem>>, %arg3: memref<1x512xf32, #tpu.memory_space<vmem>>, %arg4: memref<512x256xbf16, #tpu.memory_space<vmem>>, %arg5: memref<1x256xf32, #tpu.memory_space<vmem>>, %arg6: memref<256x128xbf16, #tpu.memory_space<vmem>>, %arg7: memref<1x128xf32, #tpu.memory_space<vmem>>, %arg8: memref<128x256xbf16, #tpu.memory_space<vmem>>, %arg9: memref<1x256xf32, #tpu.memory_space<vmem>>, %arg10: memref<256x512xbf16, #tpu.memory_space<vmem>>, %arg11: memref<1x512xf32, #tpu.memory_space<vmem>>, %arg12: memref<512x512xbf16, #tpu.memory_space<vmem>>, %arg13: memref<1x512xf32, #tpu.memory_space<vmem>>, %arg14: memref<512x256xbf16, #tpu.memory_space<vmem>>, %arg15: memref<1x256xf32, #tpu.memory_space<vmem>>, %arg16: memref<256x256xf32, #tpu.memory_space<vmem>>, %arg17: memref<256x128xf32, #tpu.memory_space<vmem>>) attributes {dimension_semantics = [#tpu.dimension_semantics<parallel>], iteration_bounds = array<i64: 2>, scalar_prefetch = 0 : i64, scratch_operands = 0 : i64, tpu.core_type = #tpu.core_type<tc>, window_params = [{transform_indices = @transform_0, window_bounds = array<i64: 256, 256>}, {pipeline_mode = #tpu.pipeline_mode<synchronous>, transform_indices = @transform_1, window_bounds = array<i64: 256, 512>}, {pipeline_mode = #tpu.pipeline_mode<synchronous>, transform_indices = @transform_2, window_bounds = array<i64: 1, 512>}, {pipeline_mode = #tpu.pipeline_mode<synchronous>, transform_indices = @transform_3, window_bounds = array<i64: 512, 256>}, {pipeline_mode = #tpu.pipeline_mode<synchronous>, transform_indices = @transform_4, window_bounds = array<i64: 1, 256>}, {pipeline_mode = #tpu.pipeline_mode<synchronous>, transform_indices = @transform_5, window_bounds = array<i64: 256, 128>}, {pipeline_mode = #tpu.pipeline_mode<synchronous>, transform_indices = @transform_6, window_bounds = array<i64: 1, 128>}, {pipeline_mode = #tpu.pipeline_mode<synchronous>, transform_indices = @transform_7, window_bounds = array<i64: 128, 256>}, {pipeline_mode = #tpu.pipeline_mode<synchronous>, transform_indices = @transform_8, window_bounds = array<i64: 1, 256>}, {pipeline_mode = #tpu.pipeline_mode<synchronous>, transform_indices = @transform_9, window_bounds = array<i64: 256, 512>}, {pipeline_mode = #tpu.pipeline_mode<synchronous>, transform_indices = @transform_10, window_bounds = array<i64: 1, 512>}, {pipeline_mode = #tpu.pipeline_mode<synchronous>, transform_indices = @transform_11, window_bounds = array<i64: 512, 512>}, {pipeline_mode = #tpu.pipeline_mode<synchronous>, transform_indices = @transform_12, window_bounds = array<i64: 1, 512>}, {pipeline_mode = #tpu.pipeline_mode<synchronous>, transform_indices = @transform_13, window_bounds = array<i64: 512, 256>}, {pipeline_mode = #tpu.pipeline_mode<synchronous>, transform_indices = @transform_14, window_bounds = array<i64: 1, 256>}, {transform_indices = @transform_15, window_bounds = array<i64: 256, 256>}, {transform_indices = @transform_16, window_bounds = array<i64: 256, 128>}]} {
    %c0 = arith.constant 0 : index
    %c0_0 = arith.constant 0 : index
    %0 = vector.load %arg1[%c0, %c0_0] : memref<256x256xf32, #tpu.memory_space<vmem>>, vector<256x256xf32>
    %1 = arith.truncf %0 : vector<256x256xf32> to vector<256x256xbf16>
    %c0_1 = arith.constant 0 : index
    %c0_2 = arith.constant 0 : index
    %2 = vector.load %arg2[%c0_1, %c0_2] : memref<256x512xbf16, #tpu.memory_space<vmem>>, vector<256x512xbf16>
    %cst = arith.constant dense<0.000000e+00> : vector<256x512xf32>
    %3 = tpu.matmul %1, %2, %cst {dimension_numbers = #tpu.dot_dimension_numbers<[1], [0], [0], [1], [0, 0, 1, 1], [], []>} : vector<256x256xbf16>, vector<256x512xbf16>, vector<256x512xf32> -> vector<256x512xf32>
    %c0_3 = arith.constant 0 : index
    %c0_4 = arith.constant 0 : index
    %4 = vector.load %arg3[%c0_3, %c0_4] : memref<1x512xf32, #tpu.memory_space<vmem>>, vector<1x512xf32>
    %5 = vector.broadcast %4 : vector<1x512xf32> to vector<256x512xf32>
    %6 = arith.addf %3, %5 : vector<256x512xf32>
    %cst_5 = arith.constant 0.000000e+00 : f32
    %7 = vector.broadcast %cst_5 : f32 to vector<256x512xf32>
    %8 = arith.maximumf %6, %7 : vector<256x512xf32>
    %9 = arith.truncf %8 : vector<256x512xf32> to vector<256x512xbf16>
    %c0_6 = arith.constant 0 : index
    %c0_7 = arith.constant 0 : index
    %10 = vector.load %arg4[%c0_6, %c0_7] : memref<512x256xbf16, #tpu.memory_space<vmem>>, vector<512x256xbf16>
    %cst_8 = arith.constant dense<0.000000e+00> : vector<256x256xf32>
    %11 = tpu.matmul %9, %10, %cst_8 {dimension_numbers = #tpu.dot_dimension_numbers<[1], [0], [0], [1], [0, 0, 1, 1], [], []>} : vector<256x512xbf16>, vector<512x256xbf16>, vector<256x256xf32> -> vector<256x256xf32>
    %c0_9 = arith.constant 0 : index
    %c0_10 = arith.constant 0 : index
    %12 = vector.load %arg5[%c0_9, %c0_10] : memref<1x256xf32, #tpu.memory_space<vmem>>, vector<1x256xf32>
    %13 = vector.broadcast %12 : vector<1x256xf32> to vector<256x256xf32>
    %14 = arith.addf %11, %13 : vector<256x256xf32>
    %cst_11 = arith.constant 0.000000e+00 : f32
    %15 = vector.broadcast %cst_11 : f32 to vector<256x256xf32>
    %16 = arith.maximumf %14, %15 : vector<256x256xf32>
    %17 = arith.truncf %16 : vector<256x256xf32> to vector<256x256xbf16>
    %c0_12 = arith.constant 0 : index
    %c0_13 = arith.constant 0 : index
    %18 = vector.load %arg6[%c0_12, %c0_13] : memref<256x128xbf16, #tpu.memory_space<vmem>>, vector<256x128xbf16>
    %cst_14 = arith.constant dense<0.000000e+00> : vector<256x128xf32>
    %19 = tpu.matmul %17, %18, %cst_14 {dimension_numbers = #tpu.dot_dimension_numbers<[1], [0], [0], [1], [0, 0, 1, 1], [], []>} : vector<256x256xbf16>, vector<256x128xbf16>, vector<256x128xf32> -> vector<256x128xf32>
    %c0_15 = arith.constant 0 : index
    %c0_16 = arith.constant 0 : index
    %20 = vector.load %arg7[%c0_15, %c0_16] : memref<1x128xf32, #tpu.memory_space<vmem>>, vector<1x128xf32>
    %21 = vector.broadcast %20 : vector<1x128xf32> to vector<256x128xf32>
    %22 = arith.addf %19, %21 : vector<256x128xf32>
    %23 = math.tanh %22 : vector<256x128xf32>
    %24 = arith.truncf %23 : vector<256x128xf32> to vector<256x128xbf16>
    %c0_17 = arith.constant 0 : index
    %c0_18 = arith.constant 0 : index
    %25 = vector.load %arg8[%c0_17, %c0_18] : memref<128x256xbf16, #tpu.memory_space<vmem>>, vector<128x256xbf16>
    %cst_19 = arith.constant dense<0.000000e+00> : vector<256x256xf32>
    %26 = tpu.matmul %24, %25, %cst_19 {dimension_numbers = #tpu.dot_dimension_numbers<[1], [0], [0], [1], [0, 0, 1, 1], [], []>} : vector<256x128xbf16>, vector<128x256xbf16>, vector<256x256xf32> -> vector<256x256xf32>
    %c0_20 = arith.constant 0 : index
    %c0_21 = arith.constant 0 : index
    %27 = vector.load %arg9[%c0_20, %c0_21] : memref<1x256xf32, #tpu.memory_space<vmem>>, vector<1x256xf32>
    %28 = vector.broadcast %27 : vector<1x256xf32> to vector<256x256xf32>
    %29 = arith.addf %26, %28 : vector<256x256xf32>
    %cst_22 = arith.constant 0.000000e+00 : f32
    %30 = vector.broadcast %cst_22 : f32 to vector<256x256xf32>
    %31 = arith.maximumf %29, %30 : vector<256x256xf32>
    %32 = arith.truncf %31 : vector<256x256xf32> to vector<256x256xbf16>
    %c0_23 = arith.constant 0 : index
    %c0_24 = arith.constant 0 : index
    %33 = vector.load %arg10[%c0_23, %c0_24] : memref<256x512xbf16, #tpu.memory_space<vmem>>, vector<256x512xbf16>
    %cst_25 = arith.constant dense<0.000000e+00> : vector<256x512xf32>
    %34 = tpu.matmul %32, %33, %cst_25 {dimension_numbers = #tpu.dot_dimension_numbers<[1], [0], [0], [1], [0, 0, 1, 1], [], []>} : vector<256x256xbf16>, vector<256x512xbf16>, vector<256x512xf32> -> vector<256x512xf32>
    %c0_26 = arith.constant 0 : index
    %c0_27 = arith.constant 0 : index
    %35 = vector.load %arg11[%c0_26, %c0_27] : memref<1x512xf32, #tpu.memory_space<vmem>>, vector<1x512xf32>
    %36 = vector.broadcast %35 : vector<1x512xf32> to vector<256x512xf32>
    %37 = arith.addf %34, %36 : vector<256x512xf32>
    %cst_28 = arith.constant 0.000000e+00 : f32
    %38 = vector.broadcast %cst_28 : f32 to vector<256x512xf32>
    %39 = arith.maximumf %37, %38 : vector<256x512xf32>
    %40 = arith.truncf %39 : vector<256x512xf32> to vector<256x512xbf16>
    %c0_29 = arith.constant 0 : index
    %c0_30 = arith.constant 0 : index
    %41 = vector.load %arg12[%c0_29, %c0_30] : memref<512x512xbf16, #tpu.memory_space<vmem>>, vector<512x512xbf16>
    %cst_31 = arith.constant dense<0.000000e+00> : vector<256x512xf32>
    %42 = tpu.matmul %40, %41, %cst_31 {dimension_numbers = #tpu.dot_dimension_numbers<[1], [0], [0], [1], [0, 0, 1, 1], [], []>} : vector<256x512xbf16>, vector<512x512xbf16>, vector<256x512xf32> -> vector<256x512xf32>
    %c0_32 = arith.constant 0 : index
    %c0_33 = arith.constant 0 : index
    %43 = vector.load %arg13[%c0_32, %c0_33] : memref<1x512xf32, #tpu.memory_space<vmem>>, vector<1x512xf32>
    %44 = vector.broadcast %43 : vector<1x512xf32> to vector<256x512xf32>
    %45 = arith.addf %42, %44 : vector<256x512xf32>
    %cst_34 = arith.constant 0.000000e+00 : f32
    %46 = vector.broadcast %cst_34 : f32 to vector<256x512xf32>
    %47 = arith.maximumf %45, %46 : vector<256x512xf32>
    %48 = arith.truncf %47 : vector<256x512xf32> to vector<256x512xbf16>
    %c0_35 = arith.constant 0 : index
    %c0_36 = arith.constant 0 : index
    %49 = vector.load %arg14[%c0_35, %c0_36] : memref<512x256xbf16, #tpu.memory_space<vmem>>, vector<512x256xbf16>
    %cst_37 = arith.constant dense<0.000000e+00> : vector<256x256xf32>
    %50 = tpu.matmul %48, %49, %cst_37 {dimension_numbers = #tpu.dot_dimension_numbers<[1], [0], [0], [1], [0, 0, 1, 1], [], []>} : vector<256x512xbf16>, vector<512x256xbf16>, vector<256x256xf32> -> vector<256x256xf32>
    %c0_38 = arith.constant 0 : index
    %c0_39 = arith.constant 0 : index
    %51 = vector.load %arg15[%c0_38, %c0_39] : memref<1x256xf32, #tpu.memory_space<vmem>>, vector<1x256xf32>
    %52 = vector.broadcast %51 : vector<1x256xf32> to vector<256x256xf32>
    %53 = arith.addf %50, %52 : vector<256x256xf32>
    %c0_40 = arith.constant 0 : index
    %c0_41 = arith.constant 0 : index
    %54 = vector.load %arg16[%c0_40, %c0_41] : memref<256x256xf32, #tpu.memory_space<vmem>>, vector<256x256xf32>
    tpu.vector_store %arg16[%c0_40, %c0_41], %53 {strides = array<i32>} : memref<256x256xf32, #tpu.memory_space<vmem>>, vector<256x256xf32>,
    %c0_42 = arith.constant 0 : index
    %c0_43 = arith.constant 0 : index
    %55 = vector.load %arg17[%c0_42, %c0_43] : memref<256x128xf32, #tpu.memory_space<vmem>>, vector<256x128xf32>
    tpu.vector_store %arg17[%c0_42, %c0_43], %23 {strides = array<i32>} : memref<256x128xf32, #tpu.memory_space<vmem>>, vector<256x128xf32>,
    return
  }
  func.func @transform_0(%arg0: i32) -> (i32, i32) {
    %c0_i32 = arith.constant 0 : i32
    %c0_i32_0 = arith.constant 0 : i32
    return %arg0, %c0_i32 : i32, i32
  }
  func.func @transform_1(%arg0: i32) -> (i32, i32) {
    %c0_i32 = arith.constant 0 : i32
    %c0_i32_0 = arith.constant 0 : i32
    %c0_i32_1 = arith.constant 0 : i32
    return %c0_i32, %c0_i32_0 : i32, i32
  }
  func.func @transform_2(%arg0: i32) -> (i32, i32) {
    %c0_i32 = arith.constant 0 : i32
    %c0_i32_0 = arith.constant 0 : i32
    %c0_i32_1 = arith.constant 0 : i32
    return %c0_i32, %c0_i32_0 : i32, i32
  }
  func.func @transform_3(%arg0: i32) -> (i32, i32) {
    %c0_i32 = arith.constant 0 : i32
    %c0_i32_0 = arith.constant 0 : i32
    %c0_i32_1 = arith.constant 0 : i32
    return %c0_i32, %c0_i32_0 : i32, i32
  }
  func.func @transform_4(%arg0: i32) -> (i32, i32) {
    %c0_i32 = arith.constant 0 : i32
    %c0_i32_0 = arith.constant 0 : i32
    %c0_i32_1 = arith.constant 0 : i32
    return %c0_i32, %c0_i32_0 : i32, i32
  }
  func.func @transform_5(%arg0: i32) -> (i32, i32) {
    %c0_i32 = arith.constant 0 : i32
    %c0_i32_0 = arith.constant 0 : i32
    %c0_i32_1 = arith.constant 0 : i32
    return %c0_i32, %c0_i32_0 : i32, i32
  }
  func.func @transform_6(%arg0: i32) -> (i32, i32) {
    %c0_i32 = arith.constant 0 : i32
    %c0_i32_0 = arith.constant 0 : i32
    %c0_i32_1 = arith.constant 0 : i32
    return %c0_i32, %c0_i32_0 : i32, i32
  }
  func.func @transform_7(%arg0: i32) -> (i32, i32) {
    %c0_i32 = arith.constant 0 : i32
    %c0_i32_0 = arith.constant 0 : i32
    %c0_i32_1 = arith.constant 0 : i32
    return %c0_i32, %c0_i32_0 : i32, i32
  }
  func.func @transform_8(%arg0: i32) -> (i32, i32) {
    %c0_i32 = arith.constant 0 : i32
    %c0_i32_0 = arith.constant 0 : i32
    %c0_i32_1 = arith.constant 0 : i32
    return %c0_i32, %c0_i32_0 : i32, i32
  }
  func.func @transform_9(%arg0: i32) -> (i32, i32) {
    %c0_i32 = arith.constant 0 : i32
    %c0_i32_0 = arith.constant 0 : i32
    %c0_i32_1 = arith.constant 0 : i32
    return %c0_i32, %c0_i32_0 : i32, i32
  }
  func.func @transform_10(%arg0: i32) -> (i32, i32) {
    %c0_i32 = arith.constant 0 : i32
    %c0_i32_0 = arith.constant 0 : i32
    %c0_i32_1 = arith.constant 0 : i32
    return %c0_i32, %c0_i32_0 : i32, i32
  }
  func.func @transform_11(%arg0: i32) -> (i32, i32) {
    %c0_i32 = arith.constant 0 : i32
    %c0_i32_0 = arith.constant 0 : i32
    %c0_i32_1 = arith.constant 0 : i32
    return %c0_i32, %c0_i32_0 : i32, i32
  }
  func.func @transform_12(%arg0: i32) -> (i32, i32) {
    %c0_i32 = arith.constant 0 : i32
    %c0_i32_0 = arith.constant 0 : i32
    %c0_i32_1 = arith.constant 0 : i32
    return %c0_i32, %c0_i32_0 : i32, i32
  }
  func.func @transform_13(%arg0: i32) -> (i32, i32) {
    %c0_i32 = arith.constant 0 : i32
    %c0_i32_0 = arith.constant 0 : i32
    %c0_i32_1 = arith.constant 0 : i32
    return %c0_i32, %c0_i32_0 : i32, i32
  }
  func.func @transform_14(%arg0: i32) -> (i32, i32) {
    %c0_i32 = arith.constant 0 : i32
    %c0_i32_0 = arith.constant 0 : i32
    %c0_i32_1 = arith.constant 0 : i32
    return %c0_i32, %c0_i32_0 : i32, i32
  }
  func.func @transform_15(%arg0: i32) -> (i32, i32) {
    %c0_i32 = arith.constant 0 : i32
    %c0_i32_0 = arith.constant 0 : i32
    return %arg0, %c0_i32 : i32, i32
  }
  func.func @transform_16(%arg0: i32) -> (i32, i32) {
    %c0_i32 = arith.constant 0 : i32
    %c0_i32_0 = arith.constant 0 : i32
    return %arg0, %c0_i32 : i32, i32
  }
}

</mosaic_0001>

<llo_original>
// kernel: tpu_custom_call.1
$region0: #{tpu_custom_call.1}
  #allocation0 [shape = 'u32[]', space=smem, size = 0x4, offset = 0x4, fixed_abs, tag = 'smem constant byte address 0x4 - core index']
  #allocation1 [shape = 'u32[144,128]{1,0:T(1,128)}', space=vmem, size = 0x12000, scoped, tag = 'internal scratch']
  %s0 = inlined_call_operand.hbm [shape: f32[512,256], index: 0, kind: input, shape index: {}]
  %s1 = inlined_call_operand.hbm [shape: bf16[256,512], index: 1, kind: input, shape index: {}]
  %s2 = inlined_call_operand.vmem [shape: f32[1,512], index: 2, kind: input, shape index: {}]
  %s3 = inlined_call_operand.hbm [shape: bf16[512,256], index: 3, kind: input, shape index: {}]
  %s4 = inlined_call_operand.vmem [shape: f32[1,256], index: 4, kind: input, shape index: {}]
  %s5 = inlined_call_operand.hbm [shape: bf16[256,128], index: 5, kind: input, shape index: {}]
  %s6 = inlined_call_operand.vmem [shape: f32[1,128], index: 6, kind: input, shape index: {}]
  %s7 = inlined_call_operand.hbm [shape: bf16[128,256], index: 7, kind: input, shape index: {}]
  %s8 = inlined_call_operand.vmem [shape: f32[1,256], index: 8, kind: input, shape index: {}]
  %s9 = inlined_call_operand.hbm [shape: bf16[256,512], index: 9, kind: input, shape index: {}]
  %s10 = inlined_call_operand.vmem [shape: f32[1,512], index: 10, kind: input, shape index: {}]
  %s11 = inlined_call_operand.hbm [shape: bf16[512,512], index: 11, kind: input, shape index: {}]
  %s12 = inlined_call_operand.vmem [shape: f32[1,512], index: 12, kind: input, shape index: {}]
  %s13 = inlined_call_operand.hbm [shape: bf16[512,256], index: 13, kind: input, shape index: {}]
  %s14 = inlined_call_operand.vmem [shape: f32[1,256], index: 14, kind: input, shape index: {}]
  %s15 = inlined_call_operand.hbm [shape: f32[512,256], index: 15, kind: output, shape index: {0}]
  %s16 = inlined_call_operand.hbm [shape: f32[512,128], index: 16, kind: output, shape index: {1}]
  %17 = xla_tuple %s15, %s16
  %s18 = sld [smem:[#allocation0]]
  $region133: #{tpu_custom_call.1} parent=0
    _
  %s20 = ssub.s32 1, %s18
  %s21 = scalar_select 0, %s20, %s18
  $region1: #{tpu_custom_call.1} parent=0
    #allocation2 [shape = 'u8[524288]{0}', space=vmem, size = 0x80000, scoped, tag = 'input window, operand 0']
    #allocation3 [shape = 's32[2]{0}', space=sflag, size = 0x8, scoped, tag = 'scoped memory for tpu_custom_call.1']
    #allocation4 [shape = 's32[2]{0}', space=sflag, size = 0x8, scoped, tag = 'scoped memory for tpu_custom_call.1']
    #allocation5 [shape = 'u8[262144]{0}', space=vmem, size = 0x40000, scoped, tag = 'input window, operand 1, single buffered']
    #allocation6 [shape = 's32[1]{0}', space=sflag, size = 0x4, scoped, tag = 'scoped memory for tpu_custom_call.1']
    #allocation7 [shape = 'u8[262144]{0}', space=vmem, size = 0x40000, scoped, tag = 'input window, operand 3, single buffered']
    #allocation8 [shape = 'u8[65536]{0}', space=vmem, size = 0x10000, scoped, tag = 'input window, operand 5, single buffered']
    #allocation9 [shape = 's32[1]{0}', space=sflag, size = 0x4, scoped, tag = 'scoped memory for tpu_custom_call.1']
    #allocation10 [shape = 'u8[65536]{0}', space=vmem, size = 0x10000, scoped, tag = 'input window, operand 7, single buffered']
    #allocation11 [shape = 'u8[262144]{0}', space=vmem, size = 0x40000, scoped, tag = 'input window, operand 9, single buffered']
    #allocation12 [shape = 's32[1]{0}', space=sflag, size = 0x4, scoped, tag = 'scoped memory for tpu_custom_call.1']
    #allocation13 [shape = 'u8[524288]{0}', space=vmem, size = 0x80000, scoped, tag = 'input window, operand 11, single buffered']
    #allocation14 [shape = 'u8[262144]{0}', space=vmem, size = 0x40000, scoped, tag = 'input window, operand 13, single buffered']
    #allocation15 [shape = 's32[1]{0}', space=sflag, size = 0x4, scoped, tag = 'scoped memory for tpu_custom_call.1']
    #allocation16 [shape = 'u8[524288]{0}', space=vmem, size = 0x80000, scoped, tag = 'output window, operand 0']
    #allocation17 [shape = 'u8[262144]{0}', space=vmem, size = 0x40000, scoped, tag = 'output window, operand 1']
    #allocation18 [shape = 's32[2]{0}', space=sflag, size = 0x8, scoped, tag = 'scoped memory for tpu_custom_call.1']
    %22 = vsyncpa [#allocation3], 0
    %s23 = scalar_lea.sflag [#allocation3], 1
    %24 = vsyncpa %s23, 0
    %25 = vsyncpa [#allocation6], 0
    %26 = vsyncpa [#allocation9], 0
    %27 = vsyncpa [#allocation12], 0
    %28 = vsyncpa [#allocation15], 0
    %29 = vsyncpa [#allocation4], 0
    %s30 = scalar_lea.sflag [#allocation4], 1
    %31 = vsyncpa %s30, 0
    %32 = vsyncpa [#allocation18], 0
    %s33 = scalar_lea.sflag [#allocation18], 1
    %34 = vsyncpa %s33, 0
    loop: start=0, step=1, limit=4
    $region2: #{tpu_custom_call.1} parent=1 // loop_pre_header
      _
    $region3: #{tpu_custom_call.1} parent=1 // loop_header
      %s36 = sphi 0, %s40
      %p37 = scmp.ge.s32.totalorder %s36, 4
      %s46 = sphi 0, %s48
      %s49 = sphi 0, %s46
      %s50 = sphi 0, %s49
      %s66 = sphi 0, %s50
      %s70 = sphi 0, %s70
      %s72 = sphi 0, %s70
      %s73 = sphi 0, %s72
      %s87 = sphi 0, %s73
      %s91 = sphi 0, %s91
      %s93 = sphi 0, %s91
      %s94 = sphi 0, %s93
      %s108 = sphi 0, %s94
      %s112 = sphi 0, %s112
      %s114 = sphi 0, %s112
      %s115 = sphi 0, %s114
      %s129 = sphi 0, %s115
      %s133 = sphi 0, %s133
      %s135 = sphi 0, %s133
      %s136 = sphi 0, %s135
      %s150 = sphi 0, %s136
      %s154 = sphi 0, %s154
      %s156 = sphi 0, %s154
      %s157 = sphi 0, %s156
      %s171 = sphi 0, %s157
      %s175 = sphi 0, %s175
      %s177 = sphi 0, %s175
      %s178 = sphi 0, %s177
      %s192 = sphi 0, %s178
      %s196 = sphi 0, %s196
      %s198 = sphi 0, %s196
      %s199 = sphi 0, %s198
      %s213 = sphi 0, %s199
      %s217 = sphi 0, %s217
      %s219 = sphi 0, %s217
      %s220 = sphi 0, %s219
      %s234 = sphi 0, %s220
      %s238 = sphi 0, %s238
      %s240 = sphi 0, %s238
      %s241 = sphi 0, %s240
      %s255 = sphi 0, %s241
      %s259 = sphi 0, %s259
      %s261 = sphi 0, %s259
      %s262 = sphi 0, %s261
      %s276 = sphi 0, %s262
      %s280 = sphi 0, %s280
      %s282 = sphi 0, %s280
      %s283 = sphi 0, %s282
      %s297 = sphi 0, %s283
      %s301 = sphi 0, %s301
      %s303 = sphi 0, %s301
      %s304 = sphi 0, %s303
      %s318 = sphi 0, %s304
      %s322 = sphi 0, %s322
      %s324 = sphi 0, %s322
      %s325 = sphi 0, %s324
      %s339 = sphi 0, %s325
      %s343 = sphi 0, %s343
      %s345 = sphi 0, %s343
      %s346 = sphi 0, %s345
      %s360 = sphi 0, %s346
      %s366 = sphi 0, %s368
      %s369 = sphi 0, %s366
      %s370 = sphi 0, %s369
      %s386 = sphi 0, %s370
      %s392 = sphi 0, %s394
      %s395 = sphi 0, %s392
      %s396 = sphi 0, %s395
      %s412 = sphi 0, %s396
    $region4: #{tpu_custom_call.1} parent=1 // loop_header_branch
      %39 = sbr.rel (%p37) target = $region8
    $region5: #{tpu_custom_call.1} parent=1 // loop_body
      %s41 = ssub.s32 %s36, 1
      %s42 = ssub.s32 %s36, 2
      %s43 = sadd.s32 %s36, 1
      %s44 = ssub.s32 %s36, %s43
      %p45 = scmp.eq.s32.totalorder %s44, 0
      %s47 = sadd.s32 %s46, 1
      %s48 = scalar_select %p45, %s46, %s47
      %p51 = pneg %p45
      %p52 = scmp.eq.s32.totalorder %s36, 1
      %p53 = por %p51, %p52
      %p54 = scmp.ne.s32.totalorder %s46, %s49
      %p55 = scmp.eq.s32.totalorder %s36, 0
      %p56 = por %p54, %p55
      %p57 = scmp.ne.s32.totalorder %s46, %s49
      %p58 = scmp.eq.s32.totalorder %s41, 1
      %p59 = por %p57, %p58
      %p60 = scmp.ne.s32.totalorder %s49, %s50
      %p61 = scmp.eq.s32.totalorder %s41, 0
      %p62 = por %p60, %p61
      %p63 = scmp.ne.s32.totalorder %s49, %s50
      %p64 = scmp.eq.s32.totalorder %s42, 1
      %p65 = por %p63, %p64
      %p67 = scmp.ne.s32.totalorder %s50, %s66
      %p68 = scmp.eq.s32.totalorder %s42, 0
      %p69 = por %p67, %p68
      %s71 = sadd.s32 %s70, 1
      %p74 = scmp.eq.s32.totalorder %s36, 1
      %p75 = scmp.ne.s32.totalorder %s70, %s72
      %p76 = scmp.eq.s32.totalorder %s36, 0
      %p77 = por %p75, %p76
      %p78 = scmp.ne.s32.totalorder %s70, %s72
      %p79 = scmp.eq.s32.totalorder %s41, 1
      %p80 = por %p78, %p79
      %p81 = scmp.ne.s32.totalorder %s72, %s73
      %p82 = scmp.eq.s32.totalorder %s41, 0
      %p83 = por %p81, %p82
      %p84 = scmp.ne.s32.totalorder %s72, %s73
      %p85 = scmp.eq.s32.totalorder %s42, 1
      %p86 = por %p84, %p85
      %p88 = scmp.ne.s32.totalorder %s73, %s87
      %p89 = scmp.eq.s32.totalorder %s42, 0
      %p90 = por %p88, %p89
      %s92 = sadd.s32 %s91, 1
      %p95 = scmp.eq.s32.totalorder %s36, 1
      %p96 = scmp.ne.s32.totalorder %s91, %s93
      %p97 = scmp.eq.s32.totalorder %s36, 0
      %p98 = por %p96, %p97
      %p99 = scmp.ne.s32.totalorder %s91, %s93
      %p100 = scmp.eq.s32.totalorder %s41, 1
      %p101 = por %p99, %p100
      %p102 = scmp.ne.s32.totalorder %s93, %s94
      %p103 = scmp.eq.s32.totalorder %s41, 0
      %p104 = por %p102, %p103
      %p105 = scmp.ne.s32.totalorder %s93, %s94
      %p106 = scmp.eq.s32.totalorder %s42, 1
      %p107 = por %p105, %p106
      %p109 = scmp.ne.s32.totalorder %s94, %s108
      %p110 = scmp.eq.s32.totalorder %s42, 0
      %p111 = por %p109, %p110
      %s113 = sadd.s32 %s112, 1
      %p116 = scmp.eq.s32.totalorder %s36, 1
      %p117 = scmp.ne.s32.totalorder %s112, %s114
      %p118 = scmp.eq.s32.totalorder %s36, 0
      %p119 = por %p117, %p118
      %p120 = scmp.ne.s32.totalorder %s112, %s114
      %p121 = scmp.eq.s32.totalorder %s41, 1
      %p122 = por %p120, %p121
      %p123 = scmp.ne.s32.totalorder %s114, %s115
      %p124 = scmp.eq.s32.totalorder %s41, 0
      %p125 = por %p123, %p124
      %p126 = scmp.ne.s32.totalorder %s114, %s115
      %p127 = scmp.eq.s32.totalorder %s42, 1
      %p128 = por %p126, %p127
      %p130 = scmp.ne.s32.totalorder %s115, %s129
      %p131 = scmp.eq.s32.totalorder %s42, 0
      %p132 = por %p130, %p131
      %s134 = sadd.s32 %s133, 1
      %p137 = scmp.eq.s32.totalorder %s36, 1
      %p138 = scmp.ne.s32.totalorder %s133, %s135
      %p139 = scmp.eq.s32.totalorder %s36, 0
      %p140 = por %p138, %p139
      %p141 = scmp.ne.s32.totalorder %s133, %s135
      %p142 = scmp.eq.s32.totalorder %s41, 1
      %p143 = por %p141, %p142
      %p144 = scmp.ne.s32.totalorder %s135, %s136
      %p145 = scmp.eq.s32.totalorder %s41, 0
      %p146 = por %p144, %p145
      %p147 = scmp.ne.s32.totalorder %s135, %s136
      %p148 = scmp.eq.s32.totalorder %s42, 1
      %p149 = por %p147, %p148
      %p151 = scmp.ne.s32.totalorder %s136, %s150
      %p152 = scmp.eq.s32.totalorder %s42, 0
      %p153 = por %p151, %p152
      %s155 = sadd.s32 %s154, 1
      %p158 = scmp.eq.s32.totalorder %s36, 1
      %p159 = scmp.ne.s32.totalorder %s154, %s156
      %p160 = scmp.eq.s32.totalorder %s36, 0
      %p161 = por %p159, %p160
      %p162 = scmp.ne.s32.totalorder %s154, %s156
      %p163 = scmp.eq.s32.totalorder %s41, 1
      %p164 = por %p162, %p163
      %p165 = scmp.ne.s32.totalorder %s156, %s157
      %p166 = scmp.eq.s32.totalorder %s41, 0
      %p167 = por %p165, %p166
      %p168 = scmp.ne.s32.totalorder %s156, %s157
      %p169 = scmp.eq.s32.totalorder %s42, 1
      %p170 = por %p168, %p169
      %p172 = scmp.ne.s32.totalorder %s157, %s171
      %p173 = scmp.eq.s32.totalorder %s42, 0
      %p174 = por %p172, %p173
      %s176 = sadd.s32 %s175, 1
      %p179 = scmp.eq.s32.totalorder %s36, 1
      %p180 = scmp.ne.s32.totalorder %s175, %s177
      %p181 = scmp.eq.s32.totalorder %s36, 0
      %p182 = por %p180, %p181
      %p183 = scmp.ne.s32.totalorder %s175, %s177
      %p184 = scmp.eq.s32.totalorder %s41, 1
      %p185 = por %p183, %p184
      %p186 = scmp.ne.s32.totalorder %s177, %s178
      %p187 = scmp.eq.s32.totalorder %s41, 0
      %p188 = por %p186, %p187
      %p189 = scmp.ne.s32.totalorder %s177, %s178
      %p190 = scmp.eq.s32.totalorder %s42, 1
      %p191 = por %p189, %p190
      %p193 = scmp.ne.s32.totalorder %s178, %s192
      %p194 = scmp.eq.s32.totalorder %s42, 0
      %p195 = por %p193, %p194
      %s197 = sadd.s32 %s196, 1
      %p200 = scmp.eq.s32.totalorder %s36, 1
      %p201 = scmp.ne.s32.totalorder %s196, %s198
      %p202 = scmp.eq.s32.totalorder %s36, 0
      %p203 = por %p201, %p202
      %p204 = scmp.ne.s32.totalorder %s196, %s198
      %p205 = scmp.eq.s32.totalorder %s41, 1
      %p206 = por %p204, %p205
      %p207 = scmp.ne.s32.totalorder %s198, %s199
      %p208 = scmp.eq.s32.totalorder %s41, 0
      %p209 = por %p207, %p208
      %p210 = scmp.ne.s32.totalorder %s198, %s199
      %p211 = scmp.eq.s32.totalorder %s42, 1
      %p212 = por %p210, %p211
      %p214 = scmp.ne.s32.totalorder %s199, %s213
      %p215 = scmp.eq.s32.totalorder %s42, 0
      %p216 = por %p214, %p215
      %s218 = sadd.s32 %s217, 1
      %p221 = scmp.eq.s32.totalorder %s36, 1
      %p222 = scmp.ne.s32.totalorder %s217, %s219
      %p223 = scmp.eq.s32.totalorder %s36, 0
      %p224 = por %p222, %p223
      %p225 = scmp.ne.s32.totalorder %s217, %s219
      %p226 = scmp.eq.s32.totalorder %s41, 1
      %p227 = por %p225, %p226
      %p228 = scmp.ne.s32.totalorder %s219, %s220
      %p229 = scmp.eq.s32.totalorder %s41, 0
      %p230 = por %p228, %p229
      %p231 = scmp.ne.s32.totalorder %s219, %s220
      %p232 = scmp.eq.s32.totalorder %s42, 1
      %p233 = por %p231, %p232
      %p235 = scmp.ne.s32.totalorder %s220, %s234
      %p236 = scmp.eq.s32.totalorder %s42, 0
      %p237 = por %p235, %p236
      %s239 = sadd.s32 %s238, 1
      %p242 = scmp.eq.s32.totalorder %s36, 1
      %p243 = scmp.ne.s32.totalorder %s238, %s240
      %p244 = scmp.eq.s32.totalorder %s36, 0
      %p245 = por %p243, %p244
      %p246 = scmp.ne.s32.totalorder %s238, %s240
      %p247 = scmp.eq.s32.totalorder %s41, 1
      %p248 = por %p246, %p247
      %p249 = scmp.ne.s32.totalorder %s240, %s241
      %p250 = scmp.eq.s32.totalorder %s41, 0
      %p251 = por %p249, %p250
      %p252 = scmp.ne.s32.totalorder %s240, %s241
      %p253 = scmp.eq.s32.totalorder %s42, 1
      %p254 = por %p252, %p253
      %p256 = scmp.ne.s32.totalorder %s241, %s255
      %p257 = scmp.eq.s32.totalorder %s42, 0
      %p258 = por %p256, %p257
      %s260 = sadd.s32 %s259, 1
      %p263 = scmp.eq.s32.totalorder %s36, 1
      %p264 = scmp.ne.s32.totalorder %s259, %s261
      %p265 = scmp.eq.s32.totalorder %s36, 0
      %p266 = por %p264, %p265
      %p267 = scmp.ne.s32.totalorder %s259, %s261
      %p268 = scmp.eq.s32.totalorder %s41, 1
      %p269 = por %p267, %p268
      %p270 = scmp.ne.s32.totalorder %s261, %s262
      %p271 = scmp.eq.s32.totalorder %s41, 0
      %p272 = por %p270, %p271
      %p273 = scmp.ne.s32.totalorder %s261, %s262
      %p274 = scmp.eq.s32.totalorder %s42, 1
      %p275 = por %p273, %p274
      %p277 = scmp.ne.s32.totalorder %s262, %s276
      %p278 = scmp.eq.s32.totalorder %s42, 0
      %p279 = por %p277, %p278
      %s281 = sadd.s32 %s280, 1
      %p284 = scmp.eq.s32.totalorder %s36, 1
      %p285 = scmp.ne.s32.totalorder %s280, %s282
      %p286 = scmp.eq.s32.totalorder %s36, 0
      %p287 = por %p285, %p286
      %p288 = scmp.ne.s32.totalorder %s280, %s282
      %p289 = scmp.eq.s32.totalorder %s41, 1
      %p290 = por %p288, %p289
      %p291 = scmp.ne.s32.totalorder %s282, %s283
      %p292 = scmp.eq.s32.totalorder %s41, 0
      %p293 = por %p291, %p292
      %p294 = scmp.ne.s32.totalorder %s282, %s283
      %p295 = scmp.eq.s32.totalorder %s42, 1
      %p296 = por %p294, %p295
      %p298 = scmp.ne.s32.totalorder %s283, %s297
      %p299 = scmp.eq.s32.totalorder %s42, 0
      %p300 = por %p298, %p299
      %s302 = sadd.s32 %s301, 1
      %p305 = scmp.eq.s32.totalorder %s36, 1
      %p306 = scmp.ne.s32.totalorder %s301, %s303
      %p307 = scmp.eq.s32.totalorder %s36, 0
      %p308 = por %p306, %p307
      %p309 = scmp.ne.s32.totalorder %s301, %s303
      %p310 = scmp.eq.s32.totalorder %s41, 1
      %p311 = por %p309, %p310
      %p312 = scmp.ne.s32.totalorder %s303, %s304
      %p313 = scmp.eq.s32.totalorder %s41, 0
      %p314 = por %p312, %p313
      %p315 = scmp.ne.s32.totalorder %s303, %s304
      %p316 = scmp.eq.s32.totalorder %s42, 1
      %p317 = por %p315, %p316
      %p319 = scmp.ne.s32.totalorder %s304, %s318
      %p320 = scmp.eq.s32.totalorder %s42, 0
      %p321 = por %p319, %p320
      %s323 = sadd.s32 %s322, 1
      %p326 = scmp.eq.s32.totalorder %s36, 1
      %p327 = scmp.ne.s32.totalorder %s322, %s324
      %p328 = scmp.eq.s32.totalorder %s36, 0
      %p329 = por %p327, %p328
      %p330 = scmp.ne.s32.totalorder %s322, %s324
      %p331 = scmp.eq.s32.totalorder %s41, 1
      %p332 = por %p330, %p331
      %p333 = scmp.ne.s32.totalorder %s324, %s325
      %p334 = scmp.eq.s32.totalorder %s41, 0
      %p335 = por %p333, %p334
      %p336 = scmp.ne.s32.totalorder %s324, %s325
      %p337 = scmp.eq.s32.totalorder %s42, 1
      %p338 = por %p336, %p337
      %p340 = scmp.ne.s32.totalorder %s325, %s339
      %p341 = scmp.eq.s32.totalorder %s42, 0
      %p342 = por %p340, %p341
      %s344 = sadd.s32 %s343, 1
      %p347 = scmp.eq.s32.totalorder %s36, 1
      %p348 = scmp.ne.s32.totalorder %s343, %s345
      %p349 = scmp.eq.s32.totalorder %s36, 0
      %p350 = por %p348, %p349
      %p351 = scmp.ne.s32.totalorder %s343, %s345
      %p352 = scmp.eq.s32.totalorder %s41, 1
      %p353 = por %p351, %p352
      %p354 = scmp.ne.s32.totalorder %s345, %s346
      %p355 = scmp.eq.s32.totalorder %s41, 0
      %p356 = por %p354, %p355
      %p357 = scmp.ne.s32.totalorder %s345, %s346
      %p358 = scmp.eq.s32.totalorder %s42, 1
      %p359 = por %p357, %p358
      %p361 = scmp.ne.s32.totalorder %s346, %s360
      %p362 = scmp.eq.s32.totalorder %s42, 0
      %p363 = por %p361, %p362
      %s364 = ssub.s32 %s36, %s43
      %p365 = scmp.eq.s32.totalorder %s364, 0
      %s367 = sadd.s32 %s366, 1
      %s368 = scalar_select %p365, %s366, %s367
      %p371 = pneg %p365
      %p372 = scmp.eq.s32.totalorder %s36, 1
      %p373 = por %p371, %p372
      %p374 = scmp.ne.s32.totalorder %s366, %s369
      %p375 = scmp.eq.s32.totalorder %s36, 0
      %p376 = por %p374, %p375
      %p377 = scmp.ne.s32.totalorder %s366, %s369
      %p378 = scmp.eq.s32.totalorder %s41, 1
      %p379 = por %p377, %p378
      %p380 = scmp.ne.s32.totalorder %s369, %s370
      %p381 = scmp.eq.s32.totalorder %s41, 0
      %p382 = por %p380, %p381
      %p383 = scmp.ne.s32.totalorder %s369, %s370
      %p384 = scmp.eq.s32.totalorder %s42, 1
      %p385 = por %p383, %p384
      %p387 = scmp.ne.s32.totalorder %s370, %s386
      %p388 = scmp.eq.s32.totalorder %s42, 0
      %p389 = por %p387, %p388
      %s390 = ssub.s32 %s36, %s43
      %p391 = scmp.eq.s32.totalorder %s390, 0
      %s393 = sadd.s32 %s392, 1
      %s394 = scalar_select %p391, %s392, %s393
      %p397 = pneg %p391
      %p398 = scmp.eq.s32.totalorder %s36, 1
      %p399 = por %p397, %p398
      %p400 = scmp.ne.s32.totalorder %s392, %s395
      %p401 = scmp.eq.s32.totalorder %s36, 0
      %p402 = por %p400, %p401
      %p403 = scmp.ne.s32.totalorder %s392, %s395
      %p404 = scmp.eq.s32.totalorder %s41, 1
      %p405 = por %p403, %p404
      %p406 = scmp.ne.s32.totalorder %s395, %s396
      %p407 = scmp.eq.s32.totalorder %s41, 0
      %p408 = por %p406, %p407
      %p409 = scmp.ne.s32.totalorder %s395, %s396
      %p410 = scmp.eq.s32.totalorder %s42, 1
      %p411 = por %p409, %p410
      %p413 = scmp.ne.s32.totalorder %s396, %s412
      %p414 = scmp.eq.s32.totalorder %s42, 0
      %p415 = por %p413, %p414
      %p416 = scmp.le.s32.totalorder 1, %s36
      %p417 = scmp.lt.s32.totalorder %s36, 3
      %p418 = pnand %p416, %p417
      %p419 = pneg %p418
      // Predicated region
      $region9: #{tpu_custom_call.1} parent=5 // pred_check
        _
      $region10: #{tpu_custom_call.1} parent=5 // pred_check_branch
        %421 = sbr.rel (%p418) target = $region12
      $region11: #{tpu_custom_call.1} parent=5 // pred_region
        %s422 = ssub.s32 %s36, 1
        // Predicated region
        $region13: #{tpu_custom_call.1} parent=11 // pred_check
          %p423 = pneg %p83
        $region14: #{tpu_custom_call.1} parent=11 // pred_check_branch
          %425 = sbr.rel (%p423) target = $region16
        $region15: #{tpu_custom_call.1} parent=11 // pred_region
          %s427 = ssub.s32 8192, 8192
          %428 = vsyncadd [#allocation6], %s427
          %s429 = sshll.u32 [#allocation5], 4
          %s430 = int_to_ptr.vmem [resolvable:$true] %s429
          %435 = dma.hbm_to_vmem [thread:$0]  %s1, 8192, %s430, [#allocation6], 256, 256, 16
        $region16: #{tpu_custom_call.1} parent=11 // pred_fallthru
          _
        // Predicated region
        $region17: #{tpu_custom_call.1} parent=11 // pred_check
          %p436 = pneg %p104
        $region18: #{tpu_custom_call.1} parent=11 // pred_check_branch
          %438 = sbr.rel (%p436) target = $region20
        $region19: #{tpu_custom_call.1} parent=11 // pred_region
          _
        $region20: #{tpu_custom_call.1} parent=11 // pred_fallthru
          _
        // Predicated region
        $region21: #{tpu_custom_call.1} parent=11 // pred_check
          %p439 = pneg %p125
        $region22: #{tpu_custom_call.1} parent=11 // pred_check_branch
          %441 = sbr.rel (%p439) target = $region24
        $region23: #{tpu_custom_call.1} parent=11 // pred_region
          %s443 = ssub.s32 8192, 8192
          %444 = vsyncadd [#allocation6], %s443
          %s445 = sshll.u32 [#allocation7], 4
          %s446 = int_to_ptr.vmem [resolvable:$true] %s445
          %451 = dma.hbm_to_vmem [thread:$0]  %s3, 8192, %s446, [#allocation6], 128, 128, 8
        $region24: #{tpu_custom_call.1} parent=11 // pred_fallthru
          _
        // Predicated region
        $region25: #{tpu_custom_call.1} parent=11 // pred_check
          %p452 = pneg %p146
        $region26: #{tpu_custom_call.1} parent=11 // pred_check_branch
          %454 = sbr.rel (%p452) target = $region28
        $region27: #{tpu_custom_call.1} parent=11 // pred_region
          _
        $region28: #{tpu_custom_call.1} parent=11 // pred_fallthru
          _
        // Predicated region
        $region29: #{tpu_custom_call.1} parent=11 // pred_check
          %p455 = pneg %p167
        $region30: #{tpu_custom_call.1} parent=11 // pred_check_branch
          %457 = sbr.rel (%p455) target = $region32
        $region31: #{tpu_custom_call.1} parent=11 // pred_region
          %s459 = ssub.s32 2048, 2048
          %460 = vsyncadd [#allocation9], %s459
          %s461 = sshll.u32 [#allocation8], 4
          %s462 = int_to_ptr.vmem [resolvable:$true] %s461
          %467 = dma.hbm_to_vmem [thread:$0]  %s5, 2048, %s462, [#allocation9], 64, 64, 4
        $region32: #{tpu_custom_call.1} parent=11 // pred_fallthru
          _
        // Predicated region
        $region33: #{tpu_custom_call.1} parent=11 // pred_check
          %p468 = pneg %p188
        $region34: #{tpu_custom_call.1} parent=11 // pred_check_branch
          %470 = sbr.rel (%p468) target = $region36
        $region35: #{tpu_custom_call.1} parent=11 // pred_region
          _
        $region36: #{tpu_custom_call.1} parent=11 // pred_fallthru
          _
        // Predicated region
        $region37: #{tpu_custom_call.1} parent=11 // pred_check
          %p471 = pneg %p209
        $region38: #{tpu_custom_call.1} parent=11 // pred_check_branch
          %473 = sbr.rel (%p471) target = $region40
        $region39: #{tpu_custom_call.1} parent=11 // pred_region
          %s475 = ssub.s32 2048, 2048
          %476 = vsyncadd [#allocation9], %s475
          %s477 = sshll.u32 [#allocation10], 4
          %s478 = int_to_ptr.vmem [resolvable:$true] %s477
          %483 = dma.hbm_to_vmem [thread:$0]  %s7, 2048, %s478, [#allocation9], 128, 128, 8
        $region40: #{tpu_custom_call.1} parent=11 // pred_fallthru
          _
        // Predicated region
        $region41: #{tpu_custom_call.1} parent=11 // pred_check
          %p484 = pneg %p230
        $region42: #{tpu_custom_call.1} parent=11 // pred_check_branch
          %486 = sbr.rel (%p484) target = $region44
        $region43: #{tpu_custom_call.1} parent=11 // pred_region
          _
        $region44: #{tpu_custom_call.1} parent=11 // pred_fallthru
          _
        // Predicated region
        $region45: #{tpu_custom_call.1} parent=11 // pred_check
          %p487 = pneg %p251
        $region46: #{tpu_custom_call.1} parent=11 // pred_check_branch
          %489 = sbr.rel (%p487) target = $region48
        $region47: #{tpu_custom_call.1} parent=11 // pred_region
          %s491 = ssub.s32 8192, 8192
          %492 = vsyncadd [#allocation12], %s491
          %s493 = sshll.u32 [#allocation11], 4
          %s494 = int_to_ptr.vmem [resolvable:$true] %s493
          %499 = dma.hbm_to_vmem [thread:$0]  %s9, 8192, %s494, [#allocation12], 256, 256, 16
        $region48: #{tpu_custom_call.1} parent=11 // pred_fallthru
          _
        // Predicated region
        $region49: #{tpu_custom_call.1} parent=11 // pred_check
          %p500 = pneg %p272
        $region50: #{tpu_custom_call.1} parent=11 // pred_check_branch
          %502 = sbr.rel (%p500) target = $region52
        $region51: #{tpu_custom_call.1} parent=11 // pred_region
          _
        $region52: #{tpu_custom_call.1} parent=11 // pred_fallthru
          _
        // Predicated region
        $region53: #{tpu_custom_call.1} parent=11 // pred_check
          %p503 = pneg %p293
        $region54: #{tpu_custom_call.1} parent=11 // pred_check_branch
          %505 = sbr.rel (%p503) target = $region56
        $region55: #{tpu_custom_call.1} parent=11 // pred_region
          %s507 = ssub.s32 16384, 16384
          %508 = vsyncadd [#allocation12], %s507
          %s509 = sshll.u32 [#allocation13], 4
          %s510 = int_to_ptr.vmem [resolvable:$true] %s509
          %515 = dma.hbm_to_vmem [thread:$0]  %s11, 16384, %s510, [#allocation12], 256, 256, 16
        $region56: #{tpu_custom_call.1} parent=11 // pred_fallthru
          _
        // Predicated region
        $region57: #{tpu_custom_call.1} parent=11 // pred_check
          %p516 = pneg %p314
        $region58: #{tpu_custom_call.1} parent=11 // pred_check_branch
          %518 = sbr.rel (%p516) target = $region60
        $region59: #{tpu_custom_call.1} parent=11 // pred_region
          _
        $region60: #{tpu_custom_call.1} parent=11 // pred_fallthru
          _
        // Predicated region
        $region61: #{tpu_custom_call.1} parent=11 // pred_check
          %p519 = pneg %p335
        $region62: #{tpu_custom_call.1} parent=11 // pred_check_branch
          %521 = sbr.rel (%p519) target = $region64
        $region63: #{tpu_custom_call.1} parent=11 // pred_region
          %s523 = ssub.s32 8192, 8192
          %524 = vsyncadd [#allocation15], %s523
          %s525 = sshll.u32 [#allocation14], 4
          %s526 = int_to_ptr.vmem [resolvable:$true] %s525
          %531 = dma.hbm_to_vmem [thread:$0]  %s13, 8192, %s526, [#allocation15], 128, 128, 8
        $region64: #{tpu_custom_call.1} parent=11 // pred_fallthru
          _
        // Predicated region
        $region65: #{tpu_custom_call.1} parent=11 // pred_check
          %p532 = pneg %p356
        $region66: #{tpu_custom_call.1} parent=11 // pred_check_branch
          %534 = sbr.rel (%p532) target = $region68
        $region67: #{tpu_custom_call.1} parent=11 // pred_region
          _
        $region68: #{tpu_custom_call.1} parent=11 // pred_fallthru
          _
      $region12: #{tpu_custom_call.1} parent=5 // pred_fallthru
        _
      %p535 = scmp.lt.s32.totalorder %s36, 2
      // Predicated region
      $region69: #{tpu_custom_call.1} parent=5 // pred_check
        %p536 = pneg %p535
      $region70: #{tpu_custom_call.1} parent=5 // pred_check_branch
        %538 = sbr.rel (%p536) target = $region72
      $region71: #{tpu_custom_call.1} parent=5 // pred_region
        // Predicated region
        $region73: #{tpu_custom_call.1} parent=71 // pred_check
          %p539 = pneg %p56
        $region74: #{tpu_custom_call.1} parent=71 // pred_check_branch
          %541 = sbr.rel (%p539) target = $region76
        $region75: #{tpu_custom_call.1} parent=71 // pred_region
          %s542 = sand.u32 %s46, 1
          %s543 = scalar_lea.sflag [#allocation3], %s542
          %s544 = sand.u32 %s46, 1
          %s545 = smul.addr %s544, 512
          %s546 = scalar_lea.vmem [#allocation2], %s545
          %s547 = smul.u32 32, %s36
          %s549 = ssub.s32 8192, 8192
          %550 = vsyncadd %s543, %s549
          %s551 = smul.addr %s547, 2
          %s552 = smul.addr %s551, 128
          %s553 = scalar_lea.hbm %s0, %s552
          %s554 = sshll.u32 %s546, 4
          %s555 = int_to_ptr.vmem [resolvable:$true] %s554
          %560 = dma.hbm_to_vmem [thread:$0]  %s553, 8192, %s555, %s543, 256, 256, 16
        $region76: #{tpu_custom_call.1} parent=71 // pred_fallthru
          _
      $region72: #{tpu_custom_call.1} parent=5 // pred_fallthru
        _
      %p561 = scmp.le.s32.totalorder 1, %s36
      %p562 = scmp.lt.s32.totalorder %s36, 3
      %p563 = pnand %p561, %p562
      %p564 = pneg %p563
      // Predicated region
      $region77: #{tpu_custom_call.1} parent=5 // pred_check
        _
      $region78: #{tpu_custom_call.1} parent=5 // pred_check_branch
        %566 = sbr.rel (%p563) target = $region80
      $region79: #{tpu_custom_call.1} parent=5 // pred_region
        %s567 = ssub.s32 %s36, 1
        %s568 = sand.u32 %s49, 1
        %s569 = scalar_lea.sflag [#allocation3], %s568
        %s570 = sand.u32 %s49, 1
        %s571 = smul.addr %s570, 512
        %s572 = scalar_lea.vmem [#allocation2], %s571
        // Predicated region
        $region81: #{tpu_custom_call.1} parent=79 // pred_check
          %p573 = pneg %p62
        $region82: #{tpu_custom_call.1} parent=79 // pred_check_branch
          %575 = sbr.rel (%p573) target = $region84
        $region83: #{tpu_custom_call.1} parent=79 // pred_region
          %576 = dma.done %s569, 8192
        $region84: #{tpu_custom_call.1} parent=79 // pred_fallthru
          _
        // Predicated region
        $region85: #{tpu_custom_call.1} parent=79 // pred_check
          %p577 = pneg %p83
        $region86: #{tpu_custom_call.1} parent=79 // pred_check_branch
          %579 = sbr.rel (%p577) target = $region88
        $region87: #{tpu_custom_call.1} parent=79 // pred_region
          %580 = dma.done [#allocation6], 8192
        $region88: #{tpu_custom_call.1} parent=79 // pred_fallthru
          _
        // Predicated region
        $region89: #{tpu_custom_call.1} parent=79 // pred_check
          %p581 = pneg %p125
        $region90: #{tpu_custom_call.1} parent=79 // pred_check_branch
          %583 = sbr.rel (%p581) target = $region92
        $region91: #{tpu_custom_call.1} parent=79 // pred_region
          %584 = dma.done [#allocation6], 8192
        $region92: #{tpu_custom_call.1} parent=79 // pred_fallthru
          _
        // Predicated region
        $region93: #{tpu_custom_call.1} parent=79 // pred_check
          %p585 = pneg %p167
        $region94: #{tpu_custom_call.1} parent=79 // pred_check_branch
          %587 = sbr.rel (%p585) target = $region96
        $region95: #{tpu_custom_call.1} parent=79 // pred_region
          %588 = dma.done [#allocation9], 2048
        $region96: #{tpu_custom_call.1} parent=79 // pred_fallthru
          _
        // Predicated region
        $region97: #{tpu_custom_call.1} parent=79 // pred_check
          %p589 = pneg %p209
        $region98: #{tpu_custom_call.1} parent=79 // pred_check_branch
          %591 = sbr.rel (%p589) target = $region100
        $region99: #{tpu_custom_call.1} parent=79 // pred_region
          %592 = dma.done [#allocation9], 2048
        $region100: #{tpu_custom_call.1} parent=79 // pred_fallthru
          _
        // Predicated region
        $region101: #{tpu_custom_call.1} parent=79 // pred_check
          %p593 = pneg %p251
        $region102: #{tpu_custom_call.1} parent=79 // pred_check_branch
          %595 = sbr.rel (%p593) target = $region104
        $region103: #{tpu_custom_call.1} parent=79 // pred_region
          %596 = dma.done [#allocation12], 8192
        $region104: #{tpu_custom_call.1} parent=79 // pred_fallthru
          _
        // Predicated region
        $region105: #{tpu_custom_call.1} parent=79 // pred_check
          %p597 = pneg %p293
        $region106: #{tpu_custom_call.1} parent=79 // pred_check_branch
          %599 = sbr.rel (%p597) target = $region108
        $region107: #{tpu_custom_call.1} parent=79 // pred_region
          %600 = dma.done [#allocation12], 16384
        $region108: #{tpu_custom_call.1} parent=79 // pred_fallthru
          _
        // Predicated region
        $region109: #{tpu_custom_call.1} parent=79 // pred_check
          %p601 = pneg %p335
        $region110: #{tpu_custom_call.1} parent=79 // pred_check_branch
          %603 = sbr.rel (%p601) target = $region112
        $region111: #{tpu_custom_call.1} parent=79 // pred_region
          %604 = dma.done [#allocation15], 8192
        $region112: #{tpu_custom_call.1} parent=79 // pred_fallthru
          _
        %s605 = sand.u32 %s49, 1
        %s606 = scalar_lea.sflag [#allocation3], %s605
        %s607 = sand.u32 %s49, 1
        %s608 = smul.addr %s607, 512
        %s609 = scalar_lea.vmem [#allocation2], %s608
        %p610 = pneg %p62
        %p611 = pneg %p59
        %p612 = pneg %p83
        %p613 = pneg %p80
        %p614 = pneg %p104
        %p615 = pneg %p101
        %p616 = pneg %p125
        %p617 = pneg %p122
        %p618 = pneg %p146
        %p619 = pneg %p143
        %p620 = pneg %p167
        %p621 = pneg %p164
        %p622 = pneg %p188
        %p623 = pneg %p185
        %p624 = pneg %p209
        %p625 = pneg %p206
        %p626 = pneg %p230
        %p627 = pneg %p227
        %p628 = pneg %p251
        %p629 = pneg %p248
        %p630 = pneg %p272
        %p631 = pneg %p269
        %p632 = pneg %p293
        %p633 = pneg %p290
        %p634 = pneg %p314
        %p635 = pneg %p311
        %p636 = pneg %p335
        %p637 = pneg %p332
        %p638 = pneg %p356
        %p639 = pneg %p353
        %p640 = pneg %p382
        %p641 = pneg %p379
        %s642 = sand.u32 %s369, 1
        %s643 = scalar_lea.sflag [#allocation4], %s642
        %s644 = sand.u32 %s369, 1
        %s645 = smul.addr %s644, 512
        %s646 = scalar_lea.vmem [#allocation16], %s645
        %p647 = pneg %p408
        %p648 = pneg %p405
        %s649 = sand.u32 %s395, 1
        %s650 = scalar_lea.sflag [#allocation18], %s649
        %s651 = sand.u32 %s395, 1
        %s652 = smul.addr %s651, 256
        %s653 = scalar_lea.vmem [#allocation17], %s652
        %s654 = smul.u32 32, %s41
        %s655 = smul.u32 32, %s41
        %s656 = smul.u32 32, %s41
        %v658 = vld [vmem:[%s572] sm:$0xff]
        %v659 = vld [vmem:[%s572 + $0x8] sm:$0xff]
        %v660 = vld [vmem:[%s572 + $0x10] sm:$0xff]
        %v661 = vld [vmem:[%s572 + $0x18] sm:$0xff]
        %v662 = vld [vmem:[%s572 + $0x20] sm:$0xff]
        %v663 = vld [vmem:[%s572 + $0x28] sm:$0xff]
        %v664 = vld [vmem:[%s572 + $0x30] sm:$0xff]
        %v665 = vld [vmem:[%s572 + $0x38] sm:$0xff]
        %v666 = vld [vmem:[%s572 + $0x40] sm:$0xff]
        %v667 = vld [vmem:[%s572 + $0x48] sm:$0xff]
        %v668 = vld [vmem:[%s572 + $0x50] sm:$0xff]
        %v669 = vld [vmem:[%s572 + $0x58] sm:$0xff]
        %v670 = vld [vmem:[%s572 + $0x60] sm:$0xff]
        %v671 = vld [vmem:[%s572 + $0x68] sm:$0xff]
        %v672 = vld [vmem:[%s572 + $0x70] sm:$0xff]
        %v673 = vld [vmem:[%s572 + $0x78] sm:$0xff]
        %v674 = vld [vmem:[%s572 + $0x80] sm:$0xff]
        %v675 = vld [vmem:[%s572 + $0x88] sm:$0xff]
        %v676 = vld [vmem:[%s572 + $0x90] sm:$0xff]
        %v677 = vld [vmem:[%s572 + $0x98] sm:$0xff]
        %v678 = vld [vmem:[%s572 + $0xa0] sm:$0xff]
        %v679 = vld [vmem:[%s572 + $0xa8] sm:$0xff]
        %v680 = vld [vmem:[%s572 + $0xb0] sm:$0xff]
        %v681 = vld [vmem:[%s572 + $0xb8] sm:$0xff]
        %v682 = vld [vmem:[%s572 + $0xc0] sm:$0xff]
        %v683 = vld [vmem:[%s572 + $0xc8] sm:$0xff]
        %v684 = vld [vmem:[%s572 + $0xd0] sm:$0xff]
        %v685 = vld [vmem:[%s572 + $0xd8] sm:$0xff]
        %v686 = vld [vmem:[%s572 + $0xe0] sm:$0xff]
        %v687 = vld [vmem:[%s572 + $0xe8] sm:$0xff]
        %v688 = vld [vmem:[%s572 + $0xf0] sm:$0xff]
        %v689 = vld [vmem:[%s572 + $0xf8] sm:$0xff]
        %v690 = vld [vmem:[%s572 + $0x100] sm:$0xff]
        %v691 = vld [vmem:[%s572 + $0x108] sm:$0xff]
        %v692 = vld [vmem:[%s572 + $0x110] sm:$0xff]
        %v693 = vld [vmem:[%s572 + $0x118] sm:$0xff]
        %v694 = vld [vmem:[%s572 + $0x120] sm:$0xff]
        %v695 = vld [vmem:[%s572 + $0x128] sm:$0xff]
        %v696 = vld [vmem:[%s572 + $0x130] sm:$0xff]
        %v697 = vld [vmem:[%s572 + $0x138] sm:$0xff]
        %v698 = vld [vmem:[%s572 + $0x140] sm:$0xff]
        %v699 = vld [vmem:[%s572 + $0x148] sm:$0xff]
        %v700 = vld [vmem:[%s572 + $0x150] sm:$0xff]
        %v701 = vld [vmem:[%s572 + $0x158] sm:$0xff]
        %v702 = vld [vmem:[%s572 + $0x160] sm:$0xff]
        %v703 = vld [vmem:[%s572 + $0x168] sm:$0xff]
        %v704 = vld [vmem:[%s572 + $0x170] sm:$0xff]
        %v705 = vld [vmem:[%s572 + $0x178] sm:$0xff]
        %v706 = vld [vmem:[%s572 + $0x180] sm:$0xff]
        %v707 = vld [vmem:[%s572 + $0x188] sm:$0xff]
        %v708 = vld [vmem:[%s572 + $0x190] sm:$0xff]
        %v709 = vld [vmem:[%s572 + $0x198] sm:$0xff]
        %v710 = vld [vmem:[%s572 + $0x1a0] sm:$0xff]
        %v711 = vld [vmem:[%s572 + $0x1a8] sm:$0xff]
        %v712 = vld [vmem:[%s572 + $0x1b0] sm:$0xff]
        %v713 = vld [vmem:[%s572 + $0x1b8] sm:$0xff]
        %v714 = vld [vmem:[%s572 + $0x1c0] sm:$0xff]
        %v715 = vld [vmem:[%s572 + $0x1c8] sm:$0xff]
        %v716 = vld [vmem:[%s572 + $0x1d0] sm:$0xff]
        %v717 = vld [vmem:[%s572 + $0x1d8] sm:$0xff]
        %v718 = vld [vmem:[%s572 + $0x1e0] sm:$0xff]
        %v719 = vld [vmem:[%s572 + $0x1e8] sm:$0xff]
        %v720 = vld [vmem:[%s572 + $0x1f0] sm:$0xff]
        %v721 = vld [vmem:[%s572 + $0x1f8] sm:$0xff]
        %v722 = vpack.c.bf16 %v660, %v658
        %v723 = vpack.c.bf16 %v661, %v659
        %v724 = vpack.c.bf16 %v664, %v662
        %v725 = vpack.c.bf16 %v665, %v663
        %v726 = vpack.c.bf16 %v668, %v666
        %v727 = vpack.c.bf16 %v669, %v667
        %v728 = vpack.c.bf16 %v672, %v670
        %v729 = vpack.c.bf16 %v673, %v671
        %v730 = vpack.c.bf16 %v676, %v674
        %v731 = vpack.c.bf16 %v677, %v675
        %v732 = vpack.c.bf16 %v680, %v678
        %v733 = vpack.c.bf16 %v681, %v679
        %v734 = vpack.c.bf16 %v684, %v682
        %v735 = vpack.c.bf16 %v685, %v683
        %v736 = vpack.c.bf16 %v688, %v686
        %v737 = vpack.c.bf16 %v689, %v687
        %v738 = vpack.c.bf16 %v692, %v690
        %v739 = vpack.c.bf16 %v693, %v691
        %v740 = vpack.c.bf16 %v696, %v694
        %v741 = vpack.c.bf16 %v697, %v695
        %v742 = vpack.c.bf16 %v700, %v698
        %v743 = vpack.c.bf16 %v701, %v699
        %v744 = vpack.c.bf16 %v704, %v702
        %v745 = vpack.c.bf16 %v705, %v703
        %v746 = vpack.c.bf16 %v708, %v706
        %v747 = vpack.c.bf16 %v709, %v707
        %v748 = vpack.c.bf16 %v712, %v710
        %v749 = vpack.c.bf16 %v713, %v711
        %v750 = vpack.c.bf16 %v716, %v714
        %v751 = vpack.c.bf16 %v717, %v715
        %v752 = vpack.c.bf16 %v720, %v718
        %v753 = vpack.c.bf16 %v721, %v719
        %v754 = vld [vmem:[#allocation5] sm:$0xff]
        %v755 = vld [vmem:[#allocation5 + $0x8] sm:$0xff]
        %v756 = vld [vmem:[#allocation5 + $0x10] sm:$0xff]
        %v757 = vld [vmem:[#allocation5 + $0x18] sm:$0xff]
        %v758 = vld [vmem:[#allocation5 + $0x20] sm:$0xff]
        %v759 = vld [vmem:[#allocation5 + $0x28] sm:$0xff]
        %v760 = vld [vmem:[#allocation5 + $0x30] sm:$0xff]
        %v761 = vld [vmem:[#allocation5 + $0x38] sm:$0xff]
        %v762 = vld [vmem:[#allocation5 + $0x40] sm:$0xff]
        %v763 = vld [vmem:[#allocation5 + $0x48] sm:$0xff]
        %v764 = vld [vmem:[#allocation5 + $0x50] sm:$0xff]
        %v765 = vld [vmem:[#allocation5 + $0x58] sm:$0xff]
        %v766 = vld [vmem:[#allocation5 + $0x60] sm:$0xff]
        %v767 = vld [vmem:[#allocation5 + $0x68] sm:$0xff]
        %v768 = vld [vmem:[#allocation5 + $0x70] sm:$0xff]
        %v769 = vld [vmem:[#allocation5 + $0x78] sm:$0xff]
        %v770 = vld [vmem:[#allocation5 + $0x80] sm:$0xff]
        %v771 = vld [vmem:[#allocation5 + $0x88] sm:$0xff]
        %v772 = vld [vmem:[#allocation5 + $0x90] sm:$0xff]
        %v773 = vld [vmem:[#allocation5 + $0x98] sm:$0xff]
        %v774 = vld [vmem:[#allocation5 + $0xa0] sm:$0xff]
        %v775 = vld [vmem:[#allocation5 + $0xa8] sm:$0xff]
        %v776 = vld [vmem:[#allocation5 + $0xb0] sm:$0xff]
        %v777 = vld [vmem:[#allocation5 + $0xb8] sm:$0xff]
        %v778 = vld [vmem:[#allocation5 + $0xc0] sm:$0xff]
        %v779 = vld [vmem:[#allocation5 + $0xc8] sm:$0xff]
        %v780 = vld [vmem:[#allocation5 + $0xd0] sm:$0xff]
        %v781 = vld [vmem:[#allocation5 + $0xd8] sm:$0xff]
        %v782 = vld [vmem:[#allocation5 + $0xe0] sm:$0xff]
        %v783 = vld [vmem:[#allocation5 + $0xe8] sm:$0xff]
        %v784 = vld [vmem:[#allocation5 + $0xf0] sm:$0xff]
        %v785 = vld [vmem:[#allocation5 + $0xf8] sm:$0xff]
        %v786 = vld [vmem:[#allocation5 + $0x100] sm:$0xff]
        %v787 = vld [vmem:[#allocation5 + $0x108] sm:$0xff]
        %v788 = vld [vmem:[#allocation5 + $0x110] sm:$0xff]
        %v789 = vld [vmem:[#allocation5 + $0x118] sm:$0xff]
        %v790 = vld [vmem:[#allocation5 + $0x120] sm:$0xff]
        %v791 = vld [vmem:[#allocation5 + $0x128] sm:$0xff]
        %v792 = vld [vmem:[#allocation5 + $0x130] sm:$0xff]
        %v793 = vld [vmem:[#allocation5 + $0x138] sm:$0xff]
        %v794 = vld [vmem:[#allocation5 + $0x140] sm:$0xff]
        %v795 = vld [vmem:[#allocation5 + $0x148] sm:$0xff]
        %v796 = vld [vmem:[#allocation5 + $0x150] sm:$0xff]
        %v797 = vld [vmem:[#allocation5 + $0x158] sm:$0xff]
        %v798 = vld [vmem:[#allocation5 + $0x160] sm:$0xff]
        %v799 = vld [vmem:[#allocation5 + $0x168] sm:$0xff]
        %v800 = vld [vmem:[#allocation5 + $0x170] sm:$0xff]
        %v801 = vld [vmem:[#allocation5 + $0x178] sm:$0xff]
        %v802 = vld [vmem:[#allocation5 + $0x180] sm:$0xff]
        %v803 = vld [vmem:[#allocation5 + $0x188] sm:$0xff]
        %v804 = vld [vmem:[#allocation5 + $0x190] sm:$0xff]
        %v805 = vld [vmem:[#allocation5 + $0x198] sm:$0xff]
        %v806 = vld [vmem:[#allocation5 + $0x1a0] sm:$0xff]
        %v807 = vld [vmem:[#allocation5 + $0x1a8] sm:$0xff]
        %v808 = vld [vmem:[#allocation5 + $0x1b0] sm:$0xff]
        %v809 = vld [vmem:[#allocation5 + $0x1b8] sm:$0xff]
        %v810 = vld [vmem:[#allocation5 + $0x1c0] sm:$0xff]
        %v811 = vld [vmem:[#allocation5 + $0x1c8] sm:$0xff]
        %v812 = vld [vmem:[#allocation5 + $0x1d0] sm:$0xff]
        %v813 = vld [vmem:[#allocation5 + $0x1d8] sm:$0xff]
        %v814 = vld [vmem:[#allocation5 + $0x1e0] sm:$0xff]
        %v815 = vld [vmem:[#allocation5 + $0x1e8] sm:$0xff]
        %v816 = vld [vmem:[#allocation5 + $0x1f0] sm:$0xff]
        %v817 = vld [vmem:[#allocation5 + $0x1f8] sm:$0xff]
        %v818 = vld [vmem:[%s2] sm:$0xf]
        %v820 = vlaneseq
        %v821 = vshrl.u32 %v820, 7
        %v822 = vsub.s32 0, %v821
        %v823 = vrot.slane %v818, %v822
        %v824 = vlaneseq
        %v825 = vshrl.u32 %v824, 7
        %v826 = vsub.s32 1, %v825
        %v827 = vrot.slane %v818, %v826
        %v828 = vlaneseq
        %v829 = vshrl.u32 %v828, 7
        %v830 = vsub.s32 2, %v829
        %v831 = vrot.slane %v818, %v830
        %v832 = vlaneseq
        %v833 = vshrl.u32 %v832, 7
        %v834 = vsub.s32 3, %v833
        %v835 = vrot.slane %v818, %v834
        %v904 = vunpack.c.l.b16 %v754
        %v905 = vunpack.c.h.b16 %v754
        %v906 = vunpack.c.l.b16 %v755
        %v907 = vunpack.c.h.b16 %v755
        %v908 = vunpack.c.l.b16 %v756
        %v909 = vunpack.c.h.b16 %v756
        %v910 = vunpack.c.l.b16 %v757
        %v911 = vunpack.c.h.b16 %v757
        %v912 = vunpack.c.l.b16 %v758
        %v913 = vunpack.c.h.b16 %v758
        %v914 = vunpack.c.l.b16 %v759
        %v915 = vunpack.c.h.b16 %v759
        %v916 = vunpack.c.l.b16 %v760
        %v917 = vunpack.c.h.b16 %v760
        %v918 = vunpack.c.l.b16 %v761
        %v919 = vunpack.c.h.b16 %v761
        %v920 = vunpack.c.l.b16 %v762
        %v921 = vunpack.c.h.b16 %v762
        %v922 = vunpack.c.l.b16 %v763
        %v923 = vunpack.c.h.b16 %v763
        %v924 = vunpack.c.l.b16 %v764
        %v925 = vunpack.c.h.b16 %v764
        %v926 = vunpack.c.l.b16 %v765
        %v927 = vunpack.c.h.b16 %v765
        %v928 = vunpack.c.l.b16 %v766
        %v929 = vunpack.c.h.b16 %v766
        %v930 = vunpack.c.l.b16 %v767
        %v931 = vunpack.c.h.b16 %v767
        %v932 = vunpack.c.l.b16 %v768
        %v933 = vunpack.c.h.b16 %v768
        %v934 = vunpack.c.l.b16 %v769
        %v935 = vunpack.c.h.b16 %v769
        %v936 = vunpack.c.l.b16 %v770
        %v937 = vunpack.c.h.b16 %v770
        %v938 = vunpack.c.l.b16 %v771
        %v939 = vunpack.c.h.b16 %v771
        %v940 = vunpack.c.l.b16 %v772
        %v941 = vunpack.c.h.b16 %v772
        %v942 = vunpack.c.l.b16 %v773
        %v943 = vunpack.c.h.b16 %v773
        %v944 = vunpack.c.l.b16 %v774
        %v945 = vunpack.c.h.b16 %v774
        %v946 = vunpack.c.l.b16 %v775
        %v947 = vunpack.c.h.b16 %v775
        %v948 = vunpack.c.l.b16 %v776
        %v949 = vunpack.c.h.b16 %v776
        %v950 = vunpack.c.l.b16 %v777
        %v951 = vunpack.c.h.b16 %v777
        %v952 = vunpack.c.l.b16 %v778
        %v953 = vunpack.c.h.b16 %v778
        %v954 = vunpack.c.l.b16 %v779
        %v955 = vunpack.c.h.b16 %v779
        %v956 = vunpack.c.l.b16 %v780
        %v957 = vunpack.c.h.b16 %v780
        %v958 = vunpack.c.l.b16 %v781
        %v959 = vunpack.c.h.b16 %v781
        %v960 = vunpack.c.l.b16 %v782
        %v961 = vunpack.c.h.b16 %v782
        %v962 = vunpack.c.l.b16 %v783
        %v963 = vunpack.c.h.b16 %v783
        %v964 = vunpack.c.l.b16 %v784
        %v965 = vunpack.c.h.b16 %v784
        %v966 = vunpack.c.l.b16 %v785
        %v967 = vunpack.c.h.b16 %v785
        %v968 = vunpack.c.l.b16 %v786
        %v969 = vunpack.c.h.b16 %v786
        %v970 = vunpack.c.l.b16 %v787
        %v971 = vunpack.c.h.b16 %v787
        %v972 = vunpack.c.l.b16 %v788
        %v973 = vunpack.c.h.b16 %v788
        %v974 = vunpack.c.l.b16 %v789
        %v975 = vunpack.c.h.b16 %v789
        %v976 = vunpack.c.l.b16 %v790
        %v977 = vunpack.c.h.b16 %v790
        %v978 = vunpack.c.l.b16 %v791
        %v979 = vunpack.c.h.b16 %v791
        %v980 = vunpack.c.l.b16 %v792
        %v981 = vunpack.c.h.b16 %v792
        %v982 = vunpack.c.l.b16 %v793
        %v983 = vunpack.c.h.b16 %v793
        %v984 = vunpack.c.l.b16 %v794
        %v985 = vunpack.c.h.b16 %v794
        %v986 = vunpack.c.l.b16 %v795
        %v987 = vunpack.c.h.b16 %v795
        %v988 = vunpack.c.l.b16 %v796
        %v989 = vunpack.c.h.b16 %v796
        %v990 = vunpack.c.l.b16 %v797
        %v991 = vunpack.c.h.b16 %v797
        %v992 = vunpack.c.l.b16 %v798
        %v993 = vunpack.c.h.b16 %v798
        %v994 = vunpack.c.l.b16 %v799
        %v995 = vunpack.c.h.b16 %v799
        %v996 = vunpack.c.l.b16 %v800
        %v997 = vunpack.c.h.b16 %v800
        %v998 = vunpack.c.l.b16 %v801
        %v999 = vunpack.c.h.b16 %v801
        %v1000 = vunpack.c.l.b16 %v802
        %v1001 = vunpack.c.h.b16 %v802
        %v1002 = vunpack.c.l.b16 %v803
        %v1003 = vunpack.c.h.b16 %v803
        %v1004 = vunpack.c.l.b16 %v804
        %v1005 = vunpack.c.h.b16 %v804
        %v1006 = vunpack.c.l.b16 %v805
        %v1007 = vunpack.c.h.b16 %v805
        %v1008 = vunpack.c.l.b16 %v806
        %v1009 = vunpack.c.h.b16 %v806
        %v1010 = vunpack.c.l.b16 %v807
        %v1011 = vunpack.c.h.b16 %v807
        %v1012 = vunpack.c.l.b16 %v808
        %v1013 = vunpack.c.h.b16 %v808
        %v1014 = vunpack.c.l.b16 %v809
        %v1015 = vunpack.c.h.b16 %v809
        %v1016 = vunpack.c.l.b16 %v810
        %v1017 = vunpack.c.h.b16 %v810
        %v1018 = vunpack.c.l.b16 %v811
        %v1019 = vunpack.c.h.b16 %v811
        %v1020 = vunpack.c.l.b16 %v812
        %v1021 = vunpack.c.h.b16 %v812
        %v1022 = vunpack.c.l.b16 %v813
        %v1023 = vunpack.c.h.b16 %v813
        %v1024 = vunpack.c.l.b16 %v814
        %v1025 = vunpack.c.h.b16 %v814
        %v1026 = vunpack.c.l.b16 %v815
        %v1027 = vunpack.c.h.b16 %v815
        %v1028 = vunpack.c.l.b16 %v816
        %v1029 = vunpack.c.h.b16 %v816
        %v1030 = vunpack.c.l.b16 %v817
        %v1031 = vunpack.c.h.b16 %v817
        %v1032 = vpack.c.b16 %v908, %v904
        %v1033 = vpack.c.b16 %v909, %v905
        %v1034 = vpack.c.b16 %v910, %v906
        %v1035 = vpack.c.b16 %v911, %v907
        %v1036 = vpack.c.b16 %v916, %v912
        %v1037 = vpack.c.b16 %v917, %v913
        %v1038 = vpack.c.b16 %v918, %v914
        %v1039 = vpack.c.b16 %v919, %v915
        %v1040 = vpack.c.b16 %v924, %v920
        %v1041 = vpack.c.b16 %v925, %v921
        %v1042 = vpack.c.b16 %v926, %v922
        %v1043 = vpack.c.b16 %v927, %v923
        %v1044 = vpack.c.b16 %v932, %v928
        %v1045 = vpack.c.b16 %v933, %v929
        %v1046 = vpack.c.b16 %v934, %v930
        %v1047 = vpack.c.b16 %v935, %v931
        %v1048 = vpack.c.b16 %v940, %v936
        %v1049 = vpack.c.b16 %v941, %v937
        %v1050 = vpack.c.b16 %v942, %v938
        %v1051 = vpack.c.b16 %v943, %v939
        %v1052 = vpack.c.b16 %v948, %v944
        %v1053 = vpack.c.b16 %v949, %v945
        %v1054 = vpack.c.b16 %v950, %v946
        %v1055 = vpack.c.b16 %v951, %v947
        %v1056 = vpack.c.b16 %v956, %v952
        %v1057 = vpack.c.b16 %v957, %v953
        %v1058 = vpack.c.b16 %v958, %v954
        %v1059 = vpack.c.b16 %v959, %v955
        %v1060 = vpack.c.b16 %v964, %v960
        %v1061 = vpack.c.b16 %v965, %v961
        %v1062 = vpack.c.b16 %v966, %v962
        %v1063 = vpack.c.b16 %v967, %v963
        %v1064 = vpack.c.b16 %v972, %v968
        %v1065 = vpack.c.b16 %v973, %v969
        %v1066 = vpack.c.b16 %v974, %v970
        %v1067 = vpack.c.b16 %v975, %v971
        %v1068 = vpack.c.b16 %v980, %v976
        %v1069 = vpack.c.b16 %v981, %v977
        %v1070 = vpack.c.b16 %v982, %v978
        %v1071 = vpack.c.b16 %v983, %v979
        %v1072 = vpack.c.b16 %v988, %v984
        %v1073 = vpack.c.b16 %v989, %v985
        %v1074 = vpack.c.b16 %v990, %v986
        %v1075 = vpack.c.b16 %v991, %v987
        %v1076 = vpack.c.b16 %v996, %v992
        %v1077 = vpack.c.b16 %v997, %v993
        %v1078 = vpack.c.b16 %v998, %v994
        %v1079 = vpack.c.b16 %v999, %v995
        %v1080 = vpack.c.b16 %v1004, %v1000
        %v1081 = vpack.c.b16 %v1005, %v1001
        %v1082 = vpack.c.b16 %v1006, %v1002
        %v1083 = vpack.c.b16 %v1007, %v1003
        %v1084 = vpack.c.b16 %v1012, %v1008
        %v1085 = vpack.c.b16 %v1013, %v1009
        %v1086 = vpack.c.b16 %v1014, %v1010
        %v1087 = vpack.c.b16 %v1015, %v1011
        %v1088 = vpack.c.b16 %v1020, %v1016
        %v1089 = vpack.c.b16 %v1021, %v1017
        %v1090 = vpack.c.b16 %v1022, %v1018
        %v1091 = vpack.c.b16 %v1023, %v1019
        %v1092 = vpack.c.b16 %v1028, %v1024
        %v1093 = vpack.c.b16 %v1029, %v1025
        %v1094 = vpack.c.b16 %v1030, %v1026
        %v1095 = vpack.c.b16 %v1031, %v1027
        %1160 = vmatprep.subr.bf16.mxu0 %v1033
        %1161 = vmatpush1.bf16.msra.mxu0 %v1032
        %1162 = vmatprep.subr.bf16.mxu0 %v1037
        %1163 = vmatpush1.bf16.msra.mxu0 %v1036
        %1164 = vmatprep.subr.bf16.mxu0 %v1041
        %1165 = vmatpush1.bf16.msra.mxu0 %v1040
        %1166 = vmatprep.subr.bf16.mxu0 %v1045
        %1167 = vmatpush1.bf16.msra.mxu0 %v1044
        %1168 = vmatprep.subr.bf16.mxu0 %v1049
        %1169 = vmatpush1.bf16.msra.mxu0 %v1048
        %1170 = vmatprep.subr.bf16.mxu0 %v1053
        %1171 = vmatpush1.bf16.msra.mxu0 %v1052
        %1172 = vmatprep.subr.bf16.mxu0 %v1057
        %1173 = vmatpush1.bf16.msra.mxu0 %v1056
        %1174 = vmatprep.subr.bf16.mxu0 %v1061
        %1175 = vmatpush1.bf16.msra.mxu0 %v1060
        %1176 = vmatprep.subr.bf16.mxu0 %v1065
        %1177 = vmatpush1.bf16.msra.mxu0 %v1064
        %1178 = vmatprep.subr.bf16.mxu0 %v1069
        %1179 = vmatpush1.bf16.msra.mxu0 %v1068
        %1180 = vmatprep.subr.bf16.mxu0 %v1073
        %1181 = vmatpush1.bf16.msra.mxu0 %v1072
        %1182 = vmatprep.subr.bf16.mxu0 %v1077
        %1183 = vmatpush1.bf16.msra.mxu0 %v1076
        %1184 = vmatprep.subr.bf16.mxu0 %v1081
        %1185 = vmatpush1.bf16.msra.mxu0 %v1080
        %1186 = vmatprep.subr.bf16.mxu0 %v1085
        %1187 = vmatpush1.bf16.msra.mxu0 %v1084
        %1188 = vmatprep.subr.bf16.mxu0 %v1089
        %1189 = vmatpush1.bf16.msra.mxu0 %v1088
        %1190 = vmatprep.subr.bf16.mxu0 %v1093
        %1191 = vmatpush1.bf16.msra.mxu0 %v1092
        %1192 = vmatprep.mubr.bf16.mxu0 %v723
        %1193 = vmatmul.mubr.bf16.gmra.mrb[0].mxu0 %v722
        %v1194 = vpop.f32.mrb[0].mxu0
        %v1195 = vadd.f32 %v823, %v1194
        %v1196 = vpop.f32.mrb[0].mxu0
        %v1197 = vadd.f32 %v827, %v1196
        %v1198 = vpop.f32.mrb[0].mxu0
        %v1199 = vadd.f32 %v823, %v1198
        %v1200 = vpop.f32.mrb[0].mxu0
        %v1201 = vadd.f32 %v827, %v1200
        %1202 = vmatprep.mubr.bf16.mxu0 %v725
        %1203 = vmatmul.mubr.bf16.gmra.mrb[0].mxu0 %v724
        %v1204 = vpop.f32.mrb[0].mxu0
        %v1205 = vadd.f32 %v823, %v1204
        %v1206 = vpop.f32.mrb[0].mxu0
        %v1207 = vadd.f32 %v827, %v1206
        %v1208 = vpop.f32.mrb[0].mxu0
        %v1209 = vadd.f32 %v823, %v1208
        %v1210 = vpop.f32.mrb[0].mxu0
        %v1211 = vadd.f32 %v827, %v1210
        %1212 = vmatprep.mubr.bf16.mxu0 %v727
        %1213 = vmatmul.mubr.bf16.gmra.mrb[0].mxu0 %v726
        %v1214 = vpop.f32.mrb[0].mxu0
        %v1215 = vadd.f32 %v823, %v1214
        %v1216 = vpop.f32.mrb[0].mxu0
        %v1217 = vadd.f32 %v827, %v1216
        %v1218 = vpop.f32.mrb[0].mxu0
        %v1219 = vadd.f32 %v823, %v1218
        %v1220 = vpop.f32.mrb[0].mxu0
        %v1221 = vadd.f32 %v827, %v1220
        %1222 = vmatprep.mubr.bf16.mxu0 %v729
        %1223 = vmatmul.mubr.bf16.gmra.mrb[0].mxu0 %v728
        %v1224 = vpop.f32.mrb[0].mxu0
        %v1225 = vadd.f32 %v823, %v1224
        %v1226 = vpop.f32.mrb[0].mxu0
        %v1227 = vadd.f32 %v827, %v1226
        %v1228 = vpop.f32.mrb[0].mxu0
        %v1229 = vadd.f32 %v823, %v1228
        %v1230 = vpop.f32.mrb[0].mxu0
        %v1231 = vadd.f32 %v827, %v1230
        %1232 = vmatprep.mubr.bf16.mxu0 %v731
        %1233 = vmatmul.mubr.bf16.gmra.mrb[0].mxu0 %v730
        %v1234 = vpop.f32.mrb[0].mxu0
        %v1235 = vadd.f32 %v823, %v1234
        %v1236 = vpop.f32.mrb[0].mxu0
        %v1237 = vadd.f32 %v827, %v1236
        %v1238 = vpop.f32.mrb[0].mxu0
        %v1239 = vadd.f32 %v823, %v1238
        %v1240 = vpop.f32.mrb[0].mxu0
        %v1241 = vadd.f32 %v827, %v1240
        %1242 = vmatprep.mubr.bf16.mxu0 %v733
        %1243 = vmatmul.mubr.bf16.gmra.mrb[0].mxu0 %v732
        %v1244 = vpop.f32.mrb[0].mxu0
        %v1245 = vadd.f32 %v823, %v1244
        %v1246 = vpop.f32.mrb[0].mxu0
        %v1247 = vadd.f32 %v827, %v1246
        %v1248 = vpop.f32.mrb[0].mxu0
        %v1249 = vadd.f32 %v823, %v1248
        %v1250 = vpop.f32.mrb[0].mxu0
        %v1251 = vadd.f32 %v827, %v1250
        %1252 = vmatprep.mubr.bf16.mxu0 %v735
        %1253 = vmatmul.mubr.bf16.gmra.mrb[0].mxu0 %v734
        %v1254 = vpop.f32.mrb[0].mxu0
        %v1255 = vadd.f32 %v823, %v1254
        %v1256 = vpop.f32.mrb[0].mxu0
        %v1257 = vadd.f32 %v827, %v1256
        %v1258 = vpop.f32.mrb[0].mxu0
        %v1259 = vadd.f32 %v823, %v1258
        %v1260 = vpop.f32.mrb[0].mxu0
        %v1261 = vadd.f32 %v827, %v1260
        %1262 = vmatprep.mubr.bf16.mxu0 %v737
        %1263 = vmatmul.mubr.bf16.gmra.mrb[0].mxu0 %v736
        %v1264 = vpop.f32.mrb[0].mxu0
        %v1265 = vadd.f32 %v823, %v1264
        %v1266 = vpop.f32.mrb[0].mxu0
        %v1267 = vadd.f32 %v827, %v1266
        %v1268 = vpop.f32.mrb[0].mxu0
        %v1269 = vadd.f32 %v823, %v1268
        %v1270 = vpop.f32.mrb[0].mxu0
        %v1271 = vadd.f32 %v827, %v1270
        %1272 = vmatprep.mubr.bf16.mxu0 %v739
        %1273 = vmatmul.mubr.bf16.gmra.mrb[0].mxu0 %v738
        %v1274 = vpop.f32.mrb[0].mxu0
        %v1275 = vadd.f32 %v823, %v1274
        %v1276 = vpop.f32.mrb[0].mxu0
        %v1277 = vadd.f32 %v827, %v1276
        %v1278 = vpop.f32.mrb[0].mxu0
        %v1279 = vadd.f32 %v823, %v1278
        %v1280 = vpop.f32.mrb[0].mxu0
        %v1281 = vadd.f32 %v827, %v1280
        %1282 = vmatprep.mubr.bf16.mxu0 %v741
        %1283 = vmatmul.mubr.bf16.gmra.mrb[0].mxu0 %v740
        %v1284 = vpop.f32.mrb[0].mxu0
        %v1285 = vadd.f32 %v823, %v1284
        %v1286 = vpop.f32.mrb[0].mxu0
        %v1287 = vadd.f32 %v827, %v1286
        %v1288 = vpop.f32.mrb[0].mxu0
        %v1289 = vadd.f32 %v823, %v1288
        %v1290 = vpop.f32.mrb[0].mxu0
        %v1291 = vadd.f32 %v827, %v1290
        %1292 = vmatprep.mubr.bf16.mxu0 %v743
        %1293 = vmatmul.mubr.bf16.gmra.mrb[0].mxu0 %v742
        %v1294 = vpop.f32.mrb[0].mxu0
        %v1295 = vadd.f32 %v823, %v1294
        %v1296 = vpop.f32.mrb[0].mxu0
        %v1297 = vadd.f32 %v827, %v1296
        %v1298 = vpop.f32.mrb[0].mxu0
        %v1299 = vadd.f32 %v823, %v1298
        %v1300 = vpop.f32.mrb[0].mxu0
        %v1301 = vadd.f32 %v827, %v1300
        %1302 = vmatprep.mubr.bf16.mxu0 %v745
        %1303 = vmatmul.mubr.bf16.gmra.mrb[0].mxu0 %v744
        %v1304 = vpop.f32.mrb[0].mxu0
        %v1305 = vadd.f32 %v823, %v1304
        %v1306 = vpop.f32.mrb[0].mxu0
        %v1307 = vadd.f32 %v827, %v1306
        %v1308 = vpop.f32.mrb[0].mxu0
        %v1309 = vadd.f32 %v823, %v1308
        %v1310 = vpop.f32.mrb[0].mxu0
        %v1311 = vadd.f32 %v827, %v1310
        %1312 = vmatprep.mubr.bf16.mxu0 %v747
        %1313 = vmatmul.mubr.bf16.gmra.mrb[0].mxu0 %v746
        %v1314 = vpop.f32.mrb[0].mxu0
        %v1315 = vadd.f32 %v823, %v1314
        %v1316 = vpop.f32.mrb[0].mxu0
        %v1317 = vadd.f32 %v827, %v1316
        %v1318 = vpop.f32.mrb[0].mxu0
        %v1319 = vadd.f32 %v823, %v1318
        %v1320 = vpop.f32.mrb[0].mxu0
        %v1321 = vadd.f32 %v827, %v1320
        %1322 = vmatprep.mubr.bf16.mxu0 %v749
        %1323 = vmatmul.mubr.bf16.gmra.mrb[0].mxu0 %v748
        %v1324 = vpop.f32.mrb[0].mxu0
        %v1325 = vadd.f32 %v823, %v1324
        %v1326 = vpop.f32.mrb[0].mxu0
        %v1327 = vadd.f32 %v827, %v1326
        %v1328 = vpop.f32.mrb[0].mxu0
        %v1329 = vadd.f32 %v823, %v1328
        %v1330 = vpop.f32.mrb[0].mxu0
        %v1331 = vadd.f32 %v827, %v1330
        %1332 = vmatprep.mubr.bf16.mxu0 %v751
        %1333 = vmatmul.mubr.bf16.gmra.mrb[0].mxu0 %v750
        %v1334 = vpop.f32.mrb[0].mxu0
        %v1335 = vadd.f32 %v823, %v1334
        %v1336 = vpop.f32.mrb[0].mxu0
        %v1337 = vadd.f32 %v827, %v1336
        %v1338 = vpop.f32.mrb[0].mxu0
        %v1339 = vadd.f32 %v823, %v1338
        %v1340 = vpop.f32.mrb[0].mxu0
        %v1341 = vadd.f32 %v827, %v1340
        %1342 = vmatprep.mubr.bf16.mxu0 %v753
        %1343 = vmatmul.mubr.bf16.gmra.mrb[0].mxu0 %v752
        %v1344 = vpop.f32.mrb[0].mxu0
        %v1345 = vadd.f32 %v823, %v1344
        %v1346 = vpop.f32.mrb[0].mxu0
        %v1347 = vadd.f32 %v827, %v1346
        %v1348 = vpop.f32.mrb[0].mxu0
        %v1349 = vadd.f32 %v823, %v1348
        %v1350 = vpop.f32.mrb[0].mxu0
        %v1351 = vadd.f32 %v827, %v1350
        %1352 = vdwg.mxu0
        %1353 = vmatprep.subr.bf16.mxu0 %v1035
        %1354 = vmatpush1.bf16.msra.mxu0 %v1034
        %1355 = vmatprep.subr.bf16.mxu0 %v1039
        %1356 = vmatpush1.bf16.msra.mxu0 %v1038
        %1357 = vmatprep.subr.bf16.mxu0 %v1043
        %1358 = vmatpush1.bf16.msra.mxu0 %v1042
        %1359 = vmatprep.subr.bf16.mxu0 %v1047
        %1360 = vmatpush1.bf16.msra.mxu0 %v1046
        %1361 = vmatprep.subr.bf16.mxu0 %v1051
        %1362 = vmatpush1.bf16.msra.mxu0 %v1050
        %1363 = vmatprep.subr.bf16.mxu0 %v1055
        %1364 = vmatpush1.bf16.msra.mxu0 %v1054
        %1365 = vmatprep.subr.bf16.mxu0 %v1059
        %1366 = vmatpush1.bf16.msra.mxu0 %v1058
        %1367 = vmatprep.subr.bf16.mxu0 %v1063
        %1368 = vmatpush1.bf16.msra.mxu0 %v1062
        %1369 = vmatprep.subr.bf16.mxu0 %v1067
        %1370 = vmatpush1.bf16.msra.mxu0 %v1066
        %1371 = vmatprep.subr.bf16.mxu0 %v1071
        %1372 = vmatpush1.bf16.msra.mxu0 %v1070
        %1373 = vmatprep.subr.bf16.mxu0 %v1075
        %1374 = vmatpush1.bf16.msra.mxu0 %v1074
        %1375 = vmatprep.subr.bf16.mxu0 %v1079
        %1376 = vmatpush1.bf16.msra.mxu0 %v1078
        %1377 = vmatprep.subr.bf16.mxu0 %v1083
        %1378 = vmatpush1.bf16.msra.mxu0 %v1082
        %1379 = vmatprep.subr.bf16.mxu0 %v1087
        %1380 = vmatpush1.bf16.msra.mxu0 %v1086
        %1381 = vmatprep.subr.bf16.mxu0 %v1091
        %1382 = vmatpush1.bf16.msra.mxu0 %v1090
        %1383 = vmatprep.subr.bf16.mxu0 %v1095
        %1384 = vmatpush1.bf16.msra.mxu0 %v1094
        %1385 = vmatprep.mubr.bf16.mxu0 %v723
        %1386 = vmatmul.mubr.bf16.gmra.mrb[0].mxu0 %v722
        %v1387 = vpop.f32.mrb[0].mxu0
        %v1388 = vadd.f32 %v831, %v1387
        %v1389 = vpop.f32.mrb[0].mxu0
        %v1390 = vadd.f32 %v835, %v1389
        %v1391 = vpop.f32.mrb[0].mxu0
        %v1392 = vadd.f32 %v831, %v1391
        %v1393 = vpop.f32.mrb[0].mxu0
        %v1394 = vadd.f32 %v835, %v1393
        %1395 = vmatprep.mubr.bf16.mxu0 %v725
        %1396 = vmatmul.mubr.bf16.gmra.mrb[0].mxu0 %v724
        %v1397 = vpop.f32.mrb[0].mxu0
        %v1398 = vadd.f32 %v831, %v1397
        %v1399 = vpop.f32.mrb[0].mxu0
        %v1400 = vadd.f32 %v835, %v1399
        %v1401 = vpop.f32.mrb[0].mxu0
        %v1402 = vadd.f32 %v831, %v1401
        %v1403 = vpop.f32.mrb[0].mxu0
        %v1404 = vadd.f32 %v835, %v1403
        %1405 = vmatprep.mubr.bf16.mxu0 %v727
        %1406 = vmatmul.mubr.bf16.gmra.mrb[0].mxu0 %v726
        %v1407 = vpop.f32.mrb[0].mxu0
        %v1408 = vadd.f32 %v831, %v1407
        %v1409 = vpop.f32.mrb[0].mxu0
        %v1410 = vadd.f32 %v835, %v1409
        %v1411 = vpop.f32.mrb[0].mxu0
        %v1412 = vadd.f32 %v831, %v1411
        %v1413 = vpop.f32.mrb[0].mxu0
        %v1414 = vadd.f32 %v835, %v1413
        %1415 = vmatprep.mubr.bf16.mxu0 %v729
        %1416 = vmatmul.mubr.bf16.gmra.mrb[0].mxu0 %v728
        %v1417 = vpop.f32.mrb[0].mxu0
        %v1418 = vadd.f32 %v831, %v1417
        %v1419 = vpop.f32.mrb[0].mxu0
        %v1420 = vadd.f32 %v835, %v1419
        %v1421 = vpop.f32.mrb[0].mxu0
        %v1422 = vadd.f32 %v831, %v1421
        %v1423 = vpop.f32.mrb[0].mxu0
        %v1424 = vadd.f32 %v835, %v1423
        %1425 = vmatprep.mubr.bf16.mxu0 %v731
        %1426 = vmatmul.mubr.bf16.gmra.mrb[0].mxu0 %v730
        %v1427 = vpop.f32.mrb[0].mxu0
        %v1428 = vadd.f32 %v831, %v1427
        %v1429 = vpop.f32.mrb[0].mxu0
        %v1430 = vadd.f32 %v835, %v1429
        %v1431 = vpop.f32.mrb[0].mxu0
        %v1432 = vadd.f32 %v831, %v1431
        %v1433 = vpop.f32.mrb[0].mxu0
        %v1434 = vadd.f32 %v835, %v1433
        %1435 = vmatprep.mubr.bf16.mxu0 %v733
        %1436 = vmatmul.mubr.bf16.gmra.mrb[0].mxu0 %v732
        %v1437 = vpop.f32.mrb[0].mxu0
        %v1438 = vadd.f32 %v831, %v1437
        %v1439 = vpop.f32.mrb[0].mxu0
        %v1440 = vadd.f32 %v835, %v1439
        %v1441 = vpop.f32.mrb[0].mxu0
        %v1442 = vadd.f32 %v831, %v1441
        %v1443 = vpop.f32.mrb[0].mxu0
        %v1444 = vadd.f32 %v835, %v1443
        %1445 = vmatprep.mubr.bf16.mxu0 %v735
        %1446 = vmatmul.mubr.bf16.gmra.mrb[0].mxu0 %v734
        %v1447 = vpop.f32.mrb[0].mxu0
        %v1448 = vadd.f32 %v831, %v1447
        %v1449 = vpop.f32.mrb[0].mxu0
        %v1450 = vadd.f32 %v835, %v1449
        %v1451 = vpop.f32.mrb[0].mxu0
        %v1452 = vadd.f32 %v831, %v1451
        %v1453 = vpop.f32.mrb[0].mxu0
        %v1454 = vadd.f32 %v835, %v1453
        %1455 = vmatprep.mubr.bf16.mxu0 %v737
        %1456 = vmatmul.mubr.bf16.gmra.mrb[0].mxu0 %v736
        %v1457 = vpop.f32.mrb[0].mxu0
        %v1458 = vadd.f32 %v831, %v1457
        %v1459 = vpop.f32.mrb[0].mxu0
        %v1460 = vadd.f32 %v835, %v1459
        %v1461 = vpop.f32.mrb[0].mxu0
        %v1462 = vadd.f32 %v831, %v1461
        %v1463 = vpop.f32.mrb[0].mxu0
        %v1464 = vadd.f32 %v835, %v1463
        %1465 = vmatprep.mubr.bf16.mxu0 %v739
        %1466 = vmatmul.mubr.bf16.gmra.mrb[0].mxu0 %v738
        %v1467 = vpop.f32.mrb[0].mxu0
        %v1468 = vadd.f32 %v831, %v1467
        %v1469 = vpop.f32.mrb[0].mxu0
        %v1470 = vadd.f32 %v835, %v1469
        %v1471 = vpop.f32.mrb[0].mxu0
        %v1472 = vadd.f32 %v831, %v1471
        %v1473 = vpop.f32.mrb[0].mxu0
        %v1474 = vadd.f32 %v835, %v1473
        %1475 = vmatprep.mubr.bf16.mxu0 %v741
        %1476 = vmatmul.mubr.bf16.gmra.mrb[0].mxu0 %v740
        %v1477 = vpop.f32.mrb[0].mxu0
        %v1478 = vadd.f32 %v831, %v1477
        %v1479 = vpop.f32.mrb[0].mxu0
        %v1480 = vadd.f32 %v835, %v1479
        %v1481 = vpop.f32.mrb[0].mxu0
        %v1482 = vadd.f32 %v831, %v1481
        %v1483 = vpop.f32.mrb[0].mxu0
        %v1484 = vadd.f32 %v835, %v1483
        %1485 = vmatprep.mubr.bf16.mxu0 %v743
        %1486 = vmatmul.mubr.bf16.gmra.mrb[0].mxu0 %v742
        %v1487 = vpop.f32.mrb[0].mxu0
        %v1488 = vadd.f32 %v831, %v1487
        %v1489 = vpop.f32.mrb[0].mxu0
        %v1490 = vadd.f32 %v835, %v1489
        %v1491 = vpop.f32.mrb[0].mxu0
        %v1492 = vadd.f32 %v831, %v1491
        %v1493 = vpop.f32.mrb[0].mxu0
        %v1494 = vadd.f32 %v835, %v1493
        %1495 = vmatprep.mubr.bf16.mxu0 %v745
        %1496 = vmatmul.mubr.bf16.gmra.mrb[0].mxu0 %v744
        %v1497 = vpop.f32.mrb[0].mxu0
        %v1498 = vadd.f32 %v831, %v1497
        %v1499 = vpop.f32.mrb[0].mxu0
        %v1500 = vadd.f32 %v835, %v1499
        %v1501 = vpop.f32.mrb[0].mxu0
        %v1502 = vadd.f32 %v831, %v1501
        %v1503 = vpop.f32.mrb[0].mxu0
        %v1504 = vadd.f32 %v835, %v1503
        %1505 = vmatprep.mubr.bf16.mxu0 %v747
        %1506 = vmatmul.mubr.bf16.gmra.mrb[0].mxu0 %v746
        %v1507 = vpop.f32.mrb[0].mxu0
        %v1508 = vadd.f32 %v831, %v1507
        %v1509 = vpop.f32.mrb[0].mxu0
        %v1510 = vadd.f32 %v835, %v1509
        %v1511 = vpop.f32.mrb[0].mxu0
        %v1512 = vadd.f32 %v831, %v1511
        %v1513 = vpop.f32.mrb[0].mxu0
        %v1514 = vadd.f32 %v835, %v1513
        %1515 = vmatprep.mubr.bf16.mxu0 %v749
        %1516 = vmatmul.mubr.bf16.gmra.mrb[0].mxu0 %v748
        %v1517 = vpop.f32.mrb[0].mxu0
        %v1518 = vadd.f32 %v831, %v1517
        %v1519 = vpop.f32.mrb[0].mxu0
        %v1520 = vadd.f32 %v835, %v1519
        %v1521 = vpop.f32.mrb[0].mxu0
        %v1522 = vadd.f32 %v831, %v1521
        %v1523 = vpop.f32.mrb[0].mxu0
        %v1524 = vadd.f32 %v835, %v1523
        %1525 = vmatprep.mubr.bf16.mxu0 %v751
        %1526 = vmatmul.mubr.bf16.gmra.mrb[0].mxu0 %v750
        %v1527 = vpop.f32.mrb[0].mxu0
        %v1528 = vadd.f32 %v831, %v1527
        %v1529 = vpop.f32.mrb[0].mxu0
        %v1530 = vadd.f32 %v835, %v1529
        %v1531 = vpop.f32.mrb[0].mxu0
        %v1532 = vadd.f32 %v831, %v1531
        %v1533 = vpop.f32.mrb[0].mxu0
        %v1534 = vadd.f32 %v835, %v1533
        %1535 = vmatprep.mubr.bf16.mxu0 %v753
        %1536 = vmatmul.mubr.bf16.gmra.mrb[0].mxu0 %v752
        %v1537 = vpop.f32.mrb[0].mxu0
        %v1538 = vadd.f32 %v831, %v1537
        %v1539 = vpop.f32.mrb[0].mxu0
        %v1540 = vadd.f32 %v835, %v1539
        %v1541 = vpop.f32.mrb[0].mxu0
        %v1542 = vadd.f32 %v831, %v1541
        %v1543 = vpop.f32.mrb[0].mxu0
        %v1544 = vadd.f32 %v835, %v1543
        %1545 = vdwg.mxu0
        %v1546 = vmax.f32 %v1195, 0.0
        %v1547 = vmax.f32 %v1197, 0.0
        %v1548 = vmax.f32 %v1388, 0.0
        %v1549 = vmax.f32 %v1390, 0.0
        %v1550 = vmax.f32 %v1199, 0.0
        %v1551 = vmax.f32 %v1201, 0.0
        %v1552 = vmax.f32 %v1392, 0.0
        %v1553 = vmax.f32 %v1394, 0.0
        %v1554 = vmax.f32 %v1205, 0.0
        %v1555 = vmax.f32 %v1207, 0.0
        %v1556 = vmax.f32 %v1398, 0.0
        %v1557 = vmax.f32 %v1400, 0.0
        %v1558 = vmax.f32 %v1209, 0.0
        %v1559 = vmax.f32 %v1211, 0.0
        %v1560 = vmax.f32 %v1402, 0.0
        %v1561 = vmax.f32 %v1404, 0.0
        %v1562 = vmax.f32 %v1215, 0.0
        %v1563 = vmax.f32 %v1217, 0.0
        %v1564 = vmax.f32 %v1408, 0.0
        %v1565 = vmax.f32 %v1410, 0.0
        %v1566 = vmax.f32 %v1219, 0.0
        %v1567 = vmax.f32 %v1221, 0.0
        %v1568 = vmax.f32 %v1412, 0.0
        %v1569 = vmax.f32 %v1414, 0.0
        %v1570 = vmax.f32 %v1225, 0.0
        %v1571 = vmax.f32 %v1227, 0.0
        %v1572 = vmax.f32 %v1418, 0.0
        %v1573 = vmax.f32 %v1420, 0.0
        %v1574 = vmax.f32 %v1229, 0.0
        %v1575 = vmax.f32 %v1231, 0.0
        %v1576 = vmax.f32 %v1422, 0.0
        %v1577 = vmax.f32 %v1424, 0.0
        %v1578 = vmax.f32 %v1235, 0.0
        %v1579 = vmax.f32 %v1237, 0.0
        %v1580 = vmax.f32 %v1428, 0.0
        %v1581 = vmax.f32 %v1430, 0.0
        %v1582 = vmax.f32 %v1239, 0.0
        %v1583 = vmax.f32 %v1241, 0.0
        %v1584 = vmax.f32 %v1432, 0.0
        %v1585 = vmax.f32 %v1434, 0.0
        %v1586 = vmax.f32 %v1245, 0.0
        %v1587 = vmax.f32 %v1247, 0.0
        %v1588 = vmax.f32 %v1438, 0.0
        %v1589 = vmax.f32 %v1440, 0.0
        %v1590 = vmax.f32 %v1249, 0.0
        %v1591 = vmax.f32 %v1251, 0.0
        %v1592 = vmax.f32 %v1442, 0.0
        %v1593 = vmax.f32 %v1444, 0.0
        %v1594 = vmax.f32 %v1255, 0.0
        %v1595 = vmax.f32 %v1257, 0.0
        %v1596 = vmax.f32 %v1448, 0.0
        %v1597 = vmax.f32 %v1450, 0.0
        %v1598 = vmax.f32 %v1259, 0.0
        %v1599 = vmax.f32 %v1261, 0.0
        %v1600 = vmax.f32 %v1452, 0.0
        %v1601 = vmax.f32 %v1454, 0.0
        %v1602 = vmax.f32 %v1265, 0.0
        %v1603 = vmax.f32 %v1267, 0.0
        %v1604 = vmax.f32 %v1458, 0.0
        %v1605 = vmax.f32 %v1460, 0.0
        %v1606 = vmax.f32 %v1269, 0.0
        %v1607 = vmax.f32 %v1271, 0.0
        %v1608 = vmax.f32 %v1462, 0.0
        %v1609 = vmax.f32 %v1464, 0.0
        %v1610 = vmax.f32 %v1275, 0.0
        %v1611 = vmax.f32 %v1277, 0.0
        %v1612 = vmax.f32 %v1468, 0.0
        %v1613 = vmax.f32 %v1470, 0.0
        %v1614 = vmax.f32 %v1279, 0.0
        %v1615 = vmax.f32 %v1281, 0.0
        %v1616 = vmax.f32 %v1472, 0.0
        %v1617 = vmax.f32 %v1474, 0.0
        %v1618 = vmax.f32 %v1285, 0.0
        %v1619 = vmax.f32 %v1287, 0.0
        %v1620 = vmax.f32 %v1478, 0.0
        %v1621 = vmax.f32 %v1480, 0.0
        %v1622 = vmax.f32 %v1289, 0.0
        %v1623 = vmax.f32 %v1291, 0.0
        %v1624 = vmax.f32 %v1482, 0.0
        %v1625 = vmax.f32 %v1484, 0.0
        %v1626 = vmax.f32 %v1295, 0.0
        %v1627 = vmax.f32 %v1297, 0.0
        %v1628 = vmax.f32 %v1488, 0.0
        %v1629 = vmax.f32 %v1490, 0.0
        %v1630 = vmax.f32 %v1299, 0.0
        %v1631 = vmax.f32 %v1301, 0.0
        %v1632 = vmax.f32 %v1492, 0.0
        %v1633 = vmax.f32 %v1494, 0.0
        %v1634 = vmax.f32 %v1305, 0.0
        %v1635 = vmax.f32 %v1307, 0.0
        %v1636 = vmax.f32 %v1498, 0.0
        %v1637 = vmax.f32 %v1500, 0.0
        %v1638 = vmax.f32 %v1309, 0.0
        %v1639 = vmax.f32 %v1311, 0.0
        %v1640 = vmax.f32 %v1502, 0.0
        %v1641 = vmax.f32 %v1504, 0.0
        %v1642 = vmax.f32 %v1315, 0.0
        %v1643 = vmax.f32 %v1317, 0.0
        %v1644 = vmax.f32 %v1508, 0.0
        %v1645 = vmax.f32 %v1510, 0.0
        %v1646 = vmax.f32 %v1319, 0.0
        %v1647 = vmax.f32 %v1321, 0.0
        %v1648 = vmax.f32 %v1512, 0.0
        %v1649 = vmax.f32 %v1514, 0.0
        %v1650 = vmax.f32 %v1325, 0.0
        %v1651 = vmax.f32 %v1327, 0.0
        %v1652 = vmax.f32 %v1518, 0.0
        %v1653 = vmax.f32 %v1520, 0.0
        %v1654 = vmax.f32 %v1329, 0.0
        %v1655 = vmax.f32 %v1331, 0.0
        %v1656 = vmax.f32 %v1522, 0.0
        %v1657 = vmax.f32 %v1524, 0.0
        %v1658 = vmax.f32 %v1335, 0.0
        %v1659 = vmax.f32 %v1337, 0.0
        %v1660 = vmax.f32 %v1528, 0.0
        %v1661 = vmax.f32 %v1530, 0.0
        %v1662 = vmax.f32 %v1339, 0.0
        %v1663 = vmax.f32 %v1341, 0.0
        %v1664 = vmax.f32 %v1532, 0.0
        %v1665 = vmax.f32 %v1534, 0.0
        %v1666 = vmax.f32 %v1345, 0.0
        %v1667 = vmax.f32 %v1347, 0.0
        %v1668 = vmax.f32 %v1538, 0.0
        %v1669 = vmax.f32 %v1540, 0.0
        %v1670 = vmax.f32 %v1349, 0.0
        %v1671 = vmax.f32 %v1351, 0.0
        %v1672 = vmax.f32 %v1542, 0.0
        %v1673 = vmax.f32 %v1544, 0.0
        %v1674 = vpack.c.bf16 %v1550, %v1546
        %v1675 = vpack.c.bf16 %v1551, %v1547
        %v1676 = vpack.c.bf16 %v1552, %v1548
        %v1677 = vpack.c.bf16 %v1553, %v1549
        %v1678 = vpack.c.bf16 %v1558, %v1554
        %v1679 = vpack.c.bf16 %v1559, %v1555
        %v1680 = vpack.c.bf16 %v1560, %v1556
        %v1681 = vpack.c.bf16 %v1561, %v1557
        %v1682 = vpack.c.bf16 %v1566, %v1562
        %v1683 = vpack.c.bf16 %v1567, %v1563
        %v1684 = vpack.c.bf16 %v1568, %v1564
        %v1685 = vpack.c.bf16 %v1569, %v1565
        %v1686 = vpack.c.bf16 %v1574, %v1570
        %v1687 = vpack.c.bf16 %v1575, %v1571
        %v1688 = vpack.c.bf16 %v1576, %v1572
        %v1689 = vpack.c.bf16 %v1577, %v1573
        %v1690 = vpack.c.bf16 %v1582, %v1578
        %v1691 = vpack.c.bf16 %v1583, %v1579
        %v1692 = vpack.c.bf16 %v1584, %v1580
        %v1693 = vpack.c.bf16 %v1585, %v1581
        %v1694 = vpack.c.bf16 %v1590, %v1586
        %v1695 = vpack.c.bf16 %v1591, %v1587
        %v1696 = vpack.c.bf16 %v1592, %v1588
        %v1697 = vpack.c.bf16 %v1593, %v1589
        %v1698 = vpack.c.bf16 %v1598, %v1594
        %v1699 = vpack.c.bf16 %v1599, %v1595
        %v1700 = vpack.c.bf16 %v1600, %v1596
        %v1701 = vpack.c.bf16 %v1601, %v1597
        %v1702 = vpack.c.bf16 %v1606, %v1602
        %v1703 = vpack.c.bf16 %v1607, %v1603
        %v1704 = vpack.c.bf16 %v1608, %v1604
        %v1705 = vpack.c.bf16 %v1609, %v1605
        %v1706 = vpack.c.bf16 %v1614, %v1610
        %v1707 = vpack.c.bf16 %v1615, %v1611
        %v1708 = vpack.c.bf16 %v1616, %v1612
        %v1709 = vpack.c.bf16 %v1617, %v1613
        %v1710 = vpack.c.bf16 %v1622, %v1618
        %v1711 = vpack.c.bf16 %v1623, %v1619
        %v1712 = vpack.c.bf16 %v1624, %v1620
        %v1713 = vpack.c.bf16 %v1625, %v1621
        %v1714 = vpack.c.bf16 %v1630, %v1626
        %v1715 = vpack.c.bf16 %v1631, %v1627
        %v1716 = vpack.c.bf16 %v1632, %v1628
        %v1717 = vpack.c.bf16 %v1633, %v1629
        %v1718 = vpack.c.bf16 %v1638, %v1634
        %v1719 = vpack.c.bf16 %v1639, %v1635
        %v1720 = vpack.c.bf16 %v1640, %v1636
        %v1721 = vpack.c.bf16 %v1641, %v1637
        %v1722 = vpack.c.bf16 %v1646, %v1642
        %v1723 = vpack.c.bf16 %v1647, %v1643
        %v1724 = vpack.c.bf16 %v1648, %v1644
        %v1725 = vpack.c.bf16 %v1649, %v1645
        %v1726 = vpack.c.bf16 %v1654, %v1650
        %v1727 = vpack.c.bf16 %v1655, %v1651
        %v1728 = vpack.c.bf16 %v1656, %v1652
        %v1729 = vpack.c.bf16 %v1657, %v1653
        %v1730 = vpack.c.bf16 %v1662, %v1658
        %v1731 = vpack.c.bf16 %v1663, %v1659
        %v1732 = vpack.c.bf16 %v1664, %v1660
        %v1733 = vpack.c.bf16 %v1665, %v1661
        %v1734 = vpack.c.bf16 %v1670, %v1666
        %v1735 = vpack.c.bf16 %v1671, %v1667
        %v1736 = vpack.c.bf16 %v1672, %v1668
        %v1737 = vpack.c.bf16 %v1673, %v1669
        %v1738 = vld [vmem:[#allocation7] sm:$0xff]
        %v1739 = vld [vmem:[#allocation7 + $0x8] sm:$0xff]
        %v1740 = vld [vmem:[#allocation7 + $0x10] sm:$0xff]
        %v1741 = vld [vmem:[#allocation7 + $0x18] sm:$0xff]
        %v1742 = vld [vmem:[#allocation7 + $0x20] sm:$0xff]
        %v1743 = vld [vmem:[#allocation7 + $0x28] sm:$0xff]
        %v1744 = vld [vmem:[#allocation7 + $0x30] sm:$0xff]
        %v1745 = vld [vmem:[#allocation7 + $0x38] sm:$0xff]
        %v1746 = vld [vmem:[#allocation7 + $0x40] sm:$0xff]
        %v1747 = vld [vmem:[#allocation7 + $0x48] sm:$0xff]
        %v1748 = vld [vmem:[#allocation7 + $0x50] sm:$0xff]
        %v1749 = vld [vmem:[#allocation7 + $0x58] sm:$0xff]
        %v1750 = vld [vmem:[#allocation7 + $0x60] sm:$0xff]
        %v1751 = vld [vmem:[#allocation7 + $0x68] sm:$0xff]
        %v1752 = vld [vmem:[#allocation7 + $0x70] sm:$0xff]
        %v1753 = vld [vmem:[#allocation7 + $0x78] sm:$0xff]
        %v1754 = vld [vmem:[#allocation7 + $0x80] sm:$0xff]
        %v1755 = vld [vmem:[#allocation7 + $0x88] sm:$0xff]
        %v1756 = vld [vmem:[#allocation7 + $0x90] sm:$0xff]
        %v1757 = vld [vmem:[#allocation7 + $0x98] sm:$0xff]
        %v1758 = vld [vmem:[#allocation7 + $0xa0] sm:$0xff]
        %v1759 = vld [vmem:[#allocation7 + $0xa8] sm:$0xff]
        %v1760 = vld [vmem:[#allocation7 + $0xb0] sm:$0xff]
        %v1761 = vld [vmem:[#allocation7 + $0xb8] sm:$0xff]
        %v1762 = vld [vmem:[#allocation7 + $0xc0] sm:$0xff]
        %v1763 = vld [vmem:[#allocation7 + $0xc8] sm:$0xff]
        %v1764 = vld [vmem:[#allocation7 + $0xd0] sm:$0xff]
        %v1765 = vld [vmem:[#allocation7 + $0xd8] sm:$0xff]
        %v1766 = vld [vmem:[#allocation7 + $0xe0] sm:$0xff]
        %v1767 = vld [vmem:[#allocation7 + $0xe8] sm:$0xff]
        %v1768 = vld [vmem:[#allocation7 + $0xf0] sm:$0xff]
        %v1769 = vld [vmem:[#allocation7 + $0xf8] sm:$0xff]
        %v1770 = vld [vmem:[#allocation7 + $0x100] sm:$0xff]
        %v1771 = vld [vmem:[#allocation7 + $0x108] sm:$0xff]
        %v1772 = vld [vmem:[#allocation7 + $0x110] sm:$0xff]
        %v1773 = vld [vmem:[#allocation7 + $0x118] sm:$0xff]
        %v1774 = vld [vmem:[#allocation7 + $0x120] sm:$0xff]
        %v1775 = vld [vmem:[#allocation7 + $0x128] sm:$0xff]
        %v1776 = vld [vmem:[#allocation7 + $0x130] sm:$0xff]
        %v1777 = vld [vmem:[#allocation7 + $0x138] sm:$0xff]
        %v1778 = vld [vmem:[#allocation7 + $0x140] sm:$0xff]
        %v1779 = vld [vmem:[#allocation7 + $0x148] sm:$0xff]
        %v1780 = vld [vmem:[#allocation7 + $0x150] sm:$0xff]
        %v1781 = vld [vmem:[#allocation7 + $0x158] sm:$0xff]
        %v1782 = vld [vmem:[#allocation7 + $0x160] sm:$0xff]
        %v1783 = vld [vmem:[#allocation7 + $0x168] sm:$0xff]
        %v1784 = vld [vmem:[#allocation7 + $0x170] sm:$0xff]
        %v1785 = vld [vmem:[#allocation7 + $0x178] sm:$0xff]
        %v1786 = vld [vmem:[#allocation7 + $0x180] sm:$0xff]
        %v1787 = vld [vmem:[#allocation7 + $0x188] sm:$0xff]
        %v1788 = vld [vmem:[#allocation7 + $0x190] sm:$0xff]
        %v1789 = vld [vmem:[#allocation7 + $0x198] sm:$0xff]
        %v1790 = vld [vmem:[#allocation7 + $0x1a0] sm:$0xff]
        %v1791 = vld [vmem:[#allocation7 + $0x1a8] sm:$0xff]
        %v1792 = vld [vmem:[#allocation7 + $0x1b0] sm:$0xff]
        %v1793 = vld [vmem:[#allocation7 + $0x1b8] sm:$0xff]
        %v1794 = vld [vmem:[#allocation7 + $0x1c0] sm:$0xff]
        %v1795 = vld [vmem:[#allocation7 + $0x1c8] sm:$0xff]
        %v1796 = vld [vmem:[#allocation7 + $0x1d0] sm:$0xff]
        %v1797 = vld [vmem:[#allocation7 + $0x1d8] sm:$0xff]
        %v1798 = vld [vmem:[#allocation7 + $0x1e0] sm:$0xff]
        %v1799 = vld [vmem:[#allocation7 + $0x1e8] sm:$0xff]
        %v1800 = vld [vmem:[#allocation7 + $0x1f0] sm:$0xff]
        %v1801 = vld [vmem:[#allocation7 + $0x1f8] sm:$0xff]
        %v1802 = vld [vmem:[%s4] sm:$0x3]
        %v1804 = vlaneseq
        %v1805 = vshrl.u32 %v1804, 7
        %v1806 = vsub.s32 0, %v1805
        %v1807 = vrot.slane %v1802, %v1806
        %v1808 = vlaneseq
        %v1809 = vshrl.u32 %v1808, 7
        %v1810 = vsub.s32 1, %v1809
        %v1811 = vrot.slane %v1802, %v1810
        %v1878 = vunpack.c.l.b16 %v1738
        %v1879 = vunpack.c.h.b16 %v1738
        %v1880 = vunpack.c.l.b16 %v1739
        %v1881 = vunpack.c.h.b16 %v1739
        %v1882 = vunpack.c.l.b16 %v1740
        %v1883 = vunpack.c.h.b16 %v1740
        %v1884 = vunpack.c.l.b16 %v1741
        %v1885 = vunpack.c.h.b16 %v1741
        %v1886 = vunpack.c.l.b16 %v1742
        %v1887 = vunpack.c.h.b16 %v1742
        %v1888 = vunpack.c.l.b16 %v1743
        %v1889 = vunpack.c.h.b16 %v1743
        %v1890 = vunpack.c.l.b16 %v1744
        %v1891 = vunpack.c.h.b16 %v1744
        %v1892 = vunpack.c.l.b16 %v1745
        %v1893 = vunpack.c.h.b16 %v1745
        %v1894 = vunpack.c.l.b16 %v1746
        %v1895 = vunpack.c.h.b16 %v1746
        %v1896 = vunpack.c.l.b16 %v1747
        %v1897 = vunpack.c.h.b16 %v1747
        %v1898 = vunpack.c.l.b16 %v1748
        %v1899 = vunpack.c.h.b16 %v1748
        %v1900 = vunpack.c.l.b16 %v1749
        %v1901 = vunpack.c.h.b16 %v1749
        %v1902 = vunpack.c.l.b16 %v1750
        %v1903 = vunpack.c.h.b16 %v1750
        %v1904 = vunpack.c.l.b16 %v1751
        %v1905 = vunpack.c.h.b16 %v1751
        %v1906 = vunpack.c.l.b16 %v1752
        %v1907 = vunpack.c.h.b16 %v1752
        %v1908 = vunpack.c.l.b16 %v1753
        %v1909 = vunpack.c.h.b16 %v1753
        %v1910 = vunpack.c.l.b16 %v1754
        %v1911 = vunpack.c.h.b16 %v1754
        %v1912 = vunpack.c.l.b16 %v1755
        %v1913 = vunpack.c.h.b16 %v1755
        %v1914 = vunpack.c.l.b16 %v1756
        %v1915 = vunpack.c.h.b16 %v1756
        %v1916 = vunpack.c.l.b16 %v1757
        %v1917 = vunpack.c.h.b16 %v1757
        %v1918 = vunpack.c.l.b16 %v1758
        %v1919 = vunpack.c.h.b16 %v1758
        %v1920 = vunpack.c.l.b16 %v1759
        %v1921 = vunpack.c.h.b16 %v1759
        %v1922 = vunpack.c.l.b16 %v1760
        %v1923 = vunpack.c.h.b16 %v1760
        %v1924 = vunpack.c.l.b16 %v1761
        %v1925 = vunpack.c.h.b16 %v1761
        %v1926 = vunpack.c.l.b16 %v1762
        %v1927 = vunpack.c.h.b16 %v1762
        %v1928 = vunpack.c.l.b16 %v1763
        %v1929 = vunpack.c.h.b16 %v1763
        %v1930 = vunpack.c.l.b16 %v1764
        %v1931 = vunpack.c.h.b16 %v1764
        %v1932 = vunpack.c.l.b16 %v1765
        %v1933 = vunpack.c.h.b16 %v1765
        %v1934 = vunpack.c.l.b16 %v1766
        %v1935 = vunpack.c.h.b16 %v1766
        %v1936 = vunpack.c.l.b16 %v1767
        %v1937 = vunpack.c.h.b16 %v1767
        %v1938 = vunpack.c.l.b16 %v1768
        %v1939 = vunpack.c.h.b16 %v1768
        %v1940 = vunpack.c.l.b16 %v1769
        %v1941 = vunpack.c.h.b16 %v1769
        %v1942 = vunpack.c.l.b16 %v1770
        %v1943 = vunpack.c.h.b16 %v1770
        %v1944 = vunpack.c.l.b16 %v1771
        %v1945 = vunpack.c.h.b16 %v1771
        %v1946 = vunpack.c.l.b16 %v1772
        %v1947 = vunpack.c.h.b16 %v1772
        %v1948 = vunpack.c.l.b16 %v1773
        %v1949 = vunpack.c.h.b16 %v1773
        %v1950 = vunpack.c.l.b16 %v1774
        %v1951 = vunpack.c.h.b16 %v1774
        %v1952 = vunpack.c.l.b16 %v1775
        %v1953 = vunpack.c.h.b16 %v1775
        %v1954 = vunpack.c.l.b16 %v1776
        %v1955 = vunpack.c.h.b16 %v1776
        %v1956 = vunpack.c.l.b16 %v1777
        %v1957 = vunpack.c.h.b16 %v1777
        %v1958 = vunpack.c.l.b16 %v1778
        %v1959 = vunpack.c.h.b16 %v1778
        %v1960 = vunpack.c.l.b16 %v1779
        %v1961 = vunpack.c.h.b16 %v1779
        %v1962 = vunpack.c.l.b16 %v1780
        %v1963 = vunpack.c.h.b16 %v1780
        %v1964 = vunpack.c.l.b16 %v1781
        %v1965 = vunpack.c.h.b16 %v1781
        %v1966 = vunpack.c.l.b16 %v1782
        %v1967 = vunpack.c.h.b16 %v1782
        %v1968 = vunpack.c.l.b16 %v1783
        %v1969 = vunpack.c.h.b16 %v1783
        %v1970 = vunpack.c.l.b16 %v1784
        %v1971 = vunpack.c.h.b16 %v1784
        %v1972 = vunpack.c.l.b16 %v1785
        %v1973 = vunpack.c.h.b16 %v1785
        %v1974 = vunpack.c.l.b16 %v1786
        %v1975 = vunpack.c.h.b16 %v1786
        %v1976 = vunpack.c.l.b16 %v1787
        %v1977 = vunpack.c.h.b16 %v1787
        %v1978 = vunpack.c.l.b16 %v1788
        %v1979 = vunpack.c.h.b16 %v1788
        %v1980 = vunpack.c.l.b16 %v1789
        %v1981 = vunpack.c.h.b16 %v1789
        %v1982 = vunpack.c.l.b16 %v1790
        %v1983 = vunpack.c.h.b16 %v1790
        %v1984 = vunpack.c.l.b16 %v1791
        %v1985 = vunpack.c.h.b16 %v1791
        %v1986 = vunpack.c.l.b16 %v1792
        %v1987 = vunpack.c.h.b16 %v1792
        %v1988 = vunpack.c.l.b16 %v1793
        %v1989 = vunpack.c.h.b16 %v1793
        %v1990 = vunpack.c.l.b16 %v1794
        %v1991 = vunpack.c.h.b16 %v1794
        %v1992 = vunpack.c.l.b16 %v1795
        %v1993 = vunpack.c.h.b16 %v1795
        %v1994 = vunpack.c.l.b16 %v1796
        %v1995 = vunpack.c.h.b16 %v1796
        %v1996 = vunpack.c.l.b16 %v1797
        %v1997 = vunpack.c.h.b16 %v1797
        %v1998 = vunpack.c.l.b16 %v1798
        %v1999 = vunpack.c.h.b16 %v1798
        %v2000 = vunpack.c.l.b16 %v1799
        %v2001 = vunpack.c.h.b16 %v1799
        %v2002 = vunpack.c.l.b16 %v1800
        %v2003 = vunpack.c.h.b16 %v1800
        %v2004 = vunpack.c.l.b16 %v1801
        %v2005 = vunpack.c.h.b16 %v1801
        %v2006 = vpack.c.b16 %v1880, %v1878
        %v2007 = vpack.c.b16 %v1881, %v1879
        %v2008 = vpack.c.b16 %v1884, %v1882
        %v2009 = vpack.c.b16 %v1885, %v1883
        %v2010 = vpack.c.b16 %v1888, %v1886
        %v2011 = vpack.c.b16 %v1889, %v1887
        %v2012 = vpack.c.b16 %v1892, %v1890
        %v2013 = vpack.c.b16 %v1893, %v1891
        %v2014 = vpack.c.b16 %v1896, %v1894
        %v2015 = vpack.c.b16 %v1897, %v1895
        %v2016 = vpack.c.b16 %v1900, %v1898
        %v2017 = vpack.c.b16 %v1901, %v1899
        %v2018 = vpack.c.b16 %v1904, %v1902
        %v2019 = vpack.c.b16 %v1905, %v1903
        %v2020 = vpack.c.b16 %v1908, %v1906
        %v2021 = vpack.c.b16 %v1909, %v1907
        %v2022 = vpack.c.b16 %v1912, %v1910
        %v2023 = vpack.c.b16 %v1913, %v1911
        %v2024 = vpack.c.b16 %v1916, %v1914
        %v2025 = vpack.c.b16 %v1917, %v1915
        %v2026 = vpack.c.b16 %v1920, %v1918
        %v2027 = vpack.c.b16 %v1921, %v1919
        %v2028 = vpack.c.b16 %v1924, %v1922
        %v2029 = vpack.c.b16 %v1925, %v1923
        %v2030 = vpack.c.b16 %v1928, %v1926
        %v2031 = vpack.c.b16 %v1929, %v1927
        %v2032 = vpack.c.b16 %v1932, %v1930
        %v2033 = vpack.c.b16 %v1933, %v1931
        %v2034 = vpack.c.b16 %v1936, %v1934
        %v2035 = vpack.c.b16 %v1937, %v1935
        %v2036 = vpack.c.b16 %v1940, %v1938
        %v2037 = vpack.c.b16 %v1941, %v1939
        %v2038 = vpack.c.b16 %v1944, %v1942
        %v2039 = vpack.c.b16 %v1945, %v1943
        %v2040 = vpack.c.b16 %v1948, %v1946
        %v2041 = vpack.c.b16 %v1949, %v1947
        %v2042 = vpack.c.b16 %v1952, %v1950
        %v2043 = vpack.c.b16 %v1953, %v1951
        %v2044 = vpack.c.b16 %v1956, %v1954
        %v2045 = vpack.c.b16 %v1957, %v1955
        %v2046 = vpack.c.b16 %v1960, %v1958
        %v2047 = vpack.c.b16 %v1961, %v1959
        %v2048 = vpack.c.b16 %v1964, %v1962
        %v2049 = vpack.c.b16 %v1965, %v1963
        %v2050 = vpack.c.b16 %v1968, %v1966
        %v2051 = vpack.c.b16 %v1969, %v1967
        %v2052 = vpack.c.b16 %v1972, %v1970
        %v2053 = vpack.c.b16 %v1973, %v1971
        %v2054 = vpack.c.b16 %v1976, %v1974
        %v2055 = vpack.c.b16 %v1977, %v1975
        %v2056 = vpack.c.b16 %v1980, %v1978
        %v2057 = vpack.c.b16 %v1981, %v1979
        %v2058 = vpack.c.b16 %v1984, %v1982
        %v2059 = vpack.c.b16 %v1985, %v1983
        %v2060 = vpack.c.b16 %v1988, %v1986
        %v2061 = vpack.c.b16 %v1989, %v1987
        %v2062 = vpack.c.b16 %v1992, %v1990
        %v2063 = vpack.c.b16 %v1993, %v1991
        %v2064 = vpack.c.b16 %v1996, %v1994
        %v2065 = vpack.c.b16 %v1997, %v1995
        %v2066 = vpack.c.b16 %v2000, %v1998
        %v2067 = vpack.c.b16 %v2001, %v1999
        %v2068 = vpack.c.b16 %v2004, %v2002
        %v2069 = vpack.c.b16 %v2005, %v2003
        %2134 = vmatprep.subr.bf16.mxu0 %v2007
        %2135 = vmatpush1.bf16.msra.mxu0 %v2006
        %2136 = vmatprep.subr.bf16.mxu0 %v2009
        %2137 = vmatpush1.bf16.msra.mxu0 %v2008
        %2138 = vmatprep.subr.bf16.mxu0 %v2011
        %2139 = vmatpush1.bf16.msra.mxu0 %v2010
        %2140 = vmatprep.subr.bf16.mxu0 %v2013
        %2141 = vmatpush1.bf16.msra.mxu0 %v2012
        %2142 = vmatprep.subr.bf16.mxu0 %v2015
        %2143 = vmatpush1.bf16.msra.mxu0 %v2014
        %2144 = vmatprep.subr.bf16.mxu0 %v2017
        %2145 = vmatpush1.bf16.msra.mxu0 %v2016
        %2146 = vmatprep.subr.bf16.mxu0 %v2019
        %2147 = vmatpush1.bf16.msra.mxu0 %v2018
        %2148 = vmatprep.subr.bf16.mxu0 %v2021
        %2149 = vmatpush1.bf16.msra.mxu0 %v2020
        %2150 = vmatprep.subr.bf16.mxu0 %v2023
        %2151 = vmatpush1.bf16.msra.mxu0 %v2022
        %2152 = vmatprep.subr.bf16.mxu0 %v2025
        %2153 = vmatpush1.bf16.msra.mxu0 %v2024
        %2154 = vmatprep.subr.bf16.mxu0 %v2027
        %2155 = vmatpush1.bf16.msra.mxu0 %v2026
        %2156 = vmatprep.subr.bf16.mxu0 %v2029
        %2157 = vmatpush1.bf16.msra.mxu0 %v2028
        %2158 = vmatprep.subr.bf16.mxu0 %v2031
        %2159 = vmatpush1.bf16.msra.mxu0 %v2030
        %2160 = vmatprep.subr.bf16.mxu0 %v2033
        %2161 = vmatpush1.bf16.msra.mxu0 %v2032
        %2162 = vmatprep.subr.bf16.mxu0 %v2035
        %2163 = vmatpush1.bf16.msra.mxu0 %v2034
        %2164 = vmatprep.subr.bf16.mxu0 %v2037
        %2165 = vmatpush1.bf16.msra.mxu0 %v2036
        %2166 = vmatprep.mubr.bf16.mxu0 %v1675
        %2167 = vmatmul.mubr.bf16.gmra.mrb[0].mxu0 %v1674
        %v2168 = vpop.f32.mrb[0].mxu0
        %v2169 = vadd.f32 %v1807, %v2168
        %v2170 = vpop.f32.mrb[0].mxu0
        %v2171 = vadd.f32 %v1811, %v2170
        %v2172 = vpop.f32.mrb[0].mxu0
        %v2173 = vadd.f32 %v1807, %v2172
        %v2174 = vpop.f32.mrb[0].mxu0
        %v2175 = vadd.f32 %v1811, %v2174
        %2176 = vmatprep.mubr.bf16.mxu0 %v1679
        %2177 = vmatmul.mubr.bf16.gmra.mrb[0].mxu0 %v1678
        %v2178 = vpop.f32.mrb[0].mxu0
        %v2179 = vadd.f32 %v1807, %v2178
        %v2180 = vpop.f32.mrb[0].mxu0
        %v2181 = vadd.f32 %v1811, %v2180
        %v2182 = vpop.f32.mrb[0].mxu0
        %v2183 = vadd.f32 %v1807, %v2182
        %v2184 = vpop.f32.mrb[0].mxu0
        %v2185 = vadd.f32 %v1811, %v2184
        %2186 = vmatprep.mubr.bf16.mxu0 %v1683
        %2187 = vmatmul.mubr.bf16.gmra.mrb[0].mxu0 %v1682
        %v2188 = vpop.f32.mrb[0].mxu0
        %v2189 = vadd.f32 %v1807, %v2188
        %v2190 = vpop.f32.mrb[0].mxu0
        %v2191 = vadd.f32 %v1811, %v2190
        %v2192 = vpop.f32.mrb[0].mxu0
        %v2193 = vadd.f32 %v1807, %v2192
        %v2194 = vpop.f32.mrb[0].mxu0
        %v2195 = vadd.f32 %v1811, %v2194
        %2196 = vmatprep.mubr.bf16.mxu0 %v1687
        %2197 = vmatmul.mubr.bf16.gmra.mrb[0].mxu0 %v1686
        %v2198 = vpop.f32.mrb[0].mxu0
        %v2199 = vadd.f32 %v1807, %v2198
        %v2200 = vpop.f32.mrb[0].mxu0
        %v2201 = vadd.f32 %v1811, %v2200
        %v2202 = vpop.f32.mrb[0].mxu0
        %v2203 = vadd.f32 %v1807, %v2202
        %v2204 = vpop.f32.mrb[0].mxu0
        %v2205 = vadd.f32 %v1811, %v2204
        %2206 = vmatprep.mubr.bf16.mxu0 %v1691
        %2207 = vmatmul.mubr.bf16.gmra.mrb[0].mxu0 %v1690
        %v2208 = vpop.f32.mrb[0].mxu0
        %v2209 = vadd.f32 %v1807, %v2208
        %v2210 = vpop.f32.mrb[0].mxu0
        %v2211 = vadd.f32 %v1811, %v2210
        %v2212 = vpop.f32.mrb[0].mxu0
        %v2213 = vadd.f32 %v1807, %v2212
        %v2214 = vpop.f32.mrb[0].mxu0
        %v2215 = vadd.f32 %v1811, %v2214
        %2216 = vmatprep.mubr.bf16.mxu0 %v1695
        %2217 = vmatmul.mubr.bf16.gmra.mrb[0].mxu0 %v1694
        %v2218 = vpop.f32.mrb[0].mxu0
        %v2219 = vadd.f32 %v1807, %v2218
        %v2220 = vpop.f32.mrb[0].mxu0
        %v2221 = vadd.f32 %v1811, %v2220
        %v2222 = vpop.f32.mrb[0].mxu0
        %v2223 = vadd.f32 %v1807, %v2222
        %v2224 = vpop.f32.mrb[0].mxu0
        %v2225 = vadd.f32 %v1811, %v2224
        %2226 = vmatprep.mubr.bf16.mxu0 %v1699
        %2227 = vmatmul.mubr.bf16.gmra.mrb[0].mxu0 %v1698
        %v2228 = vpop.f32.mrb[0].mxu0
        %v2229 = vadd.f32 %v1807, %v2228
        %v2230 = vpop.f32.mrb[0].mxu0
        %v2231 = vadd.f32 %v1811, %v2230
        %v2232 = vpop.f32.mrb[0].mxu0
        %v2233 = vadd.f32 %v1807, %v2232
        %v2234 = vpop.f32.mrb[0].mxu0
        %v2235 = vadd.f32 %v1811, %v2234
        %2236 = vmatprep.mubr.bf16.mxu0 %v1703
        %2237 = vmatmul.mubr.bf16.gmra.mrb[0].mxu0 %v1702
        %v2238 = vpop.f32.mrb[0].mxu0
        %v2239 = vadd.f32 %v1807, %v2238
        %v2240 = vpop.f32.mrb[0].mxu0
        %v2241 = vadd.f32 %v1811, %v2240
        %v2242 = vpop.f32.mrb[0].mxu0
        %v2243 = vadd.f32 %v1807, %v2242
        %v2244 = vpop.f32.mrb[0].mxu0
        %v2245 = vadd.f32 %v1811, %v2244
        %2246 = vmatprep.mubr.bf16.mxu0 %v1707
        %2247 = vmatmul.mubr.bf16.gmra.mrb[0].mxu0 %v1706
        %v2248 = vpop.f32.mrb[0].mxu0
        %v2249 = vadd.f32 %v1807, %v2248
        %v2250 = vpop.f32.mrb[0].mxu0
        %v2251 = vadd.f32 %v1811, %v2250
        %v2252 = vpop.f32.mrb[0].mxu0
        %v2253 = vadd.f32 %v1807, %v2252
        %v2254 = vpop.f32.mrb[0].mxu0
        %v2255 = vadd.f32 %v1811, %v2254
        %2256 = vmatprep.mubr.bf16.mxu0 %v1711
        %2257 = vmatmul.mubr.bf16.gmra.mrb[0].mxu0 %v1710
        %v2258 = vpop.f32.mrb[0].mxu0
        %v2259 = vadd.f32 %v1807, %v2258
        %v2260 = vpop.f32.mrb[0].mxu0
        %v2261 = vadd.f32 %v1811, %v2260
        %v2262 = vpop.f32.mrb[0].mxu0
        %v2263 = vadd.f32 %v1807, %v2262
        %v2264 = vpop.f32.mrb[0].mxu0
        %v2265 = vadd.f32 %v1811, %v2264
        %2266 = vmatprep.mubr.bf16.mxu0 %v1715
        %2267 = vmatmul.mubr.bf16.gmra.mrb[0].mxu0 %v1714
        %v2268 = vpop.f32.mrb[0].mxu0
        %v2269 = vadd.f32 %v1807, %v2268
        %v2270 = vpop.f32.mrb[0].mxu0
        %v2271 = vadd.f32 %v1811, %v2270
        %v2272 = vpop.f32.mrb[0].mxu0
        %v2273 = vadd.f32 %v1807, %v2272
        %v2274 = vpop.f32.mrb[0].mxu0
        %v2275 = vadd.f32 %v1811, %v2274
        %2276 = vmatprep.mubr.bf16.mxu0 %v1719
        %2277 = vmatmul.mubr.bf16.gmra.mrb[0].mxu0 %v1718
        %v2278 = vpop.f32.mrb[0].mxu0
        %v2279 = vadd.f32 %v1807, %v2278
        %v2280 = vpop.f32.mrb[0].mxu0
        %v2281 = vadd.f32 %v1811, %v2280
        %v2282 = vpop.f32.mrb[0].mxu0
        %v2283 = vadd.f32 %v1807, %v2282
        %v2284 = vpop.f32.mrb[0].mxu0
        %v2285 = vadd.f32 %v1811, %v2284
        %2286 = vmatprep.mubr.bf16.mxu0 %v1723
        %2287 = vmatmul.mubr.bf16.gmra.mrb[0].mxu0 %v1722
        %v2288 = vpop.f32.mrb[0].mxu0
        %v2289 = vadd.f32 %v1807, %v2288
        %v2290 = vpop.f32.mrb[0].mxu0
        %v2291 = vadd.f32 %v1811, %v2290
        %v2292 = vpop.f32.mrb[0].mxu0
        %v2293 = vadd.f32 %v1807, %v2292
        %v2294 = vpop.f32.mrb[0].mxu0
        %v2295 = vadd.f32 %v1811, %v2294
        %2296 = vmatprep.mubr.bf16.mxu0 %v1727
        %2297 = vmatmul.mubr.bf16.gmra.mrb[0].mxu0 %v1726
        %v2298 = vpop.f32.mrb[0].mxu0
        %v2299 = vadd.f32 %v1807, %v2298
        %v2300 = vpop.f32.mrb[0].mxu0
        %v2301 = vadd.f32 %v1811, %v2300
        %v2302 = vpop.f32.mrb[0].mxu0
        %v2303 = vadd.f32 %v1807, %v2302
        %v2304 = vpop.f32.mrb[0].mxu0
        %v2305 = vadd.f32 %v1811, %v2304
        %2306 = vmatprep.mubr.bf16.mxu0 %v1731
        %2307 = vmatmul.mubr.bf16.gmra.mrb[0].mxu0 %v1730
        %v2308 = vpop.f32.mrb[0].mxu0
        %v2309 = vadd.f32 %v1807, %v2308
        %v2310 = vpop.f32.mrb[0].mxu0
        %v2311 = vadd.f32 %v1811, %v2310
        %v2312 = vpop.f32.mrb[0].mxu0
        %v2313 = vadd.f32 %v1807, %v2312
        %v2314 = vpop.f32.mrb[0].mxu0
        %v2315 = vadd.f32 %v1811, %v2314
        %2316 = vmatprep.mubr.bf16.mxu0 %v1735
        %2317 = vmatmul.mubr.bf16.gmra.mrb[0].mxu0 %v1734
        %v2318 = vpop.f32.mrb[0].mxu0
        %v2319 = vadd.f32 %v1807, %v2318
        %v2320 = vpop.f32.mrb[0].mxu0
        %v2321 = vadd.f32 %v1811, %v2320
        %v2322 = vpop.f32.mrb[0].mxu0
        %v2323 = vadd.f32 %v1807, %v2322
        %v2324 = vpop.f32.mrb[0].mxu0
        %v2325 = vadd.f32 %v1811, %v2324
        %2326 = vdwg.mxu0
        %2327 = vmatprep.subr.bf16.mxu0 %v2039
        %2328 = vmatpush1.bf16.msra.mxu0 %v2038
        %2329 = vmatprep.subr.bf16.mxu0 %v2041
        %2330 = vmatpush1.bf16.msra.mxu0 %v2040
        %2331 = vmatprep.subr.bf16.mxu0 %v2043
        %2332 = vmatpush1.bf16.msra.mxu0 %v2042
        %2333 = vmatprep.subr.bf16.mxu0 %v2045
        %2334 = vmatpush1.bf16.msra.mxu0 %v2044
        %2335 = vmatprep.subr.bf16.mxu0 %v2047
        %2336 = vmatpush1.bf16.msra.mxu0 %v2046
        %2337 = vmatprep.subr.bf16.mxu0 %v2049
        %2338 = vmatpush1.bf16.msra.mxu0 %v2048
        %2339 = vmatprep.subr.bf16.mxu0 %v2051
        %2340 = vmatpush1.bf16.msra.mxu0 %v2050
        %2341 = vmatprep.subr.bf16.mxu0 %v2053
        %2342 = vmatpush1.bf16.msra.mxu0 %v2052
        %2343 = vmatprep.subr.bf16.mxu0 %v2055
        %2344 = vmatpush1.bf16.msra.mxu0 %v2054
        %2345 = vmatprep.subr.bf16.mxu0 %v2057
        %2346 = vmatpush1.bf16.msra.mxu0 %v2056
        %2347 = vmatprep.subr.bf16.mxu0 %v2059
        %2348 = vmatpush1.bf16.msra.mxu0 %v2058
        %2349 = vmatprep.subr.bf16.mxu0 %v2061
        %2350 = vmatpush1.bf16.msra.mxu0 %v2060
        %2351 = vmatprep.subr.bf16.mxu0 %v2063
        %2352 = vmatpush1.bf16.msra.mxu0 %v2062
        %2353 = vmatprep.subr.bf16.mxu0 %v2065
        %2354 = vmatpush1.bf16.msra.mxu0 %v2064
        %2355 = vmatprep.subr.bf16.mxu0 %v2067
        %2356 = vmatpush1.bf16.msra.mxu0 %v2066
        %2357 = vmatprep.subr.bf16.mxu0 %v2069
        %2358 = vmatpush1.bf16.msra.mxu0 %v2068
        %2359 = vmatprep.mubr.bf16.mxu0 %v1677
        %2360 = vmatmul.mubr.bf16.gmra.mrb[0].mxu0 %v1676
        %v2361 = vpop.f32.mrb[0].mxu0
        %v2362 = vadd.f32 %v2169, %v2361
        %v2363 = vpop.f32.mrb[0].mxu0
        %v2364 = vadd.f32 %v2171, %v2363
        %v2365 = vpop.f32.mrb[0].mxu0
        %v2366 = vadd.f32 %v2173, %v2365
        %v2367 = vpop.f32.mrb[0].mxu0
        %v2368 = vadd.f32 %v2175, %v2367
        %2369 = vmatprep.mubr.bf16.mxu0 %v1681
        %2370 = vmatmul.mubr.bf16.gmra.mrb[0].mxu0 %v1680
        %v2371 = vpop.f32.mrb[0].mxu0
        %v2372 = vadd.f32 %v2179, %v2371
        %v2373 = vpop.f32.mrb[0].mxu0
        %v2374 = vadd.f32 %v2181, %v2373
        %v2375 = vpop.f32.mrb[0].mxu0
        %v2376 = vadd.f32 %v2183, %v2375
        %v2377 = vpop.f32.mrb[0].mxu0
        %v2378 = vadd.f32 %v2185, %v2377
        %2379 = vmatprep.mubr.bf16.mxu0 %v1685
        %2380 = vmatmul.mubr.bf16.gmra.mrb[0].mxu0 %v1684
        %v2381 = vpop.f32.mrb[0].mxu0
        %v2382 = vadd.f32 %v2189, %v2381
        %v2383 = vpop.f32.mrb[0].mxu0
        %v2384 = vadd.f32 %v2191, %v2383
        %v2385 = vpop.f32.mrb[0].mxu0
        %v2386 = vadd.f32 %v2193, %v2385
        %v2387 = vpop.f32.mrb[0].mxu0
        %v2388 = vadd.f32 %v2195, %v2387
        %2389 = vmatprep.mubr.bf16.mxu0 %v1689
        %2390 = vmatmul.mubr.bf16.gmra.mrb[0].mxu0 %v1688
        %v2391 = vpop.f32.mrb[0].mxu0
        %v2392 = vadd.f32 %v2199, %v2391
        %v2393 = vpop.f32.mrb[0].mxu0
        %v2394 = vadd.f32 %v2201, %v2393
        %v2395 = vpop.f32.mrb[0].mxu0
        %v2396 = vadd.f32 %v2203, %v2395
        %v2397 = vpop.f32.mrb[0].mxu0
        %v2398 = vadd.f32 %v2205, %v2397
        %2399 = vmatprep.mubr.bf16.mxu0 %v1693
        %2400 = vmatmul.mubr.bf16.gmra.mrb[0].mxu0 %v1692
        %v2401 = vpop.f32.mrb[0].mxu0
        %v2402 = vadd.f32 %v2209, %v2401
        %v2403 = vpop.f32.mrb[0].mxu0
        %v2404 = vadd.f32 %v2211, %v2403
        %v2405 = vpop.f32.mrb[0].mxu0
        %v2406 = vadd.f32 %v2213, %v2405
        %v2407 = vpop.f32.mrb[0].mxu0
        %v2408 = vadd.f32 %v2215, %v2407
        %2409 = vmatprep.mubr.bf16.mxu0 %v1697
        %2410 = vmatmul.mubr.bf16.gmra.mrb[0].mxu0 %v1696
        %v2411 = vpop.f32.mrb[0].mxu0
        %v2412 = vadd.f32 %v2219, %v2411
        %v2413 = vpop.f32.mrb[0].mxu0
        %v2414 = vadd.f32 %v2221, %v2413
        %v2415 = vpop.f32.mrb[0].mxu0
        %v2416 = vadd.f32 %v2223, %v2415
        %v2417 = vpop.f32.mrb[0].mxu0
        %v2418 = vadd.f32 %v2225, %v2417
        %2419 = vmatprep.mubr.bf16.mxu0 %v1701
        %2420 = vmatmul.mubr.bf16.gmra.mrb[0].mxu0 %v1700
        %v2421 = vpop.f32.mrb[0].mxu0
        %v2422 = vadd.f32 %v2229, %v2421
        %v2423 = vpop.f32.mrb[0].mxu0
        %v2424 = vadd.f32 %v2231, %v2423
        %v2425 = vpop.f32.mrb[0].mxu0
        %v2426 = vadd.f32 %v2233, %v2425
        %v2427 = vpop.f32.mrb[0].mxu0
        %v2428 = vadd.f32 %v2235, %v2427
        %2429 = vmatprep.mubr.bf16.mxu0 %v1705
        %2430 = vmatmul.mubr.bf16.gmra.mrb[0].mxu0 %v1704
        %v2431 = vpop.f32.mrb[0].mxu0
        %v2432 = vadd.f32 %v2239, %v2431
        %v2433 = vpop.f32.mrb[0].mxu0
        %v2434 = vadd.f32 %v2241, %v2433
        %v2435 = vpop.f32.mrb[0].mxu0
        %v2436 = vadd.f32 %v2243, %v2435
        %v2437 = vpop.f32.mrb[0].mxu0
        %v2438 = vadd.f32 %v2245, %v2437
        %2439 = vmatprep.mubr.bf16.mxu0 %v1709
        %2440 = vmatmul.mubr.bf16.gmra.mrb[0].mxu0 %v1708
        %v2441 = vpop.f32.mrb[0].mxu0
        %v2442 = vadd.f32 %v2249, %v2441
        %v2443 = vpop.f32.mrb[0].mxu0
        %v2444 = vadd.f32 %v2251, %v2443
        %v2445 = vpop.f32.mrb[0].mxu0
        %v2446 = vadd.f32 %v2253, %v2445
        %v2447 = vpop.f32.mrb[0].mxu0
        %v2448 = vadd.f32 %v2255, %v2447
        %2449 = vmatprep.mubr.bf16.mxu0 %v1713
        %2450 = vmatmul.mubr.bf16.gmra.mrb[0].mxu0 %v1712
        %v2451 = vpop.f32.mrb[0].mxu0
        %v2452 = vadd.f32 %v2259, %v2451
        %v2453 = vpop.f32.mrb[0].mxu0
        %v2454 = vadd.f32 %v2261, %v2453
        %v2455 = vpop.f32.mrb[0].mxu0
        %v2456 = vadd.f32 %v2263, %v2455
        %v2457 = vpop.f32.mrb[0].mxu0
        %v2458 = vadd.f32 %v2265, %v2457
        %2459 = vmatprep.mubr.bf16.mxu0 %v1717
        %2460 = vmatmul.mubr.bf16.gmra.mrb[0].mxu0 %v1716
        %v2461 = vpop.f32.mrb[0].mxu0
        %v2462 = vadd.f32 %v2269, %v2461
        %v2463 = vpop.f32.mrb[0].mxu0
        %v2464 = vadd.f32 %v2271, %v2463
        %v2465 = vpop.f32.mrb[0].mxu0
        %v2466 = vadd.f32 %v2273, %v2465
        %v2467 = vpop.f32.mrb[0].mxu0
        %v2468 = vadd.f32 %v2275, %v2467
        %2469 = vmatprep.mubr.bf16.mxu0 %v1721
        %2470 = vmatmul.mubr.bf16.gmra.mrb[0].mxu0 %v1720
        %v2471 = vpop.f32.mrb[0].mxu0
        %v2472 = vadd.f32 %v2279, %v2471
        %v2473 = vpop.f32.mrb[0].mxu0
        %v2474 = vadd.f32 %v2281, %v2473
        %v2475 = vpop.f32.mrb[0].mxu0
        %v2476 = vadd.f32 %v2283, %v2475
        %v2477 = vpop.f32.mrb[0].mxu0
        %v2478 = vadd.f32 %v2285, %v2477
        %2479 = vmatprep.mubr.bf16.mxu0 %v1725
        %2480 = vmatmul.mubr.bf16.gmra.mrb[0].mxu0 %v1724
        %v2481 = vpop.f32.mrb[0].mxu0
        %v2482 = vadd.f32 %v2289, %v2481
        %v2483 = vpop.f32.mrb[0].mxu0
        %v2484 = vadd.f32 %v2291, %v2483
        %v2485 = vpop.f32.mrb[0].mxu0
        %v2486 = vadd.f32 %v2293, %v2485
        %v2487 = vpop.f32.mrb[0].mxu0
        %v2488 = vadd.f32 %v2295, %v2487
        %2489 = vmatprep.mubr.bf16.mxu0 %v1729
        %2490 = vmatmul.mubr.bf16.gmra.mrb[0].mxu0 %v1728
        %v2491 = vpop.f32.mrb[0].mxu0
        %v2492 = vadd.f32 %v2299, %v2491
        %v2493 = vpop.f32.mrb[0].mxu0
        %v2494 = vadd.f32 %v2301, %v2493
        %v2495 = vpop.f32.mrb[0].mxu0
        %v2496 = vadd.f32 %v2303, %v2495
        %v2497 = vpop.f32.mrb[0].mxu0
        %v2498 = vadd.f32 %v2305, %v2497
        %2499 = vmatprep.mubr.bf16.mxu0 %v1733
        %2500 = vmatmul.mubr.bf16.gmra.mrb[0].mxu0 %v1732
        %v2501 = vpop.f32.mrb[0].mxu0
        %v2502 = vadd.f32 %v2309, %v2501
        %v2503 = vpop.f32.mrb[0].mxu0
        %v2504 = vadd.f32 %v2311, %v2503
        %v2505 = vpop.f32.mrb[0].mxu0
        %v2506 = vadd.f32 %v2313, %v2505
        %v2507 = vpop.f32.mrb[0].mxu0
        %v2508 = vadd.f32 %v2315, %v2507
        %2509 = vmatprep.mubr.bf16.mxu0 %v1737
        %2510 = vmatmul.mubr.bf16.gmra.mrb[0].mxu0 %v1736
        %v2511 = vpop.f32.mrb[0].mxu0
        %v2512 = vadd.f32 %v2319, %v2511
        %v2513 = vpop.f32.mrb[0].mxu0
        %v2514 = vadd.f32 %v2321, %v2513
        %v2515 = vpop.f32.mrb[0].mxu0
        %v2516 = vadd.f32 %v2323, %v2515
        %v2517 = vpop.f32.mrb[0].mxu0
        %v2518 = vadd.f32 %v2325, %v2517
        %2519 = vdwg.mxu0
        %v2520 = vmax.f32 %v2362, 0.0
        %v2521 = vmax.f32 %v2364, 0.0
        %v2522 = vmax.f32 %v2366, 0.0
        %v2523 = vmax.f32 %v2368, 0.0
        %v2524 = vmax.f32 %v2372, 0.0
        %v2525 = vmax.f32 %v2374, 0.0
        %v2526 = vmax.f32 %v2376, 0.0
        %v2527 = vmax.f32 %v2378, 0.0
        %v2528 = vmax.f32 %v2382, 0.0
        %v2529 = vmax.f32 %v2384, 0.0
        %v2530 = vmax.f32 %v2386, 0.0
        %v2531 = vmax.f32 %v2388, 0.0
        %v2532 = vmax.f32 %v2392, 0.0
        %v2533 = vmax.f32 %v2394, 0.0
        %v2534 = vmax.f32 %v2396, 0.0
        %v2535 = vmax.f32 %v2398, 0.0
        %v2536 = vmax.f32 %v2402, 0.0
        %v2537 = vmax.f32 %v2404, 0.0
        %v2538 = vmax.f32 %v2406, 0.0
        %v2539 = vmax.f32 %v2408, 0.0
        %v2540 = vmax.f32 %v2412, 0.0
        %v2541 = vmax.f32 %v2414, 0.0
        %v2542 = vmax.f32 %v2416, 0.0
        %v2543 = vmax.f32 %v2418, 0.0
        %v2544 = vmax.f32 %v2422, 0.0
        %v2545 = vmax.f32 %v2424, 0.0
        %v2546 = vmax.f32 %v2426, 0.0
        %v2547 = vmax.f32 %v2428, 0.0
        %v2548 = vmax.f32 %v2432, 0.0
        %v2549 = vmax.f32 %v2434, 0.0
        %v2550 = vmax.f32 %v2436, 0.0
        %v2551 = vmax.f32 %v2438, 0.0
        %v2552 = vmax.f32 %v2442, 0.0
        %v2553 = vmax.f32 %v2444, 0.0
        %v2554 = vmax.f32 %v2446, 0.0
        %v2555 = vmax.f32 %v2448, 0.0
        %v2556 = vmax.f32 %v2452, 0.0
        %v2557 = vmax.f32 %v2454, 0.0
        %v2558 = vmax.f32 %v2456, 0.0
        %v2559 = vmax.f32 %v2458, 0.0
        %v2560 = vmax.f32 %v2462, 0.0
        %v2561 = vmax.f32 %v2464, 0.0
        %v2562 = vmax.f32 %v2466, 0.0
        %v2563 = vmax.f32 %v2468, 0.0
        %v2564 = vmax.f32 %v2472, 0.0
        %v2565 = vmax.f32 %v2474, 0.0
        %v2566 = vmax.f32 %v2476, 0.0
        %v2567 = vmax.f32 %v2478, 0.0
        %v2568 = vmax.f32 %v2482, 0.0
        %v2569 = vmax.f32 %v2484, 0.0
        %v2570 = vmax.f32 %v2486, 0.0
        %v2571 = vmax.f32 %v2488, 0.0
        %v2572 = vmax.f32 %v2492, 0.0
        %v2573 = vmax.f32 %v2494, 0.0
        %v2574 = vmax.f32 %v2496, 0.0
        %v2575 = vmax.f32 %v2498, 0.0
        %v2576 = vmax.f32 %v2502, 0.0
        %v2577 = vmax.f32 %v2504, 0.0
        %v2578 = vmax.f32 %v2506, 0.0
        %v2579 = vmax.f32 %v2508, 0.0
        %v2580 = vmax.f32 %v2512, 0.0
        %v2581 = vmax.f32 %v2514, 0.0
        %v2582 = vmax.f32 %v2516, 0.0
        %v2583 = vmax.f32 %v2518, 0.0
        %v2584 = vpack.c.bf16 %v2522, %v2520
        %v2585 = vpack.c.bf16 %v2523, %v2521
        %v2586 = vpack.c.bf16 %v2526, %v2524
        %v2587 = vpack.c.bf16 %v2527, %v2525
        %v2588 = vpack.c.bf16 %v2530, %v2528
        %v2589 = vpack.c.bf16 %v2531, %v2529
        %v2590 = vpack.c.bf16 %v2534, %v2532
        %v2591 = vpack.c.bf16 %v2535, %v2533
        %v2592 = vpack.c.bf16 %v2538, %v2536
        %v2593 = vpack.c.bf16 %v2539, %v2537
        %v2594 = vpack.c.bf16 %v2542, %v2540
        %v2595 = vpack.c.bf16 %v2543, %v2541
        %v2596 = vpack.c.bf16 %v2546, %v2544
        %v2597 = vpack.c.bf16 %v2547, %v2545
        %v2598 = vpack.c.bf16 %v2550, %v2548
        %v2599 = vpack.c.bf16 %v2551, %v2549
        %v2600 = vpack.c.bf16 %v2554, %v2552
        %v2601 = vpack.c.bf16 %v2555, %v2553
        %v2602 = vpack.c.bf16 %v2558, %v2556
        %v2603 = vpack.c.bf16 %v2559, %v2557
        %v2604 = vpack.c.bf16 %v2562, %v2560
        %v2605 = vpack.c.bf16 %v2563, %v2561
        %v2606 = vpack.c.bf16 %v2566, %v2564
        %v2607 = vpack.c.bf16 %v2567, %v2565
        %v2608 = vpack.c.bf16 %v2570, %v2568
        %v2609 = vpack.c.bf16 %v2571, %v2569
        %v2610 = vpack.c.bf16 %v2574, %v2572
        %v2611 = vpack.c.bf16 %v2575, %v2573
        %v2612 = vpack.c.bf16 %v2578, %v2576
        %v2613 = vpack.c.bf16 %v2579, %v2577
        %v2614 = vpack.c.bf16 %v2582, %v2580
        %v2615 = vpack.c.bf16 %v2583, %v2581
        %v2616 = vld [vmem:[#allocation8] sm:$0xf]
        %v2617 = vld [vmem:[#allocation8 + $0x4] sm:$0xf]
        %v2618 = vld [vmem:[#allocation8 + $0x8] sm:$0xf]
        %v2619 = vld [vmem:[#allocation8 + $0xc] sm:$0xf]
        %v2620 = vld [vmem:[#allocation8 + $0x10] sm:$0xf]
        %v2621 = vld [vmem:[#allocation8 + $0x14] sm:$0xf]
        %v2622 = vld [vmem:[#allocation8 + $0x18] sm:$0xf]
        %v2623 = vld [vmem:[#allocation8 + $0x1c] sm:$0xf]
        %v2624 = vld [vmem:[#allocation8 + $0x20] sm:$0xf]
        %v2625 = vld [vmem:[#allocation8 + $0x24] sm:$0xf]
        %v2626 = vld [vmem:[#allocation8 + $0x28] sm:$0xf]
        %v2627 = vld [vmem:[#allocation8 + $0x2c] sm:$0xf]
        %v2628 = vld [vmem:[#allocation8 + $0x30] sm:$0xf]
        %v2629 = vld [vmem:[#allocation8 + $0x34] sm:$0xf]
        %v2630 = vld [vmem:[#allocation8 + $0x38] sm:$0xf]
        %v2631 = vld [vmem:[#allocation8 + $0x3c] sm:$0xf]
        %v2632 = vld [vmem:[#allocation8 + $0x40] sm:$0xf]
        %v2633 = vld [vmem:[#allocation8 + $0x44] sm:$0xf]
        %v2634 = vld [vmem:[#allocation8 + $0x48] sm:$0xf]
        %v2635 = vld [vmem:[#allocation8 + $0x4c] sm:$0xf]
        %v2636 = vld [vmem:[#allocation8 + $0x50] sm:$0xf]
        %v2637 = vld [vmem:[#allocation8 + $0x54] sm:$0xf]
        %v2638 = vld [vmem:[#allocation8 + $0x58] sm:$0xf]
        %v2639 = vld [vmem:[#allocation8 + $0x5c] sm:$0xf]
        %v2640 = vld [vmem:[#allocation8 + $0x60] sm:$0xf]
        %v2641 = vld [vmem:[#allocation8 + $0x64] sm:$0xf]
        %v2642 = vld [vmem:[#allocation8 + $0x68] sm:$0xf]
        %v2643 = vld [vmem:[#allocation8 + $0x6c] sm:$0xf]
        %v2644 = vld [vmem:[#allocation8 + $0x70] sm:$0xf]
        %v2645 = vld [vmem:[#allocation8 + $0x74] sm:$0xf]
        %v2646 = vld [vmem:[#allocation8 + $0x78] sm:$0xf]
        %v2647 = vld [vmem:[#allocation8 + $0x7c] sm:$0xf]
        %v2648 = vld [vmem:[%s6] sm:$0x1]
        %v2650 = vlaneseq
        %v2651 = vshrl.u32 %v2650, 7
        %v2652 = vsub.s32 0, %v2651
        %v2653 = vrot.slane %v2648, %v2652
        %v2687 = vunpack.c.l.b16 %v2616
        %v2688 = vunpack.c.l.b16 %v2617
        %v2689 = vunpack.c.l.b16 %v2618
        %v2690 = vunpack.c.l.b16 %v2619
        %v2691 = vunpack.c.l.b16 %v2620
        %v2692 = vunpack.c.l.b16 %v2621
        %v2693 = vunpack.c.l.b16 %v2622
        %v2694 = vunpack.c.l.b16 %v2623
        %v2695 = vunpack.c.l.b16 %v2624
        %v2696 = vunpack.c.l.b16 %v2625
        %v2697 = vunpack.c.l.b16 %v2626
        %v2698 = vunpack.c.l.b16 %v2627
        %v2699 = vunpack.c.l.b16 %v2628
        %v2700 = vunpack.c.l.b16 %v2629
        %v2701 = vunpack.c.l.b16 %v2630
        %v2702 = vunpack.c.l.b16 %v2631
        %v2703 = vunpack.c.l.b16 %v2632
        %v2704 = vunpack.c.l.b16 %v2633
        %v2705 = vunpack.c.l.b16 %v2634
        %v2706 = vunpack.c.l.b16 %v2635
        %v2707 = vunpack.c.l.b16 %v2636
        %v2708 = vunpack.c.l.b16 %v2637
        %v2709 = vunpack.c.l.b16 %v2638
        %v2710 = vunpack.c.l.b16 %v2639
        %v2711 = vunpack.c.l.b16 %v2640
        %v2712 = vunpack.c.l.b16 %v2641
        %v2713 = vunpack.c.l.b16 %v2642
        %v2714 = vunpack.c.l.b16 %v2643
        %v2715 = vunpack.c.l.b16 %v2644
        %v2716 = vunpack.c.l.b16 %v2645
        %v2717 = vunpack.c.l.b16 %v2646
        %v2718 = vunpack.c.l.b16 %v2647
        %v2719 = vpack.c.b16 %v2688, %v2687
        %v2720 = vpack.c.b16 %v2690, %v2689
        %v2721 = vpack.c.b16 %v2692, %v2691
        %v2722 = vpack.c.b16 %v2694, %v2693
        %v2723 = vpack.c.b16 %v2696, %v2695
        %v2724 = vpack.c.b16 %v2698, %v2697
        %v2725 = vpack.c.b16 %v2700, %v2699
        %v2726 = vpack.c.b16 %v2702, %v2701
        %v2727 = vpack.c.b16 %v2704, %v2703
        %v2728 = vpack.c.b16 %v2706, %v2705
        %v2729 = vpack.c.b16 %v2708, %v2707
        %v2730 = vpack.c.b16 %v2710, %v2709
        %v2731 = vpack.c.b16 %v2712, %v2711
        %v2732 = vpack.c.b16 %v2714, %v2713
        %v2733 = vpack.c.b16 %v2716, %v2715
        %v2734 = vpack.c.b16 %v2718, %v2717
        %2751 = vmatprep.subr.bf16.mxu0 0
        %2752 = vmatpush1.bf16.msra.mxu0 %v2719
        %2753 = vmatprep.subr.bf16.mxu0 0
        %2754 = vmatpush1.bf16.msra.mxu0 %v2720
        %2755 = vmatprep.subr.bf16.mxu0 0
        %2756 = vmatpush1.bf16.msra.mxu0 %v2721
        %2757 = vmatprep.subr.bf16.mxu0 0
        %2758 = vmatpush1.bf16.msra.mxu0 %v2722
        %2759 = vmatprep.subr.bf16.mxu0 0
        %2760 = vmatpush1.bf16.msra.mxu0 %v2723
        %2761 = vmatprep.subr.bf16.mxu0 0
        %2762 = vmatpush1.bf16.msra.mxu0 %v2724
        %2763 = vmatprep.subr.bf16.mxu0 0
        %2764 = vmatpush1.bf16.msra.mxu0 %v2725
        %2765 = vmatprep.subr.bf16.mxu0 0
        %2766 = vmatpush1.bf16.msra.mxu0 %v2726
        %2767 = vmatprep.subr.bf16.mxu0 0
        %2768 = vmatpush1.bf16.msra.mxu0 %v2727
        %2769 = vmatprep.subr.bf16.mxu0 0
        %2770 = vmatpush1.bf16.msra.mxu0 %v2728
        %2771 = vmatprep.subr.bf16.mxu0 0
        %2772 = vmatpush1.bf16.msra.mxu0 %v2729
        %2773 = vmatprep.subr.bf16.mxu0 0
        %2774 = vmatpush1.bf16.msra.mxu0 %v2730
        %2775 = vmatprep.subr.bf16.mxu0 0
        %2776 = vmatpush1.bf16.msra.mxu0 %v2731
        %2777 = vmatprep.subr.bf16.mxu0 0
        %2778 = vmatpush1.bf16.msra.mxu0 %v2732
        %2779 = vmatprep.subr.bf16.mxu0 0
        %2780 = vmatpush1.bf16.msra.mxu0 %v2733
        %2781 = vmatprep.subr.bf16.mxu0 0
        %2782 = vmatpush1.bf16.msra.mxu0 %v2734
        %2783 = vmatprep.mubr.bf16.mxu0 %v2585
        %2784 = vmatmul.mubr.bf16.gmra.mrb[0].mxu0 %v2584
        %v2785 = vpop.f32.mrb[0].mxu0
        %v2786 = vadd.f32 %v2653, %v2785
        %v2787 = vpop.f32.mrb[0].mxu0
        %v2788 = vpop.f32.mrb[0].mxu0
        %v2789 = vadd.f32 %v2653, %v2788
        %v2790 = vpop.f32.mrb[0].mxu0
        %2791 = vmatprep.mubr.bf16.mxu0 %v2587
        %2792 = vmatmul.mubr.bf16.gmra.mrb[0].mxu0 %v2586
        %v2793 = vpop.f32.mrb[0].mxu0
        %v2794 = vadd.f32 %v2653, %v2793
        %v2795 = vpop.f32.mrb[0].mxu0
        %v2796 = vpop.f32.mrb[0].mxu0
        %v2797 = vadd.f32 %v2653, %v2796
        %v2798 = vpop.f32.mrb[0].mxu0
        %2799 = vmatprep.mubr.bf16.mxu0 %v2589
        %2800 = vmatmul.mubr.bf16.gmra.mrb[0].mxu0 %v2588
        %v2801 = vpop.f32.mrb[0].mxu0
        %v2802 = vadd.f32 %v2653, %v2801
        %v2803 = vpop.f32.mrb[0].mxu0
        %v2804 = vpop.f32.mrb[0].mxu0
        %v2805 = vadd.f32 %v2653, %v2804
        %v2806 = vpop.f32.mrb[0].mxu0
        %2807 = vmatprep.mubr.bf16.mxu0 %v2591
        %2808 = vmatmul.mubr.bf16.gmra.mrb[0].mxu0 %v2590
        %v2809 = vpop.f32.mrb[0].mxu0
        %v2810 = vadd.f32 %v2653, %v2809
        %v2811 = vpop.f32.mrb[0].mxu0
        %v2812 = vpop.f32.mrb[0].mxu0
        %v2813 = vadd.f32 %v2653, %v2812
        %v2814 = vpop.f32.mrb[0].mxu0
        %2815 = vmatprep.mubr.bf16.mxu0 %v2593
        %2816 = vmatmul.mubr.bf16.gmra.mrb[0].mxu0 %v2592
        %v2817 = vpop.f32.mrb[0].mxu0
        %v2818 = vadd.f32 %v2653, %v2817
        %v2819 = vpop.f32.mrb[0].mxu0
        %v2820 = vpop.f32.mrb[0].mxu0
        %v2821 = vadd.f32 %v2653, %v2820
        %v2822 = vpop.f32.mrb[0].mxu0
        %2823 = vmatprep.mubr.bf16.mxu0 %v2595
        %2824 = vmatmul.mubr.bf16.gmra.mrb[0].mxu0 %v2594
        %v2825 = vpop.f32.mrb[0].mxu0
        %v2826 = vadd.f32 %v2653, %v2825
        %v2827 = vpop.f32.mrb[0].mxu0
        %v2828 = vpop.f32.mrb[0].mxu0
        %v2829 = vadd.f32 %v2653, %v2828
        %v2830 = vpop.f32.mrb[0].mxu0
        %2831 = vmatprep.mubr.bf16.mxu0 %v2597
        %2832 = vmatmul.mubr.bf16.gmra.mrb[0].mxu0 %v2596
        %v2833 = vpop.f32.mrb[0].mxu0
        %v2834 = vadd.f32 %v2653, %v2833
        %v2835 = vpop.f32.mrb[0].mxu0
        %v2836 = vpop.f32.mrb[0].mxu0
        %v2837 = vadd.f32 %v2653, %v2836
        %v2838 = vpop.f32.mrb[0].mxu0
        %2839 = vmatprep.mubr.bf16.mxu0 %v2599
        %2840 = vmatmul.mubr.bf16.gmra.mrb[0].mxu0 %v2598
        %v2841 = vpop.f32.mrb[0].mxu0
        %v2842 = vadd.f32 %v2653, %v2841
        %v2843 = vpop.f32.mrb[0].mxu0
        %v2844 = vpop.f32.mrb[0].mxu0
        %v2845 = vadd.f32 %v2653, %v2844
        %v2846 = vpop.f32.mrb[0].mxu0
        %2847 = vmatprep.mubr.bf16.mxu0 %v2601
        %2848 = vmatmul.mubr.bf16.gmra.mrb[0].mxu0 %v2600
        %v2849 = vpop.f32.mrb[0].mxu0
        %v2850 = vadd.f32 %v2653, %v2849
        %v2851 = vpop.f32.mrb[0].mxu0
        %v2852 = vpop.f32.mrb[0].mxu0
        %v2853 = vadd.f32 %v2653, %v2852
        %v2854 = vpop.f32.mrb[0].mxu0
        %2855 = vmatprep.mubr.bf16.mxu0 %v2603
        %2856 = vmatmul.mubr.bf16.gmra.mrb[0].mxu0 %v2602
        %v2857 = vpop.f32.mrb[0].mxu0
        %v2858 = vadd.f32 %v2653, %v2857
        %v2859 = vpop.f32.mrb[0].mxu0
        %v2860 = vpop.f32.mrb[0].mxu0
        %v2861 = vadd.f32 %v2653, %v2860
        %v2862 = vpop.f32.mrb[0].mxu0
        %2863 = vmatprep.mubr.bf16.mxu0 %v2605
        %2864 = vmatmul.mubr.bf16.gmra.mrb[0].mxu0 %v2604
        %v2865 = vpop.f32.mrb[0].mxu0
        %v2866 = vadd.f32 %v2653, %v2865
        %v2867 = vpop.f32.mrb[0].mxu0
        %v2868 = vpop.f32.mrb[0].mxu0
        %v2869 = vadd.f32 %v2653, %v2868
        %v2870 = vpop.f32.mrb[0].mxu0
        %2871 = vmatprep.mubr.bf16.mxu0 %v2607
        %2872 = vmatmul.mubr.bf16.gmra.mrb[0].mxu0 %v2606
        %v2873 = vpop.f32.mrb[0].mxu0
        %v2874 = vadd.f32 %v2653, %v2873
        %v2875 = vpop.f32.mrb[0].mxu0
        %v2876 = vpop.f32.mrb[0].mxu0
        %v2877 = vadd.f32 %v2653, %v2876
        %v2878 = vpop.f32.mrb[0].mxu0
        %2879 = vmatprep.mubr.bf16.mxu0 %v2609
        %2880 = vmatmul.mubr.bf16.gmra.mrb[0].mxu0 %v2608
        %v2881 = vpop.f32.mrb[0].mxu0
        %v2882 = vadd.f32 %v2653, %v2881
        %v2883 = vpop.f32.mrb[0].mxu0
        %v2884 = vpop.f32.mrb[0].mxu0
        %v2885 = vadd.f32 %v2653, %v2884
        %v2886 = vpop.f32.mrb[0].mxu0
        %2887 = vmatprep.mubr.bf16.mxu0 %v2611
        %2888 = vmatmul.mubr.bf16.gmra.mrb[0].mxu0 %v2610
        %v2889 = vpop.f32.mrb[0].mxu0
        %v2890 = vadd.f32 %v2653, %v2889
        %v2891 = vpop.f32.mrb[0].mxu0
        %v2892 = vpop.f32.mrb[0].mxu0
        %v2893 = vadd.f32 %v2653, %v2892
        %v2894 = vpop.f32.mrb[0].mxu0
        %2895 = vmatprep.mubr.bf16.mxu0 %v2613
        %2896 = vmatmul.mubr.bf16.gmra.mrb[0].mxu0 %v2612
        %v2897 = vpop.f32.mrb[0].mxu0
        %v2898 = vadd.f32 %v2653, %v2897
        %v2899 = vpop.f32.mrb[0].mxu0
        %v2900 = vpop.f32.mrb[0].mxu0
        %v2901 = vadd.f32 %v2653, %v2900
        %v2902 = vpop.f32.mrb[0].mxu0
        %2903 = vmatprep.mubr.bf16.mxu0 %v2615
        %2904 = vmatmul.mubr.bf16.gmra.mrb[0].mxu0 %v2614
        %v2905 = vpop.f32.mrb[0].mxu0
        %v2906 = vadd.f32 %v2653, %v2905
        %v2907 = vpop.f32.mrb[0].mxu0
        %v2908 = vpop.f32.mrb[0].mxu0
        %v2909 = vadd.f32 %v2653, %v2908
        %v2910 = vpop.f32.mrb[0].mxu0
        %2911 = vdwg.mxu0
        %v2912 = vtanh.pop %v2786
        %v2913 = vtanh.pop %v2789
        %v2914 = vtanh.pop %v2794
        %v2915 = vtanh.pop %v2797
        %v2916 = vtanh.pop %v2802
        %v2917 = vtanh.pop %v2805
        %v2918 = vtanh.pop %v2810
        %v2919 = vtanh.pop %v2813
        %v2920 = vtanh.pop %v2818
        %v2921 = vtanh.pop %v2821
        %v2922 = vtanh.pop %v2826
        %v2923 = vtanh.pop %v2829
        %v2924 = vtanh.pop %v2834
        %v2925 = vtanh.pop %v2837
        %v2926 = vtanh.pop %v2842
        %v2927 = vtanh.pop %v2845
        %v2928 = vtanh.pop %v2850
        %v2929 = vtanh.pop %v2853
        %v2930 = vtanh.pop %v2858
        %v2931 = vtanh.pop %v2861
        %v2932 = vtanh.pop %v2866
        %v2933 = vtanh.pop %v2869
        %v2934 = vtanh.pop %v2874
        %v2935 = vtanh.pop %v2877
        %v2936 = vtanh.pop %v2882
        %v2937 = vtanh.pop %v2885
        %v2938 = vtanh.pop %v2890
        %v2939 = vtanh.pop %v2893
        %v2940 = vtanh.pop %v2898
        %v2941 = vtanh.pop %v2901
        %v2942 = vtanh.pop %v2906
        %v2943 = vtanh.pop %v2909
        %v2944 = vpack.c.bf16 %v2913, %v2912
        %v2945 = vpack.c.bf16 %v2915, %v2914
        %v2946 = vpack.c.bf16 %v2917, %v2916
        %v2947 = vpack.c.bf16 %v2919, %v2918
        %v2948 = vpack.c.bf16 %v2921, %v2920
        %v2949 = vpack.c.bf16 %v2923, %v2922
        %v2950 = vpack.c.bf16 %v2925, %v2924
        %v2951 = vpack.c.bf16 %v2927, %v2926
        %v2952 = vpack.c.bf16 %v2929, %v2928
        %v2953 = vpack.c.bf16 %v2931, %v2930
        %v2954 = vpack.c.bf16 %v2933, %v2932
        %v2955 = vpack.c.bf16 %v2935, %v2934
        %v2956 = vpack.c.bf16 %v2937, %v2936
        %v2957 = vpack.c.bf16 %v2939, %v2938
        %v2958 = vpack.c.bf16 %v2941, %v2940
        %v2959 = vpack.c.bf16 %v2943, %v2942
        %v2960 = vld [vmem:[#allocation10] sm:$0xff]
        %v2961 = vld [vmem:[#allocation10 + $0x8] sm:$0xff]
        %v2962 = vld [vmem:[#allocation10 + $0x10] sm:$0xff]
        %v2963 = vld [vmem:[#allocation10 + $0x18] sm:$0xff]
        %v2964 = vld [vmem:[#allocation10 + $0x20] sm:$0xff]
        %v2965 = vld [vmem:[#allocation10 + $0x28] sm:$0xff]
        %v2966 = vld [vmem:[#allocation10 + $0x30] sm:$0xff]
        %v2967 = vld [vmem:[#allocation10 + $0x38] sm:$0xff]
        %v2968 = vld [vmem:[#allocation10 + $0x40] sm:$0xff]
        %v2969 = vld [vmem:[#allocation10 + $0x48] sm:$0xff]
        %v2970 = vld [vmem:[#allocation10 + $0x50] sm:$0xff]
        %v2971 = vld [vmem:[#allocation10 + $0x58] sm:$0xff]
        %v2972 = vld [vmem:[#allocation10 + $0x60] sm:$0xff]
        %v2973 = vld [vmem:[#allocation10 + $0x68] sm:$0xff]
        %v2974 = vld [vmem:[#allocation10 + $0x70] sm:$0xff]
        %v2975 = vld [vmem:[#allocation10 + $0x78] sm:$0xff]
        %v2976 = vld [vmem:[%s8] sm:$0x3]
        %v2978 = vlaneseq
        %v2979 = vshrl.u32 %v2978, 7
        %v2980 = vsub.s32 0, %v2979
        %v2981 = vrot.slane %v2976, %v2980
        %v2982 = vlaneseq
        %v2983 = vshrl.u32 %v2982, 7
        %v2984 = vsub.s32 1, %v2983
        %v2985 = vrot.slane %v2976, %v2984
        %v3004 = vunpack.c.l.b16 %v2960
        %v3005 = vunpack.c.h.b16 %v2960
        %v3006 = vunpack.c.l.b16 %v2961
        %v3007 = vunpack.c.h.b16 %v2961
        %v3008 = vunpack.c.l.b16 %v2962
        %v3009 = vunpack.c.h.b16 %v2962
        %v3010 = vunpack.c.l.b16 %v2963
        %v3011 = vunpack.c.h.b16 %v2963
        %v3012 = vunpack.c.l.b16 %v2964
        %v3013 = vunpack.c.h.b16 %v2964
        %v3014 = vunpack.c.l.b16 %v2965
        %v3015 = vunpack.c.h.b16 %v2965
        %v3016 = vunpack.c.l.b16 %v2966
        %v3017 = vunpack.c.h.b16 %v2966
        %v3018 = vunpack.c.l.b16 %v2967
        %v3019 = vunpack.c.h.b16 %v2967
        %v3020 = vunpack.c.l.b16 %v2968
        %v3021 = vunpack.c.h.b16 %v2968
        %v3022 = vunpack.c.l.b16 %v2969
        %v3023 = vunpack.c.h.b16 %v2969
        %v3024 = vunpack.c.l.b16 %v2970
        %v3025 = vunpack.c.h.b16 %v2970
        %v3026 = vunpack.c.l.b16 %v2971
        %v3027 = vunpack.c.h.b16 %v2971
        %v3028 = vunpack.c.l.b16 %v2972
        %v3029 = vunpack.c.h.b16 %v2972
        %v3030 = vunpack.c.l.b16 %v2973
        %v3031 = vunpack.c.h.b16 %v2973
        %v3032 = vunpack.c.l.b16 %v2974
        %v3033 = vunpack.c.h.b16 %v2974
        %v3034 = vunpack.c.l.b16 %v2975
        %v3035 = vunpack.c.h.b16 %v2975
        %v3036 = vpack.c.b16 %v3006, %v3004
        %v3037 = vpack.c.b16 %v3007, %v3005
        %v3038 = vpack.c.b16 %v3010, %v3008
        %v3039 = vpack.c.b16 %v3011, %v3009
        %v3040 = vpack.c.b16 %v3014, %v3012
        %v3041 = vpack.c.b16 %v3015, %v3013
        %v3042 = vpack.c.b16 %v3018, %v3016
        %v3043 = vpack.c.b16 %v3019, %v3017
        %v3044 = vpack.c.b16 %v3022, %v3020
        %v3045 = vpack.c.b16 %v3023, %v3021
        %v3046 = vpack.c.b16 %v3026, %v3024
        %v3047 = vpack.c.b16 %v3027, %v3025
        %v3048 = vpack.c.b16 %v3030, %v3028
        %v3049 = vpack.c.b16 %v3031, %v3029
        %v3050 = vpack.c.b16 %v3034, %v3032
        %v3051 = vpack.c.b16 %v3035, %v3033
        %3068 = vmatprep.subr.bf16.mxu0 %v3037
        %3069 = vmatpush1.bf16.msra.mxu0 %v3036
        %3070 = vmatprep.subr.bf16.mxu0 %v3039
        %3071 = vmatpush1.bf16.msra.mxu0 %v3038
        %3072 = vmatprep.subr.bf16.mxu0 %v3041
        %3073 = vmatpush1.bf16.msra.mxu0 %v3040
        %3074 = vmatprep.subr.bf16.mxu0 %v3043
        %3075 = vmatpush1.bf16.msra.mxu0 %v3042
        %3076 = vmatprep.subr.bf16.mxu0 %v3045
        %3077 = vmatpush1.bf16.msra.mxu0 %v3044
        %3078 = vmatprep.subr.bf16.mxu0 %v3047
        %3079 = vmatpush1.bf16.msra.mxu0 %v3046
        %3080 = vmatprep.subr.bf16.mxu0 %v3049
        %3081 = vmatpush1.bf16.msra.mxu0 %v3048
        %3082 = vmatprep.subr.bf16.mxu0 %v3051
        %3083 = vmatpush1.bf16.msra.mxu0 %v3050
        %3084 = vmatprep.subr.bf16.mxu0 0
        %3085 = vmatpush1.bf16.msra.mxu0 0
        %3086 = vmatprep.subr.bf16.mxu0 0
        %3087 = vmatpush1.bf16.msra.mxu0 0
        %3088 = vmatprep.subr.bf16.mxu0 0
        %3089 = vmatpush1.bf16.msra.mxu0 0
        %3090 = vmatprep.subr.bf16.mxu0 0
        %3091 = vmatpush1.bf16.msra.mxu0 0
        %3092 = vmatprep.subr.bf16.mxu0 0
        %3093 = vmatpush1.bf16.msra.mxu0 0
        %3094 = vmatprep.subr.bf16.mxu0 0
        %3095 = vmatpush1.bf16.msra.mxu0 0
        %3096 = vmatprep.subr.bf16.mxu0 0
        %3097 = vmatpush1.bf16.msra.mxu0 0
        %3098 = vmatprep.subr.bf16.mxu0 0
        %3099 = vmatpush1.bf16.msra.mxu0 0
        %3100 = vmatprep.mubr.bf16.mxu0 0
        %3101 = vmatmul.mubr.bf16.gmra.mrb[0].mxu0 %v2944
        %v3102 = vpop.f32.mrb[0].mxu0
        %v3103 = vadd.f32 %v2981, %v3102
        %v3104 = vpop.f32.mrb[0].mxu0
        %v3105 = vadd.f32 %v2985, %v3104
        %v3106 = vpop.f32.mrb[0].mxu0
        %v3107 = vadd.f32 %v2981, %v3106
        %v3108 = vpop.f32.mrb[0].mxu0
        %v3109 = vadd.f32 %v2985, %v3108
        %3110 = vmatprep.mubr.bf16.mxu0 0
        %3111 = vmatmul.mubr.bf16.gmra.mrb[0].mxu0 %v2945
        %v3112 = vpop.f32.mrb[0].mxu0
        %v3113 = vadd.f32 %v2981, %v3112
        %v3114 = vpop.f32.mrb[0].mxu0
        %v3115 = vadd.f32 %v2985, %v3114
        %v3116 = vpop.f32.mrb[0].mxu0
        %v3117 = vadd.f32 %v2981, %v3116
        %v3118 = vpop.f32.mrb[0].mxu0
        %v3119 = vadd.f32 %v2985, %v3118
        %3120 = vmatprep.mubr.bf16.mxu0 0
        %3121 = vmatmul.mubr.bf16.gmra.mrb[0].mxu0 %v2946
        %v3122 = vpop.f32.mrb[0].mxu0
        %v3123 = vadd.f32 %v2981, %v3122
        %v3124 = vpop.f32.mrb[0].mxu0
        %v3125 = vadd.f32 %v2985, %v3124
        %v3126 = vpop.f32.mrb[0].mxu0
        %v3127 = vadd.f32 %v2981, %v3126
        %v3128 = vpop.f32.mrb[0].mxu0
        %v3129 = vadd.f32 %v2985, %v3128
        %3130 = vmatprep.mubr.bf16.mxu0 0
        %3131 = vmatmul.mubr.bf16.gmra.mrb[0].mxu0 %v2947
        %v3132 = vpop.f32.mrb[0].mxu0
        %v3133 = vadd.f32 %v2981, %v3132
        %v3134 = vpop.f32.mrb[0].mxu0
        %v3135 = vadd.f32 %v2985, %v3134
        %v3136 = vpop.f32.mrb[0].mxu0
        %v3137 = vadd.f32 %v2981, %v3136
        %v3138 = vpop.f32.mrb[0].mxu0
        %v3139 = vadd.f32 %v2985, %v3138
        %3140 = vmatprep.mubr.bf16.mxu0 0
        %3141 = vmatmul.mubr.bf16.gmra.mrb[0].mxu0 %v2948
        %v3142 = vpop.f32.mrb[0].mxu0
        %v3143 = vadd.f32 %v2981, %v3142
        %v3144 = vpop.f32.mrb[0].mxu0
        %v3145 = vadd.f32 %v2985, %v3144
        %v3146 = vpop.f32.mrb[0].mxu0
        %v3147 = vadd.f32 %v2981, %v3146
        %v3148 = vpop.f32.mrb[0].mxu0
        %v3149 = vadd.f32 %v2985, %v3148
        %3150 = vmatprep.mubr.bf16.mxu0 0
        %3151 = vmatmul.mubr.bf16.gmra.mrb[0].mxu0 %v2949
        %v3152 = vpop.f32.mrb[0].mxu0
        %v3153 = vadd.f32 %v2981, %v3152
        %v3154 = vpop.f32.mrb[0].mxu0
        %v3155 = vadd.f32 %v2985, %v3154
        %v3156 = vpop.f32.mrb[0].mxu0
        %v3157 = vadd.f32 %v2981, %v3156
        %v3158 = vpop.f32.mrb[0].mxu0
        %v3159 = vadd.f32 %v2985, %v3158
        %3160 = vmatprep.mubr.bf16.mxu0 0
        %3161 = vmatmul.mubr.bf16.gmra.mrb[0].mxu0 %v2950
        %v3162 = vpop.f32.mrb[0].mxu0
        %v3163 = vadd.f32 %v2981, %v3162
        %v3164 = vpop.f32.mrb[0].mxu0
        %v3165 = vadd.f32 %v2985, %v3164
        %v3166 = vpop.f32.mrb[0].mxu0
        %v3167 = vadd.f32 %v2981, %v3166
        %v3168 = vpop.f32.mrb[0].mxu0
        %v3169 = vadd.f32 %v2985, %v3168
        %3170 = vmatprep.mubr.bf16.mxu0 0
        %3171 = vmatmul.mubr.bf16.gmra.mrb[0].mxu0 %v2951
        %v3172 = vpop.f32.mrb[0].mxu0
        %v3173 = vadd.f32 %v2981, %v3172
        %v3174 = vpop.f32.mrb[0].mxu0
        %v3175 = vadd.f32 %v2985, %v3174
        %v3176 = vpop.f32.mrb[0].mxu0
        %v3177 = vadd.f32 %v2981, %v3176
        %v3178 = vpop.f32.mrb[0].mxu0
        %v3179 = vadd.f32 %v2985, %v3178
        %3180 = vmatprep.mubr.bf16.mxu0 0
        %3181 = vmatmul.mubr.bf16.gmra.mrb[0].mxu0 %v2952
        %v3182 = vpop.f32.mrb[0].mxu0
        %v3183 = vadd.f32 %v2981, %v3182
        %v3184 = vpop.f32.mrb[0].mxu0
        %v3185 = vadd.f32 %v2985, %v3184
        %v3186 = vpop.f32.mrb[0].mxu0
        %v3187 = vadd.f32 %v2981, %v3186
        %v3188 = vpop.f32.mrb[0].mxu0
        %v3189 = vadd.f32 %v2985, %v3188
        %3190 = vmatprep.mubr.bf16.mxu0 0
        %3191 = vmatmul.mubr.bf16.gmra.mrb[0].mxu0 %v2953
        %v3192 = vpop.f32.mrb[0].mxu0
        %v3193 = vadd.f32 %v2981, %v3192
        %v3194 = vpop.f32.mrb[0].mxu0
        %v3195 = vadd.f32 %v2985, %v3194
        %v3196 = vpop.f32.mrb[0].mxu0
        %v3197 = vadd.f32 %v2981, %v3196
        %v3198 = vpop.f32.mrb[0].mxu0
        %v3199 = vadd.f32 %v2985, %v3198
        %3200 = vmatprep.mubr.bf16.mxu0 0
        %3201 = vmatmul.mubr.bf16.gmra.mrb[0].mxu0 %v2954
        %v3202 = vpop.f32.mrb[0].mxu0
        %v3203 = vadd.f32 %v2981, %v3202
        %v3204 = vpop.f32.mrb[0].mxu0
        %v3205 = vadd.f32 %v2985, %v3204
        %v3206 = vpop.f32.mrb[0].mxu0
        %v3207 = vadd.f32 %v2981, %v3206
        %v3208 = vpop.f32.mrb[0].mxu0
        %v3209 = vadd.f32 %v2985, %v3208
        %3210 = vmatprep.mubr.bf16.mxu0 0
        %3211 = vmatmul.mubr.bf16.gmra.mrb[0].mxu0 %v2955
        %v3212 = vpop.f32.mrb[0].mxu0
        %v3213 = vadd.f32 %v2981, %v3212
        %v3214 = vpop.f32.mrb[0].mxu0
        %v3215 = vadd.f32 %v2985, %v3214
        %v3216 = vpop.f32.mrb[0].mxu0
        %v3217 = vadd.f32 %v2981, %v3216
        %v3218 = vpop.f32.mrb[0].mxu0
        %v3219 = vadd.f32 %v2985, %v3218
        %3220 = vmatprep.mubr.bf16.mxu0 0
        %3221 = vmatmul.mubr.bf16.gmra.mrb[0].mxu0 %v2956
        %v3222 = vpop.f32.mrb[0].mxu0
        %v3223 = vadd.f32 %v2981, %v3222
        %v3224 = vpop.f32.mrb[0].mxu0
        %v3225 = vadd.f32 %v2985, %v3224
        %v3226 = vpop.f32.mrb[0].mxu0
        %v3227 = vadd.f32 %v2981, %v3226
        %v3228 = vpop.f32.mrb[0].mxu0
        %v3229 = vadd.f32 %v2985, %v3228
        %3230 = vmatprep.mubr.bf16.mxu0 0
        %3231 = vmatmul.mubr.bf16.gmra.mrb[0].mxu0 %v2957
        %v3232 = vpop.f32.mrb[0].mxu0
        %v3233 = vadd.f32 %v2981, %v3232
        %v3234 = vpop.f32.mrb[0].mxu0
        %v3235 = vadd.f32 %v2985, %v3234
        %v3236 = vpop.f32.mrb[0].mxu0
        %v3237 = vadd.f32 %v2981, %v3236
        %v3238 = vpop.f32.mrb[0].mxu0
        %v3239 = vadd.f32 %v2985, %v3238
        %3240 = vmatprep.mubr.bf16.mxu0 0
        %3241 = vmatmul.mubr.bf16.gmra.mrb[0].mxu0 %v2958
        %v3242 = vpop.f32.mrb[0].mxu0
        %v3243 = vadd.f32 %v2981, %v3242
        %v3244 = vpop.f32.mrb[0].mxu0
        %v3245 = vadd.f32 %v2985, %v3244
        %v3246 = vpop.f32.mrb[0].mxu0
        %v3247 = vadd.f32 %v2981, %v3246
        %v3248 = vpop.f32.mrb[0].mxu0
        %v3249 = vadd.f32 %v2985, %v3248
        %3250 = vmatprep.mubr.bf16.mxu0 0
        %3251 = vmatmul.mubr.bf16.gmra.mrb[0].mxu0 %v2959
        %v3252 = vpop.f32.mrb[0].mxu0
        %v3253 = vadd.f32 %v2981, %v3252
        %v3254 = vpop.f32.mrb[0].mxu0
        %v3255 = vadd.f32 %v2985, %v3254
        %v3256 = vpop.f32.mrb[0].mxu0
        %v3257 = vadd.f32 %v2981, %v3256
        %v3258 = vpop.f32.mrb[0].mxu0
        %v3259 = vadd.f32 %v2985, %v3258
        %3260 = vdwg.mxu0
        %v3261 = vmax.f32 %v3103, 0.0
        %v3262 = vmax.f32 %v3105, 0.0
        %v3263 = vmax.f32 %v3107, 0.0
        %v3264 = vmax.f32 %v3109, 0.0
        %v3265 = vmax.f32 %v3113, 0.0
        %v3266 = vmax.f32 %v3115, 0.0
        %v3267 = vmax.f32 %v3117, 0.0
        %v3268 = vmax.f32 %v3119, 0.0
        %v3269 = vmax.f32 %v3123, 0.0
        %v3270 = vmax.f32 %v3125, 0.0
        %v3271 = vmax.f32 %v3127, 0.0
        %v3272 = vmax.f32 %v3129, 0.0
        %v3273 = vmax.f32 %v3133, 0.0
        %v3274 = vmax.f32 %v3135, 0.0
        %v3275 = vmax.f32 %v3137, 0.0
        %v3276 = vmax.f32 %v3139, 0.0
        %v3277 = vmax.f32 %v3143, 0.0
        %v3278 = vmax.f32 %v3145, 0.0
        %v3279 = vmax.f32 %v3147, 0.0
        %v3280 = vmax.f32 %v3149, 0.0
        %v3281 = vmax.f32 %v3153, 0.0
        %v3282 = vmax.f32 %v3155, 0.0
        %v3283 = vmax.f32 %v3157, 0.0
        %v3284 = vmax.f32 %v3159, 0.0
        %v3285 = vmax.f32 %v3163, 0.0
        %v3286 = vmax.f32 %v3165, 0.0
        %v3287 = vmax.f32 %v3167, 0.0
        %v3288 = vmax.f32 %v3169, 0.0
        %v3289 = vmax.f32 %v3173, 0.0
        %v3290 = vmax.f32 %v3175, 0.0
        %v3291 = vmax.f32 %v3177, 0.0
        %v3292 = vmax.f32 %v3179, 0.0
        %v3293 = vmax.f32 %v3183, 0.0
        %v3294 = vmax.f32 %v3185, 0.0
        %v3295 = vmax.f32 %v3187, 0.0
        %v3296 = vmax.f32 %v3189, 0.0
        %v3297 = vmax.f32 %v3193, 0.0
        %v3298 = vmax.f32 %v3195, 0.0
        %v3299 = vmax.f32 %v3197, 0.0
        %v3300 = vmax.f32 %v3199, 0.0
        %v3301 = vmax.f32 %v3203, 0.0
        %v3302 = vmax.f32 %v3205, 0.0
        %v3303 = vmax.f32 %v3207, 0.0
        %v3304 = vmax.f32 %v3209, 0.0
        %v3305 = vmax.f32 %v3213, 0.0
        %v3306 = vmax.f32 %v3215, 0.0
        %v3307 = vmax.f32 %v3217, 0.0
        %v3308 = vmax.f32 %v3219, 0.0
        %v3309 = vmax.f32 %v3223, 0.0
        %v3310 = vmax.f32 %v3225, 0.0
        %v3311 = vmax.f32 %v3227, 0.0
        %v3312 = vmax.f32 %v3229, 0.0
        %v3313 = vmax.f32 %v3233, 0.0
        %v3314 = vmax.f32 %v3235, 0.0
        %v3315 = vmax.f32 %v3237, 0.0
        %v3316 = vmax.f32 %v3239, 0.0
        %v3317 = vmax.f32 %v3243, 0.0
        %v3318 = vmax.f32 %v3245, 0.0
        %v3319 = vmax.f32 %v3247, 0.0
        %v3320 = vmax.f32 %v3249, 0.0
        %v3321 = vmax.f32 %v3253, 0.0
        %v3322 = vmax.f32 %v3255, 0.0
        %v3323 = vmax.f32 %v3257, 0.0
        %v3324 = vmax.f32 %v3259, 0.0
        %v3325 = vpack.c.bf16 %v3263, %v3261
        %v3326 = vpack.c.bf16 %v3264, %v3262
        %v3327 = vpack.c.bf16 %v3267, %v3265
        %v3328 = vpack.c.bf16 %v3268, %v3266
        %v3329 = vpack.c.bf16 %v3271, %v3269
        %v3330 = vpack.c.bf16 %v3272, %v3270
        %v3331 = vpack.c.bf16 %v3275, %v3273
        %v3332 = vpack.c.bf16 %v3276, %v3274
        %v3333 = vpack.c.bf16 %v3279, %v3277
        %v3334 = vpack.c.bf16 %v3280, %v3278
        %v3335 = vpack.c.bf16 %v3283, %v3281
        %v3336 = vpack.c.bf16 %v3284, %v3282
        %v3337 = vpack.c.bf16 %v3287, %v3285
        %v3338 = vpack.c.bf16 %v3288, %v3286
        %v3339 = vpack.c.bf16 %v3291, %v3289
        %v3340 = vpack.c.bf16 %v3292, %v3290
        %v3341 = vpack.c.bf16 %v3295, %v3293
        %v3342 = vpack.c.bf16 %v3296, %v3294
        %v3343 = vpack.c.bf16 %v3299, %v3297
        %v3344 = vpack.c.bf16 %v3300, %v3298
        %v3345 = vpack.c.bf16 %v3303, %v3301
        %v3346 = vpack.c.bf16 %v3304, %v3302
        %v3347 = vpack.c.bf16 %v3307, %v3305
        %v3348 = vpack.c.bf16 %v3308, %v3306
        %v3349 = vpack.c.bf16 %v3311, %v3309
        %v3350 = vpack.c.bf16 %v3312, %v3310
        %v3351 = vpack.c.bf16 %v3315, %v3313
        %v3352 = vpack.c.bf16 %v3316, %v3314
        %v3353 = vpack.c.bf16 %v3319, %v3317
        %v3354 = vpack.c.bf16 %v3320, %v3318
        %v3355 = vpack.c.bf16 %v3323, %v3321
        %v3356 = vpack.c.bf16 %v3324, %v3322
        %v3357 = vld [vmem:[#allocation11] sm:$0xff]
        %v3358 = vld [vmem:[#allocation11 + $0x8] sm:$0xff]
        %v3359 = vld [vmem:[#allocation11 + $0x10] sm:$0xff]
        %v3360 = vld [vmem:[#allocation11 + $0x18] sm:$0xff]
        %v3361 = vld [vmem:[#allocation11 + $0x20] sm:$0xff]
        %v3362 = vld [vmem:[#allocation11 + $0x28] sm:$0xff]
        %v3363 = vld [vmem:[#allocation11 + $0x30] sm:$0xff]
        %v3364 = vld [vmem:[#allocation11 + $0x38] sm:$0xff]
        %v3365 = vld [vmem:[#allocation11 + $0x40] sm:$0xff]
        %v3366 = vld [vmem:[#allocation11 + $0x48] sm:$0xff]
        %v3367 = vld [vmem:[#allocation11 + $0x50] sm:$0xff]
        %v3368 = vld [vmem:[#allocation11 + $0x58] sm:$0xff]
        %v3369 = vld [vmem:[#allocation11 + $0x60] sm:$0xff]
        %v3370 = vld [vmem:[#allocation11 + $0x68] sm:$0xff]
        %v3371 = vld [vmem:[#allocation11 + $0x70] sm:$0xff]
        %v3372 = vld [vmem:[#allocation11 + $0x78] sm:$0xff]
        %v3373 = vld [vmem:[#allocation11 + $0x80] sm:$0xff]
        %v3374 = vld [vmem:[#allocation11 + $0x88] sm:$0xff]
        %v3375 = vld [vmem:[#allocation11 + $0x90] sm:$0xff]
        %v3376 = vld [vmem:[#allocation11 + $0x98] sm:$0xff]
        %v3377 = vld [vmem:[#allocation11 + $0xa0] sm:$0xff]
        %v3378 = vld [vmem:[#allocation11 + $0xa8] sm:$0xff]
        %v3379 = vld [vmem:[#allocation11 + $0xb0] sm:$0xff]
        %v3380 = vld [vmem:[#allocation11 + $0xb8] sm:$0xff]
        %v3381 = vld [vmem:[#allocation11 + $0xc0] sm:$0xff]
        %v3382 = vld [vmem:[#allocation11 + $0xc8] sm:$0xff]
        %v3383 = vld [vmem:[#allocation11 + $0xd0] sm:$0xff]
        %v3384 = vld [vmem:[#allocation11 + $0xd8] sm:$0xff]
        %v3385 = vld [vmem:[#allocation11 + $0xe0] sm:$0xff]
        %v3386 = vld [vmem:[#allocation11 + $0xe8] sm:$0xff]
        %v3387 = vld [vmem:[#allocation11 + $0xf0] sm:$0xff]
        %v3388 = vld [vmem:[#allocation11 + $0xf8] sm:$0xff]
        %v3389 = vld [vmem:[#allocation11 + $0x100] sm:$0xff]
        %v3390 = vld [vmem:[#allocation11 + $0x108] sm:$0xff]
        %v3391 = vld [vmem:[#allocation11 + $0x110] sm:$0xff]
        %v3392 = vld [vmem:[#allocation11 + $0x118] sm:$0xff]
        %v3393 = vld [vmem:[#allocation11 + $0x120] sm:$0xff]
        %v3394 = vld [vmem:[#allocation11 + $0x128] sm:$0xff]
        %v3395 = vld [vmem:[#allocation11 + $0x130] sm:$0xff]
        %v3396 = vld [vmem:[#allocation11 + $0x138] sm:$0xff]
        %v3397 = vld [vmem:[#allocation11 + $0x140] sm:$0xff]
        %v3398 = vld [vmem:[#allocation11 + $0x148] sm:$0xff]
        %v3399 = vld [vmem:[#allocation11 + $0x150] sm:$0xff]
        %v3400 = vld [vmem:[#allocation11 + $0x158] sm:$0xff]
        %v3401 = vld [vmem:[#allocation11 + $0x160] sm:$0xff]
        %v3402 = vld [vmem:[#allocation11 + $0x168] sm:$0xff]
        %v3403 = vld [vmem:[#allocation11 + $0x170] sm:$0xff]
        %v3404 = vld [vmem:[#allocation11 + $0x178] sm:$0xff]
        %v3405 = vld [vmem:[#allocation11 + $0x180] sm:$0xff]
        %v3406 = vld [vmem:[#allocation11 + $0x188] sm:$0xff]
        %v3407 = vld [vmem:[#allocation11 + $0x190] sm:$0xff]
        %v3408 = vld [vmem:[#allocation11 + $0x198] sm:$0xff]
        %v3409 = vld [vmem:[#allocation11 + $0x1a0] sm:$0xff]
        %v3410 = vld [vmem:[#allocation11 + $0x1a8] sm:$0xff]
        %v3411 = vld [vmem:[#allocation11 + $0x1b0] sm:$0xff]
        %v3412 = vld [vmem:[#allocation11 + $0x1b8] sm:$0xff]
        %v3413 = vld [vmem:[#allocation11 + $0x1c0] sm:$0xff]
        %v3414 = vld [vmem:[#allocation11 + $0x1c8] sm:$0xff]
        %v3415 = vld [vmem:[#allocation11 + $0x1d0] sm:$0xff]
        %v3416 = vld [vmem:[#allocation11 + $0x1d8] sm:$0xff]
        %v3417 = vld [vmem:[#allocation11 + $0x1e0] sm:$0xff]
        %v3418 = vld [vmem:[#allocation11 + $0x1e8] sm:$0xff]
        %v3419 = vld [vmem:[#allocation11 + $0x1f0] sm:$0xff]
        %v3420 = vld [vmem:[#allocation11 + $0x1f8] sm:$0xff]
        %v3421 = vld [vmem:[%s10] sm:$0xf]
        %v3423 = vlaneseq
        %v3424 = vshrl.u32 %v3423, 7
        %v3425 = vsub.s32 0, %v3424
        %v3426 = vrot.slane %v3421, %v3425
        %v3427 = vlaneseq
        %v3428 = vshrl.u32 %v3427, 7
        %v3429 = vsub.s32 1, %v3428
        %v3430 = vrot.slane %v3421, %v3429
        %v3431 = vlaneseq
        %v3432 = vshrl.u32 %v3431, 7
        %v3433 = vsub.s32 2, %v3432
        %v3434 = vrot.slane %v3421, %v3433
        %v3435 = vlaneseq
        %v3436 = vshrl.u32 %v3435, 7
        %v3437 = vsub.s32 3, %v3436
        %v3438 = vrot.slane %v3421, %v3437
        %v3507 = vunpack.c.l.b16 %v3357
        %v3508 = vunpack.c.h.b16 %v3357
        %v3509 = vunpack.c.l.b16 %v3358
        %v3510 = vunpack.c.h.b16 %v3358
        %v3511 = vunpack.c.l.b16 %v3359
        %v3512 = vunpack.c.h.b16 %v3359
        %v3513 = vunpack.c.l.b16 %v3360
        %v3514 = vunpack.c.h.b16 %v3360
        %v3515 = vunpack.c.l.b16 %v3361
        %v3516 = vunpack.c.h.b16 %v3361
        %v3517 = vunpack.c.l.b16 %v3362
        %v3518 = vunpack.c.h.b16 %v3362
        %v3519 = vunpack.c.l.b16 %v3363
        %v3520 = vunpack.c.h.b16 %v3363
        %v3521 = vunpack.c.l.b16 %v3364
        %v3522 = vunpack.c.h.b16 %v3364
        %v3523 = vunpack.c.l.b16 %v3365
        %v3524 = vunpack.c.h.b16 %v3365
        %v3525 = vunpack.c.l.b16 %v3366
        %v3526 = vunpack.c.h.b16 %v3366
        %v3527 = vunpack.c.l.b16 %v3367
        %v3528 = vunpack.c.h.b16 %v3367
        %v3529 = vunpack.c.l.b16 %v3368
        %v3530 = vunpack.c.h.b16 %v3368
        %v3531 = vunpack.c.l.b16 %v3369
        %v3532 = vunpack.c.h.b16 %v3369
        %v3533 = vunpack.c.l.b16 %v3370
        %v3534 = vunpack.c.h.b16 %v3370
        %v3535 = vunpack.c.l.b16 %v3371
        %v3536 = vunpack.c.h.b16 %v3371
        %v3537 = vunpack.c.l.b16 %v3372
        %v3538 = vunpack.c.h.b16 %v3372
        %v3539 = vunpack.c.l.b16 %v3373
        %v3540 = vunpack.c.h.b16 %v3373
        %v3541 = vunpack.c.l.b16 %v3374
        %v3542 = vunpack.c.h.b16 %v3374
        %v3543 = vunpack.c.l.b16 %v3375
        %v3544 = vunpack.c.h.b16 %v3375
        %v3545 = vunpack.c.l.b16 %v3376
        %v3546 = vunpack.c.h.b16 %v3376
        %v3547 = vunpack.c.l.b16 %v3377
        %v3548 = vunpack.c.h.b16 %v3377
        %v3549 = vunpack.c.l.b16 %v3378
        %v3550 = vunpack.c.h.b16 %v3378
        %v3551 = vunpack.c.l.b16 %v3379
        %v3552 = vunpack.c.h.b16 %v3379
        %v3553 = vunpack.c.l.b16 %v3380
        %v3554 = vunpack.c.h.b16 %v3380
        %v3555 = vunpack.c.l.b16 %v3381
        %v3556 = vunpack.c.h.b16 %v3381
        %v3557 = vunpack.c.l.b16 %v3382
        %v3558 = vunpack.c.h.b16 %v3382
        %v3559 = vunpack.c.l.b16 %v3383
        %v3560 = vunpack.c.h.b16 %v3383
        %v3561 = vunpack.c.l.b16 %v3384
        %v3562 = vunpack.c.h.b16 %v3384
        %v3563 = vunpack.c.l.b16 %v3385
        %v3564 = vunpack.c.h.b16 %v3385
        %v3565 = vunpack.c.l.b16 %v3386
        %v3566 = vunpack.c.h.b16 %v3386
        %v3567 = vunpack.c.l.b16 %v3387
        %v3568 = vunpack.c.h.b16 %v3387
        %v3569 = vunpack.c.l.b16 %v3388
        %v3570 = vunpack.c.h.b16 %v3388
        %v3571 = vunpack.c.l.b16 %v3389
        %v3572 = vunpack.c.h.b16 %v3389
        %v3573 = vunpack.c.l.b16 %v3390
        %v3574 = vunpack.c.h.b16 %v3390
        %v3575 = vunpack.c.l.b16 %v3391
        %v3576 = vunpack.c.h.b16 %v3391
        %v3577 = vunpack.c.l.b16 %v3392
        %v3578 = vunpack.c.h.b16 %v3392
        %v3579 = vunpack.c.l.b16 %v3393
        %v3580 = vunpack.c.h.b16 %v3393
        %v3581 = vunpack.c.l.b16 %v3394
        %v3582 = vunpack.c.h.b16 %v3394
        %v3583 = vunpack.c.l.b16 %v3395
        %v3584 = vunpack.c.h.b16 %v3395
        %v3585 = vunpack.c.l.b16 %v3396
        %v3586 = vunpack.c.h.b16 %v3396
        %v3587 = vunpack.c.l.b16 %v3397
        %v3588 = vunpack.c.h.b16 %v3397
        %v3589 = vunpack.c.l.b16 %v3398
        %v3590 = vunpack.c.h.b16 %v3398
        %v3591 = vunpack.c.l.b16 %v3399
        %v3592 = vunpack.c.h.b16 %v3399
        %v3593 = vunpack.c.l.b16 %v3400
        %v3594 = vunpack.c.h.b16 %v3400
        %v3595 = vunpack.c.l.b16 %v3401
        %v3596 = vunpack.c.h.b16 %v3401
        %v3597 = vunpack.c.l.b16 %v3402
        %v3598 = vunpack.c.h.b16 %v3402
        %v3599 = vunpack.c.l.b16 %v3403
        %v3600 = vunpack.c.h.b16 %v3403
        %v3601 = vunpack.c.l.b16 %v3404
        %v3602 = vunpack.c.h.b16 %v3404
        %v3603 = vunpack.c.l.b16 %v3405
        %v3604 = vunpack.c.h.b16 %v3405
        %v3605 = vunpack.c.l.b16 %v3406
        %v3606 = vunpack.c.h.b16 %v3406
        %v3607 = vunpack.c.l.b16 %v3407
        %v3608 = vunpack.c.h.b16 %v3407
        %v3609 = vunpack.c.l.b16 %v3408
        %v3610 = vunpack.c.h.b16 %v3408
        %v3611 = vunpack.c.l.b16 %v3409
        %v3612 = vunpack.c.h.b16 %v3409
        %v3613 = vunpack.c.l.b16 %v3410
        %v3614 = vunpack.c.h.b16 %v3410
        %v3615 = vunpack.c.l.b16 %v3411
        %v3616 = vunpack.c.h.b16 %v3411
        %v3617 = vunpack.c.l.b16 %v3412
        %v3618 = vunpack.c.h.b16 %v3412
        %v3619 = vunpack.c.l.b16 %v3413
        %v3620 = vunpack.c.h.b16 %v3413
        %v3621 = vunpack.c.l.b16 %v3414
        %v3622 = vunpack.c.h.b16 %v3414
        %v3623 = vunpack.c.l.b16 %v3415
        %v3624 = vunpack.c.h.b16 %v3415
        %v3625 = vunpack.c.l.b16 %v3416
        %v3626 = vunpack.c.h.b16 %v3416
        %v3627 = vunpack.c.l.b16 %v3417
        %v3628 = vunpack.c.h.b16 %v3417
        %v3629 = vunpack.c.l.b16 %v3418
        %v3630 = vunpack.c.h.b16 %v3418
        %v3631 = vunpack.c.l.b16 %v3419
        %v3632 = vunpack.c.h.b16 %v3419
        %v3633 = vunpack.c.l.b16 %v3420
        %v3634 = vunpack.c.h.b16 %v3420
        %v3635 = vpack.c.b16 %v3511, %v3507
        %v3636 = vpack.c.b16 %v3512, %v3508
        %v3637 = vpack.c.b16 %v3513, %v3509
        %v3638 = vpack.c.b16 %v3514, %v3510
        %v3639 = vpack.c.b16 %v3519, %v3515
        %v3640 = vpack.c.b16 %v3520, %v3516
        %v3641 = vpack.c.b16 %v3521, %v3517
        %v3642 = vpack.c.b16 %v3522, %v3518
        %v3643 = vpack.c.b16 %v3527, %v3523
        %v3644 = vpack.c.b16 %v3528, %v3524
        %v3645 = vpack.c.b16 %v3529, %v3525
        %v3646 = vpack.c.b16 %v3530, %v3526
        %v3647 = vpack.c.b16 %v3535, %v3531
        %v3648 = vpack.c.b16 %v3536, %v3532
        %v3649 = vpack.c.b16 %v3537, %v3533
        %v3650 = vpack.c.b16 %v3538, %v3534
        %v3651 = vpack.c.b16 %v3543, %v3539
        %v3652 = vpack.c.b16 %v3544, %v3540
        %v3653 = vpack.c.b16 %v3545, %v3541
        %v3654 = vpack.c.b16 %v3546, %v3542
        %v3655 = vpack.c.b16 %v3551, %v3547
        %v3656 = vpack.c.b16 %v3552, %v3548
        %v3657 = vpack.c.b16 %v3553, %v3549
        %v3658 = vpack.c.b16 %v3554, %v3550
        %v3659 = vpack.c.b16 %v3559, %v3555
        %v3660 = vpack.c.b16 %v3560, %v3556
        %v3661 = vpack.c.b16 %v3561, %v3557
        %v3662 = vpack.c.b16 %v3562, %v3558
        %v3663 = vpack.c.b16 %v3567, %v3563
        %v3664 = vpack.c.b16 %v3568, %v3564
        %v3665 = vpack.c.b16 %v3569, %v3565
        %v3666 = vpack.c.b16 %v3570, %v3566
        %v3667 = vpack.c.b16 %v3575, %v3571
        %v3668 = vpack.c.b16 %v3576, %v3572
        %v3669 = vpack.c.b16 %v3577, %v3573
        %v3670 = vpack.c.b16 %v3578, %v3574
        %v3671 = vpack.c.b16 %v3583, %v3579
        %v3672 = vpack.c.b16 %v3584, %v3580
        %v3673 = vpack.c.b16 %v3585, %v3581
        %v3674 = vpack.c.b16 %v3586, %v3582
        %v3675 = vpack.c.b16 %v3591, %v3587
        %v3676 = vpack.c.b16 %v3592, %v3588
        %v3677 = vpack.c.b16 %v3593, %v3589
        %v3678 = vpack.c.b16 %v3594, %v3590
        %v3679 = vpack.c.b16 %v3599, %v3595
        %v3680 = vpack.c.b16 %v3600, %v3596
        %v3681 = vpack.c.b16 %v3601, %v3597
        %v3682 = vpack.c.b16 %v3602, %v3598
        %v3683 = vpack.c.b16 %v3607, %v3603
        %v3684 = vpack.c.b16 %v3608, %v3604
        %v3685 = vpack.c.b16 %v3609, %v3605
        %v3686 = vpack.c.b16 %v3610, %v3606
        %v3687 = vpack.c.b16 %v3615, %v3611
        %v3688 = vpack.c.b16 %v3616, %v3612
        %v3689 = vpack.c.b16 %v3617, %v3613
        %v3690 = vpack.c.b16 %v3618, %v3614
        %v3691 = vpack.c.b16 %v3623, %v3619
        %v3692 = vpack.c.b16 %v3624, %v3620
        %v3693 = vpack.c.b16 %v3625, %v3621
        %v3694 = vpack.c.b16 %v3626, %v3622
        %v3695 = vpack.c.b16 %v3631, %v3627
        %v3696 = vpack.c.b16 %v3632, %v3628
        %v3697 = vpack.c.b16 %v3633, %v3629
        %v3698 = vpack.c.b16 %v3634, %v3630
        %3763 = vmatprep.subr.bf16.mxu0 %v3636
        %3764 = vmatpush1.bf16.msra.mxu0 %v3635
        %3765 = vmatprep.subr.bf16.mxu0 %v3640
        %3766 = vmatpush1.bf16.msra.mxu0 %v3639
        %3767 = vmatprep.subr.bf16.mxu0 %v3644
        %3768 = vmatpush1.bf16.msra.mxu0 %v3643
        %3769 = vmatprep.subr.bf16.mxu0 %v3648
        %3770 = vmatpush1.bf16.msra.mxu0 %v3647
        %3771 = vmatprep.subr.bf16.mxu0 %v3652
        %3772 = vmatpush1.bf16.msra.mxu0 %v3651
        %3773 = vmatprep.subr.bf16.mxu0 %v3656
        %3774 = vmatpush1.bf16.msra.mxu0 %v3655
        %3775 = vmatprep.subr.bf16.mxu0 %v3660
        %3776 = vmatpush1.bf16.msra.mxu0 %v3659
        %3777 = vmatprep.subr.bf16.mxu0 %v3664
        %3778 = vmatpush1.bf16.msra.mxu0 %v3663
        %3779 = vmatprep.subr.bf16.mxu0 %v3668
        %3780 = vmatpush1.bf16.msra.mxu0 %v3667
        %3781 = vmatprep.subr.bf16.mxu0 %v3672
        %3782 = vmatpush1.bf16.msra.mxu0 %v3671
        %3783 = vmatprep.subr.bf16.mxu0 %v3676
        %3784 = vmatpush1.bf16.msra.mxu0 %v3675
        %3785 = vmatprep.subr.bf16.mxu0 %v3680
        %3786 = vmatpush1.bf16.msra.mxu0 %v3679
        %3787 = vmatprep.subr.bf16.mxu0 %v3684
        %3788 = vmatpush1.bf16.msra.mxu0 %v3683
        %3789 = vmatprep.subr.bf16.mxu0 %v3688
        %3790 = vmatpush1.bf16.msra.mxu0 %v3687
        %3791 = vmatprep.subr.bf16.mxu0 %v3692
        %3792 = vmatpush1.bf16.msra.mxu0 %v3691
        %3793 = vmatprep.subr.bf16.mxu0 %v3696
        %3794 = vmatpush1.bf16.msra.mxu0 %v3695
        %3795 = vmatprep.mubr.bf16.mxu0 %v3326
        %3796 = vmatmul.mubr.bf16.gmra.mrb[0].mxu0 %v3325
        %v3797 = vpop.f32.mrb[0].mxu0
        %v3798 = vadd.f32 %v3426, %v3797
        %v3799 = vpop.f32.mrb[0].mxu0
        %v3800 = vadd.f32 %v3430, %v3799
        %v3801 = vpop.f32.mrb[0].mxu0
        %v3802 = vadd.f32 %v3426, %v3801
        %v3803 = vpop.f32.mrb[0].mxu0
        %v3804 = vadd.f32 %v3430, %v3803
        %3805 = vmatprep.mubr.bf16.mxu0 %v3328
        %3806 = vmatmul.mubr.bf16.gmra.mrb[0].mxu0 %v3327
        %v3807 = vpop.f32.mrb[0].mxu0
        %v3808 = vadd.f32 %v3426, %v3807
        %v3809 = vpop.f32.mrb[0].mxu0
        %v3810 = vadd.f32 %v3430, %v3809
        %v3811 = vpop.f32.mrb[0].mxu0
        %v3812 = vadd.f32 %v3426, %v3811
        %v3813 = vpop.f32.mrb[0].mxu0
        %v3814 = vadd.f32 %v3430, %v3813
        %3815 = vmatprep.mubr.bf16.mxu0 %v3330
        %3816 = vmatmul.mubr.bf16.gmra.mrb[0].mxu0 %v3329
        %v3817 = vpop.f32.mrb[0].mxu0
        %v3818 = vadd.f32 %v3426, %v3817
        %v3819 = vpop.f32.mrb[0].mxu0
        %v3820 = vadd.f32 %v3430, %v3819
        %v3821 = vpop.f32.mrb[0].mxu0
        %v3822 = vadd.f32 %v3426, %v3821
        %v3823 = vpop.f32.mrb[0].mxu0
        %v3824 = vadd.f32 %v3430, %v3823
        %3825 = vmatprep.mubr.bf16.mxu0 %v3332
        %3826 = vmatmul.mubr.bf16.gmra.mrb[0].mxu0 %v3331
        %v3827 = vpop.f32.mrb[0].mxu0
        %v3828 = vadd.f32 %v3426, %v3827
        %v3829 = vpop.f32.mrb[0].mxu0
        %v3830 = vadd.f32 %v3430, %v3829
        %v3831 = vpop.f32.mrb[0].mxu0
        %v3832 = vadd.f32 %v3426, %v3831
        %v3833 = vpop.f32.mrb[0].mxu0
        %v3834 = vadd.f32 %v3430, %v3833
        %3835 = vmatprep.mubr.bf16.mxu0 %v3334
        %3836 = vmatmul.mubr.bf16.gmra.mrb[0].mxu0 %v3333
        %v3837 = vpop.f32.mrb[0].mxu0
        %v3838 = vadd.f32 %v3426, %v3837
        %v3839 = vpop.f32.mrb[0].mxu0
        %v3840 = vadd.f32 %v3430, %v3839
        %v3841 = vpop.f32.mrb[0].mxu0
        %v3842 = vadd.f32 %v3426, %v3841
        %v3843 = vpop.f32.mrb[0].mxu0
        %v3844 = vadd.f32 %v3430, %v3843
        %3845 = vmatprep.mubr.bf16.mxu0 %v3336
        %3846 = vmatmul.mubr.bf16.gmra.mrb[0].mxu0 %v3335
        %v3847 = vpop.f32.mrb[0].mxu0
        %v3848 = vadd.f32 %v3426, %v3847
        %v3849 = vpop.f32.mrb[0].mxu0
        %v3850 = vadd.f32 %v3430, %v3849
        %v3851 = vpop.f32.mrb[0].mxu0
        %v3852 = vadd.f32 %v3426, %v3851
        %v3853 = vpop.f32.mrb[0].mxu0
        %v3854 = vadd.f32 %v3430, %v3853
        %3855 = vmatprep.mubr.bf16.mxu0 %v3338
        %3856 = vmatmul.mubr.bf16.gmra.mrb[0].mxu0 %v3337
        %v3857 = vpop.f32.mrb[0].mxu0
        %v3858 = vadd.f32 %v3426, %v3857
        %v3859 = vpop.f32.mrb[0].mxu0
        %v3860 = vadd.f32 %v3430, %v3859
        %v3861 = vpop.f32.mrb[0].mxu0
        %v3862 = vadd.f32 %v3426, %v3861
        %v3863 = vpop.f32.mrb[0].mxu0
        %v3864 = vadd.f32 %v3430, %v3863
        %3865 = vmatprep.mubr.bf16.mxu0 %v3340
        %3866 = vmatmul.mubr.bf16.gmra.mrb[0].mxu0 %v3339
        %v3867 = vpop.f32.mrb[0].mxu0
        %v3868 = vadd.f32 %v3426, %v3867
        %v3869 = vpop.f32.mrb[0].mxu0
        %v3870 = vadd.f32 %v3430, %v3869
        %v3871 = vpop.f32.mrb[0].mxu0
        %v3872 = vadd.f32 %v3426, %v3871
        %v3873 = vpop.f32.mrb[0].mxu0
        %v3874 = vadd.f32 %v3430, %v3873
        %3875 = vmatprep.mubr.bf16.mxu0 %v3342
        %3876 = vmatmul.mubr.bf16.gmra.mrb[0].mxu0 %v3341
        %v3877 = vpop.f32.mrb[0].mxu0
        %v3878 = vadd.f32 %v3426, %v3877
        %v3879 = vpop.f32.mrb[0].mxu0
        %v3880 = vadd.f32 %v3430, %v3879
        %v3881 = vpop.f32.mrb[0].mxu0
        %v3882 = vadd.f32 %v3426, %v3881
        %v3883 = vpop.f32.mrb[0].mxu0
        %v3884 = vadd.f32 %v3430, %v3883
        %3885 = vmatprep.mubr.bf16.mxu0 %v3344
        %3886 = vmatmul.mubr.bf16.gmra.mrb[0].mxu0 %v3343
        %v3887 = vpop.f32.mrb[0].mxu0
        %v3888 = vadd.f32 %v3426, %v3887
        %v3889 = vpop.f32.mrb[0].mxu0
        %v3890 = vadd.f32 %v3430, %v3889
        %v3891 = vpop.f32.mrb[0].mxu0
        %v3892 = vadd.f32 %v3426, %v3891
        %v3893 = vpop.f32.mrb[0].mxu0
        %v3894 = vadd.f32 %v3430, %v3893
        %3895 = vmatprep.mubr.bf16.mxu0 %v3346
        %3896 = vmatmul.mubr.bf16.gmra.mrb[0].mxu0 %v3345
        %v3897 = vpop.f32.mrb[0].mxu0
        %v3898 = vadd.f32 %v3426, %v3897
        %v3899 = vpop.f32.mrb[0].mxu0
        %v3900 = vadd.f32 %v3430, %v3899
        %v3901 = vpop.f32.mrb[0].mxu0
        %v3902 = vadd.f32 %v3426, %v3901
        %v3903 = vpop.f32.mrb[0].mxu0
        %v3904 = vadd.f32 %v3430, %v3903
        %3905 = vmatprep.mubr.bf16.mxu0 %v3348
        %3906 = vmatmul.mubr.bf16.gmra.mrb[0].mxu0 %v3347
        %v3907 = vpop.f32.mrb[0].mxu0
        %v3908 = vadd.f32 %v3426, %v3907
        %v3909 = vpop.f32.mrb[0].mxu0
        %v3910 = vadd.f32 %v3430, %v3909
        %v3911 = vpop.f32.mrb[0].mxu0
        %v3912 = vadd.f32 %v3426, %v3911
        %v3913 = vpop.f32.mrb[0].mxu0
        %v3914 = vadd.f32 %v3430, %v3913
        %3915 = vmatprep.mubr.bf16.mxu0 %v3350
        %3916 = vmatmul.mubr.bf16.gmra.mrb[0].mxu0 %v3349
        %v3917 = vpop.f32.mrb[0].mxu0
        %v3918 = vadd.f32 %v3426, %v3917
        %v3919 = vpop.f32.mrb[0].mxu0
        %v3920 = vadd.f32 %v3430, %v3919
        %v3921 = vpop.f32.mrb[0].mxu0
        %v3922 = vadd.f32 %v3426, %v3921
        %v3923 = vpop.f32.mrb[0].mxu0
        %v3924 = vadd.f32 %v3430, %v3923
        %3925 = vmatprep.mubr.bf16.mxu0 %v3352
        %3926 = vmatmul.mubr.bf16.gmra.mrb[0].mxu0 %v3351
        %v3927 = vpop.f32.mrb[0].mxu0
        %v3928 = vadd.f32 %v3426, %v3927
        %v3929 = vpop.f32.mrb[0].mxu0
        %v3930 = vadd.f32 %v3430, %v3929
        %v3931 = vpop.f32.mrb[0].mxu0
        %v3932 = vadd.f32 %v3426, %v3931
        %v3933 = vpop.f32.mrb[0].mxu0
        %v3934 = vadd.f32 %v3430, %v3933
        %3935 = vmatprep.mubr.bf16.mxu0 %v3354
        %3936 = vmatmul.mubr.bf16.gmra.mrb[0].mxu0 %v3353
        %v3937 = vpop.f32.mrb[0].mxu0
        %v3938 = vadd.f32 %v3426, %v3937
        %v3939 = vpop.f32.mrb[0].mxu0
        %v3940 = vadd.f32 %v3430, %v3939
        %v3941 = vpop.f32.mrb[0].mxu0
        %v3942 = vadd.f32 %v3426, %v3941
        %v3943 = vpop.f32.mrb[0].mxu0
        %v3944 = vadd.f32 %v3430, %v3943
        %3945 = vmatprep.mubr.bf16.mxu0 %v3356
        %3946 = vmatmul.mubr.bf16.gmra.mrb[0].mxu0 %v3355
        %v3947 = vpop.f32.mrb[0].mxu0
        %v3948 = vadd.f32 %v3426, %v3947
        %v3949 = vpop.f32.mrb[0].mxu0
        %v3950 = vadd.f32 %v3430, %v3949
        %v3951 = vpop.f32.mrb[0].mxu0
        %v3952 = vadd.f32 %v3426, %v3951
        %v3953 = vpop.f32.mrb[0].mxu0
        %v3954 = vadd.f32 %v3430, %v3953
        %3955 = vdwg.mxu0
        %3956 = vmatprep.subr.bf16.mxu0 %v3638
        %3957 = vmatpush1.bf16.msra.mxu0 %v3637
        %3958 = vmatprep.subr.bf16.mxu0 %v3642
        %3959 = vmatpush1.bf16.msra.mxu0 %v3641
        %3960 = vmatprep.subr.bf16.mxu0 %v3646
        %3961 = vmatpush1.bf16.msra.mxu0 %v3645
        %3962 = vmatprep.subr.bf16.mxu0 %v3650
        %3963 = vmatpush1.bf16.msra.mxu0 %v3649
        %3964 = vmatprep.subr.bf16.mxu0 %v3654
        %3965 = vmatpush1.bf16.msra.mxu0 %v3653
        %3966 = vmatprep.subr.bf16.mxu0 %v3658
        %3967 = vmatpush1.bf16.msra.mxu0 %v3657
        %3968 = vmatprep.subr.bf16.mxu0 %v3662
        %3969 = vmatpush1.bf16.msra.mxu0 %v3661
        %3970 = vmatprep.subr.bf16.mxu0 %v3666
        %3971 = vmatpush1.bf16.msra.mxu0 %v3665
        %3972 = vmatprep.subr.bf16.mxu0 %v3670
        %3973 = vmatpush1.bf16.msra.mxu0 %v3669
        %3974 = vmatprep.subr.bf16.mxu0 %v3674
        %3975 = vmatpush1.bf16.msra.mxu0 %v3673
        %3976 = vmatprep.subr.bf16.mxu0 %v3678
        %3977 = vmatpush1.bf16.msra.mxu0 %v3677
        %3978 = vmatprep.subr.bf16.mxu0 %v3682
        %3979 = vmatpush1.bf16.msra.mxu0 %v3681
        %3980 = vmatprep.subr.bf16.mxu0 %v3686
        %3981 = vmatpush1.bf16.msra.mxu0 %v3685
        %3982 = vmatprep.subr.bf16.mxu0 %v3690
        %3983 = vmatpush1.bf16.msra.mxu0 %v3689
        %3984 = vmatprep.subr.bf16.mxu0 %v3694
        %3985 = vmatpush1.bf16.msra.mxu0 %v3693
        %3986 = vmatprep.subr.bf16.mxu0 %v3698
        %3987 = vmatpush1.bf16.msra.mxu0 %v3697
        %3988 = vmatprep.mubr.bf16.mxu0 %v3326
        %3989 = vmatmul.mubr.bf16.gmra.mrb[0].mxu0 %v3325
        %v3990 = vpop.f32.mrb[0].mxu0
        %v3991 = vadd.f32 %v3434, %v3990
        %v3992 = vpop.f32.mrb[0].mxu0
        %v3993 = vadd.f32 %v3438, %v3992
        %v3994 = vpop.f32.mrb[0].mxu0
        %v3995 = vadd.f32 %v3434, %v3994
        %v3996 = vpop.f32.mrb[0].mxu0
        %v3997 = vadd.f32 %v3438, %v3996
        %3998 = vmatprep.mubr.bf16.mxu0 %v3328
        %3999 = vmatmul.mubr.bf16.gmra.mrb[0].mxu0 %v3327
        %v4000 = vpop.f32.mrb[0].mxu0
        %v4001 = vadd.f32 %v3434, %v4000
        %v4002 = vpop.f32.mrb[0].mxu0
        %v4003 = vadd.f32 %v3438, %v4002
        %v4004 = vpop.f32.mrb[0].mxu0
        %v4005 = vadd.f32 %v3434, %v4004
        %v4006 = vpop.f32.mrb[0].mxu0
        %v4007 = vadd.f32 %v3438, %v4006
        %4008 = vmatprep.mubr.bf16.mxu0 %v3330
        %4009 = vmatmul.mubr.bf16.gmra.mrb[0].mxu0 %v3329
        %v4010 = vpop.f32.mrb[0].mxu0
        %v4011 = vadd.f32 %v3434, %v4010
        %v4012 = vpop.f32.mrb[0].mxu0
        %v4013 = vadd.f32 %v3438, %v4012
        %v4014 = vpop.f32.mrb[0].mxu0
        %v4015 = vadd.f32 %v3434, %v4014
        %v4016 = vpop.f32.mrb[0].mxu0
        %v4017 = vadd.f32 %v3438, %v4016
        %4018 = vmatprep.mubr.bf16.mxu0 %v3332
        %4019 = vmatmul.mubr.bf16.gmra.mrb[0].mxu0 %v3331
        %v4020 = vpop.f32.mrb[0].mxu0
        %v4021 = vadd.f32 %v3434, %v4020
        %v4022 = vpop.f32.mrb[0].mxu0
        %v4023 = vadd.f32 %v3438, %v4022
        %v4024 = vpop.f32.mrb[0].mxu0
        %v4025 = vadd.f32 %v3434, %v4024
        %v4026 = vpop.f32.mrb[0].mxu0
        %v4027 = vadd.f32 %v3438, %v4026
        %4028 = vmatprep.mubr.bf16.mxu0 %v3334
        %4029 = vmatmul.mubr.bf16.gmra.mrb[0].mxu0 %v3333
        %v4030 = vpop.f32.mrb[0].mxu0
        %v4031 = vadd.f32 %v3434, %v4030
        %v4032 = vpop.f32.mrb[0].mxu0
        %v4033 = vadd.f32 %v3438, %v4032
        %v4034 = vpop.f32.mrb[0].mxu0
        %v4035 = vadd.f32 %v3434, %v4034
        %v4036 = vpop.f32.mrb[0].mxu0
        %v4037 = vadd.f32 %v3438, %v4036
        %4038 = vmatprep.mubr.bf16.mxu0 %v3336
        %4039 = vmatmul.mubr.bf16.gmra.mrb[0].mxu0 %v3335
        %v4040 = vpop.f32.mrb[0].mxu0
        %v4041 = vadd.f32 %v3434, %v4040
        %v4042 = vpop.f32.mrb[0].mxu0
        %v4043 = vadd.f32 %v3438, %v4042
        %v4044 = vpop.f32.mrb[0].mxu0
        %v4045 = vadd.f32 %v3434, %v4044
        %v4046 = vpop.f32.mrb[0].mxu0
        %v4047 = vadd.f32 %v3438, %v4046
        %4048 = vmatprep.mubr.bf16.mxu0 %v3338
        %4049 = vmatmul.mubr.bf16.gmra.mrb[0].mxu0 %v3337
        %v4050 = vpop.f32.mrb[0].mxu0
        %v4051 = vadd.f32 %v3434, %v4050
        %v4052 = vpop.f32.mrb[0].mxu0
        %v4053 = vadd.f32 %v3438, %v4052
        %v4054 = vpop.f32.mrb[0].mxu0
        %v4055 = vadd.f32 %v3434, %v4054
        %v4056 = vpop.f32.mrb[0].mxu0
        %v4057 = vadd.f32 %v3438, %v4056
        %4058 = vmatprep.mubr.bf16.mxu0 %v3340
        %4059 = vmatmul.mubr.bf16.gmra.mrb[0].mxu0 %v3339
        %v4060 = vpop.f32.mrb[0].mxu0
        %v4061 = vadd.f32 %v3434, %v4060
        %v4062 = vpop.f32.mrb[0].mxu0
        %v4063 = vadd.f32 %v3438, %v4062
        %v4064 = vpop.f32.mrb[0].mxu0
        %v4065 = vadd.f32 %v3434, %v4064
        %v4066 = vpop.f32.mrb[0].mxu0
        %v4067 = vadd.f32 %v3438, %v4066
        %4068 = vmatprep.mubr.bf16.mxu0 %v3342
        %4069 = vmatmul.mubr.bf16.gmra.mrb[0].mxu0 %v3341
        %v4070 = vpop.f32.mrb[0].mxu0
        %v4071 = vadd.f32 %v3434, %v4070
        %v4072 = vpop.f32.mrb[0].mxu0
        %v4073 = vadd.f32 %v3438, %v4072
        %v4074 = vpop.f32.mrb[0].mxu0
        %v4075 = vadd.f32 %v3434, %v4074
        %v4076 = vpop.f32.mrb[0].mxu0
        %v4077 = vadd.f32 %v3438, %v4076
        %4078 = vmatprep.mubr.bf16.mxu0 %v3344
        %4079 = vmatmul.mubr.bf16.gmra.mrb[0].mxu0 %v3343
        %v4080 = vpop.f32.mrb[0].mxu0
        %v4081 = vadd.f32 %v3434, %v4080
        %v4082 = vpop.f32.mrb[0].mxu0
        %v4083 = vadd.f32 %v3438, %v4082
        %v4084 = vpop.f32.mrb[0].mxu0
        %v4085 = vadd.f32 %v3434, %v4084
        %v4086 = vpop.f32.mrb[0].mxu0
        %v4087 = vadd.f32 %v3438, %v4086
        %4088 = vmatprep.mubr.bf16.mxu0 %v3346
        %4089 = vmatmul.mubr.bf16.gmra.mrb[0].mxu0 %v3345
        %v4090 = vpop.f32.mrb[0].mxu0
        %v4091 = vadd.f32 %v3434, %v4090
        %v4092 = vpop.f32.mrb[0].mxu0
        %v4093 = vadd.f32 %v3438, %v4092
        %v4094 = vpop.f32.mrb[0].mxu0
        %v4095 = vadd.f32 %v3434, %v4094
        %v4096 = vpop.f32.mrb[0].mxu0
        %v4097 = vadd.f32 %v3438, %v4096
        %4098 = vmatprep.mubr.bf16.mxu0 %v3348
        %4099 = vmatmul.mubr.bf16.gmra.mrb[0].mxu0 %v3347
        %v4100 = vpop.f32.mrb[0].mxu0
        %v4101 = vadd.f32 %v3434, %v4100
        %v4102 = vpop.f32.mrb[0].mxu0
        %v4103 = vadd.f32 %v3438, %v4102
        %v4104 = vpop.f32.mrb[0].mxu0
        %v4105 = vadd.f32 %v3434, %v4104
        %v4106 = vpop.f32.mrb[0].mxu0
        %v4107 = vadd.f32 %v3438, %v4106
        %4108 = vmatprep.mubr.bf16.mxu0 %v3350
        %4109 = vmatmul.mubr.bf16.gmra.mrb[0].mxu0 %v3349
        %v4110 = vpop.f32.mrb[0].mxu0
        %v4111 = vadd.f32 %v3434, %v4110
        %v4112 = vpop.f32.mrb[0].mxu0
        %v4113 = vadd.f32 %v3438, %v4112
        %v4114 = vpop.f32.mrb[0].mxu0
        %v4115 = vadd.f32 %v3434, %v4114
        %v4116 = vpop.f32.mrb[0].mxu0
        %v4117 = vadd.f32 %v3438, %v4116
        %4118 = vmatprep.mubr.bf16.mxu0 %v3352
        %4119 = vmatmul.mubr.bf16.gmra.mrb[0].mxu0 %v3351
        %v4120 = vpop.f32.mrb[0].mxu0
        %v4121 = vadd.f32 %v3434, %v4120
        %v4122 = vpop.f32.mrb[0].mxu0
        %v4123 = vadd.f32 %v3438, %v4122
        %v4124 = vpop.f32.mrb[0].mxu0
        %v4125 = vadd.f32 %v3434, %v4124
        %v4126 = vpop.f32.mrb[0].mxu0
        %v4127 = vadd.f32 %v3438, %v4126
        %4128 = vmatprep.mubr.bf16.mxu0 %v3354
        %4129 = vmatmul.mubr.bf16.gmra.mrb[0].mxu0 %v3353
        %v4130 = vpop.f32.mrb[0].mxu0
        %v4131 = vadd.f32 %v3434, %v4130
        %v4132 = vpop.f32.mrb[0].mxu0
        %v4133 = vadd.f32 %v3438, %v4132
        %v4134 = vpop.f32.mrb[0].mxu0
        %v4135 = vadd.f32 %v3434, %v4134
        %v4136 = vpop.f32.mrb[0].mxu0
        %v4137 = vadd.f32 %v3438, %v4136
        %4138 = vmatprep.mubr.bf16.mxu0 %v3356
        %4139 = vmatmul.mubr.bf16.gmra.mrb[0].mxu0 %v3355
        %v4140 = vpop.f32.mrb[0].mxu0
        %v4141 = vadd.f32 %v3434, %v4140
        %v4142 = vpop.f32.mrb[0].mxu0
        %v4143 = vadd.f32 %v3438, %v4142
        %v4144 = vpop.f32.mrb[0].mxu0
        %v4145 = vadd.f32 %v3434, %v4144
        %v4146 = vpop.f32.mrb[0].mxu0
        %v4147 = vadd.f32 %v3438, %v4146
        %4148 = vdwg.mxu0
        %v4149 = vmax.f32 %v3798, 0.0
        %v4150 = vmax.f32 %v3800, 0.0
        %v4151 = vmax.f32 %v3991, 0.0
        %v4152 = vmax.f32 %v3993, 0.0
        %v4153 = vmax.f32 %v3802, 0.0
        %v4154 = vmax.f32 %v3804, 0.0
        %v4155 = vmax.f32 %v3995, 0.0
        %v4156 = vmax.f32 %v3997, 0.0
        %v4157 = vmax.f32 %v3808, 0.0
        %v4158 = vmax.f32 %v3810, 0.0
        %v4159 = vmax.f32 %v4001, 0.0
        %v4160 = vmax.f32 %v4003, 0.0
        %v4161 = vmax.f32 %v3812, 0.0
        %v4162 = vmax.f32 %v3814, 0.0
        %v4163 = vmax.f32 %v4005, 0.0
        %v4164 = vmax.f32 %v4007, 0.0
        %v4165 = vmax.f32 %v3818, 0.0
        %v4166 = vmax.f32 %v3820, 0.0
        %v4167 = vmax.f32 %v4011, 0.0
        %v4168 = vmax.f32 %v4013, 0.0
        %v4169 = vmax.f32 %v3822, 0.0
        %v4170 = vmax.f32 %v3824, 0.0
        %v4171 = vmax.f32 %v4015, 0.0
        %v4172 = vmax.f32 %v4017, 0.0
        %v4173 = vmax.f32 %v3828, 0.0
        %v4174 = vmax.f32 %v3830, 0.0
        %v4175 = vmax.f32 %v4021, 0.0
        %v4176 = vmax.f32 %v4023, 0.0
        %v4177 = vmax.f32 %v3832, 0.0
        %v4178 = vmax.f32 %v3834, 0.0
        %v4179 = vmax.f32 %v4025, 0.0
        %v4180 = vmax.f32 %v4027, 0.0
        %v4181 = vmax.f32 %v3838, 0.0
        %v4182 = vmax.f32 %v3840, 0.0
        %v4183 = vmax.f32 %v4031, 0.0
        %v4184 = vmax.f32 %v4033, 0.0
        %v4185 = vmax.f32 %v3842, 0.0
        %v4186 = vmax.f32 %v3844, 0.0
        %v4187 = vmax.f32 %v4035, 0.0
        %v4188 = vmax.f32 %v4037, 0.0
        %v4189 = vmax.f32 %v3848, 0.0
        %v4190 = vmax.f32 %v3850, 0.0
        %v4191 = vmax.f32 %v4041, 0.0
        %v4192 = vmax.f32 %v4043, 0.0
        %v4193 = vmax.f32 %v3852, 0.0
        %v4194 = vmax.f32 %v3854, 0.0
        %v4195 = vmax.f32 %v4045, 0.0
        %v4196 = vmax.f32 %v4047, 0.0
        %v4197 = vmax.f32 %v3858, 0.0
        %v4198 = vmax.f32 %v3860, 0.0
        %v4199 = vmax.f32 %v4051, 0.0
        %v4200 = vmax.f32 %v4053, 0.0
        %v4201 = vmax.f32 %v3862, 0.0
        %v4202 = vmax.f32 %v3864, 0.0
        %v4203 = vmax.f32 %v4055, 0.0
        %v4204 = vmax.f32 %v4057, 0.0
        %v4205 = vmax.f32 %v3868, 0.0
        %v4206 = vmax.f32 %v3870, 0.0
        %v4207 = vmax.f32 %v4061, 0.0
        %v4208 = vmax.f32 %v4063, 0.0
        %v4209 = vmax.f32 %v3872, 0.0
        %v4210 = vmax.f32 %v3874, 0.0
        %v4211 = vmax.f32 %v4065, 0.0
        %v4212 = vmax.f32 %v4067, 0.0
        %v4213 = vmax.f32 %v3878, 0.0
        %v4214 = vmax.f32 %v3880, 0.0
        %v4215 = vmax.f32 %v4071, 0.0
        %v4216 = vmax.f32 %v4073, 0.0
        %v4217 = vmax.f32 %v3882, 0.0
        %v4218 = vmax.f32 %v3884, 0.0
        %v4219 = vmax.f32 %v4075, 0.0
        %v4220 = vmax.f32 %v4077, 0.0
        %v4221 = vmax.f32 %v3888, 0.0
        %v4222 = vmax.f32 %v3890, 0.0
        %v4223 = vmax.f32 %v4081, 0.0
        %v4224 = vmax.f32 %v4083, 0.0
        %v4225 = vmax.f32 %v3892, 0.0
        %v4226 = vmax.f32 %v3894, 0.0
        %v4227 = vmax.f32 %v4085, 0.0
        %v4228 = vmax.f32 %v4087, 0.0
        %v4229 = vmax.f32 %v3898, 0.0
        %v4230 = vmax.f32 %v3900, 0.0
        %v4231 = vmax.f32 %v4091, 0.0
        %v4232 = vmax.f32 %v4093, 0.0
        %v4233 = vmax.f32 %v3902, 0.0
        %v4234 = vmax.f32 %v3904, 0.0
        %v4235 = vmax.f32 %v4095, 0.0
        %v4236 = vmax.f32 %v4097, 0.0
        %v4237 = vmax.f32 %v3908, 0.0
        %v4238 = vmax.f32 %v3910, 0.0
        %v4239 = vmax.f32 %v4101, 0.0
        %v4240 = vmax.f32 %v4103, 0.0
        %v4241 = vmax.f32 %v3912, 0.0
        %v4242 = vmax.f32 %v3914, 0.0
        %v4243 = vmax.f32 %v4105, 0.0
        %v4244 = vmax.f32 %v4107, 0.0
        %v4245 = vmax.f32 %v3918, 0.0
        %v4246 = vmax.f32 %v3920, 0.0
        %v4247 = vmax.f32 %v4111, 0.0
        %v4248 = vmax.f32 %v4113, 0.0
        %v4249 = vmax.f32 %v3922, 0.0
        %v4250 = vmax.f32 %v3924, 0.0
        %v4251 = vmax.f32 %v4115, 0.0
        %v4252 = vmax.f32 %v4117, 0.0
        %v4253 = vmax.f32 %v3928, 0.0
        %v4254 = vmax.f32 %v3930, 0.0
        %v4255 = vmax.f32 %v4121, 0.0
        %v4256 = vmax.f32 %v4123, 0.0
        %v4257 = vmax.f32 %v3932, 0.0
        %v4258 = vmax.f32 %v3934, 0.0
        %v4259 = vmax.f32 %v4125, 0.0
        %v4260 = vmax.f32 %v4127, 0.0
        %v4261 = vmax.f32 %v3938, 0.0
        %v4262 = vmax.f32 %v3940, 0.0
        %v4263 = vmax.f32 %v4131, 0.0
        %v4264 = vmax.f32 %v4133, 0.0
        %v4265 = vmax.f32 %v3942, 0.0
        %v4266 = vmax.f32 %v3944, 0.0
        %v4267 = vmax.f32 %v4135, 0.0
        %v4268 = vmax.f32 %v4137, 0.0
        %v4269 = vmax.f32 %v3948, 0.0
        %v4270 = vmax.f32 %v3950, 0.0
        %v4271 = vmax.f32 %v4141, 0.0
        %v4272 = vmax.f32 %v4143, 0.0
        %v4273 = vmax.f32 %v3952, 0.0
        %v4274 = vmax.f32 %v3954, 0.0
        %v4275 = vmax.f32 %v4145, 0.0
        %v4276 = vmax.f32 %v4147, 0.0
        %v4277 = vpack.c.bf16 %v4153, %v4149
        %v4278 = vpack.c.bf16 %v4154, %v4150
        %v4279 = vpack.c.bf16 %v4155, %v4151
        %v4280 = vpack.c.bf16 %v4156, %v4152
        %v4281 = vpack.c.bf16 %v4161, %v4157
        %v4282 = vpack.c.bf16 %v4162, %v4158
        %v4283 = vpack.c.bf16 %v4163, %v4159
        %v4284 = vpack.c.bf16 %v4164, %v4160
        %v4285 = vpack.c.bf16 %v4169, %v4165
        %v4286 = vpack.c.bf16 %v4170, %v4166
        %v4287 = vpack.c.bf16 %v4171, %v4167
        %v4288 = vpack.c.bf16 %v4172, %v4168
        %v4289 = vpack.c.bf16 %v4177, %v4173
        %v4290 = vpack.c.bf16 %v4178, %v4174
        %v4291 = vpack.c.bf16 %v4179, %v4175
        %v4292 = vpack.c.bf16 %v4180, %v4176
        %v4293 = vpack.c.bf16 %v4185, %v4181
        %v4294 = vpack.c.bf16 %v4186, %v4182
        %v4295 = vpack.c.bf16 %v4187, %v4183
        %v4296 = vpack.c.bf16 %v4188, %v4184
        %v4297 = vpack.c.bf16 %v4193, %v4189
        %v4298 = vpack.c.bf16 %v4194, %v4190
        %v4299 = vpack.c.bf16 %v4195, %v4191
        %v4300 = vpack.c.bf16 %v4196, %v4192
        %v4301 = vpack.c.bf16 %v4201, %v4197
        %v4302 = vpack.c.bf16 %v4202, %v4198
        %v4303 = vpack.c.bf16 %v4203, %v4199
        %v4304 = vpack.c.bf16 %v4204, %v4200
        %v4305 = vpack.c.bf16 %v4209, %v4205
        %v4306 = vpack.c.bf16 %v4210, %v4206
        %v4307 = vpack.c.bf16 %v4211, %v4207
        %v4308 = vpack.c.bf16 %v4212, %v4208
        %v4309 = vpack.c.bf16 %v4217, %v4213
        %v4310 = vpack.c.bf16 %v4218, %v4214
        %v4311 = vpack.c.bf16 %v4219, %v4215
        %v4312 = vpack.c.bf16 %v4220, %v4216
        %v4313 = vpack.c.bf16 %v4225, %v4221
        %v4314 = vpack.c.bf16 %v4226, %v4222
        %v4315 = vpack.c.bf16 %v4227, %v4223
        %v4316 = vpack.c.bf16 %v4228, %v4224
        %v4317 = vpack.c.bf16 %v4233, %v4229
        %v4318 = vpack.c.bf16 %v4234, %v4230
        %v4319 = vpack.c.bf16 %v4235, %v4231
        %v4320 = vpack.c.bf16 %v4236, %v4232
        %v4321 = vpack.c.bf16 %v4241, %v4237
        %v4322 = vpack.c.bf16 %v4242, %v4238
        %v4323 = vpack.c.bf16 %v4243, %v4239
        %v4324 = vpack.c.bf16 %v4244, %v4240
        %v4325 = vpack.c.bf16 %v4249, %v4245
        %v4326 = vpack.c.bf16 %v4250, %v4246
        %v4327 = vpack.c.bf16 %v4251, %v4247
        %v4328 = vpack.c.bf16 %v4252, %v4248
        %v4329 = vpack.c.bf16 %v4257, %v4253
        %v4330 = vpack.c.bf16 %v4258, %v4254
        %v4331 = vpack.c.bf16 %v4259, %v4255
        %v4332 = vpack.c.bf16 %v4260, %v4256
        %v4333 = vpack.c.bf16 %v4265, %v4261
        %v4334 = vpack.c.bf16 %v4266, %v4262
        %v4335 = vpack.c.bf16 %v4267, %v4263
        %v4336 = vpack.c.bf16 %v4268, %v4264
        %v4337 = vpack.c.bf16 %v4273, %v4269
        %v4338 = vpack.c.bf16 %v4274, %v4270
        %v4339 = vpack.c.bf16 %v4275, %v4271
        %v4340 = vpack.c.bf16 %v4276, %v4272
        %v4341 = vld [vmem:[#allocation13] sm:$0xff]
        %v4342 = vld [vmem:[#allocation13 + $0x8] sm:$0xff]
        %v4343 = vld [vmem:[#allocation13 + $0x10] sm:$0xff]
        %v4344 = vld [vmem:[#allocation13 + $0x18] sm:$0xff]
        %v4345 = vld [vmem:[#allocation13 + $0x20] sm:$0xff]
        %v4346 = vld [vmem:[#allocation13 + $0x28] sm:$0xff]
        %v4347 = vld [vmem:[#allocation13 + $0x30] sm:$0xff]
        %v4348 = vld [vmem:[#allocation13 + $0x38] sm:$0xff]
        %v4349 = vld [vmem:[#allocation13 + $0x40] sm:$0xff]
        %v4350 = vld [vmem:[#allocation13 + $0x48] sm:$0xff]
        %v4351 = vld [vmem:[#allocation13 + $0x50] sm:$0xff]
        %v4352 = vld [vmem:[#allocation13 + $0x58] sm:$0xff]
        %v4353 = vld [vmem:[#allocation13 + $0x60] sm:$0xff]
        %v4354 = vld [vmem:[#allocation13 + $0x68] sm:$0xff]
        %v4355 = vld [vmem:[#allocation13 + $0x70] sm:$0xff]
        %v4356 = vld [vmem:[#allocation13 + $0x78] sm:$0xff]
        %v4357 = vld [vmem:[#allocation13 + $0x80] sm:$0xff]
        %v4358 = vld [vmem:[#allocation13 + $0x88] sm:$0xff]
        %v4359 = vld [vmem:[#allocation13 + $0x90] sm:$0xff]
        %v4360 = vld [vmem:[#allocation13 + $0x98] sm:$0xff]
        %v4361 = vld [vmem:[#allocation13 + $0xa0] sm:$0xff]
        %v4362 = vld [vmem:[#allocation13 + $0xa8] sm:$0xff]
        %v4363 = vld [vmem:[#allocation13 + $0xb0] sm:$0xff]
        %v4364 = vld [vmem:[#allocation13 + $0xb8] sm:$0xff]
        %v4365 = vld [vmem:[#allocation13 + $0xc0] sm:$0xff]
        %v4366 = vld [vmem:[#allocation13 + $0xc8] sm:$0xff]
        %v4367 = vld [vmem:[#allocation13 + $0xd0] sm:$0xff]
        %v4368 = vld [vmem:[#allocation13 + $0xd8] sm:$0xff]
        %v4369 = vld [vmem:[#allocation13 + $0xe0] sm:$0xff]
        %v4370 = vld [vmem:[#allocation13 + $0xe8] sm:$0xff]
        %v4371 = vld [vmem:[#allocation13 + $0xf0] sm:$0xff]
        %v4372 = vld [vmem:[#allocation13 + $0xf8] sm:$0xff]
        %v4373 = vld [vmem:[#allocation13 + $0x100] sm:$0xff]
        %v4374 = vld [vmem:[#allocation13 + $0x108] sm:$0xff]
        %v4375 = vld [vmem:[#allocation13 + $0x110] sm:$0xff]
        %v4376 = vld [vmem:[#allocation13 + $0x118] sm:$0xff]
        %v4377 = vld [vmem:[#allocation13 + $0x120] sm:$0xff]
        %v4378 = vld [vmem:[#allocation13 + $0x128] sm:$0xff]
        %v4379 = vld [vmem:[#allocation13 + $0x130] sm:$0xff]
        %v4380 = vld [vmem:[#allocation13 + $0x138] sm:$0xff]
        %v4381 = vld [vmem:[#allocation13 + $0x140] sm:$0xff]
        %v4382 = vld [vmem:[#allocation13 + $0x148] sm:$0xff]
        %v4383 = vld [vmem:[#allocation13 + $0x150] sm:$0xff]
        %v4384 = vld [vmem:[#allocation13 + $0x158] sm:$0xff]
        %v4385 = vld [vmem:[#allocation13 + $0x160] sm:$0xff]
        %v4386 = vld [vmem:[#allocation13 + $0x168] sm:$0xff]
        %v4387 = vld [vmem:[#allocation13 + $0x170] sm:$0xff]
        %v4388 = vld [vmem:[#allocation13 + $0x178] sm:$0xff]
        %v4389 = vld [vmem:[#allocation13 + $0x180] sm:$0xff]
        %v4390 = vld [vmem:[#allocation13 + $0x188] sm:$0xff]
        %v4391 = vld [vmem:[#allocation13 + $0x190] sm:$0xff]
        %v4392 = vld [vmem:[#allocation13 + $0x198] sm:$0xff]
        %v4393 = vld [vmem:[#allocation13 + $0x1a0] sm:$0xff]
        %v4394 = vld [vmem:[#allocation13 + $0x1a8] sm:$0xff]
        %v4395 = vld [vmem:[#allocation13 + $0x1b0] sm:$0xff]
        %v4396 = vld [vmem:[#allocation13 + $0x1b8] sm:$0xff]
        %v4397 = vld [vmem:[#allocation13 + $0x1c0] sm:$0xff]
        %v4398 = vld [vmem:[#allocation13 + $0x1c8] sm:$0xff]
        %v4399 = vld [vmem:[#allocation13 + $0x1d0] sm:$0xff]
        %v4400 = vld [vmem:[#allocation13 + $0x1d8] sm:$0xff]
        %v4401 = vld [vmem:[#allocation13 + $0x1e0] sm:$0xff]
        %v4402 = vld [vmem:[#allocation13 + $0x1e8] sm:$0xff]
        %v4403 = vld [vmem:[#allocation13 + $0x1f0] sm:$0xff]
        %v4404 = vld [vmem:[#allocation13 + $0x1f8] sm:$0xff]
        %v4405 = vld [vmem:[#allocation13 + $0x200] sm:$0xff]
        %v4406 = vld [vmem:[#allocation13 + $0x208] sm:$0xff]
        %v4407 = vld [vmem:[#allocation13 + $0x210] sm:$0xff]
        %v4408 = vld [vmem:[#allocation13 + $0x218] sm:$0xff]
        %v4409 = vld [vmem:[#allocation13 + $0x220] sm:$0xff]
        %v4410 = vld [vmem:[#allocation13 + $0x228] sm:$0xff]
        %v4411 = vld [vmem:[#allocation13 + $0x230] sm:$0xff]
        %v4412 = vld [vmem:[#allocation13 + $0x238] sm:$0xff]
        %v4413 = vld [vmem:[#allocation13 + $0x240] sm:$0xff]
        %v4414 = vld [vmem:[#allocation13 + $0x248] sm:$0xff]
        %v4415 = vld [vmem:[#allocation13 + $0x250] sm:$0xff]
        %v4416 = vld [vmem:[#allocation13 + $0x258] sm:$0xff]
        %v4417 = vld [vmem:[#allocation13 + $0x260] sm:$0xff]
        %v4418 = vld [vmem:[#allocation13 + $0x268] sm:$0xff]
        %v4419 = vld [vmem:[#allocation13 + $0x270] sm:$0xff]
        %v4420 = vld [vmem:[#allocation13 + $0x278] sm:$0xff]
        %v4421 = vld [vmem:[#allocation13 + $0x280] sm:$0xff]
        %v4422 = vld [vmem:[#allocation13 + $0x288] sm:$0xff]
        %v4423 = vld [vmem:[#allocation13 + $0x290] sm:$0xff]
        %v4424 = vld [vmem:[#allocation13 + $0x298] sm:$0xff]
        %v4425 = vld [vmem:[#allocation13 + $0x2a0] sm:$0xff]
        %v4426 = vld [vmem:[#allocation13 + $0x2a8] sm:$0xff]
        %v4427 = vld [vmem:[#allocation13 + $0x2b0] sm:$0xff]
        %v4428 = vld [vmem:[#allocation13 + $0x2b8] sm:$0xff]
        %v4429 = vld [vmem:[#allocation13 + $0x2c0] sm:$0xff]
        %v4430 = vld [vmem:[#allocation13 + $0x2c8] sm:$0xff]
        %v4431 = vld [vmem:[#allocation13 + $0x2d0] sm:$0xff]
        %v4432 = vld [vmem:[#allocation13 + $0x2d8] sm:$0xff]
        %v4433 = vld [vmem:[#allocation13 + $0x2e0] sm:$0xff]
        %v4434 = vld [vmem:[#allocation13 + $0x2e8] sm:$0xff]
        %v4435 = vld [vmem:[#allocation13 + $0x2f0] sm:$0xff]
        %v4436 = vld [vmem:[#allocation13 + $0x2f8] sm:$0xff]
        %v4437 = vld [vmem:[#allocation13 + $0x300] sm:$0xff]
        %v4438 = vld [vmem:[#allocation13 + $0x308] sm:$0xff]
        %v4439 = vld [vmem:[#allocation13 + $0x310] sm:$0xff]
        %v4440 = vld [vmem:[#allocation13 + $0x318] sm:$0xff]
        %v4441 = vld [vmem:[#allocation13 + $0x320] sm:$0xff]
        %v4442 = vld [vmem:[#allocation13 + $0x328] sm:$0xff]
        %v4443 = vld [vmem:[#allocation13 + $0x330] sm:$0xff]
        %v4444 = vld [vmem:[#allocation13 + $0x338] sm:$0xff]
        %v4445 = vld [vmem:[#allocation13 + $0x340] sm:$0xff]
        %v4446 = vld [vmem:[#allocation13 + $0x348] sm:$0xff]
        %v4447 = vld [vmem:[#allocation13 + $0x350] sm:$0xff]
        %v4448 = vld [vmem:[#allocation13 + $0x358] sm:$0xff]
        %v4449 = vld [vmem:[#allocation13 + $0x360] sm:$0xff]
        %v4450 = vld [vmem:[#allocation13 + $0x368] sm:$0xff]
        %v4451 = vld [vmem:[#allocation13 + $0x370] sm:$0xff]
        %v4452 = vld [vmem:[#allocation13 + $0x378] sm:$0xff]
        %v4453 = vld [vmem:[#allocation13 + $0x380] sm:$0xff]
        %v4454 = vld [vmem:[#allocation13 + $0x388] sm:$0xff]
        %v4455 = vld [vmem:[#allocation13 + $0x390] sm:$0xff]
        %v4456 = vld [vmem:[#allocation13 + $0x398] sm:$0xff]
        %v4457 = vld [vmem:[#allocation13 + $0x3a0] sm:$0xff]
        %v4458 = vld [vmem:[#allocation13 + $0x3a8] sm:$0xff]
        %v4459 = vld [vmem:[#allocation13 + $0x3b0] sm:$0xff]
        %v4460 = vld [vmem:[#allocation13 + $0x3b8] sm:$0xff]
        %v4461 = vld [vmem:[#allocation13 + $0x3c0] sm:$0xff]
        %v4462 = vld [vmem:[#allocation13 + $0x3c8] sm:$0xff]
        %v4463 = vld [vmem:[#allocation13 + $0x3d0] sm:$0xff]
        %v4464 = vld [vmem:[#allocation13 + $0x3d8] sm:$0xff]
        %v4465 = vld [vmem:[#allocation13 + $0x3e0] sm:$0xff]
        %v4466 = vld [vmem:[#allocation13 + $0x3e8] sm:$0xff]
        %v4467 = vld [vmem:[#allocation13 + $0x3f0] sm:$0xff]
        %v4468 = vld [vmem:[#allocation13 + $0x3f8] sm:$0xff]
        %v4469 = vld [vmem:[%s12] sm:$0xf]
        %v4471 = vlaneseq
        %v4472 = vshrl.u32 %v4471, 7
        %v4473 = vsub.s32 0, %v4472
        %v4474 = vrot.slane %v4469, %v4473
        %v4475 = vlaneseq
        %v4476 = vshrl.u32 %v4475, 7
        %v4477 = vsub.s32 1, %v4476
        %v4478 = vrot.slane %v4469, %v4477
        %v4479 = vlaneseq
        %v4480 = vshrl.u32 %v4479, 7
        %v4481 = vsub.s32 2, %v4480
        %v4482 = vrot.slane %v4469, %v4481
        %v4483 = vlaneseq
        %v4484 = vshrl.u32 %v4483, 7
        %v4485 = vsub.s32 3, %v4484
        %v4486 = vrot.slane %v4469, %v4485
        %v4619 = vunpack.c.l.b16 %v4341
        %v4620 = vunpack.c.h.b16 %v4341
        %v4621 = vunpack.c.l.b16 %v4342
        %v4622 = vunpack.c.h.b16 %v4342
        %v4623 = vunpack.c.l.b16 %v4343
        %v4624 = vunpack.c.h.b16 %v4343
        %v4625 = vunpack.c.l.b16 %v4344
        %v4626 = vunpack.c.h.b16 %v4344
        %v4627 = vunpack.c.l.b16 %v4345
        %v4628 = vunpack.c.h.b16 %v4345
        %v4629 = vunpack.c.l.b16 %v4346
        %v4630 = vunpack.c.h.b16 %v4346
        %v4631 = vunpack.c.l.b16 %v4347
        %v4632 = vunpack.c.h.b16 %v4347
        %v4633 = vunpack.c.l.b16 %v4348
        %v4634 = vunpack.c.h.b16 %v4348
        %v4635 = vunpack.c.l.b16 %v4349
        %v4636 = vunpack.c.h.b16 %v4349
        %v4637 = vunpack.c.l.b16 %v4350
        %v4638 = vunpack.c.h.b16 %v4350
        %v4639 = vunpack.c.l.b16 %v4351
        %v4640 = vunpack.c.h.b16 %v4351
        %v4641 = vunpack.c.l.b16 %v4352
        %v4642 = vunpack.c.h.b16 %v4352
        %v4643 = vunpack.c.l.b16 %v4353
        %v4644 = vunpack.c.h.b16 %v4353
        %v4645 = vunpack.c.l.b16 %v4354
        %v4646 = vunpack.c.h.b16 %v4354
        %v4647 = vunpack.c.l.b16 %v4355
        %v4648 = vunpack.c.h.b16 %v4355
        %v4649 = vunpack.c.l.b16 %v4356
        %v4650 = vunpack.c.h.b16 %v4356
        %v4651 = vunpack.c.l.b16 %v4357
        %v4652 = vunpack.c.h.b16 %v4357
        %v4653 = vunpack.c.l.b16 %v4358
        %v4654 = vunpack.c.h.b16 %v4358
        %v4655 = vunpack.c.l.b16 %v4359
        %v4656 = vunpack.c.h.b16 %v4359
        %v4657 = vunpack.c.l.b16 %v4360
        %v4658 = vunpack.c.h.b16 %v4360
        %v4659 = vunpack.c.l.b16 %v4361
        %v4660 = vunpack.c.h.b16 %v4361
        %v4661 = vunpack.c.l.b16 %v4362
        %v4662 = vunpack.c.h.b16 %v4362
        %v4663 = vunpack.c.l.b16 %v4363
        %v4664 = vunpack.c.h.b16 %v4363
        %v4665 = vunpack.c.l.b16 %v4364
        %v4666 = vunpack.c.h.b16 %v4364
        %v4667 = vunpack.c.l.b16 %v4365
        %v4668 = vunpack.c.h.b16 %v4365
        %v4669 = vunpack.c.l.b16 %v4366
        %v4670 = vunpack.c.h.b16 %v4366
        %v4671 = vunpack.c.l.b16 %v4367
        %v4672 = vunpack.c.h.b16 %v4367
        %v4673 = vunpack.c.l.b16 %v4368
        %v4674 = vunpack.c.h.b16 %v4368
        %v4675 = vunpack.c.l.b16 %v4369
        %v4676 = vunpack.c.h.b16 %v4369
        %v4677 = vunpack.c.l.b16 %v4370
        %v4678 = vunpack.c.h.b16 %v4370
        %v4679 = vunpack.c.l.b16 %v4371
        %v4680 = vunpack.c.h.b16 %v4371
        %v4681 = vunpack.c.l.b16 %v4372
        %v4682 = vunpack.c.h.b16 %v4372
        %v4683 = vunpack.c.l.b16 %v4373
        %v4684 = vunpack.c.h.b16 %v4373
        %v4685 = vunpack.c.l.b16 %v4374
        %v4686 = vunpack.c.h.b16 %v4374
        %v4687 = vunpack.c.l.b16 %v4375
        %v4688 = vunpack.c.h.b16 %v4375
        %v4689 = vunpack.c.l.b16 %v4376
        %v4690 = vunpack.c.h.b16 %v4376
        %v4691 = vunpack.c.l.b16 %v4377
        %v4692 = vunpack.c.h.b16 %v4377
        %v4693 = vunpack.c.l.b16 %v4378
        %v4694 = vunpack.c.h.b16 %v4378
        %v4695 = vunpack.c.l.b16 %v4379
        %v4696 = vunpack.c.h.b16 %v4379
        %v4697 = vunpack.c.l.b16 %v4380
        %v4698 = vunpack.c.h.b16 %v4380
        %v4699 = vunpack.c.l.b16 %v4381
        %v4700 = vunpack.c.h.b16 %v4381
        %v4701 = vunpack.c.l.b16 %v4382
        %v4702 = vunpack.c.h.b16 %v4382
        %v4703 = vunpack.c.l.b16 %v4383
        %v4704 = vunpack.c.h.b16 %v4383
        %v4705 = vunpack.c.l.b16 %v4384
        %v4706 = vunpack.c.h.b16 %v4384
        %v4707 = vunpack.c.l.b16 %v4385
        %v4708 = vunpack.c.h.b16 %v4385
        %v4709 = vunpack.c.l.b16 %v4386
        %v4710 = vunpack.c.h.b16 %v4386
        %v4711 = vunpack.c.l.b16 %v4387
        %v4712 = vunpack.c.h.b16 %v4387
        %v4713 = vunpack.c.l.b16 %v4388
        %v4714 = vunpack.c.h.b16 %v4388
        %v4715 = vunpack.c.l.b16 %v4389
        %v4716 = vunpack.c.h.b16 %v4389
        %v4717 = vunpack.c.l.b16 %v4390
        %v4718 = vunpack.c.h.b16 %v4390
        %v4719 = vunpack.c.l.b16 %v4391
        %v4720 = vunpack.c.h.b16 %v4391
        %v4721 = vunpack.c.l.b16 %v4392
        %v4722 = vunpack.c.h.b16 %v4392
        %v4723 = vunpack.c.l.b16 %v4393
        %v4724 = vunpack.c.h.b16 %v4393
        %v4725 = vunpack.c.l.b16 %v4394
        %v4726 = vunpack.c.h.b16 %v4394
        %v4727 = vunpack.c.l.b16 %v4395
        %v4728 = vunpack.c.h.b16 %v4395
        %v4729 = vunpack.c.l.b16 %v4396
        %v4730 = vunpack.c.h.b16 %v4396
        %v4731 = vunpack.c.l.b16 %v4397
        %v4732 = vunpack.c.h.b16 %v4397
        %v4733 = vunpack.c.l.b16 %v4398
        %v4734 = vunpack.c.h.b16 %v4398
        %v4735 = vunpack.c.l.b16 %v4399
        %v4736 = vunpack.c.h.b16 %v4399
        %v4737 = vunpack.c.l.b16 %v4400
        %v4738 = vunpack.c.h.b16 %v4400
        %v4739 = vunpack.c.l.b16 %v4401
        %v4740 = vunpack.c.h.b16 %v4401
        %v4741 = vunpack.c.l.b16 %v4402
        %v4742 = vunpack.c.h.b16 %v4402
        %v4743 = vunpack.c.l.b16 %v4403
        %v4744 = vunpack.c.h.b16 %v4403
        %v4745 = vunpack.c.l.b16 %v4404
        %v4746 = vunpack.c.h.b16 %v4404
        %v4747 = vunpack.c.l.b16 %v4405
        %v4748 = vunpack.c.h.b16 %v4405
        %v4749 = vunpack.c.l.b16 %v4406
        %v4750 = vunpack.c.h.b16 %v4406
        %v4751 = vunpack.c.l.b16 %v4407
        %v4752 = vunpack.c.h.b16 %v4407
        %v4753 = vunpack.c.l.b16 %v4408
        %v4754 = vunpack.c.h.b16 %v4408
        %v4755 = vunpack.c.l.b16 %v4409
        %v4756 = vunpack.c.h.b16 %v4409
        %v4757 = vunpack.c.l.b16 %v4410
        %v4758 = vunpack.c.h.b16 %v4410
        %v4759 = vunpack.c.l.b16 %v4411
        %v4760 = vunpack.c.h.b16 %v4411
        %v4761 = vunpack.c.l.b16 %v4412
        %v4762 = vunpack.c.h.b16 %v4412
        %v4763 = vunpack.c.l.b16 %v4413
        %v4764 = vunpack.c.h.b16 %v4413
        %v4765 = vunpack.c.l.b16 %v4414
        %v4766 = vunpack.c.h.b16 %v4414
        %v4767 = vunpack.c.l.b16 %v4415
        %v4768 = vunpack.c.h.b16 %v4415
        %v4769 = vunpack.c.l.b16 %v4416
        %v4770 = vunpack.c.h.b16 %v4416
        %v4771 = vunpack.c.l.b16 %v4417
        %v4772 = vunpack.c.h.b16 %v4417
        %v4773 = vunpack.c.l.b16 %v4418
        %v4774 = vunpack.c.h.b16 %v4418
        %v4775 = vunpack.c.l.b16 %v4419
        %v4776 = vunpack.c.h.b16 %v4419
        %v4777 = vunpack.c.l.b16 %v4420
        %v4778 = vunpack.c.h.b16 %v4420
        %v4779 = vunpack.c.l.b16 %v4421
        %v4780 = vunpack.c.h.b16 %v4421
        %v4781 = vunpack.c.l.b16 %v4422
        %v4782 = vunpack.c.h.b16 %v4422
        %v4783 = vunpack.c.l.b16 %v4423
        %v4784 = vunpack.c.h.b16 %v4423
        %v4785 = vunpack.c.l.b16 %v4424
        %v4786 = vunpack.c.h.b16 %v4424
        %v4787 = vunpack.c.l.b16 %v4425
        %v4788 = vunpack.c.h.b16 %v4425
        %v4789 = vunpack.c.l.b16 %v4426
        %v4790 = vunpack.c.h.b16 %v4426
        %v4791 = vunpack.c.l.b16 %v4427
        %v4792 = vunpack.c.h.b16 %v4427
        %v4793 = vunpack.c.l.b16 %v4428
        %v4794 = vunpack.c.h.b16 %v4428
        %v4795 = vunpack.c.l.b16 %v4429
        %v4796 = vunpack.c.h.b16 %v4429
        %v4797 = vunpack.c.l.b16 %v4430
        %v4798 = vunpack.c.h.b16 %v4430
        %v4799 = vunpack.c.l.b16 %v4431
        %v4800 = vunpack.c.h.b16 %v4431
        %v4801 = vunpack.c.l.b16 %v4432
        %v4802 = vunpack.c.h.b16 %v4432
        %v4803 = vunpack.c.l.b16 %v4433
        %v4804 = vunpack.c.h.b16 %v4433
        %v4805 = vunpack.c.l.b16 %v4434
        %v4806 = vunpack.c.h.b16 %v4434
        %v4807 = vunpack.c.l.b16 %v4435
        %v4808 = vunpack.c.h.b16 %v4435
        %v4809 = vunpack.c.l.b16 %v4436
        %v4810 = vunpack.c.h.b16 %v4436
        %v4811 = vunpack.c.l.b16 %v4437
        %v4812 = vunpack.c.h.b16 %v4437
        %v4813 = vunpack.c.l.b16 %v4438
        %v4814 = vunpack.c.h.b16 %v4438
        %v4815 = vunpack.c.l.b16 %v4439
        %v4816 = vunpack.c.h.b16 %v4439
        %v4817 = vunpack.c.l.b16 %v4440
        %v4818 = vunpack.c.h.b16 %v4440
        %v4819 = vunpack.c.l.b16 %v4441
        %v4820 = vunpack.c.h.b16 %v4441
        %v4821 = vunpack.c.l.b16 %v4442
        %v4822 = vunpack.c.h.b16 %v4442
        %v4823 = vunpack.c.l.b16 %v4443
        %v4824 = vunpack.c.h.b16 %v4443
        %v4825 = vunpack.c.l.b16 %v4444
        %v4826 = vunpack.c.h.b16 %v4444
        %v4827 = vunpack.c.l.b16 %v4445
        %v4828 = vunpack.c.h.b16 %v4445
        %v4829 = vunpack.c.l.b16 %v4446
        %v4830 = vunpack.c.h.b16 %v4446
        %v4831 = vunpack.c.l.b16 %v4447
        %v4832 = vunpack.c.h.b16 %v4447
        %v4833 = vunpack.c.l.b16 %v4448
        %v4834 = vunpack.c.h.b16 %v4448
        %v4835 = vunpack.c.l.b16 %v4449
        %v4836 = vunpack.c.h.b16 %v4449
        %v4837 = vunpack.c.l.b16 %v4450
        %v4838 = vunpack.c.h.b16 %v4450
        %v4839 = vunpack.c.l.b16 %v4451
        %v4840 = vunpack.c.h.b16 %v4451
        %v4841 = vunpack.c.l.b16 %v4452
        %v4842 = vunpack.c.h.b16 %v4452
        %v4843 = vunpack.c.l.b16 %v4453
        %v4844 = vunpack.c.h.b16 %v4453
        %v4845 = vunpack.c.l.b16 %v4454
        %v4846 = vunpack.c.h.b16 %v4454
        %v4847 = vunpack.c.l.b16 %v4455
        %v4848 = vunpack.c.h.b16 %v4455
        %v4849 = vunpack.c.l.b16 %v4456
        %v4850 = vunpack.c.h.b16 %v4456
        %v4851 = vunpack.c.l.b16 %v4457
        %v4852 = vunpack.c.h.b16 %v4457
        %v4853 = vunpack.c.l.b16 %v4458
        %v4854 = vunpack.c.h.b16 %v4458
        %v4855 = vunpack.c.l.b16 %v4459
        %v4856 = vunpack.c.h.b16 %v4459
        %v4857 = vunpack.c.l.b16 %v4460
        %v4858 = vunpack.c.h.b16 %v4460
        %v4859 = vunpack.c.l.b16 %v4461
        %v4860 = vunpack.c.h.b16 %v4461
        %v4861 = vunpack.c.l.b16 %v4462
        %v4862 = vunpack.c.h.b16 %v4462
        %v4863 = vunpack.c.l.b16 %v4463
        %v4864 = vunpack.c.h.b16 %v4463
        %v4865 = vunpack.c.l.b16 %v4464
        %v4866 = vunpack.c.h.b16 %v4464
        %v4867 = vunpack.c.l.b16 %v4465
        %v4868 = vunpack.c.h.b16 %v4465
        %v4869 = vunpack.c.l.b16 %v4466
        %v4870 = vunpack.c.h.b16 %v4466
        %v4871 = vunpack.c.l.b16 %v4467
        %v4872 = vunpack.c.h.b16 %v4467
        %v4873 = vunpack.c.l.b16 %v4468
        %v4874 = vunpack.c.h.b16 %v4468
        %v4875 = vpack.c.b16 %v4623, %v4619
        %v4876 = vpack.c.b16 %v4624, %v4620
        %v4877 = vpack.c.b16 %v4625, %v4621
        %v4878 = vpack.c.b16 %v4626, %v4622
        %v4879 = vpack.c.b16 %v4631, %v4627
        %v4880 = vpack.c.b16 %v4632, %v4628
        %v4881 = vpack.c.b16 %v4633, %v4629
        %v4882 = vpack.c.b16 %v4634, %v4630
        %v4883 = vpack.c.b16 %v4639, %v4635
        %v4884 = vpack.c.b16 %v4640, %v4636
        %v4885 = vpack.c.b16 %v4641, %v4637
        %v4886 = vpack.c.b16 %v4642, %v4638
        %v4887 = vpack.c.b16 %v4647, %v4643
        %v4888 = vpack.c.b16 %v4648, %v4644
        %v4889 = vpack.c.b16 %v4649, %v4645
        %v4890 = vpack.c.b16 %v4650, %v4646
        %v4891 = vpack.c.b16 %v4655, %v4651
        %v4892 = vpack.c.b16 %v4656, %v4652
        %v4893 = vpack.c.b16 %v4657, %v4653
        %v4894 = vpack.c.b16 %v4658, %v4654
        %v4895 = vpack.c.b16 %v4663, %v4659
        %v4896 = vpack.c.b16 %v4664, %v4660
        %v4897 = vpack.c.b16 %v4665, %v4661
        %v4898 = vpack.c.b16 %v4666, %v4662
        %v4899 = vpack.c.b16 %v4671, %v4667
        %v4900 = vpack.c.b16 %v4672, %v4668
        %v4901 = vpack.c.b16 %v4673, %v4669
        %v4902 = vpack.c.b16 %v4674, %v4670
        %v4903 = vpack.c.b16 %v4679, %v4675
        %v4904 = vpack.c.b16 %v4680, %v4676
        %v4905 = vpack.c.b16 %v4681, %v4677
        %v4906 = vpack.c.b16 %v4682, %v4678
        %v4907 = vpack.c.b16 %v4687, %v4683
        %v4908 = vpack.c.b16 %v4688, %v4684
        %v4909 = vpack.c.b16 %v4689, %v4685
        %v4910 = vpack.c.b16 %v4690, %v4686
        %v4911 = vpack.c.b16 %v4695, %v4691
        %v4912 = vpack.c.b16 %v4696, %v4692
        %v4913 = vpack.c.b16 %v4697, %v4693
        %v4914 = vpack.c.b16 %v4698, %v4694
        %v4915 = vpack.c.b16 %v4703, %v4699
        %v4916 = vpack.c.b16 %v4704, %v4700
        %v4917 = vpack.c.b16 %v4705, %v4701
        %v4918 = vpack.c.b16 %v4706, %v4702
        %v4919 = vpack.c.b16 %v4711, %v4707
        %v4920 = vpack.c.b16 %v4712, %v4708
        %v4921 = vpack.c.b16 %v4713, %v4709
        %v4922 = vpack.c.b16 %v4714, %v4710
        %v4923 = vpack.c.b16 %v4719, %v4715
        %v4924 = vpack.c.b16 %v4720, %v4716
        %v4925 = vpack.c.b16 %v4721, %v4717
        %v4926 = vpack.c.b16 %v4722, %v4718
        %v4927 = vpack.c.b16 %v4727, %v4723
        %v4928 = vpack.c.b16 %v4728, %v4724
        %v4929 = vpack.c.b16 %v4729, %v4725
        %v4930 = vpack.c.b16 %v4730, %v4726
        %v4931 = vpack.c.b16 %v4735, %v4731
        %v4932 = vpack.c.b16 %v4736, %v4732
        %v4933 = vpack.c.b16 %v4737, %v4733
        %v4934 = vpack.c.b16 %v4738, %v4734
        %v4935 = vpack.c.b16 %v4743, %v4739
        %v4936 = vpack.c.b16 %v4744, %v4740
        %v4937 = vpack.c.b16 %v4745, %v4741
        %v4938 = vpack.c.b16 %v4746, %v4742
        %v4939 = vpack.c.b16 %v4751, %v4747
        %v4940 = vpack.c.b16 %v4752, %v4748
        %v4941 = vpack.c.b16 %v4753, %v4749
        %v4942 = vpack.c.b16 %v4754, %v4750
        %v4943 = vpack.c.b16 %v4759, %v4755
        %v4944 = vpack.c.b16 %v4760, %v4756
        %v4945 = vpack.c.b16 %v4761, %v4757
        %v4946 = vpack.c.b16 %v4762, %v4758
        %v4947 = vpack.c.b16 %v4767, %v4763
        %v4948 = vpack.c.b16 %v4768, %v4764
        %v4949 = vpack.c.b16 %v4769, %v4765
        %v4950 = vpack.c.b16 %v4770, %v4766
        %v4951 = vpack.c.b16 %v4775, %v4771
        %v4952 = vpack.c.b16 %v4776, %v4772
        %v4953 = vpack.c.b16 %v4777, %v4773
        %v4954 = vpack.c.b16 %v4778, %v4774
        %v4955 = vpack.c.b16 %v4783, %v4779
        %v4956 = vpack.c.b16 %v4784, %v4780
        %v4957 = vpack.c.b16 %v4785, %v4781
        %v4958 = vpack.c.b16 %v4786, %v4782
        %v4959 = vpack.c.b16 %v4791, %v4787
        %v4960 = vpack.c.b16 %v4792, %v4788
        %v4961 = vpack.c.b16 %v4793, %v4789
        %v4962 = vpack.c.b16 %v4794, %v4790
        %v4963 = vpack.c.b16 %v4799, %v4795
        %v4964 = vpack.c.b16 %v4800, %v4796
        %v4965 = vpack.c.b16 %v4801, %v4797
        %v4966 = vpack.c.b16 %v4802, %v4798
        %v4967 = vpack.c.b16 %v4807, %v4803
        %v4968 = vpack.c.b16 %v4808, %v4804
        %v4969 = vpack.c.b16 %v4809, %v4805
        %v4970 = vpack.c.b16 %v4810, %v4806
        %v4971 = vpack.c.b16 %v4815, %v4811
        %v4972 = vpack.c.b16 %v4816, %v4812
        %v4973 = vpack.c.b16 %v4817, %v4813
        %v4974 = vpack.c.b16 %v4818, %v4814
        %v4975 = vpack.c.b16 %v4823, %v4819
        %v4976 = vpack.c.b16 %v4824, %v4820
        %v4977 = vpack.c.b16 %v4825, %v4821
        %v4978 = vpack.c.b16 %v4826, %v4822
        %v4979 = vpack.c.b16 %v4831, %v4827
        %v4980 = vpack.c.b16 %v4832, %v4828
        %v4981 = vpack.c.b16 %v4833, %v4829
        %v4982 = vpack.c.b16 %v4834, %v4830
        %v4983 = vpack.c.b16 %v4839, %v4835
        %v4984 = vpack.c.b16 %v4840, %v4836
        %v4985 = vpack.c.b16 %v4841, %v4837
        %v4986 = vpack.c.b16 %v4842, %v4838
        %v4987 = vpack.c.b16 %v4847, %v4843
        %v4988 = vpack.c.b16 %v4848, %v4844
        %v4989 = vpack.c.b16 %v4849, %v4845
        %v4990 = vpack.c.b16 %v4850, %v4846
        %v4991 = vpack.c.b16 %v4855, %v4851
        %v4992 = vpack.c.b16 %v4856, %v4852
        %v4993 = vpack.c.b16 %v4857, %v4853
        %v4994 = vpack.c.b16 %v4858, %v4854
        %v4995 = vpack.c.b16 %v4863, %v4859
        %v4996 = vpack.c.b16 %v4864, %v4860
        %v4997 = vpack.c.b16 %v4865, %v4861
        %v4998 = vpack.c.b16 %v4866, %v4862
        %v4999 = vpack.c.b16 %v4871, %v4867
        %v5000 = vpack.c.b16 %v4872, %v4868
        %v5001 = vpack.c.b16 %v4873, %v4869
        %v5002 = vpack.c.b16 %v4874, %v4870
        %5131 = vmatprep.subr.bf16.mxu0 %v4876
        %5132 = vmatpush1.bf16.msra.mxu0 %v4875
        %5133 = vmatprep.subr.bf16.mxu0 %v4880
        %5134 = vmatpush1.bf16.msra.mxu0 %v4879
        %5135 = vmatprep.subr.bf16.mxu0 %v4884
        %5136 = vmatpush1.bf16.msra.mxu0 %v4883
        %5137 = vmatprep.subr.bf16.mxu0 %v4888
        %5138 = vmatpush1.bf16.msra.mxu0 %v4887
        %5139 = vmatprep.subr.bf16.mxu0 %v4892
        %5140 = vmatpush1.bf16.msra.mxu0 %v4891
        %5141 = vmatprep.subr.bf16.mxu0 %v4896
        %5142 = vmatpush1.bf16.msra.mxu0 %v4895
        %5143 = vmatprep.subr.bf16.mxu0 %v4900
        %5144 = vmatpush1.bf16.msra.mxu0 %v4899
        %5145 = vmatprep.subr.bf16.mxu0 %v4904
        %5146 = vmatpush1.bf16.msra.mxu0 %v4903
        %5147 = vmatprep.subr.bf16.mxu0 %v4908
        %5148 = vmatpush1.bf16.msra.mxu0 %v4907
        %5149 = vmatprep.subr.bf16.mxu0 %v4912
        %5150 = vmatpush1.bf16.msra.mxu0 %v4911
        %5151 = vmatprep.subr.bf16.mxu0 %v4916
        %5152 = vmatpush1.bf16.msra.mxu0 %v4915
        %5153 = vmatprep.subr.bf16.mxu0 %v4920
        %5154 = vmatpush1.bf16.msra.mxu0 %v4919
        %5155 = vmatprep.subr.bf16.mxu0 %v4924
        %5156 = vmatpush1.bf16.msra.mxu0 %v4923
        %5157 = vmatprep.subr.bf16.mxu0 %v4928
        %5158 = vmatpush1.bf16.msra.mxu0 %v4927
        %5159 = vmatprep.subr.bf16.mxu0 %v4932
        %5160 = vmatpush1.bf16.msra.mxu0 %v4931
        %5161 = vmatprep.subr.bf16.mxu0 %v4936
        %5162 = vmatpush1.bf16.msra.mxu0 %v4935
        %5163 = vmatprep.mubr.bf16.mxu0 %v4278
        %5164 = vmatmul.mubr.bf16.gmra.mrb[0].mxu0 %v4277
        %v5165 = vpop.f32.mrb[0].mxu0
        %v5166 = vadd.f32 %v4474, %v5165
        %v5167 = vpop.f32.mrb[0].mxu0
        %v5168 = vadd.f32 %v4478, %v5167
        %v5169 = vpop.f32.mrb[0].mxu0
        %v5170 = vadd.f32 %v4474, %v5169
        %v5171 = vpop.f32.mrb[0].mxu0
        %v5172 = vadd.f32 %v4478, %v5171
        %5173 = vmatprep.mubr.bf16.mxu0 %v4282
        %5174 = vmatmul.mubr.bf16.gmra.mrb[0].mxu0 %v4281
        %v5175 = vpop.f32.mrb[0].mxu0
        %v5176 = vadd.f32 %v4474, %v5175
        %v5177 = vpop.f32.mrb[0].mxu0
        %v5178 = vadd.f32 %v4478, %v5177
        %v5179 = vpop.f32.mrb[0].mxu0
        %v5180 = vadd.f32 %v4474, %v5179
        %v5181 = vpop.f32.mrb[0].mxu0
        %v5182 = vadd.f32 %v4478, %v5181
        %5183 = vmatprep.mubr.bf16.mxu0 %v4286
        %5184 = vmatmul.mubr.bf16.gmra.mrb[0].mxu0 %v4285
        %v5185 = vpop.f32.mrb[0].mxu0
        %v5186 = vadd.f32 %v4474, %v5185
        %v5187 = vpop.f32.mrb[0].mxu0
        %v5188 = vadd.f32 %v4478, %v5187
        %v5189 = vpop.f32.mrb[0].mxu0
        %v5190 = vadd.f32 %v4474, %v5189
        %v5191 = vpop.f32.mrb[0].mxu0
        %v5192 = vadd.f32 %v4478, %v5191
        %5193 = vmatprep.mubr.bf16.mxu0 %v4290
        %5194 = vmatmul.mubr.bf16.gmra.mrb[0].mxu0 %v4289
        %v5195 = vpop.f32.mrb[0].mxu0
        %v5196 = vadd.f32 %v4474, %v5195
        %v5197 = vpop.f32.mrb[0].mxu0
        %v5198 = vadd.f32 %v4478, %v5197
        %v5199 = vpop.f32.mrb[0].mxu0
        %v5200 = vadd.f32 %v4474, %v5199
        %v5201 = vpop.f32.mrb[0].mxu0
        %v5202 = vadd.f32 %v4478, %v5201
        %5203 = vmatprep.mubr.bf16.mxu0 %v4294
        %5204 = vmatmul.mubr.bf16.gmra.mrb[0].mxu0 %v4293
        %v5205 = vpop.f32.mrb[0].mxu0
        %v5206 = vadd.f32 %v4474, %v5205
        %v5207 = vpop.f32.mrb[0].mxu0
        %v5208 = vadd.f32 %v4478, %v5207
        %v5209 = vpop.f32.mrb[0].mxu0
        %v5210 = vadd.f32 %v4474, %v5209
        %v5211 = vpop.f32.mrb[0].mxu0
        %v5212 = vadd.f32 %v4478, %v5211
        %5213 = vmatprep.mubr.bf16.mxu0 %v4298
        %5214 = vmatmul.mubr.bf16.gmra.mrb[0].mxu0 %v4297
        %v5215 = vpop.f32.mrb[0].mxu0
        %v5216 = vadd.f32 %v4474, %v5215
        %v5217 = vpop.f32.mrb[0].mxu0
        %v5218 = vadd.f32 %v4478, %v5217
        %v5219 = vpop.f32.mrb[0].mxu0
        %v5220 = vadd.f32 %v4474, %v5219
        %v5221 = vpop.f32.mrb[0].mxu0
        %v5222 = vadd.f32 %v4478, %v5221
        %5223 = vmatprep.mubr.bf16.mxu0 %v4302
        %5224 = vmatmul.mubr.bf16.gmra.mrb[0].mxu0 %v4301
        %v5225 = vpop.f32.mrb[0].mxu0
        %v5226 = vadd.f32 %v4474, %v5225
        %v5227 = vpop.f32.mrb[0].mxu0
        %v5228 = vadd.f32 %v4478, %v5227
        %v5229 = vpop.f32.mrb[0].mxu0
        %v5230 = vadd.f32 %v4474, %v5229
        %v5231 = vpop.f32.mrb[0].mxu0
        %v5232 = vadd.f32 %v4478, %v5231
        %5233 = vmatprep.mubr.bf16.mxu0 %v4306
        %5234 = vmatmul.mubr.bf16.gmra.mrb[0].mxu0 %v4305
        %v5235 = vpop.f32.mrb[0].mxu0
        %v5236 = vadd.f32 %v4474, %v5235
        %v5237 = vpop.f32.mrb[0].mxu0
        %v5238 = vadd.f32 %v4478, %v5237
        %v5239 = vpop.f32.mrb[0].mxu0
        %v5240 = vadd.f32 %v4474, %v5239
        %v5241 = vpop.f32.mrb[0].mxu0
        %v5242 = vadd.f32 %v4478, %v5241
        %5243 = vmatprep.mubr.bf16.mxu0 %v4310
        %5244 = vmatmul.mubr.bf16.gmra.mrb[0].mxu0 %v4309
        %v5245 = vpop.f32.mrb[0].mxu0
        %v5246 = vadd.f32 %v4474, %v5245
        %v5247 = vpop.f32.mrb[0].mxu0
        %v5248 = vadd.f32 %v4478, %v5247
        %v5249 = vpop.f32.mrb[0].mxu0
        %v5250 = vadd.f32 %v4474, %v5249
        %v5251 = vpop.f32.mrb[0].mxu0
        %v5252 = vadd.f32 %v4478, %v5251
        %5253 = vmatprep.mubr.bf16.mxu0 %v4314
        %5254 = vmatmul.mubr.bf16.gmra.mrb[0].mxu0 %v4313
        %v5255 = vpop.f32.mrb[0].mxu0
        %v5256 = vadd.f32 %v4474, %v5255
        %v5257 = vpop.f32.mrb[0].mxu0
        %v5258 = vadd.f32 %v4478, %v5257
        %v5259 = vpop.f32.mrb[0].mxu0
        %v5260 = vadd.f32 %v4474, %v5259
        %v5261 = vpop.f32.mrb[0].mxu0
        %v5262 = vadd.f32 %v4478, %v5261
        %5263 = vmatprep.mubr.bf16.mxu0 %v4318
        %5264 = vmatmul.mubr.bf16.gmra.mrb[0].mxu0 %v4317
        %v5265 = vpop.f32.mrb[0].mxu0
        %v5266 = vadd.f32 %v4474, %v5265
        %v5267 = vpop.f32.mrb[0].mxu0
        %v5268 = vadd.f32 %v4478, %v5267
        %v5269 = vpop.f32.mrb[0].mxu0
        %v5270 = vadd.f32 %v4474, %v5269
        %v5271 = vpop.f32.mrb[0].mxu0
        %v5272 = vadd.f32 %v4478, %v5271
        %5273 = vmatprep.mubr.bf16.mxu0 %v4322
        %5274 = vmatmul.mubr.bf16.gmra.mrb[0].mxu0 %v4321
        %v5275 = vpop.f32.mrb[0].mxu0
        %v5276 = vadd.f32 %v4474, %v5275
        %v5277 = vpop.f32.mrb[0].mxu0
        %v5278 = vadd.f32 %v4478, %v5277
        %v5279 = vpop.f32.mrb[0].mxu0
        %v5280 = vadd.f32 %v4474, %v5279
        %v5281 = vpop.f32.mrb[0].mxu0
        %v5282 = vadd.f32 %v4478, %v5281
        %5283 = vmatprep.mubr.bf16.mxu0 %v4326
        %5284 = vmatmul.mubr.bf16.gmra.mrb[0].mxu0 %v4325
        %v5285 = vpop.f32.mrb[0].mxu0
        %v5286 = vadd.f32 %v4474, %v5285
        %v5287 = vpop.f32.mrb[0].mxu0
        %v5288 = vadd.f32 %v4478, %v5287
        %v5289 = vpop.f32.mrb[0].mxu0
        %v5290 = vadd.f32 %v4474, %v5289
        %v5291 = vpop.f32.mrb[0].mxu0
        %v5292 = vadd.f32 %v4478, %v5291
        %5293 = vmatprep.mubr.bf16.mxu0 %v4330
        %5294 = vmatmul.mubr.bf16.gmra.mrb[0].mxu0 %v4329
        %v5295 = vpop.f32.mrb[0].mxu0
        %v5296 = vadd.f32 %v4474, %v5295
        %v5297 = vpop.f32.mrb[0].mxu0
        %v5298 = vadd.f32 %v4478, %v5297
        %v5299 = vpop.f32.mrb[0].mxu0
        %v5300 = vadd.f32 %v4474, %v5299
        %v5301 = vpop.f32.mrb[0].mxu0
        %v5302 = vadd.f32 %v4478, %v5301
        %5303 = vmatprep.mubr.bf16.mxu0 %v4334
        %5304 = vmatmul.mubr.bf16.gmra.mrb[0].mxu0 %v4333
        %v5305 = vpop.f32.mrb[0].mxu0
        %v5306 = vadd.f32 %v4474, %v5305
        %v5307 = vpop.f32.mrb[0].mxu0
        %v5308 = vadd.f32 %v4478, %v5307
        %v5309 = vpop.f32.mrb[0].mxu0
        %v5310 = vadd.f32 %v4474, %v5309
        %v5311 = vpop.f32.mrb[0].mxu0
        %v5312 = vadd.f32 %v4478, %v5311
        %5313 = vmatprep.mubr.bf16.mxu0 %v4338
        %5314 = vmatmul.mubr.bf16.gmra.mrb[0].mxu0 %v4337
        %v5315 = vpop.f32.mrb[0].mxu0
        %v5316 = vadd.f32 %v4474, %v5315
        %v5317 = vpop.f32.mrb[0].mxu0
        %v5318 = vadd.f32 %v4478, %v5317
        %v5319 = vpop.f32.mrb[0].mxu0
        %v5320 = vadd.f32 %v4474, %v5319
        %v5321 = vpop.f32.mrb[0].mxu0
        %v5322 = vadd.f32 %v4478, %v5321
        %5323 = vdwg.mxu0
        %5324 = vmatprep.subr.bf16.mxu0 %v4940
        %5325 = vmatpush1.bf16.msra.mxu0 %v4939
        %5326 = vmatprep.subr.bf16.mxu0 %v4944
        %5327 = vmatpush1.bf16.msra.mxu0 %v4943
        %5328 = vmatprep.subr.bf16.mxu0 %v4948
        %5329 = vmatpush1.bf16.msra.mxu0 %v4947
        %5330 = vmatprep.subr.bf16.mxu0 %v4952
        %5331 = vmatpush1.bf16.msra.mxu0 %v4951
        %5332 = vmatprep.subr.bf16.mxu0 %v4956
        %5333 = vmatpush1.bf16.msra.mxu0 %v4955
        %5334 = vmatprep.subr.bf16.mxu0 %v4960
        %5335 = vmatpush1.bf16.msra.mxu0 %v4959
        %5336 = vmatprep.subr.bf16.mxu0 %v4964
        %5337 = vmatpush1.bf16.msra.mxu0 %v4963
        %5338 = vmatprep.subr.bf16.mxu0 %v4968
        %5339 = vmatpush1.bf16.msra.mxu0 %v4967
        %5340 = vmatprep.subr.bf16.mxu0 %v4972
        %5341 = vmatpush1.bf16.msra.mxu0 %v4971
        %5342 = vmatprep.subr.bf16.mxu0 %v4976
        %5343 = vmatpush1.bf16.msra.mxu0 %v4975
        %5344 = vmatprep.subr.bf16.mxu0 %v4980
        %5345 = vmatpush1.bf16.msra.mxu0 %v4979
        %5346 = vmatprep.subr.bf16.mxu0 %v4984
        %5347 = vmatpush1.bf16.msra.mxu0 %v4983
        %5348 = vmatprep.subr.bf16.mxu0 %v4988
        %5349 = vmatpush1.bf16.msra.mxu0 %v4987
        %5350 = vmatprep.subr.bf16.mxu0 %v4992
        %5351 = vmatpush1.bf16.msra.mxu0 %v4991
        %5352 = vmatprep.subr.bf16.mxu0 %v4996
        %5353 = vmatpush1.bf16.msra.mxu0 %v4995
        %5354 = vmatprep.subr.bf16.mxu0 %v5000
        %5355 = vmatpush1.bf16.msra.mxu0 %v4999
        %5356 = vmatprep.mubr.bf16.mxu0 %v4280
        %5357 = vmatmul.mubr.bf16.gmra.mrb[0].mxu0 %v4279
        %v5358 = vpop.f32.mrb[0].mxu0
        %v5359 = vadd.f32 %v5166, %v5358
        %v5360 = vpop.f32.mrb[0].mxu0
        %v5361 = vadd.f32 %v5168, %v5360
        %v5362 = vpop.f32.mrb[0].mxu0
        %v5363 = vadd.f32 %v5170, %v5362
        %v5364 = vpop.f32.mrb[0].mxu0
        %v5365 = vadd.f32 %v5172, %v5364
        %5366 = vmatprep.mubr.bf16.mxu0 %v4284
        %5367 = vmatmul.mubr.bf16.gmra.mrb[0].mxu0 %v4283
        %v5368 = vpop.f32.mrb[0].mxu0
        %v5369 = vadd.f32 %v5176, %v5368
        %v5370 = vpop.f32.mrb[0].mxu0
        %v5371 = vadd.f32 %v5178, %v5370
        %v5372 = vpop.f32.mrb[0].mxu0
        %v5373 = vadd.f32 %v5180, %v5372
        %v5374 = vpop.f32.mrb[0].mxu0
        %v5375 = vadd.f32 %v5182, %v5374
        %5376 = vmatprep.mubr.bf16.mxu0 %v4288
        %5377 = vmatmul.mubr.bf16.gmra.mrb[0].mxu0 %v4287
        %v5378 = vpop.f32.mrb[0].mxu0
        %v5379 = vadd.f32 %v5186, %v5378
        %v5380 = vpop.f32.mrb[0].mxu0
        %v5381 = vadd.f32 %v5188, %v5380
        %v5382 = vpop.f32.mrb[0].mxu0
        %v5383 = vadd.f32 %v5190, %v5382
        %v5384 = vpop.f32.mrb[0].mxu0
        %v5385 = vadd.f32 %v5192, %v5384
        %5386 = vmatprep.mubr.bf16.mxu0 %v4292
        %5387 = vmatmul.mubr.bf16.gmra.mrb[0].mxu0 %v4291
        %v5388 = vpop.f32.mrb[0].mxu0
        %v5389 = vadd.f32 %v5196, %v5388
        %v5390 = vpop.f32.mrb[0].mxu0
        %v5391 = vadd.f32 %v5198, %v5390
        %v5392 = vpop.f32.mrb[0].mxu0
        %v5393 = vadd.f32 %v5200, %v5392
        %v5394 = vpop.f32.mrb[0].mxu0
        %v5395 = vadd.f32 %v5202, %v5394
        %5396 = vmatprep.mubr.bf16.mxu0 %v4296
        %5397 = vmatmul.mubr.bf16.gmra.mrb[0].mxu0 %v4295
        %v5398 = vpop.f32.mrb[0].mxu0
        %v5399 = vadd.f32 %v5206, %v5398
        %v5400 = vpop.f32.mrb[0].mxu0
        %v5401 = vadd.f32 %v5208, %v5400
        %v5402 = vpop.f32.mrb[0].mxu0
        %v5403 = vadd.f32 %v5210, %v5402
        %v5404 = vpop.f32.mrb[0].mxu0
        %v5405 = vadd.f32 %v5212, %v5404
        %5406 = vmatprep.mubr.bf16.mxu0 %v4300
        %5407 = vmatmul.mubr.bf16.gmra.mrb[0].mxu0 %v4299
        %v5408 = vpop.f32.mrb[0].mxu0
        %v5409 = vadd.f32 %v5216, %v5408
        %v5410 = vpop.f32.mrb[0].mxu0
        %v5411 = vadd.f32 %v5218, %v5410
        %v5412 = vpop.f32.mrb[0].mxu0
        %v5413 = vadd.f32 %v5220, %v5412
        %v5414 = vpop.f32.mrb[0].mxu0
        %v5415 = vadd.f32 %v5222, %v5414
        %5416 = vmatprep.mubr.bf16.mxu0 %v4304
        %5417 = vmatmul.mubr.bf16.gmra.mrb[0].mxu0 %v4303
        %v5418 = vpop.f32.mrb[0].mxu0
        %v5419 = vadd.f32 %v5226, %v5418
        %v5420 = vpop.f32.mrb[0].mxu0
        %v5421 = vadd.f32 %v5228, %v5420
        %v5422 = vpop.f32.mrb[0].mxu0
        %v5423 = vadd.f32 %v5230, %v5422
        %v5424 = vpop.f32.mrb[0].mxu0
        %v5425 = vadd.f32 %v5232, %v5424
        %5426 = vmatprep.mubr.bf16.mxu0 %v4308
        %5427 = vmatmul.mubr.bf16.gmra.mrb[0].mxu0 %v4307
        %v5428 = vpop.f32.mrb[0].mxu0
        %v5429 = vadd.f32 %v5236, %v5428
        %v5430 = vpop.f32.mrb[0].mxu0
        %v5431 = vadd.f32 %v5238, %v5430
        %v5432 = vpop.f32.mrb[0].mxu0
        %v5433 = vadd.f32 %v5240, %v5432
        %v5434 = vpop.f32.mrb[0].mxu0
        %v5435 = vadd.f32 %v5242, %v5434
        %5436 = vmatprep.mubr.bf16.mxu0 %v4312
        %5437 = vmatmul.mubr.bf16.gmra.mrb[0].mxu0 %v4311
        %v5438 = vpop.f32.mrb[0].mxu0
        %v5439 = vadd.f32 %v5246, %v5438
        %v5440 = vpop.f32.mrb[0].mxu0
        %v5441 = vadd.f32 %v5248, %v5440
        %v5442 = vpop.f32.mrb[0].mxu0
        %v5443 = vadd.f32 %v5250, %v5442
        %v5444 = vpop.f32.mrb[0].mxu0
        %v5445 = vadd.f32 %v5252, %v5444
        %5446 = vmatprep.mubr.bf16.mxu0 %v4316
        %5447 = vmatmul.mubr.bf16.gmra.mrb[0].mxu0 %v4315
        %v5448 = vpop.f32.mrb[0].mxu0
        %v5449 = vadd.f32 %v5256, %v5448
        %v5450 = vpop.f32.mrb[0].mxu0
        %v5451 = vadd.f32 %v5258, %v5450
        %v5452 = vpop.f32.mrb[0].mxu0
        %v5453 = vadd.f32 %v5260, %v5452
        %v5454 = vpop.f32.mrb[0].mxu0
        %v5455 = vadd.f32 %v5262, %v5454
        %5456 = vmatprep.mubr.bf16.mxu0 %v4320
        %5457 = vmatmul.mubr.bf16.gmra.mrb[0].mxu0 %v4319
        %v5458 = vpop.f32.mrb[0].mxu0
        %v5459 = vadd.f32 %v5266, %v5458
        %v5460 = vpop.f32.mrb[0].mxu0
        %v5461 = vadd.f32 %v5268, %v5460
        %v5462 = vpop.f32.mrb[0].mxu0
        %v5463 = vadd.f32 %v5270, %v5462
        %v5464 = vpop.f32.mrb[0].mxu0
        %v5465 = vadd.f32 %v5272, %v5464
        %5466 = vmatprep.mubr.bf16.mxu0 %v4324
        %5467 = vmatmul.mubr.bf16.gmra.mrb[0].mxu0 %v4323
        %v5468 = vpop.f32.mrb[0].mxu0
        %v5469 = vadd.f32 %v5276, %v5468
        %v5470 = vpop.f32.mrb[0].mxu0
        %v5471 = vadd.f32 %v5278, %v5470
        %v5472 = vpop.f32.mrb[0].mxu0
        %v5473 = vadd.f32 %v5280, %v5472
        %v5474 = vpop.f32.mrb[0].mxu0
        %v5475 = vadd.f32 %v5282, %v5474
        %5476 = vmatprep.mubr.bf16.mxu0 %v4328
        %5477 = vmatmul.mubr.bf16.gmra.mrb[0].mxu0 %v4327
        %v5478 = vpop.f32.mrb[0].mxu0
        %v5479 = vadd.f32 %v5286, %v5478
        %v5480 = vpop.f32.mrb[0].mxu0
        %v5481 = vadd.f32 %v5288, %v5480
        %v5482 = vpop.f32.mrb[0].mxu0
        %v5483 = vadd.f32 %v5290, %v5482
        %v5484 = vpop.f32.mrb[0].mxu0
        %v5485 = vadd.f32 %v5292, %v5484
        %5486 = vmatprep.mubr.bf16.mxu0 %v4332
        %5487 = vmatmul.mubr.bf16.gmra.mrb[0].mxu0 %v4331
        %v5488 = vpop.f32.mrb[0].mxu0
        %v5489 = vadd.f32 %v5296, %v5488
        %v5490 = vpop.f32.mrb[0].mxu0
        %v5491 = vadd.f32 %v5298, %v5490
        %v5492 = vpop.f32.mrb[0].mxu0
        %v5493 = vadd.f32 %v5300, %v5492
        %v5494 = vpop.f32.mrb[0].mxu0
        %v5495 = vadd.f32 %v5302, %v5494
        %5496 = vmatprep.mubr.bf16.mxu0 %v4336
        %5497 = vmatmul.mubr.bf16.gmra.mrb[0].mxu0 %v4335
        %v5498 = vpop.f32.mrb[0].mxu0
        %v5499 = vadd.f32 %v5306, %v5498
        %v5500 = vpop.f32.mrb[0].mxu0
        %v5501 = vadd.f32 %v5308, %v5500
        %v5502 = vpop.f32.mrb[0].mxu0
        %v5503 = vadd.f32 %v5310, %v5502
        %v5504 = vpop.f32.mrb[0].mxu0
        %v5505 = vadd.f32 %v5312, %v5504
        %5506 = vmatprep.mubr.bf16.mxu0 %v4340
        %5507 = vmatmul.mubr.bf16.gmra.mrb[0].mxu0 %v4339
        %v5508 = vpop.f32.mrb[0].mxu0
        %v5509 = vadd.f32 %v5316, %v5508
        %v5510 = vpop.f32.mrb[0].mxu0
        %v5511 = vadd.f32 %v5318, %v5510
        %v5512 = vpop.f32.mrb[0].mxu0
        %v5513 = vadd.f32 %v5320, %v5512
        %v5514 = vpop.f32.mrb[0].mxu0
        %v5515 = vadd.f32 %v5322, %v5514
        %5516 = vdwg.mxu0
        %5517 = vmatprep.subr.bf16.mxu0 %v4878
        %5518 = vmatpush1.bf16.msra.mxu0 %v4877
        %5519 = vmatprep.subr.bf16.mxu0 %v4882
        %5520 = vmatpush1.bf16.msra.mxu0 %v4881
        %5521 = vmatprep.subr.bf16.mxu0 %v4886
        %5522 = vmatpush1.bf16.msra.mxu0 %v4885
        %5523 = vmatprep.subr.bf16.mxu0 %v4890
        %5524 = vmatpush1.bf16.msra.mxu0 %v4889
        %5525 = vmatprep.subr.bf16.mxu0 %v4894
        %5526 = vmatpush1.bf16.msra.mxu0 %v4893
        %5527 = vmatprep.subr.bf16.mxu0 %v4898
        %5528 = vmatpush1.bf16.msra.mxu0 %v4897
        %5529 = vmatprep.subr.bf16.mxu0 %v4902
        %5530 = vmatpush1.bf16.msra.mxu0 %v4901
        %5531 = vmatprep.subr.bf16.mxu0 %v4906
        %5532 = vmatpush1.bf16.msra.mxu0 %v4905
        %5533 = vmatprep.subr.bf16.mxu0 %v4910
        %5534 = vmatpush1.bf16.msra.mxu0 %v4909
        %5535 = vmatprep.subr.bf16.mxu0 %v4914
        %5536 = vmatpush1.bf16.msra.mxu0 %v4913
        %5537 = vmatprep.subr.bf16.mxu0 %v4918
        %5538 = vmatpush1.bf16.msra.mxu0 %v4917
        %5539 = vmatprep.subr.bf16.mxu0 %v4922
        %5540 = vmatpush1.bf16.msra.mxu0 %v4921
        %5541 = vmatprep.subr.bf16.mxu0 %v4926
        %5542 = vmatpush1.bf16.msra.mxu0 %v4925
        %5543 = vmatprep.subr.bf16.mxu0 %v4930
        %5544 = vmatpush1.bf16.msra.mxu0 %v4929
        %5545 = vmatprep.subr.bf16.mxu0 %v4934
        %5546 = vmatpush1.bf16.msra.mxu0 %v4933
        %5547 = vmatprep.subr.bf16.mxu0 %v4938
        %5548 = vmatpush1.bf16.msra.mxu0 %v4937
        %5549 = vmatprep.mubr.bf16.mxu0 %v4278
        %5550 = vmatmul.mubr.bf16.gmra.mrb[0].mxu0 %v4277
        %v5551 = vpop.f32.mrb[0].mxu0
        %v5552 = vadd.f32 %v4482, %v5551
        %v5553 = vpop.f32.mrb[0].mxu0
        %v5554 = vadd.f32 %v4486, %v5553
        %v5555 = vpop.f32.mrb[0].mxu0
        %v5556 = vadd.f32 %v4482, %v5555
        %v5557 = vpop.f32.mrb[0].mxu0
        %v5558 = vadd.f32 %v4486, %v5557
        %5559 = vmatprep.mubr.bf16.mxu0 %v4282
        %5560 = vmatmul.mubr.bf16.gmra.mrb[0].mxu0 %v4281
        %v5561 = vpop.f32.mrb[0].mxu0
        %v5562 = vadd.f32 %v4482, %v5561
        %v5563 = vpop.f32.mrb[0].mxu0
        %v5564 = vadd.f32 %v4486, %v5563
        %v5565 = vpop.f32.mrb[0].mxu0
        %v5566 = vadd.f32 %v4482, %v5565
        %v5567 = vpop.f32.mrb[0].mxu0
        %v5568 = vadd.f32 %v4486, %v5567
        %5569 = vmatprep.mubr.bf16.mxu0 %v4286
        %5570 = vmatmul.mubr.bf16.gmra.mrb[0].mxu0 %v4285
        %v5571 = vpop.f32.mrb[0].mxu0
        %v5572 = vadd.f32 %v4482, %v5571
        %v5573 = vpop.f32.mrb[0].mxu0
        %v5574 = vadd.f32 %v4486, %v5573
        %v5575 = vpop.f32.mrb[0].mxu0
        %v5576 = vadd.f32 %v4482, %v5575
        %v5577 = vpop.f32.mrb[0].mxu0
        %v5578 = vadd.f32 %v4486, %v5577
        %5579 = vmatprep.mubr.bf16.mxu0 %v4290
        %5580 = vmatmul.mubr.bf16.gmra.mrb[0].mxu0 %v4289
        %v5581 = vpop.f32.mrb[0].mxu0
        %v5582 = vadd.f32 %v4482, %v5581
        %v5583 = vpop.f32.mrb[0].mxu0
        %v5584 = vadd.f32 %v4486, %v5583
        %v5585 = vpop.f32.mrb[0].mxu0
        %v5586 = vadd.f32 %v4482, %v5585
        %v5587 = vpop.f32.mrb[0].mxu0
        %v5588 = vadd.f32 %v4486, %v5587
        %5589 = vmatprep.mubr.bf16.mxu0 %v4294
        %5590 = vmatmul.mubr.bf16.gmra.mrb[0].mxu0 %v4293
        %v5591 = vpop.f32.mrb[0].mxu0
        %v5592 = vadd.f32 %v4482, %v5591
        %v5593 = vpop.f32.mrb[0].mxu0
        %v5594 = vadd.f32 %v4486, %v5593
        %v5595 = vpop.f32.mrb[0].mxu0
        %v5596 = vadd.f32 %v4482, %v5595
        %v5597 = vpop.f32.mrb[0].mxu0
        %v5598 = vadd.f32 %v4486, %v5597
        %5599 = vmatprep.mubr.bf16.mxu0 %v4298
        %5600 = vmatmul.mubr.bf16.gmra.mrb[0].mxu0 %v4297
        %v5601 = vpop.f32.mrb[0].mxu0
        %v5602 = vadd.f32 %v4482, %v5601
        %v5603 = vpop.f32.mrb[0].mxu0
        %v5604 = vadd.f32 %v4486, %v5603
        %v5605 = vpop.f32.mrb[0].mxu0
        %v5606 = vadd.f32 %v4482, %v5605
        %v5607 = vpop.f32.mrb[0].mxu0
        %v5608 = vadd.f32 %v4486, %v5607
        %5609 = vmatprep.mubr.bf16.mxu0 %v4302
        %5610 = vmatmul.mubr.bf16.gmra.mrb[0].mxu0 %v4301
        %v5611 = vpop.f32.mrb[0].mxu0
        %v5612 = vadd.f32 %v4482, %v5611
        %v5613 = vpop.f32.mrb[0].mxu0
        %v5614 = vadd.f32 %v4486, %v5613
        %v5615 = vpop.f32.mrb[0].mxu0
        %v5616 = vadd.f32 %v4482, %v5615
        %v5617 = vpop.f32.mrb[0].mxu0
        %v5618 = vadd.f32 %v4486, %v5617
        %5619 = vmatprep.mubr.bf16.mxu0 %v4306
        %5620 = vmatmul.mubr.bf16.gmra.mrb[0].mxu0 %v4305
        %v5621 = vpop.f32.mrb[0].mxu0
        %v5622 = vadd.f32 %v4482, %v5621
        %v5623 = vpop.f32.mrb[0].mxu0
        %v5624 = vadd.f32 %v4486, %v5623
        %v5625 = vpop.f32.mrb[0].mxu0
        %v5626 = vadd.f32 %v4482, %v5625
        %v5627 = vpop.f32.mrb[0].mxu0
        %v5628 = vadd.f32 %v4486, %v5627
        %5629 = vmatprep.mubr.bf16.mxu0 %v4310
        %5630 = vmatmul.mubr.bf16.gmra.mrb[0].mxu0 %v4309
        %v5631 = vpop.f32.mrb[0].mxu0
        %v5632 = vadd.f32 %v4482, %v5631
        %v5633 = vpop.f32.mrb[0].mxu0
        %v5634 = vadd.f32 %v4486, %v5633
        %v5635 = vpop.f32.mrb[0].mxu0
        %v5636 = vadd.f32 %v4482, %v5635
        %v5637 = vpop.f32.mrb[0].mxu0
        %v5638 = vadd.f32 %v4486, %v5637
        %5639 = vmatprep.mubr.bf16.mxu0 %v4314
        %5640 = vmatmul.mubr.bf16.gmra.mrb[0].mxu0 %v4313
        %v5641 = vpop.f32.mrb[0].mxu0
        %v5642 = vadd.f32 %v4482, %v5641
        %v5643 = vpop.f32.mrb[0].mxu0
        %v5644 = vadd.f32 %v4486, %v5643
        %v5645 = vpop.f32.mrb[0].mxu0
        %v5646 = vadd.f32 %v4482, %v5645
        %v5647 = vpop.f32.mrb[0].mxu0
        %v5648 = vadd.f32 %v4486, %v5647
        %5649 = vmatprep.mubr.bf16.mxu0 %v4318
        %5650 = vmatmul.mubr.bf16.gmra.mrb[0].mxu0 %v4317
        %v5651 = vpop.f32.mrb[0].mxu0
        %v5652 = vadd.f32 %v4482, %v5651
        %v5653 = vpop.f32.mrb[0].mxu0
        %v5654 = vadd.f32 %v4486, %v5653
        %v5655 = vpop.f32.mrb[0].mxu0
        %v5656 = vadd.f32 %v4482, %v5655
        %v5657 = vpop.f32.mrb[0].mxu0
        %v5658 = vadd.f32 %v4486, %v5657
        %5659 = vmatprep.mubr.bf16.mxu0 %v4322
        %5660 = vmatmul.mubr.bf16.gmra.mrb[0].mxu0 %v4321
        %v5661 = vpop.f32.mrb[0].mxu0
        %v5662 = vadd.f32 %v4482, %v5661
        %v5663 = vpop.f32.mrb[0].mxu0
        %v5664 = vadd.f32 %v4486, %v5663
        %v5665 = vpop.f32.mrb[0].mxu0
        %v5666 = vadd.f32 %v4482, %v5665
        %v5667 = vpop.f32.mrb[0].mxu0
        %v5668 = vadd.f32 %v4486, %v5667
        %5669 = vmatprep.mubr.bf16.mxu0 %v4326
        %5670 = vmatmul.mubr.bf16.gmra.mrb[0].mxu0 %v4325
        %v5671 = vpop.f32.mrb[0].mxu0
        %v5672 = vadd.f32 %v4482, %v5671
        %v5673 = vpop.f32.mrb[0].mxu0
        %v5674 = vadd.f32 %v4486, %v5673
        %v5675 = vpop.f32.mrb[0].mxu0
        %v5676 = vadd.f32 %v4482, %v5675
        %v5677 = vpop.f32.mrb[0].mxu0
        %v5678 = vadd.f32 %v4486, %v5677
        %5679 = vmatprep.mubr.bf16.mxu0 %v4330
        %5680 = vmatmul.mubr.bf16.gmra.mrb[0].mxu0 %v4329
        %v5681 = vpop.f32.mrb[0].mxu0
        %v5682 = vadd.f32 %v4482, %v5681
        %v5683 = vpop.f32.mrb[0].mxu0
        %v5684 = vadd.f32 %v4486, %v5683
        %v5685 = vpop.f32.mrb[0].mxu0
        %v5686 = vadd.f32 %v4482, %v5685
        %v5687 = vpop.f32.mrb[0].mxu0
        %v5688 = vadd.f32 %v4486, %v5687
        %5689 = vmatprep.mubr.bf16.mxu0 %v4334
        %5690 = vmatmul.mubr.bf16.gmra.mrb[0].mxu0 %v4333
        %v5691 = vpop.f32.mrb[0].mxu0
        %v5692 = vadd.f32 %v4482, %v5691
        %v5693 = vpop.f32.mrb[0].mxu0
        %v5694 = vadd.f32 %v4486, %v5693
        %v5695 = vpop.f32.mrb[0].mxu0
        %v5696 = vadd.f32 %v4482, %v5695
        %v5697 = vpop.f32.mrb[0].mxu0
        %v5698 = vadd.f32 %v4486, %v5697
        %5699 = vmatprep.mubr.bf16.mxu0 %v4338
        %5700 = vmatmul.mubr.bf16.gmra.mrb[0].mxu0 %v4337
        %v5701 = vpop.f32.mrb[0].mxu0
        %v5702 = vadd.f32 %v4482, %v5701
        %v5703 = vpop.f32.mrb[0].mxu0
        %v5704 = vadd.f32 %v4486, %v5703
        %v5705 = vpop.f32.mrb[0].mxu0
        %v5706 = vadd.f32 %v4482, %v5705
        %v5707 = vpop.f32.mrb[0].mxu0
        %v5708 = vadd.f32 %v4486, %v5707
        %5709 = vdwg.mxu0
        %5710 = vmatprep.subr.bf16.mxu0 %v4942
        %5711 = vmatpush1.bf16.msra.mxu0 %v4941
        %5712 = vmatprep.subr.bf16.mxu0 %v4946
        %5713 = vmatpush1.bf16.msra.mxu0 %v4945
        %5714 = vmatprep.subr.bf16.mxu0 %v4950
        %5715 = vmatpush1.bf16.msra.mxu0 %v4949
        %5716 = vmatprep.subr.bf16.mxu0 %v4954
        %5717 = vmatpush1.bf16.msra.mxu0 %v4953
        %5718 = vmatprep.subr.bf16.mxu0 %v4958
        %5719 = vmatpush1.bf16.msra.mxu0 %v4957
        %5720 = vmatprep.subr.bf16.mxu0 %v4962
        %5721 = vmatpush1.bf16.msra.mxu0 %v4961
        %5722 = vmatprep.subr.bf16.mxu0 %v4966
        %5723 = vmatpush1.bf16.msra.mxu0 %v4965
        %5724 = vmatprep.subr.bf16.mxu0 %v4970
        %5725 = vmatpush1.bf16.msra.mxu0 %v4969
        %5726 = vmatprep.subr.bf16.mxu0 %v4974
        %5727 = vmatpush1.bf16.msra.mxu0 %v4973
        %5728 = vmatprep.subr.bf16.mxu0 %v4978
        %5729 = vmatpush1.bf16.msra.mxu0 %v4977
        %5730 = vmatprep.subr.bf16.mxu0 %v4982
        %5731 = vmatpush1.bf16.msra.mxu0 %v4981
        %5732 = vmatprep.subr.bf16.mxu0 %v4986
        %5733 = vmatpush1.bf16.msra.mxu0 %v4985
        %5734 = vmatprep.subr.bf16.mxu0 %v4990
        %5735 = vmatpush1.bf16.msra.mxu0 %v4989
        %5736 = vmatprep.subr.bf16.mxu0 %v4994
        %5737 = vmatpush1.bf16.msra.mxu0 %v4993
        %5738 = vmatprep.subr.bf16.mxu0 %v4998
        %5739 = vmatpush1.bf16.msra.mxu0 %v4997
        %5740 = vmatprep.subr.bf16.mxu0 %v5002
        %5741 = vmatpush1.bf16.msra.mxu0 %v5001
        %5742 = vmatprep.mubr.bf16.mxu0 %v4280
        %5743 = vmatmul.mubr.bf16.gmra.mrb[0].mxu0 %v4279
        %v5744 = vpop.f32.mrb[0].mxu0
        %v5745 = vadd.f32 %v5552, %v5744
        %v5746 = vpop.f32.mrb[0].mxu0
        %v5747 = vadd.f32 %v5554, %v5746
        %v5748 = vpop.f32.mrb[0].mxu0
        %v5749 = vadd.f32 %v5556, %v5748
        %v5750 = vpop.f32.mrb[0].mxu0
        %v5751 = vadd.f32 %v5558, %v5750
        %5752 = vmatprep.mubr.bf16.mxu0 %v4284
        %5753 = vmatmul.mubr.bf16.gmra.mrb[0].mxu0 %v4283
        %v5754 = vpop.f32.mrb[0].mxu0
        %v5755 = vadd.f32 %v5562, %v5754
        %v5756 = vpop.f32.mrb[0].mxu0
        %v5757 = vadd.f32 %v5564, %v5756
        %v5758 = vpop.f32.mrb[0].mxu0
        %v5759 = vadd.f32 %v5566, %v5758
        %v5760 = vpop.f32.mrb[0].mxu0
        %v5761 = vadd.f32 %v5568, %v5760
        %5762 = vmatprep.mubr.bf16.mxu0 %v4288
        %5763 = vmatmul.mubr.bf16.gmra.mrb[0].mxu0 %v4287
        %v5764 = vpop.f32.mrb[0].mxu0
        %v5765 = vadd.f32 %v5572, %v5764
        %v5766 = vpop.f32.mrb[0].mxu0
        %v5767 = vadd.f32 %v5574, %v5766
        %v5768 = vpop.f32.mrb[0].mxu0
        %v5769 = vadd.f32 %v5576, %v5768
        %v5770 = vpop.f32.mrb[0].mxu0
        %v5771 = vadd.f32 %v5578, %v5770
        %5772 = vmatprep.mubr.bf16.mxu0 %v4292
        %5773 = vmatmul.mubr.bf16.gmra.mrb[0].mxu0 %v4291
        %v5774 = vpop.f32.mrb[0].mxu0
        %v5775 = vadd.f32 %v5582, %v5774
        %v5776 = vpop.f32.mrb[0].mxu0
        %v5777 = vadd.f32 %v5584, %v5776
        %v5778 = vpop.f32.mrb[0].mxu0
        %v5779 = vadd.f32 %v5586, %v5778
        %v5780 = vpop.f32.mrb[0].mxu0
        %v5781 = vadd.f32 %v5588, %v5780
        %5782 = vmatprep.mubr.bf16.mxu0 %v4296
        %5783 = vmatmul.mubr.bf16.gmra.mrb[0].mxu0 %v4295
        %v5784 = vpop.f32.mrb[0].mxu0
        %v5785 = vadd.f32 %v5592, %v5784
        %v5786 = vpop.f32.mrb[0].mxu0
        %v5787 = vadd.f32 %v5594, %v5786
        %v5788 = vpop.f32.mrb[0].mxu0
        %v5789 = vadd.f32 %v5596, %v5788
        %v5790 = vpop.f32.mrb[0].mxu0
        %v5791 = vadd.f32 %v5598, %v5790
        %5792 = vmatprep.mubr.bf16.mxu0 %v4300
        %5793 = vmatmul.mubr.bf16.gmra.mrb[0].mxu0 %v4299
        %v5794 = vpop.f32.mrb[0].mxu0
        %v5795 = vadd.f32 %v5602, %v5794
        %v5796 = vpop.f32.mrb[0].mxu0
        %v5797 = vadd.f32 %v5604, %v5796
        %v5798 = vpop.f32.mrb[0].mxu0
        %v5799 = vadd.f32 %v5606, %v5798
        %v5800 = vpop.f32.mrb[0].mxu0
        %v5801 = vadd.f32 %v5608, %v5800
        %5802 = vmatprep.mubr.bf16.mxu0 %v4304
        %5803 = vmatmul.mubr.bf16.gmra.mrb[0].mxu0 %v4303
        %v5804 = vpop.f32.mrb[0].mxu0
        %v5805 = vadd.f32 %v5612, %v5804
        %v5806 = vpop.f32.mrb[0].mxu0
        %v5807 = vadd.f32 %v5614, %v5806
        %v5808 = vpop.f32.mrb[0].mxu0
        %v5809 = vadd.f32 %v5616, %v5808
        %v5810 = vpop.f32.mrb[0].mxu0
        %v5811 = vadd.f32 %v5618, %v5810
        %5812 = vmatprep.mubr.bf16.mxu0 %v4308
        %5813 = vmatmul.mubr.bf16.gmra.mrb[0].mxu0 %v4307
        %v5814 = vpop.f32.mrb[0].mxu0
        %v5815 = vadd.f32 %v5622, %v5814
        %v5816 = vpop.f32.mrb[0].mxu0
        %v5817 = vadd.f32 %v5624, %v5816
        %v5818 = vpop.f32.mrb[0].mxu0
        %v5819 = vadd.f32 %v5626, %v5818
        %v5820 = vpop.f32.mrb[0].mxu0
        %v5821 = vadd.f32 %v5628, %v5820
        %5822 = vmatprep.mubr.bf16.mxu0 %v4312
        %5823 = vmatmul.mubr.bf16.gmra.mrb[0].mxu0 %v4311
        %v5824 = vpop.f32.mrb[0].mxu0
        %v5825 = vadd.f32 %v5632, %v5824
        %v5826 = vpop.f32.mrb[0].mxu0
        %v5827 = vadd.f32 %v5634, %v5826
        %v5828 = vpop.f32.mrb[0].mxu0
        %v5829 = vadd.f32 %v5636, %v5828
        %v5830 = vpop.f32.mrb[0].mxu0
        %v5831 = vadd.f32 %v5638, %v5830
        %5832 = vmatprep.mubr.bf16.mxu0 %v4316
        %5833 = vmatmul.mubr.bf16.gmra.mrb[0].mxu0 %v4315
        %v5834 = vpop.f32.mrb[0].mxu0
        %v5835 = vadd.f32 %v5642, %v5834
        %v5836 = vpop.f32.mrb[0].mxu0
        %v5837 = vadd.f32 %v5644, %v5836
        %v5838 = vpop.f32.mrb[0].mxu0
        %v5839 = vadd.f32 %v5646, %v5838
        %v5840 = vpop.f32.mrb[0].mxu0
        %v5841 = vadd.f32 %v5648, %v5840
        %5842 = vmatprep.mubr.bf16.mxu0 %v4320
        %5843 = vmatmul.mubr.bf16.gmra.mrb[0].mxu0 %v4319
        %v5844 = vpop.f32.mrb[0].mxu0
        %v5845 = vadd.f32 %v5652, %v5844
        %v5846 = vpop.f32.mrb[0].mxu0
        %v5847 = vadd.f32 %v5654, %v5846
        %v5848 = vpop.f32.mrb[0].mxu0
        %v5849 = vadd.f32 %v5656, %v5848
        %v5850 = vpop.f32.mrb[0].mxu0
        %v5851 = vadd.f32 %v5658, %v5850
        %5852 = vmatprep.mubr.bf16.mxu0 %v4324
        %5853 = vmatmul.mubr.bf16.gmra.mrb[0].mxu0 %v4323
        %v5854 = vpop.f32.mrb[0].mxu0
        %v5855 = vadd.f32 %v5662, %v5854
        %v5856 = vpop.f32.mrb[0].mxu0
        %v5857 = vadd.f32 %v5664, %v5856
        %v5858 = vpop.f32.mrb[0].mxu0
        %v5859 = vadd.f32 %v5666, %v5858
        %v5860 = vpop.f32.mrb[0].mxu0
        %v5861 = vadd.f32 %v5668, %v5860
        %5862 = vmatprep.mubr.bf16.mxu0 %v4328
        %5863 = vmatmul.mubr.bf16.gmra.mrb[0].mxu0 %v4327
        %v5864 = vpop.f32.mrb[0].mxu0
        %v5865 = vadd.f32 %v5672, %v5864
        %v5866 = vpop.f32.mrb[0].mxu0
        %v5867 = vadd.f32 %v5674, %v5866
        %v5868 = vpop.f32.mrb[0].mxu0
        %v5869 = vadd.f32 %v5676, %v5868
        %v5870 = vpop.f32.mrb[0].mxu0
        %v5871 = vadd.f32 %v5678, %v5870
        %5872 = vmatprep.mubr.bf16.mxu0 %v4332
        %5873 = vmatmul.mubr.bf16.gmra.mrb[0].mxu0 %v4331
        %v5874 = vpop.f32.mrb[0].mxu0
        %v5875 = vadd.f32 %v5682, %v5874
        %v5876 = vpop.f32.mrb[0].mxu0
        %v5877 = vadd.f32 %v5684, %v5876
        %v5878 = vpop.f32.mrb[0].mxu0
        %v5879 = vadd.f32 %v5686, %v5878
        %v5880 = vpop.f32.mrb[0].mxu0
        %v5881 = vadd.f32 %v5688, %v5880
        %5882 = vmatprep.mubr.bf16.mxu0 %v4336
        %5883 = vmatmul.mubr.bf16.gmra.mrb[0].mxu0 %v4335
        %v5884 = vpop.f32.mrb[0].mxu0
        %v5885 = vadd.f32 %v5692, %v5884
        %v5886 = vpop.f32.mrb[0].mxu0
        %v5887 = vadd.f32 %v5694, %v5886
        %v5888 = vpop.f32.mrb[0].mxu0
        %v5889 = vadd.f32 %v5696, %v5888
        %v5890 = vpop.f32.mrb[0].mxu0
        %v5891 = vadd.f32 %v5698, %v5890
        %5892 = vmatprep.mubr.bf16.mxu0 %v4340
        %5893 = vmatmul.mubr.bf16.gmra.mrb[0].mxu0 %v4339
        %v5894 = vpop.f32.mrb[0].mxu0
        %v5895 = vadd.f32 %v5702, %v5894
        %v5896 = vpop.f32.mrb[0].mxu0
        %v5897 = vadd.f32 %v5704, %v5896
        %v5898 = vpop.f32.mrb[0].mxu0
        %v5899 = vadd.f32 %v5706, %v5898
        %v5900 = vpop.f32.mrb[0].mxu0
        %v5901 = vadd.f32 %v5708, %v5900
        %5902 = vdwg.mxu0
        %v5903 = vmax.f32 %v5359, 0.0
        %v5904 = vmax.f32 %v5361, 0.0
        %v5905 = vmax.f32 %v5745, 0.0
        %v5906 = vmax.f32 %v5747, 0.0
        %v5907 = vmax.f32 %v5363, 0.0
        %v5908 = vmax.f32 %v5365, 0.0
        %v5909 = vmax.f32 %v5749, 0.0
        %v5910 = vmax.f32 %v5751, 0.0
        %v5911 = vmax.f32 %v5369, 0.0
        %v5912 = vmax.f32 %v5371, 0.0
        %v5913 = vmax.f32 %v5755, 0.0
        %v5914 = vmax.f32 %v5757, 0.0
        %v5915 = vmax.f32 %v5373, 0.0
        %v5916 = vmax.f32 %v5375, 0.0
        %v5917 = vmax.f32 %v5759, 0.0
        %v5918 = vmax.f32 %v5761, 0.0
        %v5919 = vmax.f32 %v5379, 0.0
        %v5920 = vmax.f32 %v5381, 0.0
        %v5921 = vmax.f32 %v5765, 0.0
        %v5922 = vmax.f32 %v5767, 0.0
        %v5923 = vmax.f32 %v5383, 0.0
        %v5924 = vmax.f32 %v5385, 0.0
        %v5925 = vmax.f32 %v5769, 0.0
        %v5926 = vmax.f32 %v5771, 0.0
        %v5927 = vmax.f32 %v5389, 0.0
        %v5928 = vmax.f32 %v5391, 0.0
        %v5929 = vmax.f32 %v5775, 0.0
        %v5930 = vmax.f32 %v5777, 0.0
        %v5931 = vmax.f32 %v5393, 0.0
        %v5932 = vmax.f32 %v5395, 0.0
        %v5933 = vmax.f32 %v5779, 0.0
        %v5934 = vmax.f32 %v5781, 0.0
        %v5935 = vmax.f32 %v5399, 0.0
        %v5936 = vmax.f32 %v5401, 0.0
        %v5937 = vmax.f32 %v5785, 0.0
        %v5938 = vmax.f32 %v5787, 0.0
        %v5939 = vmax.f32 %v5403, 0.0
        %v5940 = vmax.f32 %v5405, 0.0
        %v5941 = vmax.f32 %v5789, 0.0
        %v5942 = vmax.f32 %v5791, 0.0
        %v5943 = vmax.f32 %v5409, 0.0
        %v5944 = vmax.f32 %v5411, 0.0
        %v5945 = vmax.f32 %v5795, 0.0
        %v5946 = vmax.f32 %v5797, 0.0
        %v5947 = vmax.f32 %v5413, 0.0
        %v5948 = vmax.f32 %v5415, 0.0
        %v5949 = vmax.f32 %v5799, 0.0
        %v5950 = vmax.f32 %v5801, 0.0
        %v5951 = vmax.f32 %v5419, 0.0
        %v5952 = vmax.f32 %v5421, 0.0
        %v5953 = vmax.f32 %v5805, 0.0
        %v5954 = vmax.f32 %v5807, 0.0
        %v5955 = vmax.f32 %v5423, 0.0
        %v5956 = vmax.f32 %v5425, 0.0
        %v5957 = vmax.f32 %v5809, 0.0
        %v5958 = vmax.f32 %v5811, 0.0
        %v5959 = vmax.f32 %v5429, 0.0
        %v5960 = vmax.f32 %v5431, 0.0
        %v5961 = vmax.f32 %v5815, 0.0
        %v5962 = vmax.f32 %v5817, 0.0
        %v5963 = vmax.f32 %v5433, 0.0
        %v5964 = vmax.f32 %v5435, 0.0
        %v5965 = vmax.f32 %v5819, 0.0
        %v5966 = vmax.f32 %v5821, 0.0
        %v5967 = vmax.f32 %v5439, 0.0
        %v5968 = vmax.f32 %v5441, 0.0
        %v5969 = vmax.f32 %v5825, 0.0
        %v5970 = vmax.f32 %v5827, 0.0
        %v5971 = vmax.f32 %v5443, 0.0
        %v5972 = vmax.f32 %v5445, 0.0
        %v5973 = vmax.f32 %v5829, 0.0
        %v5974 = vmax.f32 %v5831, 0.0
        %v5975 = vmax.f32 %v5449, 0.0
        %v5976 = vmax.f32 %v5451, 0.0
        %v5977 = vmax.f32 %v5835, 0.0
        %v5978 = vmax.f32 %v5837, 0.0
        %v5979 = vmax.f32 %v5453, 0.0
        %v5980 = vmax.f32 %v5455, 0.0
        %v5981 = vmax.f32 %v5839, 0.0
        %v5982 = vmax.f32 %v5841, 0.0
        %v5983 = vmax.f32 %v5459, 0.0
        %v5984 = vmax.f32 %v5461, 0.0
        %v5985 = vmax.f32 %v5845, 0.0
        %v5986 = vmax.f32 %v5847, 0.0
        %v5987 = vmax.f32 %v5463, 0.0
        %v5988 = vmax.f32 %v5465, 0.0
        %v5989 = vmax.f32 %v5849, 0.0
        %v5990 = vmax.f32 %v5851, 0.0
        %v5991 = vmax.f32 %v5469, 0.0
        %v5992 = vmax.f32 %v5471, 0.0
        %v5993 = vmax.f32 %v5855, 0.0
        %v5994 = vmax.f32 %v5857, 0.0
        %v5995 = vmax.f32 %v5473, 0.0
        %v5996 = vmax.f32 %v5475, 0.0
        %v5997 = vmax.f32 %v5859, 0.0
        %v5998 = vmax.f32 %v5861, 0.0
        %v5999 = vmax.f32 %v5479, 0.0
        %v6000 = vmax.f32 %v5481, 0.0
        %v6001 = vmax.f32 %v5865, 0.0
        %v6002 = vmax.f32 %v5867, 0.0
        %v6003 = vmax.f32 %v5483, 0.0
        %v6004 = vmax.f32 %v5485, 0.0
        %v6005 = vmax.f32 %v5869, 0.0
        %v6006 = vmax.f32 %v5871, 0.0
        %v6007 = vmax.f32 %v5489, 0.0
        %v6008 = vmax.f32 %v5491, 0.0
        %v6009 = vmax.f32 %v5875, 0.0
        %v6010 = vmax.f32 %v5877, 0.0
        %v6011 = vmax.f32 %v5493, 0.0
        %v6012 = vmax.f32 %v5495, 0.0
        %v6013 = vmax.f32 %v5879, 0.0
        %v6014 = vmax.f32 %v5881, 0.0
        %v6015 = vmax.f32 %v5499, 0.0
        %v6016 = vmax.f32 %v5501, 0.0
        %v6017 = vmax.f32 %v5885, 0.0
        %v6018 = vmax.f32 %v5887, 0.0
        %v6019 = vmax.f32 %v5503, 0.0
        %v6020 = vmax.f32 %v5505, 0.0
        %v6021 = vmax.f32 %v5889, 0.0
        %v6022 = vmax.f32 %v5891, 0.0
        %v6023 = vmax.f32 %v5509, 0.0
        %v6024 = vmax.f32 %v5511, 0.0
        %v6025 = vmax.f32 %v5895, 0.0
        %v6026 = vmax.f32 %v5897, 0.0
        %v6027 = vmax.f32 %v5513, 0.0
        %v6028 = vmax.f32 %v5515, 0.0
        %v6029 = vmax.f32 %v5899, 0.0
        %v6030 = vmax.f32 %v5901, 0.0
        %v6031 = vpack.c.bf16 %v5907, %v5903
        %v6032 = vpack.c.bf16 %v5908, %v5904
        %v6033 = vpack.c.bf16 %v5909, %v5905
        %v6034 = vpack.c.bf16 %v5910, %v5906
        %v6035 = vpack.c.bf16 %v5915, %v5911
        %v6036 = vpack.c.bf16 %v5916, %v5912
        %v6037 = vpack.c.bf16 %v5917, %v5913
        %v6038 = vpack.c.bf16 %v5918, %v5914
        %v6039 = vpack.c.bf16 %v5923, %v5919
        %v6040 = vpack.c.bf16 %v5924, %v5920
        %v6041 = vpack.c.bf16 %v5925, %v5921
        %v6042 = vpack.c.bf16 %v5926, %v5922
        %v6043 = vpack.c.bf16 %v5931, %v5927
        %v6044 = vpack.c.bf16 %v5932, %v5928
        %v6045 = vpack.c.bf16 %v5933, %v5929
        %v6046 = vpack.c.bf16 %v5934, %v5930
        %v6047 = vpack.c.bf16 %v5939, %v5935
        %v6048 = vpack.c.bf16 %v5940, %v5936
        %v6049 = vpack.c.bf16 %v5941, %v5937
        %v6050 = vpack.c.bf16 %v5942, %v5938
        %v6051 = vpack.c.bf16 %v5947, %v5943
        %v6052 = vpack.c.bf16 %v5948, %v5944
        %v6053 = vpack.c.bf16 %v5949, %v5945
        %v6054 = vpack.c.bf16 %v5950, %v5946
        %v6055 = vpack.c.bf16 %v5955, %v5951
        %v6056 = vpack.c.bf16 %v5956, %v5952
        %v6057 = vpack.c.bf16 %v5957, %v5953
        %v6058 = vpack.c.bf16 %v5958, %v5954
        %v6059 = vpack.c.bf16 %v5963, %v5959
        %v6060 = vpack.c.bf16 %v5964, %v5960
        %v6061 = vpack.c.bf16 %v5965, %v5961
        %v6062 = vpack.c.bf16 %v5966, %v5962
        %v6063 = vpack.c.bf16 %v5971, %v5967
        %v6064 = vpack.c.bf16 %v5972, %v5968
        %v6065 = vpack.c.bf16 %v5973, %v5969
        %v6066 = vpack.c.bf16 %v5974, %v5970
        %v6067 = vpack.c.bf16 %v5979, %v5975
        %v6068 = vpack.c.bf16 %v5980, %v5976
        %v6069 = vpack.c.bf16 %v5981, %v5977
        %v6070 = vpack.c.bf16 %v5982, %v5978
        %v6071 = vpack.c.bf16 %v5987, %v5983
        %v6072 = vpack.c.bf16 %v5988, %v5984
        %v6073 = vpack.c.bf16 %v5989, %v5985
        %v6074 = vpack.c.bf16 %v5990, %v5986
        %v6075 = vpack.c.bf16 %v5995, %v5991
        %v6076 = vpack.c.bf16 %v5996, %v5992
        %v6077 = vpack.c.bf16 %v5997, %v5993
        %v6078 = vpack.c.bf16 %v5998, %v5994
        %v6079 = vpack.c.bf16 %v6003, %v5999
        %v6080 = vpack.c.bf16 %v6004, %v6000
        %v6081 = vpack.c.bf16 %v6005, %v6001
        %v6082 = vpack.c.bf16 %v6006, %v6002
        %v6083 = vpack.c.bf16 %v6011, %v6007
        %v6084 = vpack.c.bf16 %v6012, %v6008
        %v6085 = vpack.c.bf16 %v6013, %v6009
        %v6086 = vpack.c.bf16 %v6014, %v6010
        %v6087 = vpack.c.bf16 %v6019, %v6015
        %v6088 = vpack.c.bf16 %v6020, %v6016
        %v6089 = vpack.c.bf16 %v6021, %v6017
        %v6090 = vpack.c.bf16 %v6022, %v6018
        %v6091 = vpack.c.bf16 %v6027, %v6023
        %v6092 = vpack.c.bf16 %v6028, %v6024
        %v6093 = vpack.c.bf16 %v6029, %v6025
        %v6094 = vpack.c.bf16 %v6030, %v6026
        %v6095 = vld [vmem:[#allocation14] sm:$0xff]
        %v6096 = vld [vmem:[#allocation14 + $0x8] sm:$0xff]
        %v6097 = vld [vmem:[#allocation14 + $0x10] sm:$0xff]
        %v6098 = vld [vmem:[#allocation14 + $0x18] sm:$0xff]
        %v6099 = vld [vmem:[#allocation14 + $0x20] sm:$0xff]
        %v6100 = vld [vmem:[#allocation14 + $0x28] sm:$0xff]
        %v6101 = vld [vmem:[#allocation14 + $0x30] sm:$0xff]
        %v6102 = vld [vmem:[#allocation14 + $0x38] sm:$0xff]
        %v6103 = vld [vmem:[#allocation14 + $0x40] sm:$0xff]
        %v6104 = vld [vmem:[#allocation14 + $0x48] sm:$0xff]
        %v6105 = vld [vmem:[#allocation14 + $0x50] sm:$0xff]
        %v6106 = vld [vmem:[#allocation14 + $0x58] sm:$0xff]
        %v6107 = vld [vmem:[#allocation14 + $0x60] sm:$0xff]
        %v6108 = vld [vmem:[#allocation14 + $0x68] sm:$0xff]
        %v6109 = vld [vmem:[#allocation14 + $0x70] sm:$0xff]
        %v6110 = vld [vmem:[#allocation14 + $0x78] sm:$0xff]
        %v6111 = vld [vmem:[#allocation14 + $0x80] sm:$0xff]
        %v6112 = vld [vmem:[#allocation14 + $0x88] sm:$0xff]
        %v6113 = vld [vmem:[#allocation14 + $0x90] sm:$0xff]
        %v6114 = vld [vmem:[#allocation14 + $0x98] sm:$0xff]
        %v6115 = vld [vmem:[#allocation14 + $0xa0] sm:$0xff]
        %v6116 = vld [vmem:[#allocation14 + $0xa8] sm:$0xff]
        %v6117 = vld [vmem:[#allocation14 + $0xb0] sm:$0xff]
        %v6118 = vld [vmem:[#allocation14 + $0xb8] sm:$0xff]
        %v6119 = vld [vmem:[#allocation14 + $0xc0] sm:$0xff]
        %v6120 = vld [vmem:[#allocation14 + $0xc8] sm:$0xff]
        %v6121 = vld [vmem:[#allocation14 + $0xd0] sm:$0xff]
        %v6122 = vld [vmem:[#allocation14 + $0xd8] sm:$0xff]
        %v6123 = vld [vmem:[#allocation14 + $0xe0] sm:$0xff]
        %v6124 = vld [vmem:[#allocation14 + $0xe8] sm:$0xff]
        %v6125 = vld [vmem:[#allocation14 + $0xf0] sm:$0xff]
        %v6126 = vld [vmem:[#allocation14 + $0xf8] sm:$0xff]
        %v6127 = vld [vmem:[#allocation14 + $0x100] sm:$0xff]
        %v6128 = vld [vmem:[#allocation14 + $0x108] sm:$0xff]
        %v6129 = vld [vmem:[#allocation14 + $0x110] sm:$0xff]
        %v6130 = vld [vmem:[#allocation14 + $0x118] sm:$0xff]
        %v6131 = vld [vmem:[#allocation14 + $0x120] sm:$0xff]
        %v6132 = vld [vmem:[#allocation14 + $0x128] sm:$0xff]
        %v6133 = vld [vmem:[#allocation14 + $0x130] sm:$0xff]
        %v6134 = vld [vmem:[#allocation14 + $0x138] sm:$0xff]
        %v6135 = vld [vmem:[#allocation14 + $0x140] sm:$0xff]
        %v6136 = vld [vmem:[#allocation14 + $0x148] sm:$0xff]
        %v6137 = vld [vmem:[#allocation14 + $0x150] sm:$0xff]
        %v6138 = vld [vmem:[#allocation14 + $0x158] sm:$0xff]
        %v6139 = vld [vmem:[#allocation14 + $0x160] sm:$0xff]
        %v6140 = vld [vmem:[#allocation14 + $0x168] sm:$0xff]
        %v6141 = vld [vmem:[#allocation14 + $0x170] sm:$0xff]
        %v6142 = vld [vmem:[#allocation14 + $0x178] sm:$0xff]
        %v6143 = vld [vmem:[#allocation14 + $0x180] sm:$0xff]
        %v6144 = vld [vmem:[#allocation14 + $0x188] sm:$0xff]
        %v6145 = vld [vmem:[#allocation14 + $0x190] sm:$0xff]
        %v6146 = vld [vmem:[#allocation14 + $0x198] sm:$0xff]
        %v6147 = vld [vmem:[#allocation14 + $0x1a0] sm:$0xff]
        %v6148 = vld [vmem:[#allocation14 + $0x1a8] sm:$0xff]
        %v6149 = vld [vmem:[#allocation14 + $0x1b0] sm:$0xff]
        %v6150 = vld [vmem:[#allocation14 + $0x1b8] sm:$0xff]
        %v6151 = vld [vmem:[#allocation14 + $0x1c0] sm:$0xff]
        %v6152 = vld [vmem:[#allocation14 + $0x1c8] sm:$0xff]
        %v6153 = vld [vmem:[#allocation14 + $0x1d0] sm:$0xff]
        %v6154 = vld [vmem:[#allocation14 + $0x1d8] sm:$0xff]
        %v6155 = vld [vmem:[#allocation14 + $0x1e0] sm:$0xff]
        %v6156 = vld [vmem:[#allocation14 + $0x1e8] sm:$0xff]
        %v6157 = vld [vmem:[#allocation14 + $0x1f0] sm:$0xff]
        %v6158 = vld [vmem:[#allocation14 + $0x1f8] sm:$0xff]
        %v6159 = vld [vmem:[%s14] sm:$0x3]
        %v6161 = vlaneseq
        %v6162 = vshrl.u32 %v6161, 7
        %v6163 = vsub.s32 0, %v6162
        %v6164 = vrot.slane %v6159, %v6163
        %v6165 = vlaneseq
        %v6166 = vshrl.u32 %v6165, 7
        %v6167 = vsub.s32 1, %v6166
        %v6168 = vrot.slane %v6159, %v6167
        %v6235 = vunpack.c.l.b16 %v6095
        %v6236 = vunpack.c.h.b16 %v6095
        %v6237 = vunpack.c.l.b16 %v6096
        %v6238 = vunpack.c.h.b16 %v6096
        %v6239 = vunpack.c.l.b16 %v6097
        %v6240 = vunpack.c.h.b16 %v6097
        %v6241 = vunpack.c.l.b16 %v6098
        %v6242 = vunpack.c.h.b16 %v6098
        %v6243 = vunpack.c.l.b16 %v6099
        %v6244 = vunpack.c.h.b16 %v6099
        %v6245 = vunpack.c.l.b16 %v6100
        %v6246 = vunpack.c.h.b16 %v6100
        %v6247 = vunpack.c.l.b16 %v6101
        %v6248 = vunpack.c.h.b16 %v6101
        %v6249 = vunpack.c.l.b16 %v6102
        %v6250 = vunpack.c.h.b16 %v6102
        %v6251 = vunpack.c.l.b16 %v6103
        %v6252 = vunpack.c.h.b16 %v6103
        %v6253 = vunpack.c.l.b16 %v6104
        %v6254 = vunpack.c.h.b16 %v6104
        %v6255 = vunpack.c.l.b16 %v6105
        %v6256 = vunpack.c.h.b16 %v6105
        %v6257 = vunpack.c.l.b16 %v6106
        %v6258 = vunpack.c.h.b16 %v6106
        %v6259 = vunpack.c.l.b16 %v6107
        %v6260 = vunpack.c.h.b16 %v6107
        %v6261 = vunpack.c.l.b16 %v6108
        %v6262 = vunpack.c.h.b16 %v6108
        %v6263 = vunpack.c.l.b16 %v6109
        %v6264 = vunpack.c.h.b16 %v6109
        %v6265 = vunpack.c.l.b16 %v6110
        %v6266 = vunpack.c.h.b16 %v6110
        %v6267 = vunpack.c.l.b16 %v6111
        %v6268 = vunpack.c.h.b16 %v6111
        %v6269 = vunpack.c.l.b16 %v6112
        %v6270 = vunpack.c.h.b16 %v6112
        %v6271 = vunpack.c.l.b16 %v6113
        %v6272 = vunpack.c.h.b16 %v6113
        %v6273 = vunpack.c.l.b16 %v6114
        %v6274 = vunpack.c.h.b16 %v6114
        %v6275 = vunpack.c.l.b16 %v6115
        %v6276 = vunpack.c.h.b16 %v6115
        %v6277 = vunpack.c.l.b16 %v6116
        %v6278 = vunpack.c.h.b16 %v6116
        %v6279 = vunpack.c.l.b16 %v6117
        %v6280 = vunpack.c.h.b16 %v6117
        %v6281 = vunpack.c.l.b16 %v6118
        %v6282 = vunpack.c.h.b16 %v6118
        %v6283 = vunpack.c.l.b16 %v6119
        %v6284 = vunpack.c.h.b16 %v6119
        %v6285 = vunpack.c.l.b16 %v6120
        %v6286 = vunpack.c.h.b16 %v6120
        %v6287 = vunpack.c.l.b16 %v6121
        %v6288 = vunpack.c.h.b16 %v6121
        %v6289 = vunpack.c.l.b16 %v6122
        %v6290 = vunpack.c.h.b16 %v6122
        %v6291 = vunpack.c.l.b16 %v6123
        %v6292 = vunpack.c.h.b16 %v6123
        %v6293 = vunpack.c.l.b16 %v6124
        %v6294 = vunpack.c.h.b16 %v6124
        %v6295 = vunpack.c.l.b16 %v6125
        %v6296 = vunpack.c.h.b16 %v6125
        %v6297 = vunpack.c.l.b16 %v6126
        %v6298 = vunpack.c.h.b16 %v6126
        %v6299 = vunpack.c.l.b16 %v6127
        %v6300 = vunpack.c.h.b16 %v6127
        %v6301 = vunpack.c.l.b16 %v6128
        %v6302 = vunpack.c.h.b16 %v6128
        %v6303 = vunpack.c.l.b16 %v6129
        %v6304 = vunpack.c.h.b16 %v6129
        %v6305 = vunpack.c.l.b16 %v6130
        %v6306 = vunpack.c.h.b16 %v6130
        %v6307 = vunpack.c.l.b16 %v6131
        %v6308 = vunpack.c.h.b16 %v6131
        %v6309 = vunpack.c.l.b16 %v6132
        %v6310 = vunpack.c.h.b16 %v6132
        %v6311 = vunpack.c.l.b16 %v6133
        %v6312 = vunpack.c.h.b16 %v6133
        %v6313 = vunpack.c.l.b16 %v6134
        %v6314 = vunpack.c.h.b16 %v6134
        %v6315 = vunpack.c.l.b16 %v6135
        %v6316 = vunpack.c.h.b16 %v6135
        %v6317 = vunpack.c.l.b16 %v6136
        %v6318 = vunpack.c.h.b16 %v6136
        %v6319 = vunpack.c.l.b16 %v6137
        %v6320 = vunpack.c.h.b16 %v6137
        %v6321 = vunpack.c.l.b16 %v6138
        %v6322 = vunpack.c.h.b16 %v6138
        %v6323 = vunpack.c.l.b16 %v6139
        %v6324 = vunpack.c.h.b16 %v6139
        %v6325 = vunpack.c.l.b16 %v6140
        %v6326 = vunpack.c.h.b16 %v6140
        %v6327 = vunpack.c.l.b16 %v6141
        %v6328 = vunpack.c.h.b16 %v6141
        %v6329 = vunpack.c.l.b16 %v6142
        %v6330 = vunpack.c.h.b16 %v6142
        %v6331 = vunpack.c.l.b16 %v6143
        %v6332 = vunpack.c.h.b16 %v6143
        %v6333 = vunpack.c.l.b16 %v6144
        %v6334 = vunpack.c.h.b16 %v6144
        %v6335 = vunpack.c.l.b16 %v6145
        %v6336 = vunpack.c.h.b16 %v6145
        %v6337 = vunpack.c.l.b16 %v6146
        %v6338 = vunpack.c.h.b16 %v6146
        %v6339 = vunpack.c.l.b16 %v6147
        %v6340 = vunpack.c.h.b16 %v6147
        %v6341 = vunpack.c.l.b16 %v6148
        %v6342 = vunpack.c.h.b16 %v6148
        %v6343 = vunpack.c.l.b16 %v6149
        %v6344 = vunpack.c.h.b16 %v6149
        %v6345 = vunpack.c.l.b16 %v6150
        %v6346 = vunpack.c.h.b16 %v6150
        %v6347 = vunpack.c.l.b16 %v6151
        %v6348 = vunpack.c.h.b16 %v6151
        %v6349 = vunpack.c.l.b16 %v6152
        %v6350 = vunpack.c.h.b16 %v6152
        %v6351 = vunpack.c.l.b16 %v6153
        %v6352 = vunpack.c.h.b16 %v6153
        %v6353 = vunpack.c.l.b16 %v6154
        %v6354 = vunpack.c.h.b16 %v6154
        %v6355 = vunpack.c.l.b16 %v6155
        %v6356 = vunpack.c.h.b16 %v6155
        %v6357 = vunpack.c.l.b16 %v6156
        %v6358 = vunpack.c.h.b16 %v6156
        %v6359 = vunpack.c.l.b16 %v6157
        %v6360 = vunpack.c.h.b16 %v6157
        %v6361 = vunpack.c.l.b16 %v6158
        %v6362 = vunpack.c.h.b16 %v6158
        %v6363 = vpack.c.b16 %v6237, %v6235
        %v6364 = vpack.c.b16 %v6238, %v6236
        %v6365 = vpack.c.b16 %v6241, %v6239
        %v6366 = vpack.c.b16 %v6242, %v6240
        %v6367 = vpack.c.b16 %v6245, %v6243
        %v6368 = vpack.c.b16 %v6246, %v6244
        %v6369 = vpack.c.b16 %v6249, %v6247
        %v6370 = vpack.c.b16 %v6250, %v6248
        %v6371 = vpack.c.b16 %v6253, %v6251
        %v6372 = vpack.c.b16 %v6254, %v6252
        %v6373 = vpack.c.b16 %v6257, %v6255
        %v6374 = vpack.c.b16 %v6258, %v6256
        %v6375 = vpack.c.b16 %v6261, %v6259
        %v6376 = vpack.c.b16 %v6262, %v6260
        %v6377 = vpack.c.b16 %v6265, %v6263
        %v6378 = vpack.c.b16 %v6266, %v6264
        %v6379 = vpack.c.b16 %v6269, %v6267
        %v6380 = vpack.c.b16 %v6270, %v6268
        %v6381 = vpack.c.b16 %v6273, %v6271
        %v6382 = vpack.c.b16 %v6274, %v6272
        %v6383 = vpack.c.b16 %v6277, %v6275
        %v6384 = vpack.c.b16 %v6278, %v6276
        %v6385 = vpack.c.b16 %v6281, %v6279
        %v6386 = vpack.c.b16 %v6282, %v6280
        %v6387 = vpack.c.b16 %v6285, %v6283
        %v6388 = vpack.c.b16 %v6286, %v6284
        %v6389 = vpack.c.b16 %v6289, %v6287
        %v6390 = vpack.c.b16 %v6290, %v6288
        %v6391 = vpack.c.b16 %v6293, %v6291
        %v6392 = vpack.c.b16 %v6294, %v6292
        %v6393 = vpack.c.b16 %v6297, %v6295
        %v6394 = vpack.c.b16 %v6298, %v6296
        %v6395 = vpack.c.b16 %v6301, %v6299
        %v6396 = vpack.c.b16 %v6302, %v6300
        %v6397 = vpack.c.b16 %v6305, %v6303
        %v6398 = vpack.c.b16 %v6306, %v6304
        %v6399 = vpack.c.b16 %v6309, %v6307
        %v6400 = vpack.c.b16 %v6310, %v6308
        %v6401 = vpack.c.b16 %v6313, %v6311
        %v6402 = vpack.c.b16 %v6314, %v6312
        %v6403 = vpack.c.b16 %v6317, %v6315
        %v6404 = vpack.c.b16 %v6318, %v6316
        %v6405 = vpack.c.b16 %v6321, %v6319
        %v6406 = vpack.c.b16 %v6322, %v6320
        %v6407 = vpack.c.b16 %v6325, %v6323
        %v6408 = vpack.c.b16 %v6326, %v6324
        %v6409 = vpack.c.b16 %v6329, %v6327
        %v6410 = vpack.c.b16 %v6330, %v6328
        %v6411 = vpack.c.b16 %v6333, %v6331
        %v6412 = vpack.c.b16 %v6334, %v6332
        %v6413 = vpack.c.b16 %v6337, %v6335
        %v6414 = vpack.c.b16 %v6338, %v6336
        %v6415 = vpack.c.b16 %v6341, %v6339
        %v6416 = vpack.c.b16 %v6342, %v6340
        %v6417 = vpack.c.b16 %v6345, %v6343
        %v6418 = vpack.c.b16 %v6346, %v6344
        %v6419 = vpack.c.b16 %v6349, %v6347
        %v6420 = vpack.c.b16 %v6350, %v6348
        %v6421 = vpack.c.b16 %v6353, %v6351
        %v6422 = vpack.c.b16 %v6354, %v6352
        %v6423 = vpack.c.b16 %v6357, %v6355
        %v6424 = vpack.c.b16 %v6358, %v6356
        %v6425 = vpack.c.b16 %v6361, %v6359
        %v6426 = vpack.c.b16 %v6362, %v6360
        %6491 = vmatprep.subr.bf16.mxu0 %v6364
        %6492 = vmatpush1.bf16.msra.mxu0 %v6363
        %6493 = vmatprep.subr.bf16.mxu0 %v6366
        %6494 = vmatpush1.bf16.msra.mxu0 %v6365
        %6495 = vmatprep.subr.bf16.mxu0 %v6368
        %6496 = vmatpush1.bf16.msra.mxu0 %v6367
        %6497 = vmatprep.subr.bf16.mxu0 %v6370
        %6498 = vmatpush1.bf16.msra.mxu0 %v6369
        %6499 = vmatprep.subr.bf16.mxu0 %v6372
        %6500 = vmatpush1.bf16.msra.mxu0 %v6371
        %6501 = vmatprep.subr.bf16.mxu0 %v6374
        %6502 = vmatpush1.bf16.msra.mxu0 %v6373
        %6503 = vmatprep.subr.bf16.mxu0 %v6376
        %6504 = vmatpush1.bf16.msra.mxu0 %v6375
        %6505 = vmatprep.subr.bf16.mxu0 %v6378
        %6506 = vmatpush1.bf16.msra.mxu0 %v6377
        %6507 = vmatprep.subr.bf16.mxu0 %v6380
        %6508 = vmatpush1.bf16.msra.mxu0 %v6379
        %6509 = vmatprep.subr.bf16.mxu0 %v6382
        %6510 = vmatpush1.bf16.msra.mxu0 %v6381
        %6511 = vmatprep.subr.bf16.mxu0 %v6384
        %6512 = vmatpush1.bf16.msra.mxu0 %v6383
        %6513 = vmatprep.subr.bf16.mxu0 %v6386
        %6514 = vmatpush1.bf16.msra.mxu0 %v6385
        %6515 = vmatprep.subr.bf16.mxu0 %v6388
        %6516 = vmatpush1.bf16.msra.mxu0 %v6387
        %6517 = vmatprep.subr.bf16.mxu0 %v6390
        %6518 = vmatpush1.bf16.msra.mxu0 %v6389
        %6519 = vmatprep.subr.bf16.mxu0 %v6392
        %6520 = vmatpush1.bf16.msra.mxu0 %v6391
        %6521 = vmatprep.subr.bf16.mxu0 %v6394
        %6522 = vmatpush1.bf16.msra.mxu0 %v6393
        %6523 = vmatprep.mubr.bf16.mxu0 %v6032
        %6524 = vmatmul.mubr.bf16.gmra.mrb[0].mxu0 %v6031
        %v6525 = vpop.f32.mrb[0].mxu0
        %v6526 = vadd.f32 %v6164, %v6525
        %v6527 = vpop.f32.mrb[0].mxu0
        %v6528 = vadd.f32 %v6168, %v6527
        %v6529 = vpop.f32.mrb[0].mxu0
        %v6530 = vadd.f32 %v6164, %v6529
        %v6531 = vpop.f32.mrb[0].mxu0
        %v6532 = vadd.f32 %v6168, %v6531
        %6533 = vmatprep.mubr.bf16.mxu0 %v6036
        %6534 = vmatmul.mubr.bf16.gmra.mrb[0].mxu0 %v6035
        %v6535 = vpop.f32.mrb[0].mxu0
        %v6536 = vadd.f32 %v6164, %v6535
        %v6537 = vpop.f32.mrb[0].mxu0
        %v6538 = vadd.f32 %v6168, %v6537
        %v6539 = vpop.f32.mrb[0].mxu0
        %v6540 = vadd.f32 %v6164, %v6539
        %v6541 = vpop.f32.mrb[0].mxu0
        %v6542 = vadd.f32 %v6168, %v6541
        %6543 = vmatprep.mubr.bf16.mxu0 %v6040
        %6544 = vmatmul.mubr.bf16.gmra.mrb[0].mxu0 %v6039
        %v6545 = vpop.f32.mrb[0].mxu0
        %v6546 = vadd.f32 %v6164, %v6545
        %v6547 = vpop.f32.mrb[0].mxu0
        %v6548 = vadd.f32 %v6168, %v6547
        %v6549 = vpop.f32.mrb[0].mxu0
        %v6550 = vadd.f32 %v6164, %v6549
        %v6551 = vpop.f32.mrb[0].mxu0
        %v6552 = vadd.f32 %v6168, %v6551
        %6553 = vmatprep.mubr.bf16.mxu0 %v6044
        %6554 = vmatmul.mubr.bf16.gmra.mrb[0].mxu0 %v6043
        %v6555 = vpop.f32.mrb[0].mxu0
        %v6556 = vadd.f32 %v6164, %v6555
        %v6557 = vpop.f32.mrb[0].mxu0
        %v6558 = vadd.f32 %v6168, %v6557
        %v6559 = vpop.f32.mrb[0].mxu0
        %v6560 = vadd.f32 %v6164, %v6559
        %v6561 = vpop.f32.mrb[0].mxu0
        %v6562 = vadd.f32 %v6168, %v6561
        %6563 = vmatprep.mubr.bf16.mxu0 %v6048
        %6564 = vmatmul.mubr.bf16.gmra.mrb[0].mxu0 %v6047
        %v6565 = vpop.f32.mrb[0].mxu0
        %v6566 = vadd.f32 %v6164, %v6565
        %v6567 = vpop.f32.mrb[0].mxu0
        %v6568 = vadd.f32 %v6168, %v6567
        %v6569 = vpop.f32.mrb[0].mxu0
        %v6570 = vadd.f32 %v6164, %v6569
        %v6571 = vpop.f32.mrb[0].mxu0
        %v6572 = vadd.f32 %v6168, %v6571
        %6573 = vmatprep.mubr.bf16.mxu0 %v6052
        %6574 = vmatmul.mubr.bf16.gmra.mrb[0].mxu0 %v6051
        %v6575 = vpop.f32.mrb[0].mxu0
        %v6576 = vadd.f32 %v6164, %v6575
        %v6577 = vpop.f32.mrb[0].mxu0
        %v6578 = vadd.f32 %v6168, %v6577
        %v6579 = vpop.f32.mrb[0].mxu0
        %v6580 = vadd.f32 %v6164, %v6579
        %v6581 = vpop.f32.mrb[0].mxu0
        %v6582 = vadd.f32 %v6168, %v6581
        %6583 = vmatprep.mubr.bf16.mxu0 %v6056
        %6584 = vmatmul.mubr.bf16.gmra.mrb[0].mxu0 %v6055
        %v6585 = vpop.f32.mrb[0].mxu0
        %v6586 = vadd.f32 %v6164, %v6585
        %v6587 = vpop.f32.mrb[0].mxu0
        %v6588 = vadd.f32 %v6168, %v6587
        %v6589 = vpop.f32.mrb[0].mxu0
        %v6590 = vadd.f32 %v6164, %v6589
        %v6591 = vpop.f32.mrb[0].mxu0
        %v6592 = vadd.f32 %v6168, %v6591
        %6593 = vmatprep.mubr.bf16.mxu0 %v6060
        %6594 = vmatmul.mubr.bf16.gmra.mrb[0].mxu0 %v6059
        %v6595 = vpop.f32.mrb[0].mxu0
        %v6596 = vadd.f32 %v6164, %v6595
        %v6597 = vpop.f32.mrb[0].mxu0
        %v6598 = vadd.f32 %v6168, %v6597
        %v6599 = vpop.f32.mrb[0].mxu0
        %v6600 = vadd.f32 %v6164, %v6599
        %v6601 = vpop.f32.mrb[0].mxu0
        %v6602 = vadd.f32 %v6168, %v6601
        %6603 = vmatprep.mubr.bf16.mxu0 %v6064
        %6604 = vmatmul.mubr.bf16.gmra.mrb[0].mxu0 %v6063
        %v6605 = vpop.f32.mrb[0].mxu0
        %v6606 = vadd.f32 %v6164, %v6605
        %v6607 = vpop.f32.mrb[0].mxu0
        %v6608 = vadd.f32 %v6168, %v6607
        %v6609 = vpop.f32.mrb[0].mxu0
        %v6610 = vadd.f32 %v6164, %v6609
        %v6611 = vpop.f32.mrb[0].mxu0
        %v6612 = vadd.f32 %v6168, %v6611
        %6613 = vmatprep.mubr.bf16.mxu0 %v6068
        %6614 = vmatmul.mubr.bf16.gmra.mrb[0].mxu0 %v6067
        %v6615 = vpop.f32.mrb[0].mxu0
        %v6616 = vadd.f32 %v6164, %v6615
        %v6617 = vpop.f32.mrb[0].mxu0
        %v6618 = vadd.f32 %v6168, %v6617
        %v6619 = vpop.f32.mrb[0].mxu0
        %v6620 = vadd.f32 %v6164, %v6619
        %v6621 = vpop.f32.mrb[0].mxu0
        %v6622 = vadd.f32 %v6168, %v6621
        %6623 = vmatprep.mubr.bf16.mxu0 %v6072
        %6624 = vmatmul.mubr.bf16.gmra.mrb[0].mxu0 %v6071
        %v6625 = vpop.f32.mrb[0].mxu0
        %v6626 = vadd.f32 %v6164, %v6625
        %v6627 = vpop.f32.mrb[0].mxu0
        %v6628 = vadd.f32 %v6168, %v6627
        %v6629 = vpop.f32.mrb[0].mxu0
        %v6630 = vadd.f32 %v6164, %v6629
        %v6631 = vpop.f32.mrb[0].mxu0
        %v6632 = vadd.f32 %v6168, %v6631
        %6633 = vmatprep.mubr.bf16.mxu0 %v6076
        %6634 = vmatmul.mubr.bf16.gmra.mrb[0].mxu0 %v6075
        %v6635 = vpop.f32.mrb[0].mxu0
        %v6636 = vadd.f32 %v6164, %v6635
        %v6637 = vpop.f32.mrb[0].mxu0
        %v6638 = vadd.f32 %v6168, %v6637
        %v6639 = vpop.f32.mrb[0].mxu0
        %v6640 = vadd.f32 %v6164, %v6639
        %v6641 = vpop.f32.mrb[0].mxu0
        %v6642 = vadd.f32 %v6168, %v6641
        %6643 = vmatprep.mubr.bf16.mxu0 %v6080
        %6644 = vmatmul.mubr.bf16.gmra.mrb[0].mxu0 %v6079
        %v6645 = vpop.f32.mrb[0].mxu0
        %v6646 = vadd.f32 %v6164, %v6645
        %v6647 = vpop.f32.mrb[0].mxu0
        %v6648 = vadd.f32 %v6168, %v6647
        %v6649 = vpop.f32.mrb[0].mxu0
        %v6650 = vadd.f32 %v6164, %v6649
        %v6651 = vpop.f32.mrb[0].mxu0
        %v6652 = vadd.f32 %v6168, %v6651
        %6653 = vmatprep.mubr.bf16.mxu0 %v6084
        %6654 = vmatmul.mubr.bf16.gmra.mrb[0].mxu0 %v6083
        %v6655 = vpop.f32.mrb[0].mxu0
        %v6656 = vadd.f32 %v6164, %v6655
        %v6657 = vpop.f32.mrb[0].mxu0
        %v6658 = vadd.f32 %v6168, %v6657
        %v6659 = vpop.f32.mrb[0].mxu0
        %v6660 = vadd.f32 %v6164, %v6659
        %v6661 = vpop.f32.mrb[0].mxu0
        %v6662 = vadd.f32 %v6168, %v6661
        %6663 = vmatprep.mubr.bf16.mxu0 %v6088
        %6664 = vmatmul.mubr.bf16.gmra.mrb[0].mxu0 %v6087
        %v6665 = vpop.f32.mrb[0].mxu0
        %v6666 = vadd.f32 %v6164, %v6665
        %v6667 = vpop.f32.mrb[0].mxu0
        %v6668 = vadd.f32 %v6168, %v6667
        %v6669 = vpop.f32.mrb[0].mxu0
        %v6670 = vadd.f32 %v6164, %v6669
        %v6671 = vpop.f32.mrb[0].mxu0
        %v6672 = vadd.f32 %v6168, %v6671
        %6673 = vmatprep.mubr.bf16.mxu0 %v6092
        %6674 = vmatmul.mubr.bf16.gmra.mrb[0].mxu0 %v6091
        %v6675 = vpop.f32.mrb[0].mxu0
        %v6676 = vadd.f32 %v6164, %v6675
        %v6677 = vpop.f32.mrb[0].mxu0
        %v6678 = vadd.f32 %v6168, %v6677
        %v6679 = vpop.f32.mrb[0].mxu0
        %v6680 = vadd.f32 %v6164, %v6679
        %v6681 = vpop.f32.mrb[0].mxu0
        %v6682 = vadd.f32 %v6168, %v6681
        %6683 = vdwg.mxu0
        %6684 = vmatprep.subr.bf16.mxu0 %v6396
        %6685 = vmatpush1.bf16.msra.mxu0 %v6395
        %6686 = vmatprep.subr.bf16.mxu0 %v6398
        %6687 = vmatpush1.bf16.msra.mxu0 %v6397
        %6688 = vmatprep.subr.bf16.mxu0 %v6400
        %6689 = vmatpush1.bf16.msra.mxu0 %v6399
        %6690 = vmatprep.subr.bf16.mxu0 %v6402
        %6691 = vmatpush1.bf16.msra.mxu0 %v6401
        %6692 = vmatprep.subr.bf16.mxu0 %v6404
        %6693 = vmatpush1.bf16.msra.mxu0 %v6403
        %6694 = vmatprep.subr.bf16.mxu0 %v6406
        %6695 = vmatpush1.bf16.msra.mxu0 %v6405
        %6696 = vmatprep.subr.bf16.mxu0 %v6408
        %6697 = vmatpush1.bf16.msra.mxu0 %v6407
        %6698 = vmatprep.subr.bf16.mxu0 %v6410
        %6699 = vmatpush1.bf16.msra.mxu0 %v6409
        %6700 = vmatprep.subr.bf16.mxu0 %v6412
        %6701 = vmatpush1.bf16.msra.mxu0 %v6411
        %6702 = vmatprep.subr.bf16.mxu0 %v6414
        %6703 = vmatpush1.bf16.msra.mxu0 %v6413
        %6704 = vmatprep.subr.bf16.mxu0 %v6416
        %6705 = vmatpush1.bf16.msra.mxu0 %v6415
        %6706 = vmatprep.subr.bf16.mxu0 %v6418
        %6707 = vmatpush1.bf16.msra.mxu0 %v6417
        %6708 = vmatprep.subr.bf16.mxu0 %v6420
        %6709 = vmatpush1.bf16.msra.mxu0 %v6419
        %6710 = vmatprep.subr.bf16.mxu0 %v6422
        %6711 = vmatpush1.bf16.msra.mxu0 %v6421
        %6712 = vmatprep.subr.bf16.mxu0 %v6424
        %6713 = vmatpush1.bf16.msra.mxu0 %v6423
        %6714 = vmatprep.subr.bf16.mxu0 %v6426
        %6715 = vmatpush1.bf16.msra.mxu0 %v6425
        %6716 = vmatprep.mubr.bf16.mxu0 %v6034
        %6717 = vmatmul.mubr.bf16.gmra.mrb[0].mxu0 %v6033
        %v6718 = vpop.f32.mrb[0].mxu0
        %v6719 = vadd.f32 %v6526, %v6718
        %v6720 = vpop.f32.mrb[0].mxu0
        %v6721 = vadd.f32 %v6528, %v6720
        %v6722 = vpop.f32.mrb[0].mxu0
        %v6723 = vadd.f32 %v6530, %v6722
        %v6724 = vpop.f32.mrb[0].mxu0
        %v6725 = vadd.f32 %v6532, %v6724
        %6726 = vmatprep.mubr.bf16.mxu0 %v6038
        %6727 = vmatmul.mubr.bf16.gmra.mrb[0].mxu0 %v6037
        %v6728 = vpop.f32.mrb[0].mxu0
        %v6729 = vadd.f32 %v6536, %v6728
        %v6730 = vpop.f32.mrb[0].mxu0
        %v6731 = vadd.f32 %v6538, %v6730
        %v6732 = vpop.f32.mrb[0].mxu0
        %v6733 = vadd.f32 %v6540, %v6732
        %v6734 = vpop.f32.mrb[0].mxu0
        %v6735 = vadd.f32 %v6542, %v6734
        %6736 = vmatprep.mubr.bf16.mxu0 %v6042
        %6737 = vmatmul.mubr.bf16.gmra.mrb[0].mxu0 %v6041
        %v6738 = vpop.f32.mrb[0].mxu0
        %v6739 = vadd.f32 %v6546, %v6738
        %v6740 = vpop.f32.mrb[0].mxu0
        %v6741 = vadd.f32 %v6548, %v6740
        %v6742 = vpop.f32.mrb[0].mxu0
        %v6743 = vadd.f32 %v6550, %v6742
        %v6744 = vpop.f32.mrb[0].mxu0
        %v6745 = vadd.f32 %v6552, %v6744
        %6746 = vmatprep.mubr.bf16.mxu0 %v6046
        %6747 = vmatmul.mubr.bf16.gmra.mrb[0].mxu0 %v6045
        %v6748 = vpop.f32.mrb[0].mxu0
        %v6749 = vadd.f32 %v6556, %v6748
        %v6750 = vpop.f32.mrb[0].mxu0
        %v6751 = vadd.f32 %v6558, %v6750
        %v6752 = vpop.f32.mrb[0].mxu0
        %v6753 = vadd.f32 %v6560, %v6752
        %v6754 = vpop.f32.mrb[0].mxu0
        %v6755 = vadd.f32 %v6562, %v6754
        %6756 = vmatprep.mubr.bf16.mxu0 %v6050
        %6757 = vmatmul.mubr.bf16.gmra.mrb[0].mxu0 %v6049
        %v6758 = vpop.f32.mrb[0].mxu0
        %v6759 = vadd.f32 %v6566, %v6758
        %v6760 = vpop.f32.mrb[0].mxu0
        %v6761 = vadd.f32 %v6568, %v6760
        %v6762 = vpop.f32.mrb[0].mxu0
        %v6763 = vadd.f32 %v6570, %v6762
        %v6764 = vpop.f32.mrb[0].mxu0
        %v6765 = vadd.f32 %v6572, %v6764
        %6766 = vmatprep.mubr.bf16.mxu0 %v6054
        %6767 = vmatmul.mubr.bf16.gmra.mrb[0].mxu0 %v6053
        %v6768 = vpop.f32.mrb[0].mxu0
        %v6769 = vadd.f32 %v6576, %v6768
        %v6770 = vpop.f32.mrb[0].mxu0
        %v6771 = vadd.f32 %v6578, %v6770
        %v6772 = vpop.f32.mrb[0].mxu0
        %v6773 = vadd.f32 %v6580, %v6772
        %v6774 = vpop.f32.mrb[0].mxu0
        %v6775 = vadd.f32 %v6582, %v6774
        %6776 = vmatprep.mubr.bf16.mxu0 %v6058
        %6777 = vmatmul.mubr.bf16.gmra.mrb[0].mxu0 %v6057
        %v6778 = vpop.f32.mrb[0].mxu0
        %v6779 = vadd.f32 %v6586, %v6778
        %v6780 = vpop.f32.mrb[0].mxu0
        %v6781 = vadd.f32 %v6588, %v6780
        %v6782 = vpop.f32.mrb[0].mxu0
        %v6783 = vadd.f32 %v6590, %v6782
        %v6784 = vpop.f32.mrb[0].mxu0
        %v6785 = vadd.f32 %v6592, %v6784
        %6786 = vmatprep.mubr.bf16.mxu0 %v6062
        %6787 = vmatmul.mubr.bf16.gmra.mrb[0].mxu0 %v6061
        %v6788 = vpop.f32.mrb[0].mxu0
        %v6789 = vadd.f32 %v6596, %v6788
        %v6790 = vpop.f32.mrb[0].mxu0
        %v6791 = vadd.f32 %v6598, %v6790
        %v6792 = vpop.f32.mrb[0].mxu0
        %v6793 = vadd.f32 %v6600, %v6792
        %v6794 = vpop.f32.mrb[0].mxu0
        %v6795 = vadd.f32 %v6602, %v6794
        %6796 = vmatprep.mubr.bf16.mxu0 %v6066
        %6797 = vmatmul.mubr.bf16.gmra.mrb[0].mxu0 %v6065
        %v6798 = vpop.f32.mrb[0].mxu0
        %v6799 = vadd.f32 %v6606, %v6798
        %v6800 = vpop.f32.mrb[0].mxu0
        %v6801 = vadd.f32 %v6608, %v6800
        %v6802 = vpop.f32.mrb[0].mxu0
        %v6803 = vadd.f32 %v6610, %v6802
        %v6804 = vpop.f32.mrb[0].mxu0
        %v6805 = vadd.f32 %v6612, %v6804
        %6806 = vmatprep.mubr.bf16.mxu0 %v6070
        %6807 = vmatmul.mubr.bf16.gmra.mrb[0].mxu0 %v6069
        %v6808 = vpop.f32.mrb[0].mxu0
        %v6809 = vadd.f32 %v6616, %v6808
        %v6810 = vpop.f32.mrb[0].mxu0
        %v6811 = vadd.f32 %v6618, %v6810
        %v6812 = vpop.f32.mrb[0].mxu0
        %v6813 = vadd.f32 %v6620, %v6812
        %v6814 = vpop.f32.mrb[0].mxu0
        %v6815 = vadd.f32 %v6622, %v6814
        %6816 = vmatprep.mubr.bf16.mxu0 %v6074
        %6817 = vmatmul.mubr.bf16.gmra.mrb[0].mxu0 %v6073
        %v6818 = vpop.f32.mrb[0].mxu0
        %v6819 = vadd.f32 %v6626, %v6818
        %v6820 = vpop.f32.mrb[0].mxu0
        %v6821 = vadd.f32 %v6628, %v6820
        %v6822 = vpop.f32.mrb[0].mxu0
        %v6823 = vadd.f32 %v6630, %v6822
        %v6824 = vpop.f32.mrb[0].mxu0
        %v6825 = vadd.f32 %v6632, %v6824
        %6826 = vmatprep.mubr.bf16.mxu0 %v6078
        %6827 = vmatmul.mubr.bf16.gmra.mrb[0].mxu0 %v6077
        %v6828 = vpop.f32.mrb[0].mxu0
        %v6829 = vadd.f32 %v6636, %v6828
        %v6830 = vpop.f32.mrb[0].mxu0
        %v6831 = vadd.f32 %v6638, %v6830
        %v6832 = vpop.f32.mrb[0].mxu0
        %v6833 = vadd.f32 %v6640, %v6832
        %v6834 = vpop.f32.mrb[0].mxu0
        %v6835 = vadd.f32 %v6642, %v6834
        %6836 = vmatprep.mubr.bf16.mxu0 %v6082
        %6837 = vmatmul.mubr.bf16.gmra.mrb[0].mxu0 %v6081
        %v6838 = vpop.f32.mrb[0].mxu0
        %v6839 = vadd.f32 %v6646, %v6838
        %v6840 = vpop.f32.mrb[0].mxu0
        %v6841 = vadd.f32 %v6648, %v6840
        %v6842 = vpop.f32.mrb[0].mxu0
        %v6843 = vadd.f32 %v6650, %v6842
        %v6844 = vpop.f32.mrb[0].mxu0
        %v6845 = vadd.f32 %v6652, %v6844
        %6846 = vmatprep.mubr.bf16.mxu0 %v6086
        %6847 = vmatmul.mubr.bf16.gmra.mrb[0].mxu0 %v6085
        %v6848 = vpop.f32.mrb[0].mxu0
        %v6849 = vadd.f32 %v6656, %v6848
        %v6850 = vpop.f32.mrb[0].mxu0
        %v6851 = vadd.f32 %v6658, %v6850
        %v6852 = vpop.f32.mrb[0].mxu0
        %v6853 = vadd.f32 %v6660, %v6852
        %v6854 = vpop.f32.mrb[0].mxu0
        %v6855 = vadd.f32 %v6662, %v6854
        %6856 = vmatprep.mubr.bf16.mxu0 %v6090
        %6857 = vmatmul.mubr.bf16.gmra.mrb[0].mxu0 %v6089
        %v6858 = vpop.f32.mrb[0].mxu0
        %v6859 = vadd.f32 %v6666, %v6858
        %v6860 = vpop.f32.mrb[0].mxu0
        %v6861 = vadd.f32 %v6668, %v6860
        %v6862 = vpop.f32.mrb[0].mxu0
        %v6863 = vadd.f32 %v6670, %v6862
        %v6864 = vpop.f32.mrb[0].mxu0
        %v6865 = vadd.f32 %v6672, %v6864
        %6866 = vmatprep.mubr.bf16.mxu0 %v6094
        %6867 = vmatmul.mubr.bf16.gmra.mrb[0].mxu0 %v6093
        %v6868 = vpop.f32.mrb[0].mxu0
        %v6869 = vadd.f32 %v6676, %v6868
        %v6870 = vpop.f32.mrb[0].mxu0
        %v6871 = vadd.f32 %v6678, %v6870
        %v6872 = vpop.f32.mrb[0].mxu0
        %v6873 = vadd.f32 %v6680, %v6872
        %v6874 = vpop.f32.mrb[0].mxu0
        %v6875 = vadd.f32 %v6682, %v6874
        %6876 = vdwg.mxu0
        %6877 = vst [vmem:[%s646] sm:$0xff] %v6719
        %6878 = vst [vmem:[%s646 + $0x8] sm:$0xff] %v6721
        %6879 = vst [vmem:[%s646 + $0x10] sm:$0xff] %v6723
        %6880 = vst [vmem:[%s646 + $0x18] sm:$0xff] %v6725
        %6881 = vst [vmem:[%s646 + $0x20] sm:$0xff] %v6729
        %6882 = vst [vmem:[%s646 + $0x28] sm:$0xff] %v6731
        %6883 = vst [vmem:[%s646 + $0x30] sm:$0xff] %v6733
        %6884 = vst [vmem:[%s646 + $0x38] sm:$0xff] %v6735
        %6885 = vst [vmem:[%s646 + $0x40] sm:$0xff] %v6739
        %6886 = vst [vmem:[%s646 + $0x48] sm:$0xff] %v6741
        %6887 = vst [vmem:[%s646 + $0x50] sm:$0xff] %v6743
        %6888 = vst [vmem:[%s646 + $0x58] sm:$0xff] %v6745
        %6889 = vst [vmem:[%s646 + $0x60] sm:$0xff] %v6749
        %6890 = vst [vmem:[%s646 + $0x68] sm:$0xff] %v6751
        %6891 = vst [vmem:[%s646 + $0x70] sm:$0xff] %v6753
        %6892 = vst [vmem:[%s646 + $0x78] sm:$0xff] %v6755
        %6893 = vst [vmem:[%s646 + $0x80] sm:$0xff] %v6759
        %6894 = vst [vmem:[%s646 + $0x88] sm:$0xff] %v6761
        %6895 = vst [vmem:[%s646 + $0x90] sm:$0xff] %v6763
        %6896 = vst [vmem:[%s646 + $0x98] sm:$0xff] %v6765
        %6897 = vst [vmem:[%s646 + $0xa0] sm:$0xff] %v6769
        %6898 = vst [vmem:[%s646 + $0xa8] sm:$0xff] %v6771
        %6899 = vst [vmem:[%s646 + $0xb0] sm:$0xff] %v6773
        %6900 = vst [vmem:[%s646 + $0xb8] sm:$0xff] %v6775
        %6901 = vst [vmem:[%s646 + $0xc0] sm:$0xff] %v6779
        %6902 = vst [vmem:[%s646 + $0xc8] sm:$0xff] %v6781
        %6903 = vst [vmem:[%s646 + $0xd0] sm:$0xff] %v6783
        %6904 = vst [vmem:[%s646 + $0xd8] sm:$0xff] %v6785
        %6905 = vst [vmem:[%s646 + $0xe0] sm:$0xff] %v6789
        %6906 = vst [vmem:[%s646 + $0xe8] sm:$0xff] %v6791
        %6907 = vst [vmem:[%s646 + $0xf0] sm:$0xff] %v6793
        %6908 = vst [vmem:[%s646 + $0xf8] sm:$0xff] %v6795
        %6909 = vst [vmem:[%s646 + $0x100] sm:$0xff] %v6799
        %6910 = vst [vmem:[%s646 + $0x108] sm:$0xff] %v6801
        %6911 = vst [vmem:[%s646 + $0x110] sm:$0xff] %v6803
        %6912 = vst [vmem:[%s646 + $0x118] sm:$0xff] %v6805
        %6913 = vst [vmem:[%s646 + $0x120] sm:$0xff] %v6809
        %6914 = vst [vmem:[%s646 + $0x128] sm:$0xff] %v6811
        %6915 = vst [vmem:[%s646 + $0x130] sm:$0xff] %v6813
        %6916 = vst [vmem:[%s646 + $0x138] sm:$0xff] %v6815
        %6917 = vst [vmem:[%s646 + $0x140] sm:$0xff] %v6819
        %6918 = vst [vmem:[%s646 + $0x148] sm:$0xff] %v6821
        %6919 = vst [vmem:[%s646 + $0x150] sm:$0xff] %v6823
        %6920 = vst [vmem:[%s646 + $0x158] sm:$0xff] %v6825
        %6921 = vst [vmem:[%s646 + $0x160] sm:$0xff] %v6829
        %6922 = vst [vmem:[%s646 + $0x168] sm:$0xff] %v6831
        %6923 = vst [vmem:[%s646 + $0x170] sm:$0xff] %v6833
        %6924 = vst [vmem:[%s646 + $0x178] sm:$0xff] %v6835
        %6925 = vst [vmem:[%s646 + $0x180] sm:$0xff] %v6839
        %6926 = vst [vmem:[%s646 + $0x188] sm:$0xff] %v6841
        %6927 = vst [vmem:[%s646 + $0x190] sm:$0xff] %v6843
        %6928 = vst [vmem:[%s646 + $0x198] sm:$0xff] %v6845
        %6929 = vst [vmem:[%s646 + $0x1a0] sm:$0xff] %v6849
        %6930 = vst [vmem:[%s646 + $0x1a8] sm:$0xff] %v6851
        %6931 = vst [vmem:[%s646 + $0x1b0] sm:$0xff] %v6853
        %6932 = vst [vmem:[%s646 + $0x1b8] sm:$0xff] %v6855
        %6933 = vst [vmem:[%s646 + $0x1c0] sm:$0xff] %v6859
        %6934 = vst [vmem:[%s646 + $0x1c8] sm:$0xff] %v6861
        %6935 = vst [vmem:[%s646 + $0x1d0] sm:$0xff] %v6863
        %6936 = vst [vmem:[%s646 + $0x1d8] sm:$0xff] %v6865
        %6937 = vst [vmem:[%s646 + $0x1e0] sm:$0xff] %v6869
        %6938 = vst [vmem:[%s646 + $0x1e8] sm:$0xff] %v6871
        %6939 = vst [vmem:[%s646 + $0x1f0] sm:$0xff] %v6873
        %6940 = vst [vmem:[%s646 + $0x1f8] sm:$0xff] %v6875
        %6941 = vst [vmem:[%s653] sm:$0xff] %v2912
        %6942 = vst [vmem:[%s653 + $0x8] sm:$0xff] %v2913
        %6943 = vst [vmem:[%s653 + $0x10] sm:$0xff] %v2914
        %6944 = vst [vmem:[%s653 + $0x18] sm:$0xff] %v2915
        %6945 = vst [vmem:[%s653 + $0x20] sm:$0xff] %v2916
        %6946 = vst [vmem:[%s653 + $0x28] sm:$0xff] %v2917
        %6947 = vst [vmem:[%s653 + $0x30] sm:$0xff] %v2918
        %6948 = vst [vmem:[%s653 + $0x38] sm:$0xff] %v2919
        %6949 = vst [vmem:[%s653 + $0x40] sm:$0xff] %v2920
        %6950 = vst [vmem:[%s653 + $0x48] sm:$0xff] %v2921
        %6951 = vst [vmem:[%s653 + $0x50] sm:$0xff] %v2922
        %6952 = vst [vmem:[%s653 + $0x58] sm:$0xff] %v2923
        %6953 = vst [vmem:[%s653 + $0x60] sm:$0xff] %v2924
        %6954 = vst [vmem:[%s653 + $0x68] sm:$0xff] %v2925
        %6955 = vst [vmem:[%s653 + $0x70] sm:$0xff] %v2926
        %6956 = vst [vmem:[%s653 + $0x78] sm:$0xff] %v2927
        %6957 = vst [vmem:[%s653 + $0x80] sm:$0xff] %v2928
        %6958 = vst [vmem:[%s653 + $0x88] sm:$0xff] %v2929
        %6959 = vst [vmem:[%s653 + $0x90] sm:$0xff] %v2930
        %6960 = vst [vmem:[%s653 + $0x98] sm:$0xff] %v2931
        %6961 = vst [vmem:[%s653 + $0xa0] sm:$0xff] %v2932
        %6962 = vst [vmem:[%s653 + $0xa8] sm:$0xff] %v2933
        %6963 = vst [vmem:[%s653 + $0xb0] sm:$0xff] %v2934
        %6964 = vst [vmem:[%s653 + $0xb8] sm:$0xff] %v2935
        %6965 = vst [vmem:[%s653 + $0xc0] sm:$0xff] %v2936
        %6966 = vst [vmem:[%s653 + $0xc8] sm:$0xff] %v2937
        %6967 = vst [vmem:[%s653 + $0xd0] sm:$0xff] %v2938
        %6968 = vst [vmem:[%s653 + $0xd8] sm:$0xff] %v2939
        %6969 = vst [vmem:[%s653 + $0xe0] sm:$0xff] %v2940
        %6970 = vst [vmem:[%s653 + $0xe8] sm:$0xff] %v2941
        %6971 = vst [vmem:[%s653 + $0xf0] sm:$0xff] %v2942
        %6972 = vst [vmem:[%s653 + $0xf8] sm:$0xff] %v2943
        %s6973 = sand.u32 %s369, 1
        %s6974 = scalar_lea.sflag [#allocation4], %s6973
        %s6975 = sand.u32 %s369, 1
        %s6976 = smul.addr %s6975, 512
        %s6977 = scalar_lea.vmem [#allocation16], %s6976
        %s6978 = sand.u32 %s395, 1
        %s6979 = scalar_lea.sflag [#allocation18], %s6978
        %s6980 = sand.u32 %s395, 1
        %s6981 = smul.addr %s6980, 256
        %s6982 = scalar_lea.vmem [#allocation17], %s6981
        // Predicated region
        $region113: #{tpu_custom_call.1} parent=79 // pred_check
          %p6983 = pneg %p379
        $region114: #{tpu_custom_call.1} parent=79 // pred_check_branch
          %6985 = sbr.rel (%p6983) target = $region116
        $region115: #{tpu_custom_call.1} parent=79 // pred_region
          %s6986 = smul.u32 32, %s41
          %s6988 = ssub.s32 8192, 8192
          %6989 = vsyncadd %s6974, %s6988
          %s6990 = smul.addr %s6986, 2
          %s6991 = smul.addr %s6990, 128
          %s6992 = scalar_lea.hbm %s15, %s6991
          %s6993 = sshll.u32 %s6977, 4
          %s6994 = int_to_ptr.vmem [resolvable:$true] %s6993
          %6999 = dma.vmem_to_hbm [thread:$0]  %s6994, 8192, %s6992, %s6974, 256, 256, 16
        $region116: #{tpu_custom_call.1} parent=79 // pred_fallthru
          _
        // Predicated region
        $region117: #{tpu_custom_call.1} parent=79 // pred_check
          %p7000 = pneg %p405
        $region118: #{tpu_custom_call.1} parent=79 // pred_check_branch
          %7002 = sbr.rel (%p7000) target = $region120
        $region119: #{tpu_custom_call.1} parent=79 // pred_region
          %s7003 = smul.u32 32, %s41
          %s7005 = ssub.s32 4096, 4096
          %7006 = vsyncadd %s6979, %s7005
          %s7007 = smul.addr %s7003, 128
          %s7008 = scalar_lea.hbm %s16, %s7007
          %s7009 = sshll.u32 %s6982, 4
          %s7010 = int_to_ptr.vmem [resolvable:$true] %s7009
          %7015 = dma.vmem_to_hbm [thread:$0]  %s7010, 4096, %s7008, %s6979, 128, 128, 8
        $region120: #{tpu_custom_call.1} parent=79 // pred_fallthru
          _
      $region80: #{tpu_custom_call.1} parent=5 // pred_fallthru
        _
      %p7016 = scmp.le.s32.totalorder 2, %s36
      // Predicated region
      $region121: #{tpu_custom_call.1} parent=5 // pred_check
        %p7017 = pneg %p7016
      $region122: #{tpu_custom_call.1} parent=5 // pred_check_branch
        %7019 = sbr.rel (%p7017) target = $region124
      $region123: #{tpu_custom_call.1} parent=5 // pred_region
        %s7020 = ssub.s32 %s36, 2
        // Predicated region
        $region125: #{tpu_custom_call.1} parent=123 // pred_check
          %p7021 = pneg %p385
        $region126: #{tpu_custom_call.1} parent=123 // pred_check_branch
          %7023 = sbr.rel (%p7021) target = $region128
        $region127: #{tpu_custom_call.1} parent=123 // pred_region
          %s7024 = sand.u32 %s370, 1
          %s7025 = scalar_lea.sflag [#allocation4], %s7024
          %s7026 = sand.u32 %s370, 1
          %s7027 = smul.addr %s7026, 512
          %s7028 = scalar_lea.vmem [#allocation16], %s7027
          %7029 = dma.done %s7025, 8192
        $region128: #{tpu_custom_call.1} parent=123 // pred_fallthru
          _
        // Predicated region
        $region129: #{tpu_custom_call.1} parent=123 // pred_check
          %p7030 = pneg %p411
        $region130: #{tpu_custom_call.1} parent=123 // pred_check_branch
          %7032 = sbr.rel (%p7030) target = $region132
        $region131: #{tpu_custom_call.1} parent=123 // pred_region
          %s7033 = sand.u32 %s396, 1
          %s7034 = scalar_lea.sflag [#allocation18], %s7033
          %s7035 = sand.u32 %s396, 1
          %s7036 = smul.addr %s7035, 256
          %s7037 = scalar_lea.vmem [#allocation17], %s7036
          %7038 = dma.done %s7034, 4096
        $region132: #{tpu_custom_call.1} parent=123 // pred_fallthru
          _
      $region124: #{tpu_custom_call.1} parent=5 // pred_fallthru
        _
    $region6: #{tpu_custom_call.1} parent=1 // loop_footer
      %s40 = sadd.s32 1, %s36
    $region7: #{tpu_custom_call.1} parent=1 // loop_footer_branch
      %35 = sbr.rel target = $region3
    $region8: #{tpu_custom_call.1} parent=1 // loop_exit
      _
    %7039 = vsyncpa [#allocation3], 1
    %s7040 = scalar_lea.sflag [#allocation3], 1
    %7041 = vsyncpa %s7040, 1
    %7042 = vsyncpa [#allocation6], 1
    %7043 = vsyncpa [#allocation9], 1
    %7044 = vsyncpa [#allocation12], 1
    %7045 = vsyncpa [#allocation15], 1
    %7046 = vsyncpa [#allocation4], 1
    %s7047 = scalar_lea.sflag [#allocation4], 1
    %7048 = vsyncpa %s7047, 1
    %7049 = vsyncpa [#allocation18], 1
    %s7050 = scalar_lea.sflag [#allocation18], 1
    %7051 = vsyncpa %s7050, 1

</llo_original>
